<compile_context>
chip_gen: v5e
topology: v5e:2x2
jax: 0.10.0
libtpu: 0.0.40
codegen_flags: <defaults>
</compile_context>

<pallas_src>
import functools

import numpy as np

import jax
import jax.numpy as jnp
from jax.experimental import pallas as pl
from jax.experimental.pallas import tpu as pltpu


# ---------------------------------------------------------------------------
# Fused Pallas kernel: upsample + pad + concat + (conv3x3 + BN + ReLU) x 2
# ---------------------------------------------------------------------------
def _up_fused_kernel(x1_ref, x2_ref, awt_ref, ah_ref, w1_ref, s1_ref, b1_ref,
                     w2_ref, s2_ref, b2_ref, o_ref, xpad_ref, hpad_ref,
                     *, H, W, H1, W1):
    # x1_ref:   (1, C1, H1, W1)  low-res input (NCHW)
    # x2_ref:   (1, C2, H,  W)   skip connection (NCHW)
    # awt_ref:  (W1, W)          W-axis upsample+pad operator (transposed), f32
    # ah_ref:   (H,  H1)         H-axis upsample+pad operator, f32
    # w1_ref:   (9, Cmid, Cin)   conv1 weights, per-tap (ky*3+kx, cout, cin), bf16
    # s1/b1:    (Cmid, 1)        folded BN1 scale / shift, f32
    # w2_ref:   (9, Cout, Cmid)  conv2 weights, bf16
    # s2/b2:    (Cout, 1)        folded BN2 scale / shift, f32
    # o_ref:    (1, Cout, H*W)   channels-first output (lane-dense store)
    # xpad_ref: (Cin,  H+2, W+2) bf16 scratch — conv1 input with 1-px halo
    # hpad_ref: (Cmid, H+2, W+2) bf16 scratch — conv2 input with 1-px halo
    C1 = x1_ref.shape[1]
    C2 = x2_ref.shape[1]
    Cin = xpad_ref.shape[0]
    Cmid = hpad_ref.shape[0]
    Cout = o_ref.shape[1]
    cdt = xpad_ref.dtype

    # 1) Separable bilinear x2 upsample (align_corners=True) + F.pad:
    #    W pass = one small 2-D MXU matmul, H pass = one channel-batched
    #    matmul.  Interpolation arithmetic stays in f32.
    x1 = x1_ref[0]                                                # (C1, H1, W1)
    t = jnp.dot(x1.reshape(C1 * H1, W1), awt_ref[...],
                preferred_element_type=jnp.float32)               # (C1*H1, W)
    ah_b = jnp.broadcast_to(ah_ref[...], (C1, H, H1))
    x1_up = jax.lax.dot_general(                                  # (C1, H, W)
        ah_b, t.reshape(C1, H1, W),
        dimension_numbers=(((2,), (1,)), ((0,), (0,))),
        preferred_element_type=jnp.float32)

    # 2) Stage conv1 input in VMEM: torch.cat([x2, x1_up], dim=1) plus the
    #    conv's 1-px zero halo.  Only the halo is cleared — every step, so the
    #    kernel is correct with per-core scratch under megacore batch
    #    splitting — and the interior is fully overwritten.
    def clear_halo(ref, c, dt):
        ref[:, 0:1, :] = jnp.zeros((c, 1, W + 2), dt)
        ref[:, H + 1:H + 2, :] = jnp.zeros((c, 1, W + 2), dt)
        ref[:, :, 0:1] = jnp.zeros((c, H + 2, 1), dt)
        ref[:, :, W + 1:W + 2] = jnp.zeros((c, H + 2, 1), dt)

    clear_halo(xpad_ref, Cin, cdt)
    xpad_ref[0:C2, 1:H + 1, 1:W + 1] = x2_ref[0].astype(cdt)
    xpad_ref[C2:Cin, 1:H + 1, 1:W + 1] = x1_up.astype(cdt)

    # 3) 3x3 conv = 9 per-tap MXU matmuls (bf16 operands, f32 accumulation).
    def conv3x3(src_ref, w_ref, c_in, c_out):
        acc = jnp.zeros((c_out, H * W), jnp.float32)
        for k in range(9):
            ky, kx = divmod(k, 3)
            win = src_ref[:, ky:ky + H, kx:kx + W].reshape(c_in, H * W)
            acc = acc + jnp.dot(w_ref[k], win,
                                preferred_element_type=jnp.float32)
        return acc

    h = conv3x3(xpad_ref, w1_ref, Cin, Cmid)                      # (Cmid, H*W)
    h = jnp.maximum(h * s1_ref[...] + b1_ref[...], 0.0)           # BN1 + ReLU

    # 4) conv2 consumes conv1's output directly from VMEM.
    clear_halo(hpad_ref, Cmid, cdt)
    hpad_ref[:, 1:H + 1, 1:W + 1] = h.reshape(Cmid, H, W).astype(cdt)
    y = conv3x3(hpad_ref, w2_ref, Cmid, Cout)                     # (Cout, H*W)
    y = jnp.maximum(y * s2_ref[...] + b2_ref[...], 0.0)           # BN2 + ReLU

    # 5) Channels-first, lane-dense store — already NCHW (flat HW), no transpose.
    o_ref[...] = y[None]


# ---------------------------------------------------------------------------
# Trace-time constants: per-axis bilinear x2 upsample + F.pad operators
# ---------------------------------------------------------------------------
def _upsample_pad_axis_matrix(n_in, n_total):
    """(n_total, n_in) one-axis operator: x2 bilinear upsample
    (align_corners=True) followed by Up.forward's centering F.pad.
    Pure numpy, evaluated at trace time -> compile-time constant."""
    n_up = 2 * n_in
    off = (n_total - n_up) // 2               # F.pad left/top amount
    src = np.arange(n_up) * (n_in - 1) / (n_up - 1)
    i0 = np.floor(src).astype(np.int64)
    i1 = np.minimum(i0 + 1, n_in - 1)
    frac = src - i0
    a = np.zeros((n_total, n_in), np.float64)
    for o in range(n_up):
        a[off + o, i0[o]] += 1.0 - frac[o]
        a[off + o, i1[o]] += frac[o]
    return a.astype(np.float32)


def _build_upsample_pad_matrix(h_in, w_in, h_out, w_out):
    """Dense (h_out*w_out, h_in*w_in) operator — used only by the references
    and the numpy check; the kernel uses the separable factors."""
    return np.kron(_upsample_pad_axis_matrix(h_in, h_out),
                   _upsample_pad_axis_matrix(w_in, w_out)).astype(np.float32)


# ---------------------------------------------------------------------------
# Wrapper
# ---------------------------------------------------------------------------
def up_forward(x1_nchw, x2_nchw, prep):
    """Forward pass of `Up` (bilinear=True). Inputs/outputs are NCHW."""
    N, C1, H1, W1 = x1_nchw.shape
    _, C2, H2, W2 = x2_nchw.shape
    Cin = C1 + C2
    Cmid = prep["w1"].shape[1]
    Cout = prep["w2"].shape[1]
    assert H2 >= 2 * H1 and W2 >= 2 * W1

    # Separable upsample+pad factors: numpy at trace time, tiny VMEM footprint.
    ah = jnp.asarray(_upsample_pad_axis_matrix(H1, H2))           # (H2, H1)
    awt = jnp.asarray(_upsample_pad_axis_matrix(W1, W2).T)        # (W1, W2)

    kernel = functools.partial(_up_fused_kernel, H=H2, W=W2, H1=H1, W1=W1)
    out_flat = pl.pallas_call(
        kernel,
        out_shape=jax.ShapeDtypeStruct((N, Cout, H2 * W2), jnp.float32),
        grid=(N,),
        in_specs=[
            pl.BlockSpec((1, C1, H1, W1), lambda n: (n, 0, 0, 0)),
            pl.BlockSpec((1, C2, H2, W2), lambda n: (n, 0, 0, 0)),
            pl.BlockSpec((W1, W2), lambda n: (0, 0)),
            pl.BlockSpec((H2, H1), lambda n: (0, 0)),
            pl.BlockSpec((9, Cmid, Cin), lambda n: (0, 0, 0)),
            pl.BlockSpec((Cmid, 1), lambda n: (0, 0)),
            pl.BlockSpec((Cmid, 1), lambda n: (0, 0)),
            pl.BlockSpec((9, Cout, Cmid), lambda n: (0, 0, 0)),
            pl.BlockSpec((Cout, 1), lambda n: (0, 0)),
            pl.BlockSpec((Cout, 1), lambda n: (0, 0)),
        ],
        out_specs=pl.BlockSpec((1, Cout, H2 * W2), lambda n: (n, 0, 0)),
        scratch_shapes=[
            pltpu.VMEM((Cin, H2 + 2, W2 + 2), jnp.bfloat16),    # conv1 input
            pltpu.VMEM((Cmid, H2 + 2, W2 + 2), jnp.bfloat16),   # conv2 input
        ],
        compiler_params=pltpu.CompilerParams(
            dimension_semantics=("parallel",),     # one image per TC on v7x
            vmem_limit_bytes=32 * 1024 * 1024),
    )(x1_nchw, x2_nchw, awt, ah,
      prep["w1"], prep["scale1"], prep["shift1"],
      prep["w2"], prep["scale2"], prep["shift2"])

    return out_flat.reshape(N, Cout, H2, W2)


# ---------------------------------------------------------------------------
# Parameters (deterministic init) + one-time re-layout for the kernel
# ---------------------------------------------------------------------------
def init_params(key, in_channels, out_channels):
    mid = in_channels // 2
    ks = jax.random.split(key, 10)
    eps = 1e-5

    def bn_fold(kg, kb, km, kv, c):
        gamma = 0.5 + jax.random.uniform(kg, (c,), jnp.float32)
        beta = 0.1 * jax.random.normal(kb, (c,), jnp.float32)
        mean = 0.1 * jax.random.normal(km, (c,), jnp.float32)
        var = 0.5 + jax.random.uniform(kv, (c,), jnp.float32)
        scale = gamma / jnp.sqrt(var + eps)
        shift = beta - mean * scale
        return scale, shift

    w1 = 0.1 * jax.random.normal(ks[0], (mid, in_channels, 3, 3), jnp.float32)
    s1, b1 = bn_fold(ks[1], ks[2], ks[3], ks[4], mid)
    w2 = 0.1 * jax.random.normal(ks[5], (out_channels, mid, 3, 3), jnp.float32)
    s2, b2 = bn_fold(ks[6], ks[7], ks[8], ks[9], out_channels)
    return {"w1": w1, "scale1": s1, "shift1": b1,
            "w2": w2, "scale2": s2, "shift2": b2}


def prepare_params(params):
    """One-time weight/BN re-layout (hoisted out of jit): conv weights ->
    per-tap (9, Cout, Cin) bf16; BN scale/shift -> (C, 1) f32 columns."""
    def conv_taps(w_oihw):
        co, ci, kh, kw = w_oihw.shape
        return (jnp.transpose(w_oihw, (2, 3, 0, 1))
                .reshape(kh * kw, co, ci).astype(jnp.bfloat16))

    def col(v):
        return v.reshape(-1, 1).astype(jnp.float32)

    return {"w1": conv_taps(params["w1"]),
            "scale1": col(params["scale1"]), "shift1": col(params["shift1"]),
            "w2": conv_taps(params["w2"]),
            "scale2": col(params["scale2"]), "shift2": col(params["shift2"])}


# ---------------------------------------------------------------------------
# References for correctness checks
# ---------------------------------------------------------------------------
def _upsample_lerp_np(x_nchw):
    """PyTorch-style bilinear x2 upsample, align_corners=True (gather+lerp)."""
    n, c, h, w = x_nchw.shape
    ho, wo = 2 * h, 2 * w
    ys = np.arange(ho) * (h - 1) / (ho - 1)
    xs = np.arange(wo) * (w - 1) / (wo - 1)
    y0 = np.floor(ys).astype(np.int64)
    x0 = np.floor(xs).astype(np.int64)
    y1 = np.minimum(y0 + 1, h - 1)
    x1 = np.minimum(x0 + 1, w - 1)
    wy = (ys - y0)[None, None, :, None]
    wx = (xs - x0)[None, None, None, :]
    top, bot = x_nchw[:, :, y0], x_nchw[:, :, y1]
    tl, tr = top[:, :, :, x0], top[:, :, :, x1]
    bl, br = bot[:, :, :, x0], bot[:, :, :, x1]
    return (tl * (1 - wy) * (1 - wx) + tr * (1 - wy) * wx
            + bl * wy * (1 - wx) + br * wy * wx)


def up_forward_ref(x1, x2, params, conv_dtype=jnp.float32):
    """Pure-JAX/XLA reference.  conv_dtype=f32 reproduces the exact PyTorch
    module semantics; conv_dtype=bf16 mirrors the kernel's mixed precision."""
    N, C1, H1, W1 = x1.shape
    _, C2, H2, W2 = x2.shape
    u = jnp.asarray(_build_upsample_pad_matrix(H1, W1, H2, W2))
    x1_up = jnp.einsum("pq,ncq->ncp", u,
                       x1.reshape(N, C1, H1 * W1)).reshape(N, C1, H2, W2)
    x = jnp.concatenate([x2, x1_up], axis=1)

    def conv_bn_relu(z, w_oihw, scale, shift):
        y = jax.lax.conv_general_dilated(
            z.astype(conv_dtype), w_oihw.astype(conv_dtype),
            window_strides=(1, 1), padding="SAME",
            dimension_numbers=("NCHW", "OIHW", "NCHW"),
            preferred_element_type=jnp.float32)
        return jnp.maximum(y * scale[None, :, None, None]
                           + shift[None, :, None, None], 0.0)

    y = conv_bn_relu(x, params["w1"], params["scale1"], params["shift1"])
    y = conv_bn_relu(y, params["w2"], params["scale2"], params["shift2"])
    return y


if __name__ == "__main__":
    in_channels, out_channels = 8, 4
    N, H2, W2 = 2, 16, 16          # x2 spatial size; x1 is half resolution
    H1, W1 = H2 // 2, W2 // 2

    key = jax.random.PRNGKey(0)
    k_p, k1, k2 = jax.random.split(key, 3)
    params = init_params(k_p, in_channels, out_channels)
    prep = prepare_params(params)   # one-time weight/BN re-layout (hoisted)

    # x1: low-res feature map, x2: skip connection (channels sum to in_channels)
    x1 = jax.random.normal(k1, (N, in_channels // 2, H1, W1), jnp.float32)
    x2 = jax.random.normal(k2, (N, in_channels // 2, H2, W2), jnp.float32)

    # Check the separable (kron-factored) upsample operator reproduces
    # PyTorch's gather/lerp bilinear (align_corners=True) + F.pad exactly.
    x1_np = np.asarray(x1).astype(np.float64)
    u_np = _build_upsample_pad_matrix(H1, W1, H2, W2).astype(np.float64)
    up_mat = (x1_np.reshape(N, -1, H1 * W1) @ u_np.T).reshape(N, -1, H2, W2)
    off_y, off_x = (H2 - 2 * H1) // 2, (W2 - 2 * W1) // 2
    lerp = _upsample_lerp_np(x1_np)
    assert np.allclose(
        up_mat[:, :, off_y:off_y + 2 * H1, off_x:off_x + 2 * W1],
        lerp, atol=1e-6)

    out = jax.jit(up_forward)(x1, x2, prep)
    out = jax.block_until_ready(out)
    assert out.shape == (N, out_channels, H2, W2), out.shape

    # Tight check vs a reference that mirrors the kernel's bf16 conv operands.
    ref_bf16 = up_forward_ref(x1, x2, params, conv_dtype=jnp.bfloat16)
    err_b = float(jnp.max(jnp.abs(out - ref_bf16)))
    assert jnp.allclose(out, ref_bf16, atol=5e-3, rtol=5e-3), err_b

    # Loose check vs exact f32 module semantics (bf16 operand rounding only).
    ref_f32 = up_forward_ref(x1, x2, params, conv_dtype=jnp.float32)
    err_f = float(jnp.max(jnp.abs(out - ref_f32)))
    assert jnp.allclose(out, ref_f32, atol=5e-2, rtol=5e-2), err_f

    print("KERNEL_OK")
</pallas_src>

<mosaic_0001>
module attributes {stable_mosaic.version = 11 : i64} {
  func.func @_up_fused_kernel(%arg0: i32, %arg1: memref<1x4x8x8xf32, #tpu.memory_space<vmem>>, %arg2: memref<1x4x16x16xf32, #tpu.memory_space<vmem>>, %arg3: memref<8x16xf32, #tpu.memory_space<vmem>>, %arg4: memref<16x8xf32, #tpu.memory_space<vmem>>, %arg5: memref<9x4x8xbf16, #tpu.memory_space<vmem>>, %arg6: memref<4x1xf32, #tpu.memory_space<vmem>>, %arg7: memref<4x1xf32, #tpu.memory_space<vmem>>, %arg8: memref<9x4x4xbf16, #tpu.memory_space<vmem>>, %arg9: memref<4x1xf32, #tpu.memory_space<vmem>>, %arg10: memref<4x1xf32, #tpu.memory_space<vmem>>, %arg11: memref<1x4x256xf32, #tpu.memory_space<vmem>>, %arg12: memref<8x18x18xbf16, #tpu.memory_space<vmem>>, %arg13: memref<4x18x18xbf16, #tpu.memory_space<vmem>>) attributes {dimension_semantics = [#tpu.dimension_semantics<parallel>], iteration_bounds = array<i64: 2>, scalar_prefetch = 0 : i64, scratch_operands = 2 : i64, tpu.core_type = #tpu.core_type<tc>, window_params = [{transform_indices = @transform_0, window_bounds = array<i64: 1, 4, 8, 8>}, {transform_indices = @transform_1, window_bounds = array<i64: 1, 4, 16, 16>}, {pipeline_mode = #tpu.pipeline_mode<synchronous>, transform_indices = @transform_2, window_bounds = array<i64: 8, 16>}, {pipeline_mode = #tpu.pipeline_mode<synchronous>, transform_indices = @transform_3, window_bounds = array<i64: 16, 8>}, {pipeline_mode = #tpu.pipeline_mode<synchronous>, transform_indices = @transform_4, window_bounds = array<i64: 9, 4, 8>}, {pipeline_mode = #tpu.pipeline_mode<synchronous>, transform_indices = @transform_5, window_bounds = array<i64: 4, 1>}, {pipeline_mode = #tpu.pipeline_mode<synchronous>, transform_indices = @transform_6, window_bounds = array<i64: 4, 1>}, {pipeline_mode = #tpu.pipeline_mode<synchronous>, transform_indices = @transform_7, window_bounds = array<i64: 9, 4, 4>}, {pipeline_mode = #tpu.pipeline_mode<synchronous>, transform_indices = @transform_8, window_bounds = array<i64: 4, 1>}, {pipeline_mode = #tpu.pipeline_mode<synchronous>, transform_indices = @transform_9, window_bounds = array<i64: 4, 1>}, {transform_indices = @transform_10, window_bounds = array<i64: 1, 4, 256>}]} {
    %c0 = arith.constant 0 : index
    %c0_0 = arith.constant 0 : index
    %c0_1 = arith.constant 0 : index
    %c0_2 = arith.constant 0 : index
    %0 = vector.load %arg1[%c0, %c0_0, %c0_1, %c0_2] : memref<1x4x8x8xf32, #tpu.memory_space<vmem>>, vector<1x4x8x8xf32>
    %1 = vector.shape_cast %0 : vector<1x4x8x8xf32> to vector<4x8x8xf32>
    %2 = vector.shape_cast %1 : vector<4x8x8xf32> to vector<32x8xf32>
    %c0_3 = arith.constant 0 : index
    %c0_4 = arith.constant 0 : index
    %3 = vector.load %arg3[%c0_3, %c0_4] : memref<8x16xf32, #tpu.memory_space<vmem>>, vector<8x16xf32>
    %cst = arith.constant dense<0.000000e+00> : vector<32x16xf32>
    %4 = tpu.matmul %2, %3, %cst {dimension_numbers = #tpu.dot_dimension_numbers<[1], [0], [0], [1], [0, 0, 1, 1], [], []>} : vector<32x8xf32>, vector<8x16xf32>, vector<32x16xf32> -> vector<32x16xf32>
    %c0_5 = arith.constant 0 : index
    %c0_6 = arith.constant 0 : index
    %5 = vector.load %arg4[%c0_5, %c0_6] : memref<16x8xf32, #tpu.memory_space<vmem>>, vector<16x8xf32>
    %6 = vector.shape_cast %5 : vector<16x8xf32> to vector<1x16x8xf32>
    %7 = vector.broadcast %6 : vector<1x16x8xf32> to vector<4x16x8xf32>
    %8 = vector.shape_cast %4 : vector<32x16xf32> to vector<4x8x16xf32>
    %cst_7 = arith.constant dense<0.000000e+00> : vector<4x16x16xf32>
    %9 = tpu.matmul %7, %8, %cst_7 {dimension_numbers = #tpu.dot_dimension_numbers<[2], [1], [1], [2], [0, 0, 0, 1, 1, 2], [0], [0]>} : vector<4x16x8xf32>, vector<4x8x16xf32>, vector<4x16x16xf32> -> vector<4x16x16xf32>
    %cst_8 = arith.constant 0.000000e+00 : bf16
    %10 = vector.broadcast %cst_8 : bf16 to vector<8x1x18xbf16>
    %c0_9 = arith.constant 0 : index
    %c0_10 = arith.constant 0 : index
    %c0_11 = arith.constant 0 : index
    %11 = vector.load %arg12[%c0_9, %c0_10, %c0_11] : memref<8x18x18xbf16, #tpu.memory_space<vmem>>, vector<8x1x18xbf16>
    tpu.vector_store %arg12[%c0_9, %c0_10, %c0_11], %10 {strides = array<i32>} : memref<8x18x18xbf16, #tpu.memory_space<vmem>>, vector<8x1x18xbf16>,
    %cst_12 = arith.constant 0.000000e+00 : bf16
    %12 = vector.broadcast %cst_12 : bf16 to vector<8x1x18xbf16>
    %c0_13 = arith.constant 0 : index
    %c17 = arith.constant 17 : index
    %c0_14 = arith.constant 0 : index
    %13 = vector.load %arg12[%c0_13, %c17, %c0_14] : memref<8x18x18xbf16, #tpu.memory_space<vmem>>, vector<8x1x18xbf16>
    tpu.vector_store %arg12[%c0_13, %c17, %c0_14], %12 {strides = array<i32>} : memref<8x18x18xbf16, #tpu.memory_space<vmem>>, vector<8x1x18xbf16>,
    %cst_15 = arith.constant 0.000000e+00 : bf16
    %14 = vector.broadcast %cst_15 : bf16 to vector<8x18x1xbf16>
    %c0_16 = arith.constant 0 : index
    %c0_17 = arith.constant 0 : index
    %c0_18 = arith.constant 0 : index
    %15 = vector.load %arg12[%c0_16, %c0_17, %c0_18] : memref<8x18x18xbf16, #tpu.memory_space<vmem>>, vector<8x18x1xbf16>
    tpu.vector_store %arg12[%c0_16, %c0_17, %c0_18], %14 {strides = array<i32>} : memref<8x18x18xbf16, #tpu.memory_space<vmem>>, vector<8x18x1xbf16>,
    %cst_19 = arith.constant 0.000000e+00 : bf16
    %16 = vector.broadcast %cst_19 : bf16 to vector<8x18x1xbf16>
    %c0_20 = arith.constant 0 : index
    %c0_21 = arith.constant 0 : index
    %c17_22 = arith.constant 17 : index
    %17 = vector.load %arg12[%c0_20, %c0_21, %c17_22] : memref<8x18x18xbf16, #tpu.memory_space<vmem>>, vector<8x18x1xbf16>
    tpu.vector_store %arg12[%c0_20, %c0_21, %c17_22], %16 {strides = array<i32>} : memref<8x18x18xbf16, #tpu.memory_space<vmem>>, vector<8x18x1xbf16>,
    %c0_23 = arith.constant 0 : index
    %c0_24 = arith.constant 0 : index
    %c0_25 = arith.constant 0 : index
    %c0_26 = arith.constant 0 : index
    %18 = vector.load %arg2[%c0_23, %c0_24, %c0_25, %c0_26] : memref<1x4x16x16xf32, #tpu.memory_space<vmem>>, vector<1x4x16x16xf32>
    %19 = vector.shape_cast %18 : vector<1x4x16x16xf32> to vector<4x16x16xf32>
    %20 = arith.truncf %19 : vector<4x16x16xf32> to vector<4x16x16xbf16>
    %c0_27 = arith.constant 0 : index
    %c1 = arith.constant 1 : index
    %c1_28 = arith.constant 1 : index
    %21 = vector.load %arg12[%c0_27, %c1, %c1_28] : memref<8x18x18xbf16, #tpu.memory_space<vmem>>, vector<4x16x16xbf16>
    tpu.vector_store %arg12[%c0_27, %c1, %c1_28], %20 {strides = array<i32>} : memref<8x18x18xbf16, #tpu.memory_space<vmem>>, vector<4x16x16xbf16>,
    %22 = arith.truncf %9 : vector<4x16x16xf32> to vector<4x16x16xbf16>
    %c4 = arith.constant 4 : index
    %c1_29 = arith.constant 1 : index
    %c1_30 = arith.constant 1 : index
    %23 = vector.load %arg12[%c4, %c1_29, %c1_30] : memref<8x18x18xbf16, #tpu.memory_space<vmem>>, vector<4x16x16xbf16>
    tpu.vector_store %arg12[%c4, %c1_29, %c1_30], %22 {strides = array<i32>} : memref<8x18x18xbf16, #tpu.memory_space<vmem>>, vector<4x16x16xbf16>,
    %cst_31 = arith.constant 0.000000e+00 : f32
    %24 = vector.broadcast %cst_31 : f32 to vector<4x256xf32>
    %c0_32 = arith.constant 0 : index
    %c0_33 = arith.constant 0 : index
    %c0_34 = arith.constant 0 : index
    %25 = vector.load %arg12[%c0_32, %c0_33, %c0_34] : memref<8x18x18xbf16, #tpu.memory_space<vmem>>, vector<8x16x16xbf16>
    %26 = vector.shape_cast %25 : vector<8x16x16xbf16> to vector<8x256xbf16>
    %c0_35 = arith.constant 0 : index
    %c0_36 = arith.constant 0 : index
    %c0_37 = arith.constant 0 : index
    %27 = vector.load %arg5[%c0_35, %c0_36, %c0_37] : memref<9x4x8xbf16, #tpu.memory_space<vmem>>, vector<1x4x8xbf16>
    %28 = vector.shape_cast %27 : vector<1x4x8xbf16> to vector<4x8xbf16>
    %cst_38 = arith.constant dense<0.000000e+00> : vector<4x256xf32>
    %29 = tpu.matmul %28, %26, %cst_38 {dimension_numbers = #tpu.dot_dimension_numbers<[1], [0], [0], [1], [0, 0, 1, 1], [], []>} : vector<4x8xbf16>, vector<8x256xbf16>, vector<4x256xf32> -> vector<4x256xf32>
    %30 = arith.addf %24, %29 : vector<4x256xf32>
    %c0_39 = arith.constant 0 : index
    %c0_40 = arith.constant 0 : index
    %c1_41 = arith.constant 1 : index
    %31 = vector.load %arg12[%c0_39, %c0_40, %c1_41] : memref<8x18x18xbf16, #tpu.memory_space<vmem>>, vector<8x16x16xbf16>
    %32 = vector.shape_cast %31 : vector<8x16x16xbf16> to vector<8x256xbf16>
    %c1_42 = arith.constant 1 : index
    %c0_43 = arith.constant 0 : index
    %c0_44 = arith.constant 0 : index
    %33 = vector.load %arg5[%c1_42, %c0_43, %c0_44] : memref<9x4x8xbf16, #tpu.memory_space<vmem>>, vector<1x4x8xbf16>
    %34 = vector.shape_cast %33 : vector<1x4x8xbf16> to vector<4x8xbf16>
    %cst_45 = arith.constant dense<0.000000e+00> : vector<4x256xf32>
    %35 = tpu.matmul %34, %32, %cst_45 {dimension_numbers = #tpu.dot_dimension_numbers<[1], [0], [0], [1], [0, 0, 1, 1], [], []>} : vector<4x8xbf16>, vector<8x256xbf16>, vector<4x256xf32> -> vector<4x256xf32>
    %36 = arith.addf %30, %35 : vector<4x256xf32>
    %c0_46 = arith.constant 0 : index
    %c0_47 = arith.constant 0 : index
    %c2 = arith.constant 2 : index
    %37 = vector.load %arg12[%c0_46, %c0_47, %c2] : memref<8x18x18xbf16, #tpu.memory_space<vmem>>, vector<8x16x16xbf16>
    %38 = vector.shape_cast %37 : vector<8x16x16xbf16> to vector<8x256xbf16>
    %c2_48 = arith.constant 2 : index
    %c0_49 = arith.constant 0 : index
    %c0_50 = arith.constant 0 : index
    %39 = vector.load %arg5[%c2_48, %c0_49, %c0_50] : memref<9x4x8xbf16, #tpu.memory_space<vmem>>, vector<1x4x8xbf16>
    %40 = vector.shape_cast %39 : vector<1x4x8xbf16> to vector<4x8xbf16>
    %cst_51 = arith.constant dense<0.000000e+00> : vector<4x256xf32>
    %41 = tpu.matmul %40, %38, %cst_51 {dimension_numbers = #tpu.dot_dimension_numbers<[1], [0], [0], [1], [0, 0, 1, 1], [], []>} : vector<4x8xbf16>, vector<8x256xbf16>, vector<4x256xf32> -> vector<4x256xf32>
    %42 = arith.addf %36, %41 : vector<4x256xf32>
    %c0_52 = arith.constant 0 : index
    %c1_53 = arith.constant 1 : index
    %c0_54 = arith.constant 0 : index
    %43 = vector.load %arg12[%c0_52, %c1_53, %c0_54] : memref<8x18x18xbf16, #tpu.memory_space<vmem>>, vector<8x16x16xbf16>
    %44 = vector.shape_cast %43 : vector<8x16x16xbf16> to vector<8x256xbf16>
    %c3 = arith.constant 3 : index
    %c0_55 = arith.constant 0 : index
    %c0_56 = arith.constant 0 : index
    %45 = vector.load %arg5[%c3, %c0_55, %c0_56] : memref<9x4x8xbf16, #tpu.memory_space<vmem>>, vector<1x4x8xbf16>
    %46 = vector.shape_cast %45 : vector<1x4x8xbf16> to vector<4x8xbf16>
    %cst_57 = arith.constant dense<0.000000e+00> : vector<4x256xf32>
    %47 = tpu.matmul %46, %44, %cst_57 {dimension_numbers = #tpu.dot_dimension_numbers<[1], [0], [0], [1], [0, 0, 1, 1], [], []>} : vector<4x8xbf16>, vector<8x256xbf16>, vector<4x256xf32> -> vector<4x256xf32>
    %48 = arith.addf %42, %47 : vector<4x256xf32>
    %c0_58 = arith.constant 0 : index
    %c1_59 = arith.constant 1 : index
    %c1_60 = arith.constant 1 : index
    %49 = vector.load %arg12[%c0_58, %c1_59, %c1_60] : memref<8x18x18xbf16, #tpu.memory_space<vmem>>, vector<8x16x16xbf16>
    %50 = vector.shape_cast %49 : vector<8x16x16xbf16> to vector<8x256xbf16>
    %c4_61 = arith.constant 4 : index
    %c0_62 = arith.constant 0 : index
    %c0_63 = arith.constant 0 : index
    %51 = vector.load %arg5[%c4_61, %c0_62, %c0_63] : memref<9x4x8xbf16, #tpu.memory_space<vmem>>, vector<1x4x8xbf16>
    %52 = vector.shape_cast %51 : vector<1x4x8xbf16> to vector<4x8xbf16>
    %cst_64 = arith.constant dense<0.000000e+00> : vector<4x256xf32>
    %53 = tpu.matmul %52, %50, %cst_64 {dimension_numbers = #tpu.dot_dimension_numbers<[1], [0], [0], [1], [0, 0, 1, 1], [], []>} : vector<4x8xbf16>, vector<8x256xbf16>, vector<4x256xf32> -> vector<4x256xf32>
    %54 = arith.addf %48, %53 : vector<4x256xf32>
    %c0_65 = arith.constant 0 : index
    %c1_66 = arith.constant 1 : index
    %c2_67 = arith.constant 2 : index
    %55 = vector.load %arg12[%c0_65, %c1_66, %c2_67] : memref<8x18x18xbf16, #tpu.memory_space<vmem>>, vector<8x16x16xbf16>
    %56 = vector.shape_cast %55 : vector<8x16x16xbf16> to vector<8x256xbf16>
    %c5 = arith.constant 5 : index
    %c0_68 = arith.constant 0 : index
    %c0_69 = arith.constant 0 : index
    %57 = vector.load %arg5[%c5, %c0_68, %c0_69] : memref<9x4x8xbf16, #tpu.memory_space<vmem>>, vector<1x4x8xbf16>
    %58 = vector.shape_cast %57 : vector<1x4x8xbf16> to vector<4x8xbf16>
    %cst_70 = arith.constant dense<0.000000e+00> : vector<4x256xf32>
    %59 = tpu.matmul %58, %56, %cst_70 {dimension_numbers = #tpu.dot_dimension_numbers<[1], [0], [0], [1], [0, 0, 1, 1], [], []>} : vector<4x8xbf16>, vector<8x256xbf16>, vector<4x256xf32> -> vector<4x256xf32>
    %60 = arith.addf %54, %59 : vector<4x256xf32>
    %c0_71 = arith.constant 0 : index
    %c2_72 = arith.constant 2 : index
    %c0_73 = arith.constant 0 : index
    %61 = vector.load %arg12[%c0_71, %c2_72, %c0_73] : memref<8x18x18xbf16, #tpu.memory_space<vmem>>, vector<8x16x16xbf16>
    %62 = vector.shape_cast %61 : vector<8x16x16xbf16> to vector<8x256xbf16>
    %c6 = arith.constant 6 : index
    %c0_74 = arith.constant 0 : index
    %c0_75 = arith.constant 0 : index
    %63 = vector.load %arg5[%c6, %c0_74, %c0_75] : memref<9x4x8xbf16, #tpu.memory_space<vmem>>, vector<1x4x8xbf16>
    %64 = vector.shape_cast %63 : vector<1x4x8xbf16> to vector<4x8xbf16>
    %cst_76 = arith.constant dense<0.000000e+00> : vector<4x256xf32>
    %65 = tpu.matmul %64, %62, %cst_76 {dimension_numbers = #tpu.dot_dimension_numbers<[1], [0], [0], [1], [0, 0, 1, 1], [], []>} : vector<4x8xbf16>, vector<8x256xbf16>, vector<4x256xf32> -> vector<4x256xf32>
    %66 = arith.addf %60, %65 : vector<4x256xf32>
    %c0_77 = arith.constant 0 : index
    %c2_78 = arith.constant 2 : index
    %c1_79 = arith.constant 1 : index
    %67 = vector.load %arg12[%c0_77, %c2_78, %c1_79] : memref<8x18x18xbf16, #tpu.memory_space<vmem>>, vector<8x16x16xbf16>
    %68 = vector.shape_cast %67 : vector<8x16x16xbf16> to vector<8x256xbf16>
    %c7 = arith.constant 7 : index
    %c0_80 = arith.constant 0 : index
    %c0_81 = arith.constant 0 : index
    %69 = vector.load %arg5[%c7, %c0_80, %c0_81] : memref<9x4x8xbf16, #tpu.memory_space<vmem>>, vector<1x4x8xbf16>
    %70 = vector.shape_cast %69 : vector<1x4x8xbf16> to vector<4x8xbf16>
    %cst_82 = arith.constant dense<0.000000e+00> : vector<4x256xf32>
    %71 = tpu.matmul %70, %68, %cst_82 {dimension_numbers = #tpu.dot_dimension_numbers<[1], [0], [0], [1], [0, 0, 1, 1], [], []>} : vector<4x8xbf16>, vector<8x256xbf16>, vector<4x256xf32> -> vector<4x256xf32>
    %72 = arith.addf %66, %71 : vector<4x256xf32>
    %c0_83 = arith.constant 0 : index
    %c2_84 = arith.constant 2 : index
    %c2_85 = arith.constant 2 : index
    %73 = vector.load %arg12[%c0_83, %c2_84, %c2_85] : memref<8x18x18xbf16, #tpu.memory_space<vmem>>, vector<8x16x16xbf16>
    %74 = vector.shape_cast %73 : vector<8x16x16xbf16> to vector<8x256xbf16>
    %c8 = arith.constant 8 : index
    %c0_86 = arith.constant 0 : index
    %c0_87 = arith.constant 0 : index
    %75 = vector.load %arg5[%c8, %c0_86, %c0_87] : memref<9x4x8xbf16, #tpu.memory_space<vmem>>, vector<1x4x8xbf16>
    %76 = vector.shape_cast %75 : vector<1x4x8xbf16> to vector<4x8xbf16>
    %cst_88 = arith.constant dense<0.000000e+00> : vector<4x256xf32>
    %77 = tpu.matmul %76, %74, %cst_88 {dimension_numbers = #tpu.dot_dimension_numbers<[1], [0], [0], [1], [0, 0, 1, 1], [], []>} : vector<4x8xbf16>, vector<8x256xbf16>, vector<4x256xf32> -> vector<4x256xf32>
    %78 = arith.addf %72, %77 : vector<4x256xf32>
    %c0_89 = arith.constant 0 : index
    %c0_90 = arith.constant 0 : index
    %79 = vector.load %arg6[%c0_89, %c0_90] : memref<4x1xf32, #tpu.memory_space<vmem>>, vector<4x1xf32>
    %80 = vector.broadcast %79 : vector<4x1xf32> to vector<4x256xf32>
    %81 = arith.mulf %78, %80 : vector<4x256xf32>
    %c0_91 = arith.constant 0 : index
    %c0_92 = arith.constant 0 : index
    %82 = vector.load %arg7[%c0_91, %c0_92] : memref<4x1xf32, #tpu.memory_space<vmem>>, vector<4x1xf32>
    %83 = vector.broadcast %82 : vector<4x1xf32> to vector<4x256xf32>
    %84 = arith.addf %81, %83 : vector<4x256xf32>
    %cst_93 = arith.constant 0.000000e+00 : f32
    %85 = vector.broadcast %cst_93 : f32 to vector<4x256xf32>
    %86 = arith.maximumf %84, %85 : vector<4x256xf32>
    %cst_94 = arith.constant 0.000000e+00 : bf16
    %87 = vector.broadcast %cst_94 : bf16 to vector<4x1x18xbf16>
    %c0_95 = arith.constant 0 : index
    %c0_96 = arith.constant 0 : index
    %c0_97 = arith.constant 0 : index
    %88 = vector.load %arg13[%c0_95, %c0_96, %c0_97] : memref<4x18x18xbf16, #tpu.memory_space<vmem>>, vector<4x1x18xbf16>
    tpu.vector_store %arg13[%c0_95, %c0_96, %c0_97], %87 {strides = array<i32>} : memref<4x18x18xbf16, #tpu.memory_space<vmem>>, vector<4x1x18xbf16>,
    %cst_98 = arith.constant 0.000000e+00 : bf16
    %89 = vector.broadcast %cst_98 : bf16 to vector<4x1x18xbf16>
    %c0_99 = arith.constant 0 : index
    %c17_100 = arith.constant 17 : index
    %c0_101 = arith.constant 0 : index
    %90 = vector.load %arg13[%c0_99, %c17_100, %c0_101] : memref<4x18x18xbf16, #tpu.memory_space<vmem>>, vector<4x1x18xbf16>
    tpu.vector_store %arg13[%c0_99, %c17_100, %c0_101], %89 {strides = array<i32>} : memref<4x18x18xbf16, #tpu.memory_space<vmem>>, vector<4x1x18xbf16>,
    %cst_102 = arith.constant 0.000000e+00 : bf16
    %91 = vector.broadcast %cst_102 : bf16 to vector<4x18x1xbf16>
    %c0_103 = arith.constant 0 : index
    %c0_104 = arith.constant 0 : index
    %c0_105 = arith.constant 0 : index
    %92 = vector.load %arg13[%c0_103, %c0_104, %c0_105] : memref<4x18x18xbf16, #tpu.memory_space<vmem>>, vector<4x18x1xbf16>
    tpu.vector_store %arg13[%c0_103, %c0_104, %c0_105], %91 {strides = array<i32>} : memref<4x18x18xbf16, #tpu.memory_space<vmem>>, vector<4x18x1xbf16>,
    %cst_106 = arith.constant 0.000000e+00 : bf16
    %93 = vector.broadcast %cst_106 : bf16 to vector<4x18x1xbf16>
    %c0_107 = arith.constant 0 : index
    %c0_108 = arith.constant 0 : index
    %c17_109 = arith.constant 17 : index
    %94 = vector.load %arg13[%c0_107, %c0_108, %c17_109] : memref<4x18x18xbf16, #tpu.memory_space<vmem>>, vector<4x18x1xbf16>
    tpu.vector_store %arg13[%c0_107, %c0_108, %c17_109], %93 {strides = array<i32>} : memref<4x18x18xbf16, #tpu.memory_space<vmem>>, vector<4x18x1xbf16>,
    %95 = vector.shape_cast %86 : vector<4x256xf32> to vector<4x16x16xf32>
    %96 = arith.truncf %95 : vector<4x16x16xf32> to vector<4x16x16xbf16>
    %c0_110 = arith.constant 0 : index
    %c1_111 = arith.constant 1 : index
    %c1_112 = arith.constant 1 : index
    %97 = vector.load %arg13[%c0_110, %c1_111, %c1_112] : memref<4x18x18xbf16, #tpu.memory_space<vmem>>, vector<4x16x16xbf16>
    tpu.vector_store %arg13[%c0_110, %c1_111, %c1_112], %96 {strides = array<i32>} : memref<4x18x18xbf16, #tpu.memory_space<vmem>>, vector<4x16x16xbf16>,
    %cst_113 = arith.constant 0.000000e+00 : f32
    %98 = vector.broadcast %cst_113 : f32 to vector<4x256xf32>
    %c0_114 = arith.constant 0 : index
    %c0_115 = arith.constant 0 : index
    %c0_116 = arith.constant 0 : index
    %99 = vector.load %arg13[%c0_114, %c0_115, %c0_116] : memref<4x18x18xbf16, #tpu.memory_space<vmem>>, vector<4x16x16xbf16>
    %100 = vector.shape_cast %99 : vector<4x16x16xbf16> to vector<4x256xbf16>
    %c0_117 = arith.constant 0 : index
    %c0_118 = arith.constant 0 : index
    %c0_119 = arith.constant 0 : index
    %101 = vector.load %arg8[%c0_117, %c0_118, %c0_119] : memref<9x4x4xbf16, #tpu.memory_space<vmem>>, vector<1x4x4xbf16>
    %102 = vector.shape_cast %101 : vector<1x4x4xbf16> to vector<4x4xbf16>
    %cst_120 = arith.constant dense<0.000000e+00> : vector<4x256xf32>
    %103 = tpu.matmul %102, %100, %cst_120 {dimension_numbers = #tpu.dot_dimension_numbers<[1], [0], [0], [1], [0, 0, 1, 1], [], []>} : vector<4x4xbf16>, vector<4x256xbf16>, vector<4x256xf32> -> vector<4x256xf32>
    %104 = arith.addf %98, %103 : vector<4x256xf32>
    %c0_121 = arith.constant 0 : index
    %c0_122 = arith.constant 0 : index
    %c1_123 = arith.constant 1 : index
    %105 = vector.load %arg13[%c0_121, %c0_122, %c1_123] : memref<4x18x18xbf16, #tpu.memory_space<vmem>>, vector<4x16x16xbf16>
    %106 = vector.shape_cast %105 : vector<4x16x16xbf16> to vector<4x256xbf16>
    %c1_124 = arith.constant 1 : index
    %c0_125 = arith.constant 0 : index
    %c0_126 = arith.constant 0 : index
    %107 = vector.load %arg8[%c1_124, %c0_125, %c0_126] : memref<9x4x4xbf16, #tpu.memory_space<vmem>>, vector<1x4x4xbf16>
    %108 = vector.shape_cast %107 : vector<1x4x4xbf16> to vector<4x4xbf16>
    %cst_127 = arith.constant dense<0.000000e+00> : vector<4x256xf32>
    %109 = tpu.matmul %108, %106, %cst_127 {dimension_numbers = #tpu.dot_dimension_numbers<[1], [0], [0], [1], [0, 0, 1, 1], [], []>} : vector<4x4xbf16>, vector<4x256xbf16>, vector<4x256xf32> -> vector<4x256xf32>
    %110 = arith.addf %104, %109 : vector<4x256xf32>
    %c0_128 = arith.constant 0 : index
    %c0_129 = arith.constant 0 : index
    %c2_130 = arith.constant 2 : index
    %111 = vector.load %arg13[%c0_128, %c0_129, %c2_130] : memref<4x18x18xbf16, #tpu.memory_space<vmem>>, vector<4x16x16xbf16>
    %112 = vector.shape_cast %111 : vector<4x16x16xbf16> to vector<4x256xbf16>
    %c2_131 = arith.constant 2 : index
    %c0_132 = arith.constant 0 : index
    %c0_133 = arith.constant 0 : index
    %113 = vector.load %arg8[%c2_131, %c0_132, %c0_133] : memref<9x4x4xbf16, #tpu.memory_space<vmem>>, vector<1x4x4xbf16>
    %114 = vector.shape_cast %113 : vector<1x4x4xbf16> to vector<4x4xbf16>
    %cst_134 = arith.constant dense<0.000000e+00> : vector<4x256xf32>
    %115 = tpu.matmul %114, %112, %cst_134 {dimension_numbers = #tpu.dot_dimension_numbers<[1], [0], [0], [1], [0, 0, 1, 1], [], []>} : vector<4x4xbf16>, vector<4x256xbf16>, vector<4x256xf32> -> vector<4x256xf32>
    %116 = arith.addf %110, %115 : vector<4x256xf32>
    %c0_135 = arith.constant 0 : index
    %c1_136 = arith.constant 1 : index
    %c0_137 = arith.constant 0 : index
    %117 = vector.load %arg13[%c0_135, %c1_136, %c0_137] : memref<4x18x18xbf16, #tpu.memory_space<vmem>>, vector<4x16x16xbf16>
    %118 = vector.shape_cast %117 : vector<4x16x16xbf16> to vector<4x256xbf16>
    %c3_138 = arith.constant 3 : index
    %c0_139 = arith.constant 0 : index
    %c0_140 = arith.constant 0 : index
    %119 = vector.load %arg8[%c3_138, %c0_139, %c0_140] : memref<9x4x4xbf16, #tpu.memory_space<vmem>>, vector<1x4x4xbf16>
    %120 = vector.shape_cast %119 : vector<1x4x4xbf16> to vector<4x4xbf16>
    %cst_141 = arith.constant dense<0.000000e+00> : vector<4x256xf32>
    %121 = tpu.matmul %120, %118, %cst_141 {dimension_numbers = #tpu.dot_dimension_numbers<[1], [0], [0], [1], [0, 0, 1, 1], [], []>} : vector<4x4xbf16>, vector<4x256xbf16>, vector<4x256xf32> -> vector<4x256xf32>
    %122 = arith.addf %116, %121 : vector<4x256xf32>
    %c0_142 = arith.constant 0 : index
    %c1_143 = arith.constant 1 : index
    %c1_144 = arith.constant 1 : index
    %123 = vector.load %arg13[%c0_142, %c1_143, %c1_144] : memref<4x18x18xbf16, #tpu.memory_space<vmem>>, vector<4x16x16xbf16>
    %124 = vector.shape_cast %123 : vector<4x16x16xbf16> to vector<4x256xbf16>
    %c4_145 = arith.constant 4 : index
    %c0_146 = arith.constant 0 : index
    %c0_147 = arith.constant 0 : index
    %125 = vector.load %arg8[%c4_145, %c0_146, %c0_147] : memref<9x4x4xbf16, #tpu.memory_space<vmem>>, vector<1x4x4xbf16>
    %126 = vector.shape_cast %125 : vector<1x4x4xbf16> to vector<4x4xbf16>
    %cst_148 = arith.constant dense<0.000000e+00> : vector<4x256xf32>
    %127 = tpu.matmul %126, %124, %cst_148 {dimension_numbers = #tpu.dot_dimension_numbers<[1], [0], [0], [1], [0, 0, 1, 1], [], []>} : vector<4x4xbf16>, vector<4x256xbf16>, vector<4x256xf32> -> vector<4x256xf32>
    %128 = arith.addf %122, %127 : vector<4x256xf32>
    %c0_149 = arith.constant 0 : index
    %c1_150 = arith.constant 1 : index
    %c2_151 = arith.constant 2 : index
    %129 = vector.load %arg13[%c0_149, %c1_150, %c2_151] : memref<4x18x18xbf16, #tpu.memory_space<vmem>>, vector<4x16x16xbf16>
    %130 = vector.shape_cast %129 : vector<4x16x16xbf16> to vector<4x256xbf16>
    %c5_152 = arith.constant 5 : index
    %c0_153 = arith.constant 0 : index
    %c0_154 = arith.constant 0 : index
    %131 = vector.load %arg8[%c5_152, %c0_153, %c0_154] : memref<9x4x4xbf16, #tpu.memory_space<vmem>>, vector<1x4x4xbf16>
    %132 = vector.shape_cast %131 : vector<1x4x4xbf16> to vector<4x4xbf16>
    %cst_155 = arith.constant dense<0.000000e+00> : vector<4x256xf32>
    %133 = tpu.matmul %132, %130, %cst_155 {dimension_numbers = #tpu.dot_dimension_numbers<[1], [0], [0], [1], [0, 0, 1, 1], [], []>} : vector<4x4xbf16>, vector<4x256xbf16>, vector<4x256xf32> -> vector<4x256xf32>
    %134 = arith.addf %128, %133 : vector<4x256xf32>
    %c0_156 = arith.constant 0 : index
    %c2_157 = arith.constant 2 : index
    %c0_158 = arith.constant 0 : index
    %135 = vector.load %arg13[%c0_156, %c2_157, %c0_158] : memref<4x18x18xbf16, #tpu.memory_space<vmem>>, vector<4x16x16xbf16>
    %136 = vector.shape_cast %135 : vector<4x16x16xbf16> to vector<4x256xbf16>
    %c6_159 = arith.constant 6 : index
    %c0_160 = arith.constant 0 : index
    %c0_161 = arith.constant 0 : index
    %137 = vector.load %arg8[%c6_159, %c0_160, %c0_161] : memref<9x4x4xbf16, #tpu.memory_space<vmem>>, vector<1x4x4xbf16>
    %138 = vector.shape_cast %137 : vector<1x4x4xbf16> to vector<4x4xbf16>
    %cst_162 = arith.constant dense<0.000000e+00> : vector<4x256xf32>
    %139 = tpu.matmul %138, %136, %cst_162 {dimension_numbers = #tpu.dot_dimension_numbers<[1], [0], [0], [1], [0, 0, 1, 1], [], []>} : vector<4x4xbf16>, vector<4x256xbf16>, vector<4x256xf32> -> vector<4x256xf32>
    %140 = arith.addf %134, %139 : vector<4x256xf32>
    %c0_163 = arith.constant 0 : index
    %c2_164 = arith.constant 2 : index
    %c1_165 = arith.constant 1 : index
    %141 = vector.load %arg13[%c0_163, %c2_164, %c1_165] : memref<4x18x18xbf16, #tpu.memory_space<vmem>>, vector<4x16x16xbf16>
    %142 = vector.shape_cast %141 : vector<4x16x16xbf16> to vector<4x256xbf16>
    %c7_166 = arith.constant 7 : index
    %c0_167 = arith.constant 0 : index
    %c0_168 = arith.constant 0 : index
    %143 = vector.load %arg8[%c7_166, %c0_167, %c0_168] : memref<9x4x4xbf16, #tpu.memory_space<vmem>>, vector<1x4x4xbf16>
    %144 = vector.shape_cast %143 : vector<1x4x4xbf16> to vector<4x4xbf16>
    %cst_169 = arith.constant dense<0.000000e+00> : vector<4x256xf32>
    %145 = tpu.matmul %144, %142, %cst_169 {dimension_numbers = #tpu.dot_dimension_numbers<[1], [0], [0], [1], [0, 0, 1, 1], [], []>} : vector<4x4xbf16>, vector<4x256xbf16>, vector<4x256xf32> -> vector<4x256xf32>
    %146 = arith.addf %140, %145 : vector<4x256xf32>
    %c0_170 = arith.constant 0 : index
    %c2_171 = arith.constant 2 : index
    %c2_172 = arith.constant 2 : index
    %147 = vector.load %arg13[%c0_170, %c2_171, %c2_172] : memref<4x18x18xbf16, #tpu.memory_space<vmem>>, vector<4x16x16xbf16>
    %148 = vector.shape_cast %147 : vector<4x16x16xbf16> to vector<4x256xbf16>
    %c8_173 = arith.constant 8 : index
    %c0_174 = arith.constant 0 : index
    %c0_175 = arith.constant 0 : index
    %149 = vector.load %arg8[%c8_173, %c0_174, %c0_175] : memref<9x4x4xbf16, #tpu.memory_space<vmem>>, vector<1x4x4xbf16>
    %150 = vector.shape_cast %149 : vector<1x4x4xbf16> to vector<4x4xbf16>
    %cst_176 = arith.constant dense<0.000000e+00> : vector<4x256xf32>
    %151 = tpu.matmul %150, %148, %cst_176 {dimension_numbers = #tpu.dot_dimension_numbers<[1], [0], [0], [1], [0, 0, 1, 1], [], []>} : vector<4x4xbf16>, vector<4x256xbf16>, vector<4x256xf32> -> vector<4x256xf32>
    %152 = arith.addf %146, %151 : vector<4x256xf32>
    %c0_177 = arith.constant 0 : index
    %c0_178 = arith.constant 0 : index
    %153 = vector.load %arg9[%c0_177, %c0_178] : memref<4x1xf32, #tpu.memory_space<vmem>>, vector<4x1xf32>
    %154 = vector.broadcast %153 : vector<4x1xf32> to vector<4x256xf32>
    %155 = arith.mulf %152, %154 : vector<4x256xf32>
    %c0_179 = arith.constant 0 : index
    %c0_180 = arith.constant 0 : index
    %156 = vector.load %arg10[%c0_179, %c0_180] : memref<4x1xf32, #tpu.memory_space<vmem>>, vector<4x1xf32>
    %157 = vector.broadcast %156 : vector<4x1xf32> to vector<4x256xf32>
    %158 = arith.addf %155, %157 : vector<4x256xf32>
    %cst_181 = arith.constant 0.000000e+00 : f32
    %159 = vector.broadcast %cst_181 : f32 to vector<4x256xf32>
    %160 = arith.maximumf %158, %159 : vector<4x256xf32>
    %161 = vector.shape_cast %160 : vector<4x256xf32> to vector<1x4x256xf32>
    %c0_182 = arith.constant 0 : index
    %c0_183 = arith.constant 0 : index
    %c0_184 = arith.constant 0 : index
    %162 = vector.load %arg11[%c0_182, %c0_183, %c0_184] : memref<1x4x256xf32, #tpu.memory_space<vmem>>, vector<1x4x256xf32>
    tpu.vector_store %arg11[%c0_182, %c0_183, %c0_184], %161 {strides = array<i32>} : memref<1x4x256xf32, #tpu.memory_space<vmem>>, vector<1x4x256xf32>,
    return
  }
  func.func @transform_0(%arg0: i32) -> (i32, i32, i32, i32) {
    %c0_i32 = arith.constant 0 : i32
    %c0_i32_0 = arith.constant 0 : i32
    %c0_i32_1 = arith.constant 0 : i32
    %c0_i32_2 = arith.constant 0 : i32
    return %arg0, %c0_i32, %c0_i32_0, %c0_i32_1 : i32, i32, i32, i32
  }
  func.func @transform_1(%arg0: i32) -> (i32, i32, i32, i32) {
    %c0_i32 = arith.constant 0 : i32
    %c0_i32_0 = arith.constant 0 : i32
    %c0_i32_1 = arith.constant 0 : i32
    %c0_i32_2 = arith.constant 0 : i32
    return %arg0, %c0_i32, %c0_i32_0, %c0_i32_1 : i32, i32, i32, i32
  }
  func.func @transform_2(%arg0: i32) -> (i32, i32) {
    %c0_i32 = arith.constant 0 : i32
    %c0_i32_0 = arith.constant 0 : i32
    %c0_i32_1 = arith.constant 0 : i32
    return %c0_i32, %c0_i32_0 : i32, i32
  }
  func.func @transform_3(%arg0: i32) -> (i32, i32) {
    %c0_i32 = arith.constant 0 : i32
    %c0_i32_0 = arith.constant 0 : i32
    %c0_i32_1 = arith.constant 0 : i32
    return %c0_i32, %c0_i32_0 : i32, i32
  }
  func.func @transform_4(%arg0: i32) -> (i32, i32, i32) {
    %c0_i32 = arith.constant 0 : i32
    %c0_i32_0 = arith.constant 0 : i32
    %c0_i32_1 = arith.constant 0 : i32
    %c0_i32_2 = arith.constant 0 : i32
    return %c0_i32, %c0_i32_0, %c0_i32_1 : i32, i32, i32
  }
  func.func @transform_5(%arg0: i32) -> (i32, i32) {
    %c0_i32 = arith.constant 0 : i32
    %c0_i32_0 = arith.constant 0 : i32
    %c0_i32_1 = arith.constant 0 : i32
    return %c0_i32, %c0_i32_0 : i32, i32
  }
  func.func @transform_6(%arg0: i32) -> (i32, i32) {
    %c0_i32 = arith.constant 0 : i32
    %c0_i32_0 = arith.constant 0 : i32
    %c0_i32_1 = arith.constant 0 : i32
    return %c0_i32, %c0_i32_0 : i32, i32
  }
  func.func @transform_7(%arg0: i32) -> (i32, i32, i32) {
    %c0_i32 = arith.constant 0 : i32
    %c0_i32_0 = arith.constant 0 : i32
    %c0_i32_1 = arith.constant 0 : i32
    %c0_i32_2 = arith.constant 0 : i32
    return %c0_i32, %c0_i32_0, %c0_i32_1 : i32, i32, i32
  }
  func.func @transform_8(%arg0: i32) -> (i32, i32) {
    %c0_i32 = arith.constant 0 : i32
    %c0_i32_0 = arith.constant 0 : i32
    %c0_i32_1 = arith.constant 0 : i32
    return %c0_i32, %c0_i32_0 : i32, i32
  }
  func.func @transform_9(%arg0: i32) -> (i32, i32) {
    %c0_i32 = arith.constant 0 : i32
    %c0_i32_0 = arith.constant 0 : i32
    %c0_i32_1 = arith.constant 0 : i32
    return %c0_i32, %c0_i32_0 : i32, i32
  }
  func.func @transform_10(%arg0: i32) -> (i32, i32, i32) {
    %c0_i32 = arith.constant 0 : i32
    %c0_i32_0 = arith.constant 0 : i32
    %c0_i32_1 = arith.constant 0 : i32
    return %arg0, %c0_i32, %c0_i32_0 : i32, i32, i32
  }
}

</mosaic_0001>

<llo_original>
// kernel: up_forward.1
$region0: #{up_forward.1}
  #allocation0 [shape = 'u32[]', space=smem, size = 0x4, offset = 0x4, fixed_abs, tag = 'smem constant byte address 0x4 - core index']
  #allocation1 [shape = 'u32[72,128]{1,0:T(1,128)}', space=vmem, size = 0x9000, scoped, tag = 'internal scratch']
  #allocation2 [shape = 'bf16[8,18,18]{2,1,0:T(8,128)(2,1)}', space=vmem, size = 0xc000, scoped, tag = 'scratch operand']
  #allocation3 [shape = 'bf16[4,18,18]{2,1,0:T(8,128)(2,1)}', space=vmem, size = 0x6000, scoped, tag = 'scratch operand']
  %s0 = inlined_call_operand.hbm [shape: f32[2,4,8,8], index: 0, kind: input, shape index: {}]
  %s1 = inlined_call_operand.hbm [shape: f32[2,4,16,16], index: 1, kind: input, shape index: {}]
  %s2 = inlined_call_operand.vmem [shape: f32[8,16], index: 2, kind: input, shape index: {}]
  %s3 = inlined_call_operand.vmem [shape: f32[16,8], index: 3, kind: input, shape index: {}]
  %s4 = inlined_call_operand.vmem [shape: bf16[9,4,8], index: 4, kind: input, shape index: {}]
  %s5 = inlined_call_operand.vmem [shape: f32[4,1], index: 5, kind: input, shape index: {}]
  %s6 = inlined_call_operand.vmem [shape: f32[4,1], index: 6, kind: input, shape index: {}]
  %s7 = inlined_call_operand.vmem [shape: bf16[9,4,4], index: 7, kind: input, shape index: {}]
  %s8 = inlined_call_operand.vmem [shape: f32[4,1], index: 8, kind: input, shape index: {}]
  %s9 = inlined_call_operand.vmem [shape: f32[4,1], index: 9, kind: input, shape index: {}]
  %s10 = inlined_call_operand.vmem [shape: f32[2,4,256], index: 10, kind: output, shape index: {}]
  %s11 = sld [smem:[#allocation0]]
  $region81: #{up_forward.1} parent=0
    _
  %s13 = ssub.s32 1, %s11
  %s14 = scalar_select 0, %s13, %s11
  $region1: #{up_forward.1} parent=0
    #allocation4 [shape = 'u8[32768]{0}', space=vmem, size = 0x8000, scoped, tag = 'input window, operand 0']
    #allocation5 [shape = 's32[2]{0}', space=sflag, size = 0x8, scoped, tag = 'scoped memory for up_forward.1']
    #allocation6 [shape = 'u8[65536]{0}', space=vmem, size = 0x10000, scoped, tag = 'input window, operand 1']
    #allocation7 [shape = 's32[2]{0}', space=sflag, size = 0x8, scoped, tag = 'scoped memory for up_forward.1']
    %15 = vsyncpa [#allocation5], 0
    %s16 = scalar_lea.sflag [#allocation5], 1
    %17 = vsyncpa %s16, 0
    %18 = vsyncpa [#allocation7], 0
    %s19 = scalar_lea.sflag [#allocation7], 1
    %20 = vsyncpa %s19, 0
    loop: start=0, step=1, limit=4
    $region2: #{up_forward.1} parent=1 // loop_pre_header
      _
    $region3: #{up_forward.1} parent=1 // loop_header
      %s22 = sphi 0, %s26
      %p23 = scmp.ge.s32.totalorder %s22, 4
      %s32 = sphi 0, %s34
      %s35 = sphi 0, %s32
      %s36 = sphi 0, %s35
      %s52 = sphi 0, %s36
      %s58 = sphi 0, %s60
      %s61 = sphi 0, %s58
      %s62 = sphi 0, %s61
      %s78 = sphi 0, %s62
      %s82 = sphi 0, %s82
      %s84 = sphi 0, %s82
      %s85 = sphi 0, %s84
      %s99 = sphi 0, %s85
      %s103 = sphi 0, %s103
      %s105 = sphi 0, %s103
      %s106 = sphi 0, %s105
      %s120 = sphi 0, %s106
      %s124 = sphi 0, %s124
      %s126 = sphi 0, %s124
      %s127 = sphi 0, %s126
      %s141 = sphi 0, %s127
      %s145 = sphi 0, %s145
      %s147 = sphi 0, %s145
      %s148 = sphi 0, %s147
      %s162 = sphi 0, %s148
      %s166 = sphi 0, %s166
      %s168 = sphi 0, %s166
      %s169 = sphi 0, %s168
      %s183 = sphi 0, %s169
      %s187 = sphi 0, %s187
      %s189 = sphi 0, %s187
      %s190 = sphi 0, %s189
      %s204 = sphi 0, %s190
      %s208 = sphi 0, %s208
      %s210 = sphi 0, %s208
      %s211 = sphi 0, %s210
      %s225 = sphi 0, %s211
      %s229 = sphi 0, %s229
      %s231 = sphi 0, %s229
      %s232 = sphi 0, %s231
      %s246 = sphi 0, %s232
      %s252 = sphi 0, %s254
      %s255 = sphi 0, %s252
      %s256 = sphi 0, %s255
      %s272 = sphi 0, %s256
    $region4: #{up_forward.1} parent=1 // loop_header_branch
      %25 = sbr.rel (%p23) target = $region8
    $region5: #{up_forward.1} parent=1 // loop_body
      %s27 = ssub.s32 %s22, 1
      %s28 = ssub.s32 %s22, 2
      %s29 = sadd.s32 %s22, 1
      %s30 = ssub.s32 %s22, %s29
      %p31 = scmp.eq.s32.totalorder %s30, 0
      %s33 = sadd.s32 %s32, 1
      %s34 = scalar_select %p31, %s32, %s33
      %p37 = pneg %p31
      %p38 = scmp.eq.s32.totalorder %s22, 1
      %p39 = por %p37, %p38
      %p40 = scmp.ne.s32.totalorder %s32, %s35
      %p41 = scmp.eq.s32.totalorder %s22, 0
      %p42 = por %p40, %p41
      %p43 = scmp.ne.s32.totalorder %s32, %s35
      %p44 = scmp.eq.s32.totalorder %s27, 1
      %p45 = por %p43, %p44
      %p46 = scmp.ne.s32.totalorder %s35, %s36
      %p47 = scmp.eq.s32.totalorder %s27, 0
      %p48 = por %p46, %p47
      %p49 = scmp.ne.s32.totalorder %s35, %s36
      %p50 = scmp.eq.s32.totalorder %s28, 1
      %p51 = por %p49, %p50
      %p53 = scmp.ne.s32.totalorder %s36, %s52
      %p54 = scmp.eq.s32.totalorder %s28, 0
      %p55 = por %p53, %p54
      %s56 = ssub.s32 %s22, %s29
      %p57 = scmp.eq.s32.totalorder %s56, 0
      %s59 = sadd.s32 %s58, 1
      %s60 = scalar_select %p57, %s58, %s59
      %p63 = pneg %p57
      %p64 = scmp.eq.s32.totalorder %s22, 1
      %p65 = por %p63, %p64
      %p66 = scmp.ne.s32.totalorder %s58, %s61
      %p67 = scmp.eq.s32.totalorder %s22, 0
      %p68 = por %p66, %p67
      %p69 = scmp.ne.s32.totalorder %s58, %s61
      %p70 = scmp.eq.s32.totalorder %s27, 1
      %p71 = por %p69, %p70
      %p72 = scmp.ne.s32.totalorder %s61, %s62
      %p73 = scmp.eq.s32.totalorder %s27, 0
      %p74 = por %p72, %p73
      %p75 = scmp.ne.s32.totalorder %s61, %s62
      %p76 = scmp.eq.s32.totalorder %s28, 1
      %p77 = por %p75, %p76
      %p79 = scmp.ne.s32.totalorder %s62, %s78
      %p80 = scmp.eq.s32.totalorder %s28, 0
      %p81 = por %p79, %p80
      %s83 = sadd.s32 %s82, 1
      %p86 = scmp.eq.s32.totalorder %s22, 1
      %p87 = scmp.ne.s32.totalorder %s82, %s84
      %p88 = scmp.eq.s32.totalorder %s22, 0
      %p89 = por %p87, %p88
      %p90 = scmp.ne.s32.totalorder %s82, %s84
      %p91 = scmp.eq.s32.totalorder %s27, 1
      %p92 = por %p90, %p91
      %p93 = scmp.ne.s32.totalorder %s84, %s85
      %p94 = scmp.eq.s32.totalorder %s27, 0
      %p95 = por %p93, %p94
      %p96 = scmp.ne.s32.totalorder %s84, %s85
      %p97 = scmp.eq.s32.totalorder %s28, 1
      %p98 = por %p96, %p97
      %p100 = scmp.ne.s32.totalorder %s85, %s99
      %p101 = scmp.eq.s32.totalorder %s28, 0
      %p102 = por %p100, %p101
      %s104 = sadd.s32 %s103, 1
      %p107 = scmp.eq.s32.totalorder %s22, 1
      %p108 = scmp.ne.s32.totalorder %s103, %s105
      %p109 = scmp.eq.s32.totalorder %s22, 0
      %p110 = por %p108, %p109
      %p111 = scmp.ne.s32.totalorder %s103, %s105
      %p112 = scmp.eq.s32.totalorder %s27, 1
      %p113 = por %p111, %p112
      %p114 = scmp.ne.s32.totalorder %s105, %s106
      %p115 = scmp.eq.s32.totalorder %s27, 0
      %p116 = por %p114, %p115
      %p117 = scmp.ne.s32.totalorder %s105, %s106
      %p118 = scmp.eq.s32.totalorder %s28, 1
      %p119 = por %p117, %p118
      %p121 = scmp.ne.s32.totalorder %s106, %s120
      %p122 = scmp.eq.s32.totalorder %s28, 0
      %p123 = por %p121, %p122
      %s125 = sadd.s32 %s124, 1
      %p128 = scmp.eq.s32.totalorder %s22, 1
      %p129 = scmp.ne.s32.totalorder %s124, %s126
      %p130 = scmp.eq.s32.totalorder %s22, 0
      %p131 = por %p129, %p130
      %p132 = scmp.ne.s32.totalorder %s124, %s126
      %p133 = scmp.eq.s32.totalorder %s27, 1
      %p134 = por %p132, %p133
      %p135 = scmp.ne.s32.totalorder %s126, %s127
      %p136 = scmp.eq.s32.totalorder %s27, 0
      %p137 = por %p135, %p136
      %p138 = scmp.ne.s32.totalorder %s126, %s127
      %p139 = scmp.eq.s32.totalorder %s28, 1
      %p140 = por %p138, %p139
      %p142 = scmp.ne.s32.totalorder %s127, %s141
      %p143 = scmp.eq.s32.totalorder %s28, 0
      %p144 = por %p142, %p143
      %s146 = sadd.s32 %s145, 1
      %p149 = scmp.eq.s32.totalorder %s22, 1
      %p150 = scmp.ne.s32.totalorder %s145, %s147
      %p151 = scmp.eq.s32.totalorder %s22, 0
      %p152 = por %p150, %p151
      %p153 = scmp.ne.s32.totalorder %s145, %s147
      %p154 = scmp.eq.s32.totalorder %s27, 1
      %p155 = por %p153, %p154
      %p156 = scmp.ne.s32.totalorder %s147, %s148
      %p157 = scmp.eq.s32.totalorder %s27, 0
      %p158 = por %p156, %p157
      %p159 = scmp.ne.s32.totalorder %s147, %s148
      %p160 = scmp.eq.s32.totalorder %s28, 1
      %p161 = por %p159, %p160
      %p163 = scmp.ne.s32.totalorder %s148, %s162
      %p164 = scmp.eq.s32.totalorder %s28, 0
      %p165 = por %p163, %p164
      %s167 = sadd.s32 %s166, 1
      %p170 = scmp.eq.s32.totalorder %s22, 1
      %p171 = scmp.ne.s32.totalorder %s166, %s168
      %p172 = scmp.eq.s32.totalorder %s22, 0
      %p173 = por %p171, %p172
      %p174 = scmp.ne.s32.totalorder %s166, %s168
      %p175 = scmp.eq.s32.totalorder %s27, 1
      %p176 = por %p174, %p175
      %p177 = scmp.ne.s32.totalorder %s168, %s169
      %p178 = scmp.eq.s32.totalorder %s27, 0
      %p179 = por %p177, %p178
      %p180 = scmp.ne.s32.totalorder %s168, %s169
      %p181 = scmp.eq.s32.totalorder %s28, 1
      %p182 = por %p180, %p181
      %p184 = scmp.ne.s32.totalorder %s169, %s183
      %p185 = scmp.eq.s32.totalorder %s28, 0
      %p186 = por %p184, %p185
      %s188 = sadd.s32 %s187, 1
      %p191 = scmp.eq.s32.totalorder %s22, 1
      %p192 = scmp.ne.s32.totalorder %s187, %s189
      %p193 = scmp.eq.s32.totalorder %s22, 0
      %p194 = por %p192, %p193
      %p195 = scmp.ne.s32.totalorder %s187, %s189
      %p196 = scmp.eq.s32.totalorder %s27, 1
      %p197 = por %p195, %p196
      %p198 = scmp.ne.s32.totalorder %s189, %s190
      %p199 = scmp.eq.s32.totalorder %s27, 0
      %p200 = por %p198, %p199
      %p201 = scmp.ne.s32.totalorder %s189, %s190
      %p202 = scmp.eq.s32.totalorder %s28, 1
      %p203 = por %p201, %p202
      %p205 = scmp.ne.s32.totalorder %s190, %s204
      %p206 = scmp.eq.s32.totalorder %s28, 0
      %p207 = por %p205, %p206
      %s209 = sadd.s32 %s208, 1
      %p212 = scmp.eq.s32.totalorder %s22, 1
      %p213 = scmp.ne.s32.totalorder %s208, %s210
      %p214 = scmp.eq.s32.totalorder %s22, 0
      %p215 = por %p213, %p214
      %p216 = scmp.ne.s32.totalorder %s208, %s210
      %p217 = scmp.eq.s32.totalorder %s27, 1
      %p218 = por %p216, %p217
      %p219 = scmp.ne.s32.totalorder %s210, %s211
      %p220 = scmp.eq.s32.totalorder %s27, 0
      %p221 = por %p219, %p220
      %p222 = scmp.ne.s32.totalorder %s210, %s211
      %p223 = scmp.eq.s32.totalorder %s28, 1
      %p224 = por %p222, %p223
      %p226 = scmp.ne.s32.totalorder %s211, %s225
      %p227 = scmp.eq.s32.totalorder %s28, 0
      %p228 = por %p226, %p227
      %s230 = sadd.s32 %s229, 1
      %p233 = scmp.eq.s32.totalorder %s22, 1
      %p234 = scmp.ne.s32.totalorder %s229, %s231
      %p235 = scmp.eq.s32.totalorder %s22, 0
      %p236 = por %p234, %p235
      %p237 = scmp.ne.s32.totalorder %s229, %s231
      %p238 = scmp.eq.s32.totalorder %s27, 1
      %p239 = por %p237, %p238
      %p240 = scmp.ne.s32.totalorder %s231, %s232
      %p241 = scmp.eq.s32.totalorder %s27, 0
      %p242 = por %p240, %p241
      %p243 = scmp.ne.s32.totalorder %s231, %s232
      %p244 = scmp.eq.s32.totalorder %s28, 1
      %p245 = por %p243, %p244
      %p247 = scmp.ne.s32.totalorder %s232, %s246
      %p248 = scmp.eq.s32.totalorder %s28, 0
      %p249 = por %p247, %p248
      %s250 = ssub.s32 %s22, %s29
      %p251 = scmp.eq.s32.totalorder %s250, 0
      %s253 = sadd.s32 %s252, 1
      %s254 = scalar_select %p251, %s252, %s253
      %p257 = pneg %p251
      %p258 = scmp.eq.s32.totalorder %s22, 1
      %p259 = por %p257, %p258
      %p260 = scmp.ne.s32.totalorder %s252, %s255
      %p261 = scmp.eq.s32.totalorder %s22, 0
      %p262 = por %p260, %p261
      %p263 = scmp.ne.s32.totalorder %s252, %s255
      %p264 = scmp.eq.s32.totalorder %s27, 1
      %p265 = por %p263, %p264
      %p266 = scmp.ne.s32.totalorder %s255, %s256
      %p267 = scmp.eq.s32.totalorder %s27, 0
      %p268 = por %p266, %p267
      %p269 = scmp.ne.s32.totalorder %s255, %s256
      %p270 = scmp.eq.s32.totalorder %s28, 1
      %p271 = por %p269, %p270
      %p273 = scmp.ne.s32.totalorder %s256, %s272
      %p274 = scmp.eq.s32.totalorder %s28, 0
      %p275 = por %p273, %p274
      %p276 = scmp.le.s32.totalorder 1, %s22
      %p277 = scmp.lt.s32.totalorder %s22, 3
      %p278 = pnand %p276, %p277
      %p279 = pneg %p278
      // Predicated region
      $region9: #{up_forward.1} parent=5 // pred_check
        _
      $region10: #{up_forward.1} parent=5 // pred_check_branch
        %281 = sbr.rel (%p278) target = $region12
      $region11: #{up_forward.1} parent=5 // pred_region
        %s282 = ssub.s32 %s22, 1
        // Predicated region
        $region13: #{up_forward.1} parent=11 // pred_check
          %p283 = pneg %p95
        $region14: #{up_forward.1} parent=11 // pred_check_branch
          %285 = sbr.rel (%p283) target = $region16
        $region15: #{up_forward.1} parent=11 // pred_region
          _
        $region16: #{up_forward.1} parent=11 // pred_fallthru
          _
        // Predicated region
        $region17: #{up_forward.1} parent=11 // pred_check
          %p286 = pneg %p116
        $region18: #{up_forward.1} parent=11 // pred_check_branch
          %288 = sbr.rel (%p286) target = $region20
        $region19: #{up_forward.1} parent=11 // pred_region
          _
        $region20: #{up_forward.1} parent=11 // pred_fallthru
          _
        // Predicated region
        $region21: #{up_forward.1} parent=11 // pred_check
          %p289 = pneg %p137
        $region22: #{up_forward.1} parent=11 // pred_check_branch
          %291 = sbr.rel (%p289) target = $region24
        $region23: #{up_forward.1} parent=11 // pred_region
          _
        $region24: #{up_forward.1} parent=11 // pred_fallthru
          _
        // Predicated region
        $region25: #{up_forward.1} parent=11 // pred_check
          %p292 = pneg %p158
        $region26: #{up_forward.1} parent=11 // pred_check_branch
          %294 = sbr.rel (%p292) target = $region28
        $region27: #{up_forward.1} parent=11 // pred_region
          _
        $region28: #{up_forward.1} parent=11 // pred_fallthru
          _
        // Predicated region
        $region29: #{up_forward.1} parent=11 // pred_check
          %p295 = pneg %p179
        $region30: #{up_forward.1} parent=11 // pred_check_branch
          %297 = sbr.rel (%p295) target = $region32
        $region31: #{up_forward.1} parent=11 // pred_region
          _
        $region32: #{up_forward.1} parent=11 // pred_fallthru
          _
        // Predicated region
        $region33: #{up_forward.1} parent=11 // pred_check
          %p298 = pneg %p200
        $region34: #{up_forward.1} parent=11 // pred_check_branch
          %300 = sbr.rel (%p298) target = $region36
        $region35: #{up_forward.1} parent=11 // pred_region
          _
        $region36: #{up_forward.1} parent=11 // pred_fallthru
          _
        // Predicated region
        $region37: #{up_forward.1} parent=11 // pred_check
          %p301 = pneg %p221
        $region38: #{up_forward.1} parent=11 // pred_check_branch
          %303 = sbr.rel (%p301) target = $region40
        $region39: #{up_forward.1} parent=11 // pred_region
          _
        $region40: #{up_forward.1} parent=11 // pred_fallthru
          _
        // Predicated region
        $region41: #{up_forward.1} parent=11 // pred_check
          %p304 = pneg %p242
        $region42: #{up_forward.1} parent=11 // pred_check_branch
          %306 = sbr.rel (%p304) target = $region44
        $region43: #{up_forward.1} parent=11 // pred_region
          _
        $region44: #{up_forward.1} parent=11 // pred_fallthru
          _
      $region12: #{up_forward.1} parent=5 // pred_fallthru
        _
      %p307 = scmp.lt.s32.totalorder %s22, 2
      // Predicated region
      $region45: #{up_forward.1} parent=5 // pred_check
        %p308 = pneg %p307
      $region46: #{up_forward.1} parent=5 // pred_check_branch
        %310 = sbr.rel (%p308) target = $region48
      $region47: #{up_forward.1} parent=5 // pred_region
        // Predicated region
        $region49: #{up_forward.1} parent=47 // pred_check
          %p311 = pneg %p42
        $region50: #{up_forward.1} parent=47 // pred_check_branch
          %313 = sbr.rel (%p311) target = $region52
        $region51: #{up_forward.1} parent=47 // pred_region
          %s314 = sand.u32 %s32, 1
          %s315 = scalar_lea.sflag [#allocation5], %s314
          %s316 = sand.u32 %s32, 1
          %s317 = smul.addr %s316, 32
          %s318 = scalar_lea.vmem [#allocation4], %s317
          %320 = vsyncadd %s315, 0
          %s321 = smul.addr %s22, 4
          %s322 = smul.addr %s321, 8
          %s323 = scalar_lea.hbm %s0, %s322
          %s324 = sshll.u32 %s323, 4
          %s325 = int_to_ptr.hbm [resolvable:$true] %s324
          %s326 = sshll.u32 %s318, 4
          %s327 = int_to_ptr.vmem [resolvable:$true] %s326
          %332 = dma.hbm_to_vmem [thread:$0]  %s325, 512, %s327, %s315, 128, 128, 8
        $region52: #{up_forward.1} parent=47 // pred_fallthru
          _
        // Predicated region
        $region53: #{up_forward.1} parent=47 // pred_check
          %p333 = pneg %p68
        $region54: #{up_forward.1} parent=47 // pred_check_branch
          %335 = sbr.rel (%p333) target = $region56
        $region55: #{up_forward.1} parent=47 // pred_region
          %s336 = sand.u32 %s58, 1
          %s337 = scalar_lea.sflag [#allocation7], %s336
          %s338 = sand.u32 %s58, 1
          %s339 = smul.addr %s338, 64
          %s340 = scalar_lea.vmem [#allocation6], %s339
          %342 = vsyncadd %s337, 0
          %s343 = smul.addr %s22, 8
          %s344 = smul.addr %s343, 8
          %s345 = scalar_lea.hbm %s1, %s344
          %s346 = sshll.u32 %s345, 4
          %s347 = int_to_ptr.hbm [resolvable:$true] %s346
          %s348 = sshll.u32 %s340, 4
          %s349 = int_to_ptr.vmem [resolvable:$true] %s348
          %354 = dma.hbm_to_vmem [thread:$0]  %s347, 1024, %s349, %s337, 128, 128, 8
        $region56: #{up_forward.1} parent=47 // pred_fallthru
          _
      $region48: #{up_forward.1} parent=5 // pred_fallthru
        _
      %p355 = scmp.le.s32.totalorder 1, %s22
      %p356 = scmp.lt.s32.totalorder %s22, 3
      %p357 = pnand %p355, %p356
      %p358 = pneg %p357
      // Predicated region
      $region57: #{up_forward.1} parent=5 // pred_check
        _
      $region58: #{up_forward.1} parent=5 // pred_check_branch
        %360 = sbr.rel (%p357) target = $region60
      $region59: #{up_forward.1} parent=5 // pred_region
        %s361 = ssub.s32 %s22, 1
        %s362 = sand.u32 %s35, 1
        %s363 = scalar_lea.sflag [#allocation5], %s362
        %s364 = sand.u32 %s35, 1
        %s365 = smul.addr %s364, 32
        %s366 = scalar_lea.vmem [#allocation4], %s365
        // Predicated region
        $region61: #{up_forward.1} parent=59 // pred_check
          %p367 = pneg %p48
        $region62: #{up_forward.1} parent=59 // pred_check_branch
          %369 = sbr.rel (%p367) target = $region64
        $region63: #{up_forward.1} parent=59 // pred_region
          %371 = dma.done %s363, 512
        $region64: #{up_forward.1} parent=59 // pred_fallthru
          _
        %s372 = sand.u32 %s61, 1
        %s373 = scalar_lea.sflag [#allocation7], %s372
        %s374 = sand.u32 %s61, 1
        %s375 = smul.addr %s374, 64
        %s376 = scalar_lea.vmem [#allocation6], %s375
        // Predicated region
        $region65: #{up_forward.1} parent=59 // pred_check
          %p377 = pneg %p74
        $region66: #{up_forward.1} parent=59 // pred_check_branch
          %379 = sbr.rel (%p377) target = $region68
        $region67: #{up_forward.1} parent=59 // pred_region
          %381 = dma.done %s373, 1024
        $region68: #{up_forward.1} parent=59 // pred_fallthru
          _
        %s382 = sand.u32 %s35, 1
        %s383 = scalar_lea.sflag [#allocation5], %s382
        %s384 = sand.u32 %s35, 1
        %s385 = smul.addr %s384, 32
        %s386 = scalar_lea.vmem [#allocation4], %s385
        %p387 = pneg %p48
        %p388 = pneg %p45
        %s389 = sand.u32 %s61, 1
        %s390 = scalar_lea.sflag [#allocation7], %s389
        %s391 = sand.u32 %s61, 1
        %s392 = smul.addr %s391, 64
        %s393 = scalar_lea.vmem [#allocation6], %s392
        %p394 = pneg %p74
        %p395 = pneg %p71
        %p396 = pneg %p95
        %p397 = pneg %p92
        %p398 = pneg %p116
        %p399 = pneg %p113
        %p400 = pneg %p137
        %p401 = pneg %p134
        %p402 = pneg %p158
        %p403 = pneg %p155
        %p404 = pneg %p179
        %p405 = pneg %p176
        %p406 = pneg %p200
        %p407 = pneg %p197
        %p408 = pneg %p221
        %p409 = pneg %p218
        %p410 = pneg %p242
        %p411 = pneg %p239
        %p412 = pneg %p268
        %p413 = pneg %p265
        %p414 = scmp.lt.s32.totalorder %s27, 1
        %s415 = scalar_select %p414, %s27, 1
        %s416 = smul.addr %s415, 2
        %s417 = smul.addr %s416, 4
        %s418 = scalar_lea.vmem %s10, %s417
        %p419 = scmp.lt.s32.totalorder %s27, 1
        %s420 = scalar_select %p419, %s27, 1
        %s421 = smul.addr %s420, 2
        %s422 = smul.addr %s421, 4
        %s423 = scalar_lea.vmem %s10, %s422
        %v425 = vld [vmem:[%s366] sm:$0xff]
        %v426 = vld [vmem:[%s366 + $0x8] sm:$0xff]
        %v427 = vld [vmem:[%s366 + $0x10] sm:$0xff]
        %v428 = vld [vmem:[%s366 + $0x18] sm:$0xff]
        %v429 = vld [vmem:[%s2] sm:$0xff]
        %vm430 = vcmask 64512
        %v432 = vsel %vm430, %v425, 0
        %v435 = vsel %vm430, %v426, 0
        %v438 = vsel %vm430, %v427, 0
        %v441 = vsel %vm430, %v428, 0
        %443 = vmatpush.msra.mxu0 0.0
        %444 = vmatpush.msra.mxu0 0.0
        %445 = vmatpush.msra.mxu0 0.0
        %446 = vmatpush.msra.mxu0 0.0
        %447 = vmatpush.msra.mxu0 0.0
        %448 = vmatpush.msra.mxu0 0.0
        %449 = vmatpush.msra.mxu0 0.0
        %450 = vmatpush.msra.mxu0 0.0
        %451 = vmatpush.msra.mxu0 0.0
        %452 = vmatpush.msra.mxu0 0.0
        %453 = vmatpush.msra.mxu0 0.0
        %454 = vmatpush.msra.mxu0 0.0
        %455 = vmatpush.msra.mxu0 0.0
        %456 = vmatpush.msra.mxu0 0.0
        %457 = vmatpush.msra.mxu0 0.0
        %458 = vmatpush.msra.mxu0 %v429
        %459 = vmatmul.f32.gmra.mxu0 %v432
        %v460 = vpop.f32.mrf.mxu0
        %v461 = vadd.f32 0.0, %v460
        %462 = vmatmul.f32.gmra.mxu0 %v435
        %v463 = vpop.f32.mrf.mxu0
        %v464 = vadd.f32 0.0, %v463
        %465 = vmatmul.f32.gmra.mxu0 %v438
        %v466 = vpop.f32.mrf.mxu0
        %v467 = vadd.f32 0.0, %v466
        %468 = vmatmul.f32.gmra.mxu0 %v441
        %v469 = vpop.f32.mrf.mxu0
        %v470 = vadd.f32 0.0, %v469
        %471 = vdwg.mxu0
        %v472 = vld [vmem:[%s3] sm:$0xff]
        %v473 = vld [vmem:[%s3 + $0x8] sm:$0xff]
        %v475 = vsel %vm430, %v472, 0
        %v478 = vsel %vm430, %v473, 0
        %480 = vmatpush.msra.mxu0 0.0
        %481 = vmatpush.msra.mxu0 0.0
        %482 = vmatpush.msra.mxu0 0.0
        %483 = vmatpush.msra.mxu0 0.0
        %484 = vmatpush.msra.mxu0 0.0
        %485 = vmatpush.msra.mxu0 0.0
        %486 = vmatpush.msra.mxu0 0.0
        %487 = vmatpush.msra.mxu0 0.0
        %488 = vmatpush.msra.mxu0 0.0
        %489 = vmatpush.msra.mxu0 0.0
        %490 = vmatpush.msra.mxu0 0.0
        %491 = vmatpush.msra.mxu0 0.0
        %492 = vmatpush.msra.mxu0 0.0
        %493 = vmatpush.msra.mxu0 0.0
        %494 = vmatpush.msra.mxu0 0.0
        %495 = vmatpush.msra.mxu0 %v461
        %496 = vmatmul.f32.gmra.mxu0 %v475
        %v497 = vpop.f32.mrf.mxu0
        %v498 = vadd.f32 0.0, %v497
        %499 = vmatmul.f32.gmra.mxu0 %v478
        %v500 = vpop.f32.mrf.mxu0
        %v501 = vadd.f32 0.0, %v500
        %502 = vdwg.mxu0
        %503 = vmatpush.msra.mxu0 0.0
        %504 = vmatpush.msra.mxu0 0.0
        %505 = vmatpush.msra.mxu0 0.0
        %506 = vmatpush.msra.mxu0 0.0
        %507 = vmatpush.msra.mxu0 0.0
        %508 = vmatpush.msra.mxu0 0.0
        %509 = vmatpush.msra.mxu0 0.0
        %510 = vmatpush.msra.mxu0 0.0
        %511 = vmatpush.msra.mxu0 0.0
        %512 = vmatpush.msra.mxu0 0.0
        %513 = vmatpush.msra.mxu0 0.0
        %514 = vmatpush.msra.mxu0 0.0
        %515 = vmatpush.msra.mxu0 0.0
        %516 = vmatpush.msra.mxu0 0.0
        %517 = vmatpush.msra.mxu0 0.0
        %518 = vmatpush.msra.mxu0 %v464
        %519 = vmatmul.f32.gmra.mxu0 %v475
        %v520 = vpop.f32.mrf.mxu0
        %v521 = vadd.f32 0.0, %v520
        %522 = vmatmul.f32.gmra.mxu0 %v478
        %v523 = vpop.f32.mrf.mxu0
        %v524 = vadd.f32 0.0, %v523
        %525 = vdwg.mxu0
        %526 = vmatpush.msra.mxu0 0.0
        %527 = vmatpush.msra.mxu0 0.0
        %528 = vmatpush.msra.mxu0 0.0
        %529 = vmatpush.msra.mxu0 0.0
        %530 = vmatpush.msra.mxu0 0.0
        %531 = vmatpush.msra.mxu0 0.0
        %532 = vmatpush.msra.mxu0 0.0
        %533 = vmatpush.msra.mxu0 0.0
        %534 = vmatpush.msra.mxu0 0.0
        %535 = vmatpush.msra.mxu0 0.0
        %536 = vmatpush.msra.mxu0 0.0
        %537 = vmatpush.msra.mxu0 0.0
        %538 = vmatpush.msra.mxu0 0.0
        %539 = vmatpush.msra.mxu0 0.0
        %540 = vmatpush.msra.mxu0 0.0
        %541 = vmatpush.msra.mxu0 %v467
        %542 = vmatmul.f32.gmra.mxu0 %v475
        %v543 = vpop.f32.mrf.mxu0
        %v544 = vadd.f32 0.0, %v543
        %545 = vmatmul.f32.gmra.mxu0 %v478
        %v546 = vpop.f32.mrf.mxu0
        %v547 = vadd.f32 0.0, %v546
        %548 = vdwg.mxu0
        %549 = vmatpush.msra.mxu0 0.0
        %550 = vmatpush.msra.mxu0 0.0
        %551 = vmatpush.msra.mxu0 0.0
        %552 = vmatpush.msra.mxu0 0.0
        %553 = vmatpush.msra.mxu0 0.0
        %554 = vmatpush.msra.mxu0 0.0
        %555 = vmatpush.msra.mxu0 0.0
        %556 = vmatpush.msra.mxu0 0.0
        %557 = vmatpush.msra.mxu0 0.0
        %558 = vmatpush.msra.mxu0 0.0
        %559 = vmatpush.msra.mxu0 0.0
        %560 = vmatpush.msra.mxu0 0.0
        %561 = vmatpush.msra.mxu0 0.0
        %562 = vmatpush.msra.mxu0 0.0
        %563 = vmatpush.msra.mxu0 0.0
        %564 = vmatpush.msra.mxu0 %v470
        %565 = vmatmul.f32.gmra.mxu0 %v475
        %v566 = vpop.f32.mrf.mxu0
        %v567 = vadd.f32 0.0, %v566
        %568 = vmatmul.f32.gmra.mxu0 %v478
        %v569 = vpop.f32.mrf.mxu0
        %v570 = vadd.f32 0.0, %v569
        %571 = vdwg.mxu0
        %vm572 = vcmask 139264
        %vm573 = vsmask.f32 256
        %vm574 = vmand %vm572, %vm573
        %v575 = vld [vmem:[#allocation2] sm:$0x1]
        %v576 = vsel %vm574, 0, %v575
        %577 = vst [vmem:[#allocation2] sm:$0x1] %v576
        %v578 = vld [vmem:[#allocation2 + $0xc] sm:$0x1]
        %v579 = vsel %vm574, 0, %v578
        %580 = vst [vmem:[#allocation2 + $0xc] sm:$0x1] %v579
        %v581 = vld [vmem:[#allocation2 + $0x18] sm:$0x1]
        %v582 = vsel %vm574, 0, %v581
        %583 = vst [vmem:[#allocation2 + $0x18] sm:$0x1] %v582
        %v584 = vld [vmem:[#allocation2 + $0x24] sm:$0x1]
        %v585 = vsel %vm574, 0, %v584
        %586 = vst [vmem:[#allocation2 + $0x24] sm:$0x1] %v585
        %v587 = vld [vmem:[#allocation2 + $0x30] sm:$0x1]
        %v588 = vsel %vm574, 0, %v587
        %589 = vst [vmem:[#allocation2 + $0x30] sm:$0x1] %v588
        %v590 = vld [vmem:[#allocation2 + $0x3c] sm:$0x1]
        %v591 = vsel %vm574, 0, %v590
        %592 = vst [vmem:[#allocation2 + $0x3c] sm:$0x1] %v591
        %v593 = vld [vmem:[#allocation2 + $0x48] sm:$0x1]
        %v594 = vsel %vm574, 0, %v593
        %595 = vst [vmem:[#allocation2 + $0x48] sm:$0x1] %v594
        %v596 = vld [vmem:[#allocation2 + $0x54] sm:$0x1]
        %v597 = vsel %vm574, 0, %v596
        %598 = vst [vmem:[#allocation2 + $0x54] sm:$0x1] %v597
        %vm599 = vsmask.f32 7938
        %vm600 = vmand %vm572, %vm599
        %v601 = vld [vmem:[#allocation2 + $0x8] sm:$0x1]
        %v602 = vsel %vm600, 0, %v601
        %603 = vst [vmem:[#allocation2 + $0x8] sm:$0x1] %v602
        %v604 = vld [vmem:[#allocation2 + $0x14] sm:$0x1]
        %v605 = vsel %vm600, 0, %v604
        %606 = vst [vmem:[#allocation2 + $0x14] sm:$0x1] %v605
        %v607 = vld [vmem:[#allocation2 + $0x20] sm:$0x1]
        %v608 = vsel %vm600, 0, %v607
        %609 = vst [vmem:[#allocation2 + $0x20] sm:$0x1] %v608
        %v610 = vld [vmem:[#allocation2 + $0x2c] sm:$0x1]
        %v611 = vsel %vm600, 0, %v610
        %612 = vst [vmem:[#allocation2 + $0x2c] sm:$0x1] %v611
        %v613 = vld [vmem:[#allocation2 + $0x38] sm:$0x1]
        %v614 = vsel %vm600, 0, %v613
        %615 = vst [vmem:[#allocation2 + $0x38] sm:$0x1] %v614
        %v616 = vld [vmem:[#allocation2 + $0x44] sm:$0x1]
        %v617 = vsel %vm600, 0, %v616
        %618 = vst [vmem:[#allocation2 + $0x44] sm:$0x1] %v617
        %v619 = vld [vmem:[#allocation2 + $0x50] sm:$0x1]
        %v620 = vsel %vm600, 0, %v619
        %621 = vst [vmem:[#allocation2 + $0x50] sm:$0x1] %v620
        %v622 = vld [vmem:[#allocation2 + $0x5c] sm:$0x1]
        %v623 = vsel %vm600, 0, %v622
        %624 = vst [vmem:[#allocation2 + $0x5c] sm:$0x1] %v623
        %vm625 = vcmask 3072
        %626 = vst.msk [vmem:[#allocation2] sm:$0xf] %vm625, 0
        %627 = vst.msk [vmem:[#allocation2 + $0x4] sm:$0xf] %vm625, 0
        %vm628 = vcmask 0
        %629 = vst.msk [vmem:[#allocation2 + $0x8] sm:$0x1] %vm628, 0
        %630 = vst.msk [vmem:[#allocation2 + $0xc] sm:$0xf] %vm625, 0
        %631 = vst.msk [vmem:[#allocation2 + $0x10] sm:$0xf] %vm625, 0
        %632 = vst.msk [vmem:[#allocation2 + $0x14] sm:$0x1] %vm628, 0
        %633 = vst.msk [vmem:[#allocation2 + $0x18] sm:$0xf] %vm625, 0
        %634 = vst.msk [vmem:[#allocation2 + $0x1c] sm:$0xf] %vm625, 0
        %635 = vst.msk [vmem:[#allocation2 + $0x20] sm:$0x1] %vm628, 0
        %636 = vst.msk [vmem:[#allocation2 + $0x24] sm:$0xf] %vm625, 0
        %637 = vst.msk [vmem:[#allocation2 + $0x28] sm:$0xf] %vm625, 0
        %638 = vst.msk [vmem:[#allocation2 + $0x2c] sm:$0x1] %vm628, 0
        %639 = vst.msk [vmem:[#allocation2 + $0x30] sm:$0xf] %vm625, 0
        %640 = vst.msk [vmem:[#allocation2 + $0x34] sm:$0xf] %vm625, 0
        %641 = vst.msk [vmem:[#allocation2 + $0x38] sm:$0x1] %vm628, 0
        %642 = vst.msk [vmem:[#allocation2 + $0x3c] sm:$0xf] %vm625, 0
        %643 = vst.msk [vmem:[#allocation2 + $0x40] sm:$0xf] %vm625, 0
        %644 = vst.msk [vmem:[#allocation2 + $0x44] sm:$0x1] %vm628, 0
        %645 = vst.msk [vmem:[#allocation2 + $0x48] sm:$0xf] %vm625, 0
        %646 = vst.msk [vmem:[#allocation2 + $0x4c] sm:$0xf] %vm625, 0
        %647 = vst.msk [vmem:[#allocation2 + $0x50] sm:$0x1] %vm628, 0
        %648 = vst.msk [vmem:[#allocation2 + $0x54] sm:$0xf] %vm625, 0
        %649 = vst.msk [vmem:[#allocation2 + $0x58] sm:$0xf] %vm625, 0
        %650 = vst.msk [vmem:[#allocation2 + $0x5c] sm:$0x1] %vm628, 0
        %vm651 = vcmask 142472
        %652 = vst.msk [vmem:[#allocation2] sm:$0xf] %vm651, 0
        %653 = vst.msk [vmem:[#allocation2 + $0x4] sm:$0xf] %vm651, 0
        %vm654 = vcmask 139400
        %655 = vst.msk [vmem:[#allocation2 + $0x8] sm:$0x1] %vm654, 0
        %656 = vst.msk [vmem:[#allocation2 + $0xc] sm:$0xf] %vm651, 0
        %657 = vst.msk [vmem:[#allocation2 + $0x10] sm:$0xf] %vm651, 0
        %658 = vst.msk [vmem:[#allocation2 + $0x14] sm:$0x1] %vm654, 0
        %659 = vst.msk [vmem:[#allocation2 + $0x18] sm:$0xf] %vm651, 0
        %660 = vst.msk [vmem:[#allocation2 + $0x1c] sm:$0xf] %vm651, 0
        %661 = vst.msk [vmem:[#allocation2 + $0x20] sm:$0x1] %vm654, 0
        %662 = vst.msk [vmem:[#allocation2 + $0x24] sm:$0xf] %vm651, 0
        %663 = vst.msk [vmem:[#allocation2 + $0x28] sm:$0xf] %vm651, 0
        %664 = vst.msk [vmem:[#allocation2 + $0x2c] sm:$0x1] %vm654, 0
        %665 = vst.msk [vmem:[#allocation2 + $0x30] sm:$0xf] %vm651, 0
        %666 = vst.msk [vmem:[#allocation2 + $0x34] sm:$0xf] %vm651, 0
        %667 = vst.msk [vmem:[#allocation2 + $0x38] sm:$0x1] %vm654, 0
        %668 = vst.msk [vmem:[#allocation2 + $0x3c] sm:$0xf] %vm651, 0
        %669 = vst.msk [vmem:[#allocation2 + $0x40] sm:$0xf] %vm651, 0
        %670 = vst.msk [vmem:[#allocation2 + $0x44] sm:$0x1] %vm654, 0
        %671 = vst.msk [vmem:[#allocation2 + $0x48] sm:$0xf] %vm651, 0
        %672 = vst.msk [vmem:[#allocation2 + $0x4c] sm:$0xf] %vm651, 0
        %673 = vst.msk [vmem:[#allocation2 + $0x50] sm:$0x1] %vm654, 0
        %674 = vst.msk [vmem:[#allocation2 + $0x54] sm:$0xf] %vm651, 0
        %675 = vst.msk [vmem:[#allocation2 + $0x58] sm:$0xf] %vm651, 0
        %676 = vst.msk [vmem:[#allocation2 + $0x5c] sm:$0x1] %vm654, 0
        %v677 = vld [vmem:[%s376] sm:$0xff]
        %v678 = vld [vmem:[%s376 + $0x8] sm:$0xff]
        %v679 = vld [vmem:[%s376 + $0x10] sm:$0xff]
        %v680 = vld [vmem:[%s376 + $0x18] sm:$0xff]
        %v681 = vld [vmem:[%s376 + $0x20] sm:$0xff]
        %v682 = vld [vmem:[%s376 + $0x28] sm:$0xff]
        %v683 = vld [vmem:[%s376 + $0x30] sm:$0xff]
        %v684 = vld [vmem:[%s376 + $0x38] sm:$0xff]
        %v685 = vpack.c.bf16 %v677, %v677
        %v686 = vpack.c.bf16 %v678, %v678
        %v687 = vpack.c.bf16 %v679, %v679
        %v688 = vpack.c.bf16 %v680, %v680
        %v689 = vpack.c.bf16 %v681, %v681
        %v690 = vpack.c.bf16 %v682, %v682
        %v691 = vpack.c.bf16 %v683, %v683
        %v692 = vpack.c.bf16 %v684, %v684
        %vm693 = vsmask.f32 4368
        %vm694 = vmor %vm573, %vm693
        %v696 = vshrl.u32 %v685, 16
        %v698 = vrot.slane %v696, 7
        %v699 = vshll.u32 %v685, 16
        %v701 = vor.u32 %v698, %v699
        %v702 = vrot.slane %v698, 4
        %v704 = vshrl.u32 %v686, 16
        %v706 = vrot.slane %v704, 7
        %v707 = vshll.u32 %v686, 16
        %v709 = vor.u32 %v706, %v707
        %v710 = vsel %vm694, %v702, %v709
        %v711 = vrot.slane %v706, 4
        %v713 = vshrl.u32 %v687, 16
        %v715 = vrot.slane %v713, 7
        %v716 = vshll.u32 %v687, 16
        %v718 = vor.u32 %v715, %v716
        %v719 = vrot.slane %v715, 4
        %v721 = vshrl.u32 %v688, 16
        %v723 = vrot.slane %v721, 7
        %v724 = vshll.u32 %v688, 16
        %v726 = vor.u32 %v723, %v724
        %v727 = vsel %vm694, %v719, %v726
        %v728 = vrot.slane %v723, 4
        %v730 = vshrl.u32 %v689, 16
        %v732 = vrot.slane %v730, 7
        %v733 = vshll.u32 %v689, 16
        %v735 = vor.u32 %v732, %v733
        %v736 = vrot.slane %v732, 4
        %v738 = vshrl.u32 %v690, 16
        %v740 = vrot.slane %v738, 7
        %v741 = vshll.u32 %v690, 16
        %v743 = vor.u32 %v740, %v741
        %v744 = vsel %vm694, %v736, %v743
        %v745 = vrot.slane %v740, 4
        %v747 = vshrl.u32 %v691, 16
        %v749 = vrot.slane %v747, 7
        %v750 = vshll.u32 %v691, 16
        %v752 = vor.u32 %v749, %v750
        %v753 = vrot.slane %v749, 4
        %v755 = vshrl.u32 %v692, 16
        %v757 = vrot.slane %v755, 7
        %v758 = vshll.u32 %v692, 16
        %v760 = vor.u32 %v757, %v758
        %v761 = vsel %vm694, %v753, %v760
        %v762 = vrot.slane %v757, 4
        %763 = vrot.lane.b32.xlu0 %v701, 1
        %v764 = vpop.permute.xlu0 %763
        %765 = vrot.lane.b32.xlu0 %v710, 1
        %v766 = vpop.permute.xlu0 %765
        %767 = vrot.lane.b32.xlu0 %v711, 1
        %v768 = vpop.permute.xlu0 %767
        %769 = vrot.lane.b32.xlu0 %v718, 1
        %v770 = vpop.permute.xlu0 %769
        %771 = vrot.lane.b32.xlu0 %v727, 1
        %v772 = vpop.permute.xlu0 %771
        %773 = vrot.lane.b32.xlu0 %v728, 1
        %v774 = vpop.permute.xlu0 %773
        %775 = vrot.lane.b32.xlu0 %v735, 1
        %v776 = vpop.permute.xlu0 %775
        %777 = vrot.lane.b32.xlu0 %v744, 1
        %v778 = vpop.permute.xlu0 %777
        %779 = vrot.lane.b32.xlu0 %v745, 1
        %v780 = vpop.permute.xlu0 %779
        %781 = vrot.lane.b32.xlu0 %v752, 1
        %v782 = vpop.permute.xlu0 %781
        %783 = vrot.lane.b32.xlu0 %v761, 1
        %v784 = vpop.permute.xlu0 %783
        %785 = vrot.lane.b32.xlu0 %v762, 1
        %v786 = vpop.permute.xlu0 %785
        %vm799 = vcmask 134152
        %vm800 = vmand %vm799, %vm599
        %v801 = vld [vmem:[#allocation2] sm:$0xf]
        %v802 = vsel %vm800, %v764, %v801
        %803 = vst [vmem:[#allocation2] sm:$0xf] %v802
        %vm804 = vcmask 134152
        %805 = vst.msk [vmem:[#allocation2 + $0x4] sm:$0xf] %vm804, %v766
        %vm806 = vcmask 131080
        %vm807 = vmand %vm806, %vm573
        %v808 = vld [vmem:[#allocation2 + $0x8] sm:$0x1]
        %v809 = vsel %vm807, %v768, %v808
        %810 = vst [vmem:[#allocation2 + $0x8] sm:$0x1] %v809
        %v811 = vld [vmem:[#allocation2 + $0xc] sm:$0xf]
        %v812 = vsel %vm800, %v770, %v811
        %813 = vst [vmem:[#allocation2 + $0xc] sm:$0xf] %v812
        %814 = vst.msk [vmem:[#allocation2 + $0x10] sm:$0xf] %vm804, %v772
        %v815 = vld [vmem:[#allocation2 + $0x14] sm:$0x1]
        %v816 = vsel %vm807, %v774, %v815
        %817 = vst [vmem:[#allocation2 + $0x14] sm:$0x1] %v816
        %v818 = vld [vmem:[#allocation2 + $0x18] sm:$0xf]
        %v819 = vsel %vm800, %v776, %v818
        %820 = vst [vmem:[#allocation2 + $0x18] sm:$0xf] %v819
        %821 = vst.msk [vmem:[#allocation2 + $0x1c] sm:$0xf] %vm804, %v778
        %v822 = vld [vmem:[#allocation2 + $0x20] sm:$0x1]
        %v823 = vsel %vm807, %v780, %v822
        %824 = vst [vmem:[#allocation2 + $0x20] sm:$0x1] %v823
        %v825 = vld [vmem:[#allocation2 + $0x24] sm:$0xf]
        %v826 = vsel %vm800, %v782, %v825
        %827 = vst [vmem:[#allocation2 + $0x24] sm:$0xf] %v826
        %828 = vst.msk [vmem:[#allocation2 + $0x28] sm:$0xf] %vm804, %v784
        %v829 = vld [vmem:[#allocation2 + $0x2c] sm:$0x1]
        %v830 = vsel %vm807, %v786, %v829
        %831 = vst [vmem:[#allocation2 + $0x2c] sm:$0x1] %v830
        %v832 = vpack.c.bf16 %v498, %v498
        %v833 = vpack.c.bf16 %v501, %v501
        %v834 = vpack.c.bf16 %v521, %v521
        %v835 = vpack.c.bf16 %v524, %v524
        %v836 = vpack.c.bf16 %v544, %v544
        %v837 = vpack.c.bf16 %v547, %v547
        %v838 = vpack.c.bf16 %v567, %v567
        %v839 = vpack.c.bf16 %v570, %v570
        %v841 = vshrl.u32 %v832, 16
        %v843 = vrot.slane %v841, 7
        %v844 = vshll.u32 %v832, 16
        %v846 = vor.u32 %v843, %v844
        %v847 = vrot.slane %v843, 4
        %v849 = vshrl.u32 %v833, 16
        %v851 = vrot.slane %v849, 7
        %v852 = vshll.u32 %v833, 16
        %v854 = vor.u32 %v851, %v852
        %v855 = vsel %vm694, %v847, %v854
        %v856 = vrot.slane %v851, 4
        %v858 = vshrl.u32 %v834, 16
        %v860 = vrot.slane %v858, 7
        %v861 = vshll.u32 %v834, 16
        %v863 = vor.u32 %v860, %v861
        %v864 = vrot.slane %v860, 4
        %v866 = vshrl.u32 %v835, 16
        %v868 = vrot.slane %v866, 7
        %v869 = vshll.u32 %v835, 16
        %v871 = vor.u32 %v868, %v869
        %v872 = vsel %vm694, %v864, %v871
        %v873 = vrot.slane %v868, 4
        %v875 = vshrl.u32 %v836, 16
        %v877 = vrot.slane %v875, 7
        %v878 = vshll.u32 %v836, 16
        %v880 = vor.u32 %v877, %v878
        %v881 = vrot.slane %v877, 4
        %v883 = vshrl.u32 %v837, 16
        %v885 = vrot.slane %v883, 7
        %v886 = vshll.u32 %v837, 16
        %v888 = vor.u32 %v885, %v886
        %v889 = vsel %vm694, %v881, %v888
        %v890 = vrot.slane %v885, 4
        %v892 = vshrl.u32 %v838, 16
        %v894 = vrot.slane %v892, 7
        %v895 = vshll.u32 %v838, 16
        %v897 = vor.u32 %v894, %v895
        %v898 = vrot.slane %v894, 4
        %v900 = vshrl.u32 %v839, 16
        %v902 = vrot.slane %v900, 7
        %v903 = vshll.u32 %v839, 16
        %v905 = vor.u32 %v902, %v903
        %v906 = vsel %vm694, %v898, %v905
        %v907 = vrot.slane %v902, 4
        %908 = vrot.lane.b32.xlu0 %v846, 1
        %v909 = vpop.permute.xlu0 %908
        %910 = vrot.lane.b32.xlu0 %v855, 1
        %v911 = vpop.permute.xlu0 %910
        %912 = vrot.lane.b32.xlu0 %v856, 1
        %v913 = vpop.permute.xlu0 %912
        %914 = vrot.lane.b32.xlu0 %v863, 1
        %v915 = vpop.permute.xlu0 %914
        %916 = vrot.lane.b32.xlu0 %v872, 1
        %v917 = vpop.permute.xlu0 %916
        %918 = vrot.lane.b32.xlu0 %v873, 1
        %v919 = vpop.permute.xlu0 %918
        %920 = vrot.lane.b32.xlu0 %v880, 1
        %v921 = vpop.permute.xlu0 %920
        %922 = vrot.lane.b32.xlu0 %v889, 1
        %v923 = vpop.permute.xlu0 %922
        %924 = vrot.lane.b32.xlu0 %v890, 1
        %v925 = vpop.permute.xlu0 %924
        %926 = vrot.lane.b32.xlu0 %v897, 1
        %v927 = vpop.permute.xlu0 %926
        %928 = vrot.lane.b32.xlu0 %v906, 1
        %v929 = vpop.permute.xlu0 %928
        %930 = vrot.lane.b32.xlu0 %v907, 1
        %v931 = vpop.permute.xlu0 %930
        %s944 = scalar_lea.vmem [#allocation2], 48
        %v945 = vld [vmem:[%s944] sm:$0xf]
        %v946 = vsel %vm800, %v909, %v945
        %947 = vst [vmem:[%s944] sm:$0xf] %v946
        %948 = vst.msk [vmem:[%s944 + $0x4] sm:$0xf] %vm804, %v911
        %v949 = vld [vmem:[%s944 + $0x8] sm:$0x1]
        %v950 = vsel %vm807, %v913, %v949
        %951 = vst [vmem:[%s944 + $0x8] sm:$0x1] %v950
        %v952 = vld [vmem:[%s944 + $0xc] sm:$0xf]
        %v953 = vsel %vm800, %v915, %v952
        %954 = vst [vmem:[%s944 + $0xc] sm:$0xf] %v953
        %955 = vst.msk [vmem:[%s944 + $0x10] sm:$0xf] %vm804, %v917
        %v956 = vld [vmem:[%s944 + $0x14] sm:$0x1]
        %v957 = vsel %vm807, %v919, %v956
        %958 = vst [vmem:[%s944 + $0x14] sm:$0x1] %v957
        %v959 = vld [vmem:[%s944 + $0x18] sm:$0xf]
        %v960 = vsel %vm800, %v921, %v959
        %961 = vst [vmem:[%s944 + $0x18] sm:$0xf] %v960
        %962 = vst.msk [vmem:[%s944 + $0x1c] sm:$0xf] %vm804, %v923
        %v963 = vld [vmem:[%s944 + $0x20] sm:$0x1]
        %v964 = vsel %vm807, %v925, %v963
        %965 = vst [vmem:[%s944 + $0x20] sm:$0x1] %v964
        %v966 = vld [vmem:[%s944 + $0x24] sm:$0xf]
        %v967 = vsel %vm800, %v927, %v966
        %968 = vst [vmem:[%s944 + $0x24] sm:$0xf] %v967
        %969 = vst.msk [vmem:[%s944 + $0x28] sm:$0xf] %vm804, %v929
        %v970 = vld [vmem:[%s944 + $0x2c] sm:$0x1]
        %v971 = vsel %vm807, %v931, %v970
        %972 = vst [vmem:[%s944 + $0x2c] sm:$0x1] %v971
        %v973 = vld [vmem:[#allocation2] sm:$0xf]
        %v974 = vld [vmem:[#allocation2 + $0x4] sm:$0xf]
        %v975 = vld [vmem:[#allocation2 + $0xc] sm:$0xf]
        %v976 = vld [vmem:[#allocation2 + $0x10] sm:$0xf]
        %v977 = vld [vmem:[#allocation2 + $0x18] sm:$0xf]
        %v978 = vld [vmem:[#allocation2 + $0x1c] sm:$0xf]
        %v979 = vld [vmem:[#allocation2 + $0x24] sm:$0xf]
        %v980 = vld [vmem:[#allocation2 + $0x28] sm:$0xf]
        %v981 = vld [vmem:[#allocation2 + $0x30] sm:$0xf]
        %v982 = vld [vmem:[#allocation2 + $0x34] sm:$0xf]
        %v983 = vld [vmem:[#allocation2 + $0x3c] sm:$0xf]
        %v984 = vld [vmem:[#allocation2 + $0x40] sm:$0xf]
        %v985 = vld [vmem:[#allocation2 + $0x48] sm:$0xf]
        %v986 = vld [vmem:[#allocation2 + $0x4c] sm:$0xf]
        %v987 = vld [vmem:[#allocation2 + $0x54] sm:$0xf]
        %v988 = vld [vmem:[#allocation2 + $0x58] sm:$0xf]
        %v989 = vrot.slane %v981, 4
        %vm990 = vcmask 1047556
        %v991 = vsel %vm990, %v989, %v973
        %v993 = vunpack.c.l.s4 1983009808
        %v994 = vunpack.c.0.s8 %v993
        %v995 = vperm.slane %v991, %v994
        %v996 = vrot.slane %v985, 4
        %v997 = vsel %vm990, %v996, %v977
        %v999 = vunpack.c.l.s4 1983009808
        %v1000 = vunpack.c.0.s8 %v999
        %v1001 = vperm.slane %v997, %v1000
        %v1002 = vrot.slane %v1001, 4
        %v1003 = vsel %vm990, %v1002, %v995
        %v1004 = vrot.slane %v995, 4
        %v1005 = vsel %vm990, %v1001, %v1004
        %v1007 = vunpack.c.l.s4 1934713408
        %v1008 = vunpack.c.0.s8 %v1007
        %v1009 = vperm.slane %v1003, %v1008
        %v1011 = vunpack.c.l.s4 1934713408
        %v1012 = vunpack.c.0.s8 %v1011
        %v1013 = vperm.slane %v1005, %v1012
        %v1014 = vrot.slane %v1009, 4
        %v1015 = vsel %vm990, 0, %v1014
        %v1016 = vrot.slane %v1013, 4
        %v1017 = vsel %vm990, 0, %v1016
        %v1018 = vrot.slane %v983, 4
        %v1019 = vsel %vm990, %v1018, %v975
        %v1021 = vunpack.c.l.s4 1983009808
        %v1022 = vunpack.c.0.s8 %v1021
        %v1023 = vperm.slane %v1019, %v1022
        %v1024 = vrot.slane %v987, 4
        %v1025 = vsel %vm990, %v1024, %v979
        %v1027 = vunpack.c.l.s4 1983009808
        %v1028 = vunpack.c.0.s8 %v1027
        %v1029 = vperm.slane %v1025, %v1028
        %v1030 = vrot.slane %v1029, 4
        %v1031 = vsel %vm990, %v1030, %v1023
        %v1032 = vrot.slane %v1023, 4
        %v1033 = vsel %vm990, %v1029, %v1032
        %v1035 = vunpack.c.l.s4 1934713408
        %v1036 = vunpack.c.0.s8 %v1035
        %v1037 = vperm.slane %v1031, %v1036
        %v1039 = vunpack.c.l.s4 1934713408
        %v1040 = vunpack.c.0.s8 %v1039
        %v1041 = vperm.slane %v1033, %v1040
        %v1042 = vrot.slane %v1037, 4
        %v1043 = vsel %vm990, 0, %v1042
        %v1044 = vrot.slane %v1041, 4
        %v1045 = vsel %vm990, 0, %v1044
        %v1046 = vrot.slane %v982, 4
        %v1047 = vsel %vm990, %v1046, %v974
        %v1049 = vunpack.c.l.s4 1983009808
        %v1050 = vunpack.c.0.s8 %v1049
        %v1051 = vperm.slane %v1047, %v1050
        %v1052 = vrot.slane %v986, 4
        %v1053 = vsel %vm990, %v1052, %v978
        %v1055 = vunpack.c.l.s4 1983009808
        %v1056 = vunpack.c.0.s8 %v1055
        %v1057 = vperm.slane %v1053, %v1056
        %v1058 = vrot.slane %v1057, 4
        %v1059 = vsel %vm990, %v1058, %v1051
        %v1060 = vrot.slane %v1051, 4
        %v1061 = vsel %vm990, %v1057, %v1060
        %v1063 = vunpack.c.l.s4 1934713408
        %v1064 = vunpack.c.0.s8 %v1063
        %v1065 = vperm.slane %v1059, %v1064
        %v1067 = vunpack.c.l.s4 1934713408
        %v1068 = vunpack.c.0.s8 %v1067
        %v1069 = vperm.slane %v1061, %v1068
        %v1070 = vrot.slane %v1065, 4
        %v1071 = vsel %vm990, 0, %v1070
        %v1072 = vrot.slane %v1069, 4
        %v1073 = vsel %vm990, 0, %v1072
        %v1074 = vrot.slane %v984, 4
        %v1075 = vsel %vm990, %v1074, %v976
        %v1077 = vunpack.c.l.s4 1983009808
        %v1078 = vunpack.c.0.s8 %v1077
        %v1079 = vperm.slane %v1075, %v1078
        %v1080 = vrot.slane %v988, 4
        %v1081 = vsel %vm990, %v1080, %v980
        %v1083 = vunpack.c.l.s4 1983009808
        %v1084 = vunpack.c.0.s8 %v1083
        %v1085 = vperm.slane %v1081, %v1084
        %v1086 = vrot.slane %v1085, 4
        %v1087 = vsel %vm990, %v1086, %v1079
        %v1088 = vrot.slane %v1079, 4
        %v1089 = vsel %vm990, %v1085, %v1088
        %v1091 = vunpack.c.l.s4 1934713408
        %v1092 = vunpack.c.0.s8 %v1091
        %v1093 = vperm.slane %v1087, %v1092
        %v1095 = vunpack.c.l.s4 1934713408
        %v1096 = vunpack.c.0.s8 %v1095
        %v1097 = vperm.slane %v1089, %v1096
        %v1098 = vrot.slane %v1093, 4
        %v1099 = vsel %vm990, 0, %v1098
        %v1100 = vrot.slane %v1097, 4
        %v1101 = vsel %vm990, 0, %v1100
        %v1104 = vpack.i.b16 %v1037, %v1009
        %v1105 = vshrl.u32 %v1009, 16
        %v1106 = vshrl.u32 %v1037, 16
        %v1107 = vpack.i.b16 %v1106, %v1105
        %v1110 = vpack.i.b16 %v1043, %v1015
        %v1111 = vshrl.u32 %v1015, 16
        %v1112 = vshrl.u32 %v1043, 16
        %v1113 = vpack.i.b16 %v1112, %v1111
        %v1116 = vpack.i.b16 %v1041, %v1013
        %v1117 = vshrl.u32 %v1013, 16
        %v1118 = vshrl.u32 %v1041, 16
        %v1119 = vpack.i.b16 %v1118, %v1117
        %v1122 = vpack.i.b16 %v1045, %v1017
        %v1123 = vshrl.u32 %v1017, 16
        %v1124 = vshrl.u32 %v1045, 16
        %v1125 = vpack.i.b16 %v1124, %v1123
        %v1128 = vpack.i.b16 %v1093, %v1065
        %v1129 = vshrl.u32 %v1065, 16
        %v1130 = vshrl.u32 %v1093, 16
        %v1131 = vpack.i.b16 %v1130, %v1129
        %v1134 = vpack.i.b16 %v1099, %v1071
        %v1135 = vshrl.u32 %v1071, 16
        %v1136 = vshrl.u32 %v1099, 16
        %v1137 = vpack.i.b16 %v1136, %v1135
        %v1140 = vpack.i.b16 %v1097, %v1069
        %v1141 = vshrl.u32 %v1069, 16
        %v1142 = vshrl.u32 %v1097, 16
        %v1143 = vpack.i.b16 %v1142, %v1141
        %v1146 = vpack.i.b16 %v1101, %v1073
        %v1147 = vshrl.u32 %v1073, 16
        %v1148 = vshrl.u32 %v1101, 16
        %v1149 = vpack.i.b16 %v1148, %v1147
        %v1150 = vunpack.c.l.b16 %v1107
        %v1151 = vpack.c.b16 %v1150, %v1150
        %1152 = vrot.lane.b32.xlu0 %v1151, 16
        %v1153 = vpop.permute.xlu0 %1152
        %v1154 = vunpack.c.l.b16 %v1110
        %v1155 = vpack.c.b16 %v1154, %v1154
        %1156 = vrot.lane.b32.xlu0 %v1155, 32
        %v1157 = vpop.permute.xlu0 %1156
        %v1158 = vunpack.c.l.b16 %v1113
        %v1159 = vpack.c.b16 %v1158, %v1158
        %1160 = vrot.lane.b32.xlu0 %v1159, 48
        %v1161 = vpop.permute.xlu0 %1160
        %v1162 = vunpack.c.l.b16 %v1116
        %v1163 = vpack.c.b16 %v1162, %v1162
        %1164 = vrot.lane.b32.xlu0 %v1163, 64
        %v1165 = vpop.permute.xlu0 %1164
        %v1166 = vunpack.c.l.b16 %v1119
        %v1167 = vpack.c.b16 %v1166, %v1166
        %1168 = vrot.lane.b32.xlu0 %v1167, 80
        %v1169 = vpop.permute.xlu0 %1168
        %v1170 = vunpack.c.l.b16 %v1122
        %v1171 = vpack.c.b16 %v1170, %v1170
        %1172 = vrot.lane.b32.xlu0 %v1171, 96
        %v1173 = vpop.permute.xlu0 %1172
        %v1174 = vunpack.c.l.b16 %v1125
        %v1175 = vpack.c.b16 %v1174, %v1174
        %1176 = vrot.lane.b32.xlu0 %v1175, 112
        %v1177 = vpop.permute.xlu0 %1176
        %v1178 = vunpack.c.l.b16 %v1131
        %v1179 = vpack.c.b16 %v1178, %v1178
        %1180 = vrot.lane.b32.xlu0 %v1179, 16
        %v1181 = vpop.permute.xlu0 %1180
        %v1182 = vunpack.c.l.b16 %v1134
        %v1183 = vpack.c.b16 %v1182, %v1182
        %1184 = vrot.lane.b32.xlu0 %v1183, 32
        %v1185 = vpop.permute.xlu0 %1184
        %v1186 = vunpack.c.l.b16 %v1137
        %v1187 = vpack.c.b16 %v1186, %v1186
        %1188 = vrot.lane.b32.xlu0 %v1187, 48
        %v1189 = vpop.permute.xlu0 %1188
        %v1190 = vunpack.c.l.b16 %v1140
        %v1191 = vpack.c.b16 %v1190, %v1190
        %1192 = vrot.lane.b32.xlu0 %v1191, 64
        %v1193 = vpop.permute.xlu0 %1192
        %v1194 = vunpack.c.l.b16 %v1143
        %v1195 = vpack.c.b16 %v1194, %v1194
        %1196 = vrot.lane.b32.xlu0 %v1195, 80
        %v1197 = vpop.permute.xlu0 %1196
        %v1198 = vunpack.c.l.b16 %v1146
        %v1199 = vpack.c.b16 %v1198, %v1198
        %1200 = vrot.lane.b32.xlu0 %v1199, 96
        %v1201 = vpop.permute.xlu0 %1200
        %v1202 = vunpack.c.l.b16 %v1149
        %v1203 = vpack.c.b16 %v1202, %v1202
        %1204 = vrot.lane.b32.xlu0 %v1203, 112
        %v1205 = vpop.permute.xlu0 %1204
        %vm1206 = vcmask 130048
        %v1209 = vsel %vm1206, %v1104, %v1153
        %vm1210 = vcmask 261120
        %v1212 = vsel %vm1210, %v1209, %v1157
        %vm1213 = vcmask 392192
        %v1215 = vsel %vm1213, %v1212, %v1161
        %vm1216 = vcmask 523264
        %v1218 = vsel %vm1216, %v1215, %v1165
        %vm1219 = vcmask 654336
        %v1221 = vsel %vm1219, %v1218, %v1169
        %vm1222 = vcmask 785408
        %v1224 = vsel %vm1222, %v1221, %v1173
        %vm1225 = vcmask 916480
        %v1227 = vsel %vm1225, %v1224, %v1177
        %v1230 = vsel %vm1206, %v1128, %v1181
        %v1232 = vsel %vm1210, %v1230, %v1185
        %v1234 = vsel %vm1213, %v1232, %v1189
        %v1236 = vsel %vm1216, %v1234, %v1193
        %v1238 = vsel %vm1219, %v1236, %v1197
        %v1240 = vsel %vm1222, %v1238, %v1201
        %v1242 = vsel %vm1225, %v1240, %v1205
        %v1243 = vld [vmem:[%s4] sm:$0x3]
        %1260 = vrot.lane.b32.xlu0 %v973, 127
        %v1261 = vpop.permute.xlu0 %1260
        %1262 = vrot.lane.b32.xlu0 %v974, 127
        %v1263 = vpop.permute.xlu0 %1262
        %1264 = vrot.lane.b32.xlu0 %v975, 127
        %v1265 = vpop.permute.xlu0 %1264
        %1266 = vrot.lane.b32.xlu0 %v976, 127
        %v1267 = vpop.permute.xlu0 %1266
        %1268 = vrot.lane.b32.xlu0 %v977, 127
        %v1269 = vpop.permute.xlu0 %1268
        %1270 = vrot.lane.b32.xlu0 %v978, 127
        %v1271 = vpop.permute.xlu0 %1270
        %1272 = vrot.lane.b32.xlu0 %v979, 127
        %v1273 = vpop.permute.xlu0 %1272
        %1274 = vrot.lane.b32.xlu0 %v980, 127
        %v1275 = vpop.permute.xlu0 %1274
        %1276 = vrot.lane.b32.xlu0 %v981, 127
        %v1277 = vpop.permute.xlu0 %1276
        %1278 = vrot.lane.b32.xlu0 %v982, 127
        %v1279 = vpop.permute.xlu0 %1278
        %1280 = vrot.lane.b32.xlu0 %v983, 127
        %v1281 = vpop.permute.xlu0 %1280
        %1282 = vrot.lane.b32.xlu0 %v984, 127
        %v1283 = vpop.permute.xlu0 %1282
        %1284 = vrot.lane.b32.xlu0 %v985, 127
        %v1285 = vpop.permute.xlu0 %1284
        %1286 = vrot.lane.b32.xlu0 %v986, 127
        %v1287 = vpop.permute.xlu0 %1286
        %1288 = vrot.lane.b32.xlu0 %v987, 127
        %v1289 = vpop.permute.xlu0 %1288
        %1290 = vrot.lane.b32.xlu0 %v988, 127
        %v1291 = vpop.permute.xlu0 %1290
        %v1308 = vrot.slane %v1277, 4
        %v1309 = vsel %vm990, %v1308, %v1261
        %v1311 = vunpack.c.l.s4 1983009808
        %v1312 = vunpack.c.0.s8 %v1311
        %v1313 = vperm.slane %v1309, %v1312
        %v1314 = vrot.slane %v1285, 4
        %v1315 = vsel %vm990, %v1314, %v1269
        %v1317 = vunpack.c.l.s4 1983009808
        %v1318 = vunpack.c.0.s8 %v1317
        %v1319 = vperm.slane %v1315, %v1318
        %v1320 = vrot.slane %v1319, 4
        %v1321 = vsel %vm990, %v1320, %v1313
        %v1322 = vrot.slane %v1313, 4
        %v1323 = vsel %vm990, %v1319, %v1322
        %v1325 = vunpack.c.l.s4 1934713408
        %v1326 = vunpack.c.0.s8 %v1325
        %v1327 = vperm.slane %v1321, %v1326
        %v1329 = vunpack.c.l.s4 1934713408
        %v1330 = vunpack.c.0.s8 %v1329
        %v1331 = vperm.slane %v1323, %v1330
        %v1332 = vrot.slane %v1327, 4
        %v1333 = vsel %vm990, 0, %v1332
        %v1334 = vrot.slane %v1331, 4
        %v1335 = vsel %vm990, 0, %v1334
        %v1336 = vrot.slane %v1281, 4
        %v1337 = vsel %vm990, %v1336, %v1265
        %v1339 = vunpack.c.l.s4 1983009808
        %v1340 = vunpack.c.0.s8 %v1339
        %v1341 = vperm.slane %v1337, %v1340
        %v1342 = vrot.slane %v1289, 4
        %v1343 = vsel %vm990, %v1342, %v1273
        %v1345 = vunpack.c.l.s4 1983009808
        %v1346 = vunpack.c.0.s8 %v1345
        %v1347 = vperm.slane %v1343, %v1346
        %v1348 = vrot.slane %v1347, 4
        %v1349 = vsel %vm990, %v1348, %v1341
        %v1350 = vrot.slane %v1341, 4
        %v1351 = vsel %vm990, %v1347, %v1350
        %v1353 = vunpack.c.l.s4 1934713408
        %v1354 = vunpack.c.0.s8 %v1353
        %v1355 = vperm.slane %v1349, %v1354
        %v1357 = vunpack.c.l.s4 1934713408
        %v1358 = vunpack.c.0.s8 %v1357
        %v1359 = vperm.slane %v1351, %v1358
        %v1360 = vrot.slane %v1355, 4
        %v1361 = vsel %vm990, 0, %v1360
        %v1362 = vrot.slane %v1359, 4
        %v1363 = vsel %vm990, 0, %v1362
        %v1364 = vrot.slane %v1279, 4
        %v1365 = vsel %vm990, %v1364, %v1263
        %v1367 = vunpack.c.l.s4 1983009808
        %v1368 = vunpack.c.0.s8 %v1367
        %v1369 = vperm.slane %v1365, %v1368
        %v1370 = vrot.slane %v1287, 4
        %v1371 = vsel %vm990, %v1370, %v1271
        %v1373 = vunpack.c.l.s4 1983009808
        %v1374 = vunpack.c.0.s8 %v1373
        %v1375 = vperm.slane %v1371, %v1374
        %v1376 = vrot.slane %v1375, 4
        %v1377 = vsel %vm990, %v1376, %v1369
        %v1378 = vrot.slane %v1369, 4
        %v1379 = vsel %vm990, %v1375, %v1378
        %v1381 = vunpack.c.l.s4 1934713408
        %v1382 = vunpack.c.0.s8 %v1381
        %v1383 = vperm.slane %v1377, %v1382
        %v1385 = vunpack.c.l.s4 1934713408
        %v1386 = vunpack.c.0.s8 %v1385
        %v1387 = vperm.slane %v1379, %v1386
        %v1388 = vrot.slane %v1383, 4
        %v1389 = vsel %vm990, 0, %v1388
        %v1390 = vrot.slane %v1387, 4
        %v1391 = vsel %vm990, 0, %v1390
        %v1392 = vrot.slane %v1283, 4
        %v1393 = vsel %vm990, %v1392, %v1267
        %v1395 = vunpack.c.l.s4 1983009808
        %v1396 = vunpack.c.0.s8 %v1395
        %v1397 = vperm.slane %v1393, %v1396
        %v1398 = vrot.slane %v1291, 4
        %v1399 = vsel %vm990, %v1398, %v1275
        %v1401 = vunpack.c.l.s4 1983009808
        %v1402 = vunpack.c.0.s8 %v1401
        %v1403 = vperm.slane %v1399, %v1402
        %v1404 = vrot.slane %v1403, 4
        %v1405 = vsel %vm990, %v1404, %v1397
        %v1406 = vrot.slane %v1397, 4
        %v1407 = vsel %vm990, %v1403, %v1406
        %v1409 = vunpack.c.l.s4 1934713408
        %v1410 = vunpack.c.0.s8 %v1409
        %v1411 = vperm.slane %v1405, %v1410
        %v1413 = vunpack.c.l.s4 1934713408
        %v1414 = vunpack.c.0.s8 %v1413
        %v1415 = vperm.slane %v1407, %v1414
        %v1416 = vrot.slane %v1411, 4
        %v1417 = vsel %vm990, 0, %v1416
        %v1418 = vrot.slane %v1415, 4
        %v1419 = vsel %vm990, 0, %v1418
        %v1422 = vpack.i.b16 %v1355, %v1327
        %v1423 = vshrl.u32 %v1327, 16
        %v1424 = vshrl.u32 %v1355, 16
        %v1425 = vpack.i.b16 %v1424, %v1423
        %v1428 = vpack.i.b16 %v1361, %v1333
        %v1429 = vshrl.u32 %v1333, 16
        %v1430 = vshrl.u32 %v1361, 16
        %v1431 = vpack.i.b16 %v1430, %v1429
        %v1434 = vpack.i.b16 %v1359, %v1331
        %v1435 = vshrl.u32 %v1331, 16
        %v1436 = vshrl.u32 %v1359, 16
        %v1437 = vpack.i.b16 %v1436, %v1435
        %v1440 = vpack.i.b16 %v1363, %v1335
        %v1441 = vshrl.u32 %v1335, 16
        %v1442 = vshrl.u32 %v1363, 16
        %v1443 = vpack.i.b16 %v1442, %v1441
        %v1446 = vpack.i.b16 %v1411, %v1383
        %v1447 = vshrl.u32 %v1383, 16
        %v1448 = vshrl.u32 %v1411, 16
        %v1449 = vpack.i.b16 %v1448, %v1447
        %v1452 = vpack.i.b16 %v1417, %v1389
        %v1453 = vshrl.u32 %v1389, 16
        %v1454 = vshrl.u32 %v1417, 16
        %v1455 = vpack.i.b16 %v1454, %v1453
        %v1458 = vpack.i.b16 %v1415, %v1387
        %v1459 = vshrl.u32 %v1387, 16
        %v1460 = vshrl.u32 %v1415, 16
        %v1461 = vpack.i.b16 %v1460, %v1459
        %v1464 = vpack.i.b16 %v1419, %v1391
        %v1465 = vshrl.u32 %v1391, 16
        %v1466 = vshrl.u32 %v1419, 16
        %v1467 = vpack.i.b16 %v1466, %v1465
        %v1468 = vunpack.c.l.b16 %v1425
        %v1469 = vpack.c.b16 %v1468, %v1468
        %1470 = vrot.lane.b32.xlu0 %v1469, 16
        %v1471 = vpop.permute.xlu0 %1470
        %v1472 = vunpack.c.l.b16 %v1428
        %v1473 = vpack.c.b16 %v1472, %v1472
        %1474 = vrot.lane.b32.xlu0 %v1473, 32
        %v1475 = vpop.permute.xlu0 %1474
        %v1476 = vunpack.c.l.b16 %v1431
        %v1477 = vpack.c.b16 %v1476, %v1476
        %1478 = vrot.lane.b32.xlu0 %v1477, 48
        %v1479 = vpop.permute.xlu0 %1478
        %v1480 = vunpack.c.l.b16 %v1434
        %v1481 = vpack.c.b16 %v1480, %v1480
        %1482 = vrot.lane.b32.xlu0 %v1481, 64
        %v1483 = vpop.permute.xlu0 %1482
        %v1484 = vunpack.c.l.b16 %v1437
        %v1485 = vpack.c.b16 %v1484, %v1484
        %1486 = vrot.lane.b32.xlu0 %v1485, 80
        %v1487 = vpop.permute.xlu0 %1486
        %v1488 = vunpack.c.l.b16 %v1440
        %v1489 = vpack.c.b16 %v1488, %v1488
        %1490 = vrot.lane.b32.xlu0 %v1489, 96
        %v1491 = vpop.permute.xlu0 %1490
        %v1492 = vunpack.c.l.b16 %v1443
        %v1493 = vpack.c.b16 %v1492, %v1492
        %1494 = vrot.lane.b32.xlu0 %v1493, 112
        %v1495 = vpop.permute.xlu0 %1494
        %v1496 = vunpack.c.l.b16 %v1449
        %v1497 = vpack.c.b16 %v1496, %v1496
        %1498 = vrot.lane.b32.xlu0 %v1497, 16
        %v1499 = vpop.permute.xlu0 %1498
        %v1500 = vunpack.c.l.b16 %v1452
        %v1501 = vpack.c.b16 %v1500, %v1500
        %1502 = vrot.lane.b32.xlu0 %v1501, 32
        %v1503 = vpop.permute.xlu0 %1502
        %v1504 = vunpack.c.l.b16 %v1455
        %v1505 = vpack.c.b16 %v1504, %v1504
        %1506 = vrot.lane.b32.xlu0 %v1505, 48
        %v1507 = vpop.permute.xlu0 %1506
        %v1508 = vunpack.c.l.b16 %v1458
        %v1509 = vpack.c.b16 %v1508, %v1508
        %1510 = vrot.lane.b32.xlu0 %v1509, 64
        %v1511 = vpop.permute.xlu0 %1510
        %v1512 = vunpack.c.l.b16 %v1461
        %v1513 = vpack.c.b16 %v1512, %v1512
        %1514 = vrot.lane.b32.xlu0 %v1513, 80
        %v1515 = vpop.permute.xlu0 %1514
        %v1516 = vunpack.c.l.b16 %v1464
        %v1517 = vpack.c.b16 %v1516, %v1516
        %1518 = vrot.lane.b32.xlu0 %v1517, 96
        %v1519 = vpop.permute.xlu0 %1518
        %v1520 = vunpack.c.l.b16 %v1467
        %v1521 = vpack.c.b16 %v1520, %v1520
        %1522 = vrot.lane.b32.xlu0 %v1521, 112
        %v1523 = vpop.permute.xlu0 %1522
        %v1526 = vsel %vm1206, %v1422, %v1471
        %v1528 = vsel %vm1210, %v1526, %v1475
        %v1530 = vsel %vm1213, %v1528, %v1479
        %v1532 = vsel %vm1216, %v1530, %v1483
        %v1534 = vsel %vm1219, %v1532, %v1487
        %v1536 = vsel %vm1222, %v1534, %v1491
        %v1538 = vsel %vm1225, %v1536, %v1495
        %v1541 = vsel %vm1206, %v1446, %v1499
        %v1543 = vsel %vm1210, %v1541, %v1503
        %v1545 = vsel %vm1213, %v1543, %v1507
        %v1547 = vsel %vm1216, %v1545, %v1511
        %v1549 = vsel %vm1219, %v1547, %v1515
        %v1551 = vsel %vm1222, %v1549, %v1519
        %v1553 = vsel %vm1225, %v1551, %v1523
        %s1554 = scalar_lea.vmem %s4, 2
        %v1555 = vld [vmem:[%s1554] sm:$0x3]
        %v1557 = vsel %vm430, %v1555, 0
        %vm1559 = vcmask 1043456
        %v1560 = vsel %vm1559, %v1538, 0
        %v1562 = vsel %vm1559, %v1553, 0
        %1564 = vmatpush.bf16.msra.mxu0 0
        %1565 = vmatpush.bf16.msra.mxu0 0
        %1566 = vmatpush.bf16.msra.mxu0 0
        %1567 = vmatpush.bf16.msra.mxu0 0
        %1568 = vmatpush.bf16.msra.mxu0 0
        %1569 = vmatpush.bf16.msra.mxu0 0
        %1570 = vmatpush.bf16.msra.mxu0 0
        %1571 = vmatpush.bf16.msra.mxu0 %v1560
        %1572 = vmatmul.bf16.gmra.mxu0 %v1557
        %v1573 = vpop.f32.mrf.mxu0
        %v1574 = vadd.f32 0.0, %v1573
        %v1575 = vpop.f32.mrf.mxu0
        %1576 = vdwg.mxu0
        %1577 = vmatpush.bf16.msra.mxu0 0
        %1578 = vmatpush.bf16.msra.mxu0 0
        %1579 = vmatpush.bf16.msra.mxu0 0
        %1580 = vmatpush.bf16.msra.mxu0 0
        %1581 = vmatpush.bf16.msra.mxu0 0
        %1582 = vmatpush.bf16.msra.mxu0 0
        %1583 = vmatpush.bf16.msra.mxu0 0
        %1584 = vmatpush.bf16.msra.mxu0 %v1562
        %1585 = vmatmul.bf16.gmra.mxu0 %v1557
        %v1586 = vpop.f32.mrf.mxu0
        %v1587 = vadd.f32 0.0, %v1586
        %v1588 = vpop.f32.mrf.mxu0
        %1589 = vdwg.mxu0
        %v1591 = vsel %vm430, %v1243, 0
        %v1593 = vsel %vm1559, %v1227, 0
        %v1595 = vsel %vm1559, %v1242, 0
        %1597 = vmatpush.bf16.msra.mxu0 0
        %1598 = vmatpush.bf16.msra.mxu0 0
        %1599 = vmatpush.bf16.msra.mxu0 0
        %1600 = vmatpush.bf16.msra.mxu0 0
        %1601 = vmatpush.bf16.msra.mxu0 0
        %1602 = vmatpush.bf16.msra.mxu0 0
        %1603 = vmatpush.bf16.msra.mxu0 0
        %1604 = vmatpush.bf16.msra.mxu0 %v1593
        %1605 = vmatmul.bf16.gmra.mxu0 %v1591
        %v1606 = vpop.f32.mrf.mxu0
        %v1607 = vadd.f32 %v1574, %v1606
        %v1608 = vpop.f32.mrf.mxu0
        %1609 = vdwg.mxu0
        %1610 = vmatpush.bf16.msra.mxu0 0
        %1611 = vmatpush.bf16.msra.mxu0 0
        %1612 = vmatpush.bf16.msra.mxu0 0
        %1613 = vmatpush.bf16.msra.mxu0 0
        %1614 = vmatpush.bf16.msra.mxu0 0
        %1615 = vmatpush.bf16.msra.mxu0 0
        %1616 = vmatpush.bf16.msra.mxu0 0
        %1617 = vmatpush.bf16.msra.mxu0 %v1595
        %1618 = vmatmul.bf16.gmra.mxu0 %v1591
        %v1619 = vpop.f32.mrf.mxu0
        %v1620 = vadd.f32 %v1587, %v1619
        %v1621 = vpop.f32.mrf.mxu0
        %1622 = vdwg.mxu0
        %v1623 = vld [vmem:[#allocation2] sm:$0xf]
        %v1624 = vld [vmem:[#allocation2 + $0x4] sm:$0xf]
        %v1625 = vld [vmem:[#allocation2 + $0xc] sm:$0xf]
        %v1626 = vld [vmem:[#allocation2 + $0x10] sm:$0xf]
        %v1627 = vld [vmem:[#allocation2 + $0x18] sm:$0xf]
        %v1628 = vld [vmem:[#allocation2 + $0x1c] sm:$0xf]
        %v1629 = vld [vmem:[#allocation2 + $0x24] sm:$0xf]
        %v1630 = vld [vmem:[#allocation2 + $0x28] sm:$0xf]
        %v1631 = vld [vmem:[#allocation2 + $0x30] sm:$0xf]
        %v1632 = vld [vmem:[#allocation2 + $0x34] sm:$0xf]
        %v1633 = vld [vmem:[#allocation2 + $0x3c] sm:$0xf]
        %v1634 = vld [vmem:[#allocation2 + $0x40] sm:$0xf]
        %v1635 = vld [vmem:[#allocation2 + $0x48] sm:$0xf]
        %v1636 = vld [vmem:[#allocation2 + $0x4c] sm:$0xf]
        %v1637 = vld [vmem:[#allocation2 + $0x54] sm:$0xf]
        %v1638 = vld [vmem:[#allocation2 + $0x58] sm:$0xf]
        %1655 = vrot.lane.b32.xlu0 %v1623, 126
        %v1656 = vpop.permute.xlu0 %1655
        %1657 = vrot.lane.b32.xlu0 %v1624, 126
        %v1658 = vpop.permute.xlu0 %1657
        %1659 = vrot.lane.b32.xlu0 %v1625, 126
        %v1660 = vpop.permute.xlu0 %1659
        %1661 = vrot.lane.b32.xlu0 %v1626, 126
        %v1662 = vpop.permute.xlu0 %1661
        %1663 = vrot.lane.b32.xlu0 %v1627, 126
        %v1664 = vpop.permute.xlu0 %1663
        %1665 = vrot.lane.b32.xlu0 %v1628, 126
        %v1666 = vpop.permute.xlu0 %1665
        %1667 = vrot.lane.b32.xlu0 %v1629, 126
        %v1668 = vpop.permute.xlu0 %1667
        %1669 = vrot.lane.b32.xlu0 %v1630, 126
        %v1670 = vpop.permute.xlu0 %1669
        %1671 = vrot.lane.b32.xlu0 %v1631, 126
        %v1672 = vpop.permute.xlu0 %1671
        %1673 = vrot.lane.b32.xlu0 %v1632, 126
        %v1674 = vpop.permute.xlu0 %1673
        %1675 = vrot.lane.b32.xlu0 %v1633, 126
        %v1676 = vpop.permute.xlu0 %1675
        %1677 = vrot.lane.b32.xlu0 %v1634, 126
        %v1678 = vpop.permute.xlu0 %1677
        %1679 = vrot.lane.b32.xlu0 %v1635, 126
        %v1680 = vpop.permute.xlu0 %1679
        %1681 = vrot.lane.b32.xlu0 %v1636, 126
        %v1682 = vpop.permute.xlu0 %1681
        %1683 = vrot.lane.b32.xlu0 %v1637, 126
        %v1684 = vpop.permute.xlu0 %1683
        %1685 = vrot.lane.b32.xlu0 %v1638, 126
        %v1686 = vpop.permute.xlu0 %1685
        %v1703 = vrot.slane %v1672, 4
        %v1704 = vsel %vm990, %v1703, %v1656
        %v1706 = vunpack.c.l.s4 1983009808
        %v1707 = vunpack.c.0.s8 %v1706
        %v1708 = vperm.slane %v1704, %v1707
        %v1709 = vrot.slane %v1680, 4
        %v1710 = vsel %vm990, %v1709, %v1664
        %v1712 = vunpack.c.l.s4 1983009808
        %v1713 = vunpack.c.0.s8 %v1712
        %v1714 = vperm.slane %v1710, %v1713
        %v1715 = vrot.slane %v1714, 4
        %v1716 = vsel %vm990, %v1715, %v1708
        %v1717 = vrot.slane %v1708, 4
        %v1718 = vsel %vm990, %v1714, %v1717
        %v1720 = vunpack.c.l.s4 1934713408
        %v1721 = vunpack.c.0.s8 %v1720
        %v1722 = vperm.slane %v1716, %v1721
        %v1724 = vunpack.c.l.s4 1934713408
        %v1725 = vunpack.c.0.s8 %v1724
        %v1726 = vperm.slane %v1718, %v1725
        %v1727 = vrot.slane %v1722, 4
        %v1728 = vsel %vm990, 0, %v1727
        %v1729 = vrot.slane %v1726, 4
        %v1730 = vsel %vm990, 0, %v1729
        %v1731 = vrot.slane %v1676, 4
        %v1732 = vsel %vm990, %v1731, %v1660
        %v1734 = vunpack.c.l.s4 1983009808
        %v1735 = vunpack.c.0.s8 %v1734
        %v1736 = vperm.slane %v1732, %v1735
        %v1737 = vrot.slane %v1684, 4
        %v1738 = vsel %vm990, %v1737, %v1668
        %v1740 = vunpack.c.l.s4 1983009808
        %v1741 = vunpack.c.0.s8 %v1740
        %v1742 = vperm.slane %v1738, %v1741
        %v1743 = vrot.slane %v1742, 4
        %v1744 = vsel %vm990, %v1743, %v1736
        %v1745 = vrot.slane %v1736, 4
        %v1746 = vsel %vm990, %v1742, %v1745
        %v1748 = vunpack.c.l.s4 1934713408
        %v1749 = vunpack.c.0.s8 %v1748
        %v1750 = vperm.slane %v1744, %v1749
        %v1752 = vunpack.c.l.s4 1934713408
        %v1753 = vunpack.c.0.s8 %v1752
        %v1754 = vperm.slane %v1746, %v1753
        %v1755 = vrot.slane %v1750, 4
        %v1756 = vsel %vm990, 0, %v1755
        %v1757 = vrot.slane %v1754, 4
        %v1758 = vsel %vm990, 0, %v1757
        %v1759 = vrot.slane %v1674, 4
        %v1760 = vsel %vm990, %v1759, %v1658
        %v1762 = vunpack.c.l.s4 1983009808
        %v1763 = vunpack.c.0.s8 %v1762
        %v1764 = vperm.slane %v1760, %v1763
        %v1765 = vrot.slane %v1682, 4
        %v1766 = vsel %vm990, %v1765, %v1666
        %v1768 = vunpack.c.l.s4 1983009808
        %v1769 = vunpack.c.0.s8 %v1768
        %v1770 = vperm.slane %v1766, %v1769
        %v1771 = vrot.slane %v1770, 4
        %v1772 = vsel %vm990, %v1771, %v1764
        %v1773 = vrot.slane %v1764, 4
        %v1774 = vsel %vm990, %v1770, %v1773
        %v1776 = vunpack.c.l.s4 1934713408
        %v1777 = vunpack.c.0.s8 %v1776
        %v1778 = vperm.slane %v1772, %v1777
        %v1780 = vunpack.c.l.s4 1934713408
        %v1781 = vunpack.c.0.s8 %v1780
        %v1782 = vperm.slane %v1774, %v1781
        %v1783 = vrot.slane %v1778, 4
        %v1784 = vsel %vm990, 0, %v1783
        %v1785 = vrot.slane %v1782, 4
        %v1786 = vsel %vm990, 0, %v1785
        %v1787 = vrot.slane %v1678, 4
        %v1788 = vsel %vm990, %v1787, %v1662
        %v1790 = vunpack.c.l.s4 1983009808
        %v1791 = vunpack.c.0.s8 %v1790
        %v1792 = vperm.slane %v1788, %v1791
        %v1793 = vrot.slane %v1686, 4
        %v1794 = vsel %vm990, %v1793, %v1670
        %v1796 = vunpack.c.l.s4 1983009808
        %v1797 = vunpack.c.0.s8 %v1796
        %v1798 = vperm.slane %v1794, %v1797
        %v1799 = vrot.slane %v1798, 4
        %v1800 = vsel %vm990, %v1799, %v1792
        %v1801 = vrot.slane %v1792, 4
        %v1802 = vsel %vm990, %v1798, %v1801
        %v1804 = vunpack.c.l.s4 1934713408
        %v1805 = vunpack.c.0.s8 %v1804
        %v1806 = vperm.slane %v1800, %v1805
        %v1808 = vunpack.c.l.s4 1934713408
        %v1809 = vunpack.c.0.s8 %v1808
        %v1810 = vperm.slane %v1802, %v1809
        %v1811 = vrot.slane %v1806, 4
        %v1812 = vsel %vm990, 0, %v1811
        %v1813 = vrot.slane %v1810, 4
        %v1814 = vsel %vm990, 0, %v1813
        %v1817 = vpack.i.b16 %v1750, %v1722
        %v1818 = vshrl.u32 %v1722, 16
        %v1819 = vshrl.u32 %v1750, 16
        %v1820 = vpack.i.b16 %v1819, %v1818
        %v1823 = vpack.i.b16 %v1756, %v1728
        %v1824 = vshrl.u32 %v1728, 16
        %v1825 = vshrl.u32 %v1756, 16
        %v1826 = vpack.i.b16 %v1825, %v1824
        %v1829 = vpack.i.b16 %v1754, %v1726
        %v1830 = vshrl.u32 %v1726, 16
        %v1831 = vshrl.u32 %v1754, 16
        %v1832 = vpack.i.b16 %v1831, %v1830
        %v1835 = vpack.i.b16 %v1758, %v1730
        %v1836 = vshrl.u32 %v1730, 16
        %v1837 = vshrl.u32 %v1758, 16
        %v1838 = vpack.i.b16 %v1837, %v1836
        %v1841 = vpack.i.b16 %v1806, %v1778
        %v1842 = vshrl.u32 %v1778, 16
        %v1843 = vshrl.u32 %v1806, 16
        %v1844 = vpack.i.b16 %v1843, %v1842
        %v1847 = vpack.i.b16 %v1812, %v1784
        %v1848 = vshrl.u32 %v1784, 16
        %v1849 = vshrl.u32 %v1812, 16
        %v1850 = vpack.i.b16 %v1849, %v1848
        %v1853 = vpack.i.b16 %v1810, %v1782
        %v1854 = vshrl.u32 %v1782, 16
        %v1855 = vshrl.u32 %v1810, 16
        %v1856 = vpack.i.b16 %v1855, %v1854
        %v1859 = vpack.i.b16 %v1814, %v1786
        %v1860 = vshrl.u32 %v1786, 16
        %v1861 = vshrl.u32 %v1814, 16
        %v1862 = vpack.i.b16 %v1861, %v1860
        %v1863 = vunpack.c.l.b16 %v1820
        %v1864 = vpack.c.b16 %v1863, %v1863
        %1865 = vrot.lane.b32.xlu0 %v1864, 16
        %v1866 = vpop.permute.xlu0 %1865
        %v1867 = vunpack.c.l.b16 %v1823
        %v1868 = vpack.c.b16 %v1867, %v1867
        %1869 = vrot.lane.b32.xlu0 %v1868, 32
        %v1870 = vpop.permute.xlu0 %1869
        %v1871 = vunpack.c.l.b16 %v1826
        %v1872 = vpack.c.b16 %v1871, %v1871
        %1873 = vrot.lane.b32.xlu0 %v1872, 48
        %v1874 = vpop.permute.xlu0 %1873
        %v1875 = vunpack.c.l.b16 %v1829
        %v1876 = vpack.c.b16 %v1875, %v1875
        %1877 = vrot.lane.b32.xlu0 %v1876, 64
        %v1878 = vpop.permute.xlu0 %1877
        %v1879 = vunpack.c.l.b16 %v1832
        %v1880 = vpack.c.b16 %v1879, %v1879
        %1881 = vrot.lane.b32.xlu0 %v1880, 80
        %v1882 = vpop.permute.xlu0 %1881
        %v1883 = vunpack.c.l.b16 %v1835
        %v1884 = vpack.c.b16 %v1883, %v1883
        %1885 = vrot.lane.b32.xlu0 %v1884, 96
        %v1886 = vpop.permute.xlu0 %1885
        %v1887 = vunpack.c.l.b16 %v1838
        %v1888 = vpack.c.b16 %v1887, %v1887
        %1889 = vrot.lane.b32.xlu0 %v1888, 112
        %v1890 = vpop.permute.xlu0 %1889
        %v1891 = vunpack.c.l.b16 %v1844
        %v1892 = vpack.c.b16 %v1891, %v1891
        %1893 = vrot.lane.b32.xlu0 %v1892, 16
        %v1894 = vpop.permute.xlu0 %1893
        %v1895 = vunpack.c.l.b16 %v1847
        %v1896 = vpack.c.b16 %v1895, %v1895
        %1897 = vrot.lane.b32.xlu0 %v1896, 32
        %v1898 = vpop.permute.xlu0 %1897
        %v1899 = vunpack.c.l.b16 %v1850
        %v1900 = vpack.c.b16 %v1899, %v1899
        %1901 = vrot.lane.b32.xlu0 %v1900, 48
        %v1902 = vpop.permute.xlu0 %1901
        %v1903 = vunpack.c.l.b16 %v1853
        %v1904 = vpack.c.b16 %v1903, %v1903
        %1905 = vrot.lane.b32.xlu0 %v1904, 64
        %v1906 = vpop.permute.xlu0 %1905
        %v1907 = vunpack.c.l.b16 %v1856
        %v1908 = vpack.c.b16 %v1907, %v1907
        %1909 = vrot.lane.b32.xlu0 %v1908, 80
        %v1910 = vpop.permute.xlu0 %1909
        %v1911 = vunpack.c.l.b16 %v1859
        %v1912 = vpack.c.b16 %v1911, %v1911
        %1913 = vrot.lane.b32.xlu0 %v1912, 96
        %v1914 = vpop.permute.xlu0 %1913
        %v1915 = vunpack.c.l.b16 %v1862
        %v1916 = vpack.c.b16 %v1915, %v1915
        %1917 = vrot.lane.b32.xlu0 %v1916, 112
        %v1918 = vpop.permute.xlu0 %1917
        %v1921 = vsel %vm1206, %v1817, %v1866
        %v1923 = vsel %vm1210, %v1921, %v1870
        %v1925 = vsel %vm1213, %v1923, %v1874
        %v1927 = vsel %vm1216, %v1925, %v1878
        %v1929 = vsel %vm1219, %v1927, %v1882
        %v1931 = vsel %vm1222, %v1929, %v1886
        %v1933 = vsel %vm1225, %v1931, %v1890
        %v1936 = vsel %vm1206, %v1841, %v1894
        %v1938 = vsel %vm1210, %v1936, %v1898
        %v1940 = vsel %vm1213, %v1938, %v1902
        %v1942 = vsel %vm1216, %v1940, %v1906
        %v1944 = vsel %vm1219, %v1942, %v1910
        %v1946 = vsel %vm1222, %v1944, %v1914
        %v1948 = vsel %vm1225, %v1946, %v1918
        %s1949 = scalar_lea.vmem %s4, 4
        %v1950 = vld [vmem:[%s1949] sm:$0x3]
        %v1952 = vsel %vm430, %v1950, 0
        %v1954 = vsel %vm1559, %v1933, 0
        %v1956 = vsel %vm1559, %v1948, 0
        %1958 = vmatpush.bf16.msra.mxu0 0
        %1959 = vmatpush.bf16.msra.mxu0 0
        %1960 = vmatpush.bf16.msra.mxu0 0
        %1961 = vmatpush.bf16.msra.mxu0 0
        %1962 = vmatpush.bf16.msra.mxu0 0
        %1963 = vmatpush.bf16.msra.mxu0 0
        %1964 = vmatpush.bf16.msra.mxu0 0
        %1965 = vmatpush.bf16.msra.mxu0 %v1954
        %1966 = vmatmul.bf16.gmra.mxu0 %v1952
        %v1967 = vpop.f32.mrf.mxu0
        %v1968 = vadd.f32 0.0, %v1967
        %v1969 = vpop.f32.mrf.mxu0
        %1970 = vdwg.mxu0
        %1971 = vmatpush.bf16.msra.mxu0 0
        %1972 = vmatpush.bf16.msra.mxu0 0
        %1973 = vmatpush.bf16.msra.mxu0 0
        %1974 = vmatpush.bf16.msra.mxu0 0
        %1975 = vmatpush.bf16.msra.mxu0 0
        %1976 = vmatpush.bf16.msra.mxu0 0
        %1977 = vmatpush.bf16.msra.mxu0 0
        %1978 = vmatpush.bf16.msra.mxu0 %v1956
        %1979 = vmatmul.bf16.gmra.mxu0 %v1952
        %v1980 = vpop.f32.mrf.mxu0
        %v1981 = vadd.f32 0.0, %v1980
        %v1982 = vpop.f32.mrf.mxu0
        %1983 = vdwg.mxu0
        %v1984 = vadd.f32 %v1607, %v1968
        %v1985 = vadd.f32 %v1620, %v1981
        %v1986 = vld [vmem:[#allocation2] sm:$0xf]
        %v1987 = vld [vmem:[#allocation2 + $0x4] sm:$0xf]
        %v1988 = vld [vmem:[#allocation2 + $0x8] sm:$0x1]
        %v1989 = vld [vmem:[#allocation2 + $0xc] sm:$0xf]
        %v1990 = vld [vmem:[#allocation2 + $0x10] sm:$0xf]
        %v1991 = vld [vmem:[#allocation2 + $0x14] sm:$0x1]
        %v1992 = vld [vmem:[#allocation2 + $0x18] sm:$0xf]
        %v1993 = vld [vmem:[#allocation2 + $0x1c] sm:$0xf]
        %v1994 = vld [vmem:[#allocation2 + $0x20] sm:$0x1]
        %v1995 = vld [vmem:[#allocation2 + $0x24] sm:$0xf]
        %v1996 = vld [vmem:[#allocation2 + $0x28] sm:$0xf]
        %v1997 = vld [vmem:[#allocation2 + $0x2c] sm:$0x1]
        %v1998 = vld [vmem:[#allocation2 + $0x30] sm:$0xf]
        %v1999 = vld [vmem:[#allocation2 + $0x34] sm:$0xf]
        %v2000 = vld [vmem:[#allocation2 + $0x38] sm:$0x1]
        %v2001 = vld [vmem:[#allocation2 + $0x3c] sm:$0xf]
        %v2002 = vld [vmem:[#allocation2 + $0x40] sm:$0xf]
        %v2003 = vld [vmem:[#allocation2 + $0x44] sm:$0x1]
        %v2004 = vld [vmem:[#allocation2 + $0x48] sm:$0xf]
        %v2005 = vld [vmem:[#allocation2 + $0x4c] sm:$0xf]
        %v2006 = vld [vmem:[#allocation2 + $0x50] sm:$0x1]
        %v2007 = vld [vmem:[#allocation2 + $0x54] sm:$0xf]
        %v2008 = vld [vmem:[#allocation2 + $0x58] sm:$0xf]
        %v2009 = vld [vmem:[#allocation2 + $0x5c] sm:$0x1]
        %vm2010 = vsmask.f32 3328
        %vm2011 = vsmask.f32 7440
        %vm2012 = vmor %vm2010, %vm2011
        %v2014 = vshrl.u32 %v1986, 16
        %v2016 = vrot.slane %v2014, 4
        %v2017 = vshll.u32 %v1986, 16
        %v2019 = vrot.slane %v2017, 5
        %v2020 = vor.u32 %v2016, %v2019
        %v2021 = vrot.slane %v2020, 4
        %v2023 = vshll.u32 %v1987, 16
        %v2025 = vrot.slane %v2023, 5
        %v2026 = vsel %vm2012, %v2021, %v2025
        %v2027 = vshrl.u32 %v1987, 16
        %v2029 = vrot.slane %v2027, 4
        %v2030 = vor.u32 %v2029, %v2025
        %v2031 = vrot.slane %v2030, 4
        %v2033 = vshll.u32 %v1988, 16
        %v2035 = vrot.slane %v2033, 5
        %v2036 = vsel %vm2012, %v2031, %v2035
        %v2038 = vshrl.u32 %v1989, 16
        %v2040 = vrot.slane %v2038, 4
        %v2041 = vshll.u32 %v1989, 16
        %v2043 = vrot.slane %v2041, 5
        %v2044 = vor.u32 %v2040, %v2043
        %v2045 = vrot.slane %v2044, 4
        %v2047 = vshll.u32 %v1990, 16
        %v2049 = vrot.slane %v2047, 5
        %v2050 = vsel %vm2012, %v2045, %v2049
        %v2051 = vshrl.u32 %v1990, 16
        %v2053 = vrot.slane %v2051, 4
        %v2054 = vor.u32 %v2053, %v2049
        %v2055 = vrot.slane %v2054, 4
        %v2057 = vshll.u32 %v1991, 16
        %v2059 = vrot.slane %v2057, 5
        %v2060 = vsel %vm2012, %v2055, %v2059
        %v2062 = vshrl.u32 %v1992, 16
        %v2064 = vrot.slane %v2062, 4
        %v2065 = vshll.u32 %v1992, 16
        %v2067 = vrot.slane %v2065, 5
        %v2068 = vor.u32 %v2064, %v2067
        %v2069 = vrot.slane %v2068, 4
        %v2071 = vshll.u32 %v1993, 16
        %v2073 = vrot.slane %v2071, 5
        %v2074 = vsel %vm2012, %v2069, %v2073
        %v2075 = vshrl.u32 %v1993, 16
        %v2077 = vrot.slane %v2075, 4
        %v2078 = vor.u32 %v2077, %v2073
        %v2079 = vrot.slane %v2078, 4
        %v2081 = vshll.u32 %v1994, 16
        %v2083 = vrot.slane %v2081, 5
        %v2084 = vsel %vm2012, %v2079, %v2083
        %v2086 = vshrl.u32 %v1995, 16
        %v2088 = vrot.slane %v2086, 4
        %v2089 = vshll.u32 %v1995, 16
        %v2091 = vrot.slane %v2089, 5
        %v2092 = vor.u32 %v2088, %v2091
        %v2093 = vrot.slane %v2092, 4
        %v2095 = vshll.u32 %v1996, 16
        %v2097 = vrot.slane %v2095, 5
        %v2098 = vsel %vm2012, %v2093, %v2097
        %v2099 = vshrl.u32 %v1996, 16
        %v2101 = vrot.slane %v2099, 4
        %v2102 = vor.u32 %v2101, %v2097
        %v2103 = vrot.slane %v2102, 4
        %v2105 = vshll.u32 %v1997, 16
        %v2107 = vrot.slane %v2105, 5
        %v2108 = vsel %vm2012, %v2103, %v2107
        %v2110 = vshrl.u32 %v1998, 16
        %v2112 = vrot.slane %v2110, 4
        %v2113 = vshll.u32 %v1998, 16
        %v2115 = vrot.slane %v2113, 5
        %v2116 = vor.u32 %v2112, %v2115
        %v2117 = vrot.slane %v2116, 4
        %v2119 = vshll.u32 %v1999, 16
        %v2121 = vrot.slane %v2119, 5
        %v2122 = vsel %vm2012, %v2117, %v2121
        %v2123 = vshrl.u32 %v1999, 16
        %v2125 = vrot.slane %v2123, 4
        %v2126 = vor.u32 %v2125, %v2121
        %v2127 = vrot.slane %v2126, 4
        %v2129 = vshll.u32 %v2000, 16
        %v2131 = vrot.slane %v2129, 5
        %v2132 = vsel %vm2012, %v2127, %v2131
        %v2134 = vshrl.u32 %v2001, 16
        %v2136 = vrot.slane %v2134, 4
        %v2137 = vshll.u32 %v2001, 16
        %v2139 = vrot.slane %v2137, 5
        %v2140 = vor.u32 %v2136, %v2139
        %v2141 = vrot.slane %v2140, 4
        %v2143 = vshll.u32 %v2002, 16
        %v2145 = vrot.slane %v2143, 5
        %v2146 = vsel %vm2012, %v2141, %v2145
        %v2147 = vshrl.u32 %v2002, 16
        %v2149 = vrot.slane %v2147, 4
        %v2150 = vor.u32 %v2149, %v2145
        %v2151 = vrot.slane %v2150, 4
        %v2153 = vshll.u32 %v2003, 16
        %v2155 = vrot.slane %v2153, 5
        %v2156 = vsel %vm2012, %v2151, %v2155
        %v2158 = vshrl.u32 %v2004, 16
        %v2160 = vrot.slane %v2158, 4
        %v2161 = vshll.u32 %v2004, 16
        %v2163 = vrot.slane %v2161, 5
        %v2164 = vor.u32 %v2160, %v2163
        %v2165 = vrot.slane %v2164, 4
        %v2167 = vshll.u32 %v2005, 16
        %v2169 = vrot.slane %v2167, 5
        %v2170 = vsel %vm2012, %v2165, %v2169
        %v2171 = vshrl.u32 %v2005, 16
        %v2173 = vrot.slane %v2171, 4
        %v2174 = vor.u32 %v2173, %v2169
        %v2175 = vrot.slane %v2174, 4
        %v2177 = vshll.u32 %v2006, 16
        %v2179 = vrot.slane %v2177, 5
        %v2180 = vsel %vm2012, %v2175, %v2179
        %v2182 = vshrl.u32 %v2007, 16
        %v2184 = vrot.slane %v2182, 4
        %v2185 = vshll.u32 %v2007, 16
        %v2187 = vrot.slane %v2185, 5
        %v2188 = vor.u32 %v2184, %v2187
        %v2189 = vrot.slane %v2188, 4
        %v2191 = vshll.u32 %v2008, 16
        %v2193 = vrot.slane %v2191, 5
        %v2194 = vsel %vm2012, %v2189, %v2193
        %v2195 = vshrl.u32 %v2008, 16
        %v2197 = vrot.slane %v2195, 4
        %v2198 = vor.u32 %v2197, %v2193
        %v2199 = vrot.slane %v2198, 4
        %v2201 = vshll.u32 %v2009, 16
        %v2203 = vrot.slane %v2201, 5
        %v2204 = vsel %vm2012, %v2199, %v2203
        %v2221 = vrot.slane %v2122, 4
        %v2222 = vsel %vm990, %v2221, %v2026
        %v2224 = vunpack.c.l.s4 1983009808
        %v2225 = vunpack.c.0.s8 %v2224
        %v2226 = vperm.slane %v2222, %v2225
        %v2227 = vrot.slane %v2170, 4
        %v2228 = vsel %vm990, %v2227, %v2074
        %v2230 = vunpack.c.l.s4 1983009808
        %v2231 = vunpack.c.0.s8 %v2230
        %v2232 = vperm.slane %v2228, %v2231
        %v2233 = vrot.slane %v2232, 4
        %v2234 = vsel %vm990, %v2233, %v2226
        %v2235 = vrot.slane %v2226, 4
        %v2236 = vsel %vm990, %v2232, %v2235
        %v2238 = vunpack.c.l.s4 1934713408
        %v2239 = vunpack.c.0.s8 %v2238
        %v2240 = vperm.slane %v2234, %v2239
        %v2242 = vunpack.c.l.s4 1934713408
        %v2243 = vunpack.c.0.s8 %v2242
        %v2244 = vperm.slane %v2236, %v2243
        %v2245 = vrot.slane %v2240, 4
        %v2246 = vsel %vm990, 0, %v2245
        %v2247 = vrot.slane %v2244, 4
        %v2248 = vsel %vm990, 0, %v2247
        %v2249 = vrot.slane %v2146, 4
        %v2250 = vsel %vm990, %v2249, %v2050
        %v2252 = vunpack.c.l.s4 1983009808
        %v2253 = vunpack.c.0.s8 %v2252
        %v2254 = vperm.slane %v2250, %v2253
        %v2255 = vrot.slane %v2194, 4
        %v2256 = vsel %vm990, %v2255, %v2098
        %v2258 = vunpack.c.l.s4 1983009808
        %v2259 = vunpack.c.0.s8 %v2258
        %v2260 = vperm.slane %v2256, %v2259
        %v2261 = vrot.slane %v2260, 4
        %v2262 = vsel %vm990, %v2261, %v2254
        %v2263 = vrot.slane %v2254, 4
        %v2264 = vsel %vm990, %v2260, %v2263
        %v2266 = vunpack.c.l.s4 1934713408
        %v2267 = vunpack.c.0.s8 %v2266
        %v2268 = vperm.slane %v2262, %v2267
        %v2270 = vunpack.c.l.s4 1934713408
        %v2271 = vunpack.c.0.s8 %v2270
        %v2272 = vperm.slane %v2264, %v2271
        %v2273 = vrot.slane %v2268, 4
        %v2274 = vsel %vm990, 0, %v2273
        %v2275 = vrot.slane %v2272, 4
        %v2276 = vsel %vm990, 0, %v2275
        %v2277 = vrot.slane %v2132, 4
        %v2278 = vsel %vm990, %v2277, %v2036
        %v2280 = vunpack.c.l.s4 1983009808
        %v2281 = vunpack.c.0.s8 %v2280
        %v2282 = vperm.slane %v2278, %v2281
        %v2283 = vrot.slane %v2180, 4
        %v2284 = vsel %vm990, %v2283, %v2084
        %v2286 = vunpack.c.l.s4 1983009808
        %v2287 = vunpack.c.0.s8 %v2286
        %v2288 = vperm.slane %v2284, %v2287
        %v2289 = vrot.slane %v2288, 4
        %v2290 = vsel %vm990, %v2289, %v2282
        %v2291 = vrot.slane %v2282, 4
        %v2292 = vsel %vm990, %v2288, %v2291
        %v2294 = vunpack.c.l.s4 1934713408
        %v2295 = vunpack.c.0.s8 %v2294
        %v2296 = vperm.slane %v2290, %v2295
        %v2298 = vunpack.c.l.s4 1934713408
        %v2299 = vunpack.c.0.s8 %v2298
        %v2300 = vperm.slane %v2292, %v2299
        %v2301 = vrot.slane %v2296, 4
        %v2302 = vsel %vm990, 0, %v2301
        %v2303 = vrot.slane %v2300, 4
        %v2304 = vsel %vm990, 0, %v2303
        %v2305 = vrot.slane %v2156, 4
        %v2306 = vsel %vm990, %v2305, %v2060
        %v2308 = vunpack.c.l.s4 1983009808
        %v2309 = vunpack.c.0.s8 %v2308
        %v2310 = vperm.slane %v2306, %v2309
        %v2311 = vrot.slane %v2204, 4
        %v2312 = vsel %vm990, %v2311, %v2108
        %v2314 = vunpack.c.l.s4 1983009808
        %v2315 = vunpack.c.0.s8 %v2314
        %v2316 = vperm.slane %v2312, %v2315
        %v2317 = vrot.slane %v2316, 4
        %v2318 = vsel %vm990, %v2317, %v2310
        %v2319 = vrot.slane %v2310, 4
        %v2320 = vsel %vm990, %v2316, %v2319
        %v2322 = vunpack.c.l.s4 1934713408
        %v2323 = vunpack.c.0.s8 %v2322
        %v2324 = vperm.slane %v2318, %v2323
        %v2326 = vunpack.c.l.s4 1934713408
        %v2327 = vunpack.c.0.s8 %v2326
        %v2328 = vperm.slane %v2320, %v2327
        %v2329 = vrot.slane %v2324, 4
        %v2330 = vsel %vm990, 0, %v2329
        %v2331 = vrot.slane %v2328, 4
        %v2332 = vsel %vm990, 0, %v2331
        %v2335 = vpack.i.b16 %v2268, %v2240
        %v2336 = vshrl.u32 %v2240, 16
        %v2337 = vshrl.u32 %v2268, 16
        %v2338 = vpack.i.b16 %v2337, %v2336
        %v2341 = vpack.i.b16 %v2274, %v2246
        %v2342 = vshrl.u32 %v2246, 16
        %v2343 = vshrl.u32 %v2274, 16
        %v2344 = vpack.i.b16 %v2343, %v2342
        %v2347 = vpack.i.b16 %v2272, %v2244
        %v2348 = vshrl.u32 %v2244, 16
        %v2349 = vshrl.u32 %v2272, 16
        %v2350 = vpack.i.b16 %v2349, %v2348
        %v2353 = vpack.i.b16 %v2276, %v2248
        %v2354 = vshrl.u32 %v2248, 16
        %v2355 = vshrl.u32 %v2276, 16
        %v2356 = vpack.i.b16 %v2355, %v2354
        %v2359 = vpack.i.b16 %v2324, %v2296
        %v2360 = vshrl.u32 %v2296, 16
        %v2361 = vshrl.u32 %v2324, 16
        %v2362 = vpack.i.b16 %v2361, %v2360
        %v2365 = vpack.i.b16 %v2330, %v2302
        %v2366 = vshrl.u32 %v2302, 16
        %v2367 = vshrl.u32 %v2330, 16
        %v2368 = vpack.i.b16 %v2367, %v2366
        %v2371 = vpack.i.b16 %v2328, %v2300
        %v2372 = vshrl.u32 %v2300, 16
        %v2373 = vshrl.u32 %v2328, 16
        %v2374 = vpack.i.b16 %v2373, %v2372
        %v2377 = vpack.i.b16 %v2332, %v2304
        %v2378 = vshrl.u32 %v2304, 16
        %v2379 = vshrl.u32 %v2332, 16
        %v2380 = vpack.i.b16 %v2379, %v2378
        %v2381 = vunpack.c.l.b16 %v2338
        %v2382 = vpack.c.b16 %v2381, %v2381
        %2383 = vrot.lane.b32.xlu0 %v2382, 16
        %v2384 = vpop.permute.xlu0 %2383
        %v2385 = vunpack.c.l.b16 %v2341
        %v2386 = vpack.c.b16 %v2385, %v2385
        %2387 = vrot.lane.b32.xlu0 %v2386, 32
        %v2388 = vpop.permute.xlu0 %2387
        %v2389 = vunpack.c.l.b16 %v2344
        %v2390 = vpack.c.b16 %v2389, %v2389
        %2391 = vrot.lane.b32.xlu0 %v2390, 48
        %v2392 = vpop.permute.xlu0 %2391
        %v2393 = vunpack.c.l.b16 %v2347
        %v2394 = vpack.c.b16 %v2393, %v2393
        %2395 = vrot.lane.b32.xlu0 %v2394, 64
        %v2396 = vpop.permute.xlu0 %2395
        %v2397 = vunpack.c.l.b16 %v2350
        %v2398 = vpack.c.b16 %v2397, %v2397
        %2399 = vrot.lane.b32.xlu0 %v2398, 80
        %v2400 = vpop.permute.xlu0 %2399
        %v2401 = vunpack.c.l.b16 %v2353
        %v2402 = vpack.c.b16 %v2401, %v2401
        %2403 = vrot.lane.b32.xlu0 %v2402, 96
        %v2404 = vpop.permute.xlu0 %2403
        %v2405 = vunpack.c.l.b16 %v2356
        %v2406 = vpack.c.b16 %v2405, %v2405
        %2407 = vrot.lane.b32.xlu0 %v2406, 112
        %v2408 = vpop.permute.xlu0 %2407
        %v2409 = vunpack.c.l.b16 %v2362
        %v2410 = vpack.c.b16 %v2409, %v2409
        %2411 = vrot.lane.b32.xlu0 %v2410, 16
        %v2412 = vpop.permute.xlu0 %2411
        %v2413 = vunpack.c.l.b16 %v2365
        %v2414 = vpack.c.b16 %v2413, %v2413
        %2415 = vrot.lane.b32.xlu0 %v2414, 32
        %v2416 = vpop.permute.xlu0 %2415
        %v2417 = vunpack.c.l.b16 %v2368
        %v2418 = vpack.c.b16 %v2417, %v2417
        %2419 = vrot.lane.b32.xlu0 %v2418, 48
        %v2420 = vpop.permute.xlu0 %2419
        %v2421 = vunpack.c.l.b16 %v2371
        %v2422 = vpack.c.b16 %v2421, %v2421
        %2423 = vrot.lane.b32.xlu0 %v2422, 64
        %v2424 = vpop.permute.xlu0 %2423
        %v2425 = vunpack.c.l.b16 %v2374
        %v2426 = vpack.c.b16 %v2425, %v2425
        %2427 = vrot.lane.b32.xlu0 %v2426, 80
        %v2428 = vpop.permute.xlu0 %2427
        %v2429 = vunpack.c.l.b16 %v2377
        %v2430 = vpack.c.b16 %v2429, %v2429
        %2431 = vrot.lane.b32.xlu0 %v2430, 96
        %v2432 = vpop.permute.xlu0 %2431
        %v2433 = vunpack.c.l.b16 %v2380
        %v2434 = vpack.c.b16 %v2433, %v2433
        %2435 = vrot.lane.b32.xlu0 %v2434, 112
        %v2436 = vpop.permute.xlu0 %2435
        %v2439 = vsel %vm1206, %v2335, %v2384
        %v2441 = vsel %vm1210, %v2439, %v2388
        %v2443 = vsel %vm1213, %v2441, %v2392
        %v2445 = vsel %vm1216, %v2443, %v2396
        %v2447 = vsel %vm1219, %v2445, %v2400
        %v2449 = vsel %vm1222, %v2447, %v2404
        %v2451 = vsel %vm1225, %v2449, %v2408
        %v2454 = vsel %vm1206, %v2359, %v2412
        %v2456 = vsel %vm1210, %v2454, %v2416
        %v2458 = vsel %vm1213, %v2456, %v2420
        %v2460 = vsel %vm1216, %v2458, %v2424
        %v2462 = vsel %vm1219, %v2460, %v2428
        %v2464 = vsel %vm1222, %v2462, %v2432
        %v2466 = vsel %vm1225, %v2464, %v2436
        %s2467 = scalar_lea.vmem %s4, 6
        %v2468 = vld [vmem:[%s2467] sm:$0x3]
        %v2470 = vsel %vm430, %v2468, 0
        %v2472 = vsel %vm1559, %v2451, 0
        %v2474 = vsel %vm1559, %v2466, 0
        %2476 = vmatpush.bf16.msra.mxu0 0
        %2477 = vmatpush.bf16.msra.mxu0 0
        %2478 = vmatpush.bf16.msra.mxu0 0
        %2479 = vmatpush.bf16.msra.mxu0 0
        %2480 = vmatpush.bf16.msra.mxu0 0
        %2481 = vmatpush.bf16.msra.mxu0 0
        %2482 = vmatpush.bf16.msra.mxu0 0
        %2483 = vmatpush.bf16.msra.mxu0 %v2472
        %2484 = vmatmul.bf16.gmra.mxu0 %v2470
        %v2485 = vpop.f32.mrf.mxu0
        %v2486 = vadd.f32 0.0, %v2485
        %v2487 = vpop.f32.mrf.mxu0
        %2488 = vdwg.mxu0
        %2489 = vmatpush.bf16.msra.mxu0 0
        %2490 = vmatpush.bf16.msra.mxu0 0
        %2491 = vmatpush.bf16.msra.mxu0 0
        %2492 = vmatpush.bf16.msra.mxu0 0
        %2493 = vmatpush.bf16.msra.mxu0 0
        %2494 = vmatpush.bf16.msra.mxu0 0
        %2495 = vmatpush.bf16.msra.mxu0 0
        %2496 = vmatpush.bf16.msra.mxu0 %v2474
        %2497 = vmatmul.bf16.gmra.mxu0 %v2470
        %v2498 = vpop.f32.mrf.mxu0
        %v2499 = vadd.f32 0.0, %v2498
        %v2500 = vpop.f32.mrf.mxu0
        %2501 = vdwg.mxu0
        %v2502 = vadd.f32 %v1984, %v2486
        %v2503 = vadd.f32 %v1985, %v2499
        %v2504 = vld [vmem:[#allocation2] sm:$0xf]
        %v2505 = vld [vmem:[#allocation2 + $0x4] sm:$0xf]
        %v2506 = vld [vmem:[#allocation2 + $0x8] sm:$0x1]
        %v2507 = vld [vmem:[#allocation2 + $0xc] sm:$0xf]
        %v2508 = vld [vmem:[#allocation2 + $0x10] sm:$0xf]
        %v2509 = vld [vmem:[#allocation2 + $0x14] sm:$0x1]
        %v2510 = vld [vmem:[#allocation2 + $0x18] sm:$0xf]
        %v2511 = vld [vmem:[#allocation2 + $0x1c] sm:$0xf]
        %v2512 = vld [vmem:[#allocation2 + $0x20] sm:$0x1]
        %v2513 = vld [vmem:[#allocation2 + $0x24] sm:$0xf]
        %v2514 = vld [vmem:[#allocation2 + $0x28] sm:$0xf]
        %v2515 = vld [vmem:[#allocation2 + $0x2c] sm:$0x1]
        %v2516 = vld [vmem:[#allocation2 + $0x30] sm:$0xf]
        %v2517 = vld [vmem:[#allocation2 + $0x34] sm:$0xf]
        %v2518 = vld [vmem:[#allocation2 + $0x38] sm:$0x1]
        %v2519 = vld [vmem:[#allocation2 + $0x3c] sm:$0xf]
        %v2520 = vld [vmem:[#allocation2 + $0x40] sm:$0xf]
        %v2521 = vld [vmem:[#allocation2 + $0x44] sm:$0x1]
        %v2522 = vld [vmem:[#allocation2 + $0x48] sm:$0xf]
        %v2523 = vld [vmem:[#allocation2 + $0x4c] sm:$0xf]
        %v2524 = vld [vmem:[#allocation2 + $0x50] sm:$0x1]
        %v2525 = vld [vmem:[#allocation2 + $0x54] sm:$0xf]
        %v2526 = vld [vmem:[#allocation2 + $0x58] sm:$0xf]
        %v2527 = vld [vmem:[#allocation2 + $0x5c] sm:$0x1]
        %v2529 = vshrl.u32 %v2504, 16
        %v2531 = vrot.slane %v2529, 4
        %v2532 = vshll.u32 %v2504, 16
        %v2534 = vrot.slane %v2532, 5
        %v2535 = vor.u32 %v2531, %v2534
        %v2536 = vrot.slane %v2535, 4
        %v2538 = vshll.u32 %v2505, 16
        %v2540 = vrot.slane %v2538, 5
        %v2541 = vsel %vm2012, %v2536, %v2540
        %v2542 = vshrl.u32 %v2505, 16
        %v2544 = vrot.slane %v2542, 4
        %v2545 = vor.u32 %v2544, %v2540
        %v2546 = vrot.slane %v2545, 4
        %v2548 = vshll.u32 %v2506, 16
        %v2550 = vrot.slane %v2548, 5
        %v2551 = vsel %vm2012, %v2546, %v2550
        %v2553 = vshrl.u32 %v2507, 16
        %v2555 = vrot.slane %v2553, 4
        %v2556 = vshll.u32 %v2507, 16
        %v2558 = vrot.slane %v2556, 5
        %v2559 = vor.u32 %v2555, %v2558
        %v2560 = vrot.slane %v2559, 4
        %v2562 = vshll.u32 %v2508, 16
        %v2564 = vrot.slane %v2562, 5
        %v2565 = vsel %vm2012, %v2560, %v2564
        %v2566 = vshrl.u32 %v2508, 16
        %v2568 = vrot.slane %v2566, 4
        %v2569 = vor.u32 %v2568, %v2564
        %v2570 = vrot.slane %v2569, 4
        %v2572 = vshll.u32 %v2509, 16
        %v2574 = vrot.slane %v2572, 5
        %v2575 = vsel %vm2012, %v2570, %v2574
        %v2577 = vshrl.u32 %v2510, 16
        %v2579 = vrot.slane %v2577, 4
        %v2580 = vshll.u32 %v2510, 16
        %v2582 = vrot.slane %v2580, 5
        %v2583 = vor.u32 %v2579, %v2582
        %v2584 = vrot.slane %v2583, 4
        %v2586 = vshll.u32 %v2511, 16
        %v2588 = vrot.slane %v2586, 5
        %v2589 = vsel %vm2012, %v2584, %v2588
        %v2590 = vshrl.u32 %v2511, 16
        %v2592 = vrot.slane %v2590, 4
        %v2593 = vor.u32 %v2592, %v2588
        %v2594 = vrot.slane %v2593, 4
        %v2596 = vshll.u32 %v2512, 16
        %v2598 = vrot.slane %v2596, 5
        %v2599 = vsel %vm2012, %v2594, %v2598
        %v2601 = vshrl.u32 %v2513, 16
        %v2603 = vrot.slane %v2601, 4
        %v2604 = vshll.u32 %v2513, 16
        %v2606 = vrot.slane %v2604, 5
        %v2607 = vor.u32 %v2603, %v2606
        %v2608 = vrot.slane %v2607, 4
        %v2610 = vshll.u32 %v2514, 16
        %v2612 = vrot.slane %v2610, 5
        %v2613 = vsel %vm2012, %v2608, %v2612
        %v2614 = vshrl.u32 %v2514, 16
        %v2616 = vrot.slane %v2614, 4
        %v2617 = vor.u32 %v2616, %v2612
        %v2618 = vrot.slane %v2617, 4
        %v2620 = vshll.u32 %v2515, 16
        %v2622 = vrot.slane %v2620, 5
        %v2623 = vsel %vm2012, %v2618, %v2622
        %v2625 = vshrl.u32 %v2516, 16
        %v2627 = vrot.slane %v2625, 4
        %v2628 = vshll.u32 %v2516, 16
        %v2630 = vrot.slane %v2628, 5
        %v2631 = vor.u32 %v2627, %v2630
        %v2632 = vrot.slane %v2631, 4
        %v2634 = vshll.u32 %v2517, 16
        %v2636 = vrot.slane %v2634, 5
        %v2637 = vsel %vm2012, %v2632, %v2636
        %v2638 = vshrl.u32 %v2517, 16
        %v2640 = vrot.slane %v2638, 4
        %v2641 = vor.u32 %v2640, %v2636
        %v2642 = vrot.slane %v2641, 4
        %v2644 = vshll.u32 %v2518, 16
        %v2646 = vrot.slane %v2644, 5
        %v2647 = vsel %vm2012, %v2642, %v2646
        %v2649 = vshrl.u32 %v2519, 16
        %v2651 = vrot.slane %v2649, 4
        %v2652 = vshll.u32 %v2519, 16
        %v2654 = vrot.slane %v2652, 5
        %v2655 = vor.u32 %v2651, %v2654
        %v2656 = vrot.slane %v2655, 4
        %v2658 = vshll.u32 %v2520, 16
        %v2660 = vrot.slane %v2658, 5
        %v2661 = vsel %vm2012, %v2656, %v2660
        %v2662 = vshrl.u32 %v2520, 16
        %v2664 = vrot.slane %v2662, 4
        %v2665 = vor.u32 %v2664, %v2660
        %v2666 = vrot.slane %v2665, 4
        %v2668 = vshll.u32 %v2521, 16
        %v2670 = vrot.slane %v2668, 5
        %v2671 = vsel %vm2012, %v2666, %v2670
        %v2673 = vshrl.u32 %v2522, 16
        %v2675 = vrot.slane %v2673, 4
        %v2676 = vshll.u32 %v2522, 16
        %v2678 = vrot.slane %v2676, 5
        %v2679 = vor.u32 %v2675, %v2678
        %v2680 = vrot.slane %v2679, 4
        %v2682 = vshll.u32 %v2523, 16
        %v2684 = vrot.slane %v2682, 5
        %v2685 = vsel %vm2012, %v2680, %v2684
        %v2686 = vshrl.u32 %v2523, 16
        %v2688 = vrot.slane %v2686, 4
        %v2689 = vor.u32 %v2688, %v2684
        %v2690 = vrot.slane %v2689, 4
        %v2692 = vshll.u32 %v2524, 16
        %v2694 = vrot.slane %v2692, 5
        %v2695 = vsel %vm2012, %v2690, %v2694
        %v2697 = vshrl.u32 %v2525, 16
        %v2699 = vrot.slane %v2697, 4
        %v2700 = vshll.u32 %v2525, 16
        %v2702 = vrot.slane %v2700, 5
        %v2703 = vor.u32 %v2699, %v2702
        %v2704 = vrot.slane %v2703, 4
        %v2706 = vshll.u32 %v2526, 16
        %v2708 = vrot.slane %v2706, 5
        %v2709 = vsel %vm2012, %v2704, %v2708
        %v2710 = vshrl.u32 %v2526, 16
        %v2712 = vrot.slane %v2710, 4
        %v2713 = vor.u32 %v2712, %v2708
        %v2714 = vrot.slane %v2713, 4
        %v2716 = vshll.u32 %v2527, 16
        %v2718 = vrot.slane %v2716, 5
        %v2719 = vsel %vm2012, %v2714, %v2718
        %2720 = vrot.lane.b32.xlu0 %v2541, 127
        %v2721 = vpop.permute.xlu0 %2720
        %2722 = vrot.lane.b32.xlu0 %v2551, 127
        %v2723 = vpop.permute.xlu0 %2722
        %2724 = vrot.lane.b32.xlu0 %v2565, 127
        %v2725 = vpop.permute.xlu0 %2724
        %2726 = vrot.lane.b32.xlu0 %v2575, 127
        %v2727 = vpop.permute.xlu0 %2726
        %2728 = vrot.lane.b32.xlu0 %v2589, 127
        %v2729 = vpop.permute.xlu0 %2728
        %2730 = vrot.lane.b32.xlu0 %v2599, 127
        %v2731 = vpop.permute.xlu0 %2730
        %2732 = vrot.lane.b32.xlu0 %v2613, 127
        %v2733 = vpop.permute.xlu0 %2732
        %2734 = vrot.lane.b32.xlu0 %v2623, 127
        %v2735 = vpop.permute.xlu0 %2734
        %2736 = vrot.lane.b32.xlu0 %v2637, 127
        %v2737 = vpop.permute.xlu0 %2736
        %2738 = vrot.lane.b32.xlu0 %v2647, 127
        %v2739 = vpop.permute.xlu0 %2738
        %2740 = vrot.lane.b32.xlu0 %v2661, 127
        %v2741 = vpop.permute.xlu0 %2740
        %2742 = vrot.lane.b32.xlu0 %v2671, 127
        %v2743 = vpop.permute.xlu0 %2742
        %2744 = vrot.lane.b32.xlu0 %v2685, 127
        %v2745 = vpop.permute.xlu0 %2744
        %2746 = vrot.lane.b32.xlu0 %v2695, 127
        %v2747 = vpop.permute.xlu0 %2746
        %2748 = vrot.lane.b32.xlu0 %v2709, 127
        %v2749 = vpop.permute.xlu0 %2748
        %2750 = vrot.lane.b32.xlu0 %v2719, 127
        %v2751 = vpop.permute.xlu0 %2750
        %v2768 = vrot.slane %v2737, 4
        %v2769 = vsel %vm990, %v2768, %v2721
        %v2771 = vunpack.c.l.s4 1983009808
        %v2772 = vunpack.c.0.s8 %v2771
        %v2773 = vperm.slane %v2769, %v2772
        %v2774 = vrot.slane %v2745, 4
        %v2775 = vsel %vm990, %v2774, %v2729
        %v2777 = vunpack.c.l.s4 1983009808
        %v2778 = vunpack.c.0.s8 %v2777
        %v2779 = vperm.slane %v2775, %v2778
        %v2780 = vrot.slane %v2779, 4
        %v2781 = vsel %vm990, %v2780, %v2773
        %v2782 = vrot.slane %v2773, 4
        %v2783 = vsel %vm990, %v2779, %v2782
        %v2785 = vunpack.c.l.s4 1934713408
        %v2786 = vunpack.c.0.s8 %v2785
        %v2787 = vperm.slane %v2781, %v2786
        %v2789 = vunpack.c.l.s4 1934713408
        %v2790 = vunpack.c.0.s8 %v2789
        %v2791 = vperm.slane %v2783, %v2790
        %v2792 = vrot.slane %v2787, 4
        %v2793 = vsel %vm990, 0, %v2792
        %v2794 = vrot.slane %v2791, 4
        %v2795 = vsel %vm990, 0, %v2794
        %v2796 = vrot.slane %v2741, 4
        %v2797 = vsel %vm990, %v2796, %v2725
        %v2799 = vunpack.c.l.s4 1983009808
        %v2800 = vunpack.c.0.s8 %v2799
        %v2801 = vperm.slane %v2797, %v2800
        %v2802 = vrot.slane %v2749, 4
        %v2803 = vsel %vm990, %v2802, %v2733
        %v2805 = vunpack.c.l.s4 1983009808
        %v2806 = vunpack.c.0.s8 %v2805
        %v2807 = vperm.slane %v2803, %v2806
        %v2808 = vrot.slane %v2807, 4
        %v2809 = vsel %vm990, %v2808, %v2801
        %v2810 = vrot.slane %v2801, 4
        %v2811 = vsel %vm990, %v2807, %v2810
        %v2813 = vunpack.c.l.s4 1934713408
        %v2814 = vunpack.c.0.s8 %v2813
        %v2815 = vperm.slane %v2809, %v2814
        %v2817 = vunpack.c.l.s4 1934713408
        %v2818 = vunpack.c.0.s8 %v2817
        %v2819 = vperm.slane %v2811, %v2818
        %v2820 = vrot.slane %v2815, 4
        %v2821 = vsel %vm990, 0, %v2820
        %v2822 = vrot.slane %v2819, 4
        %v2823 = vsel %vm990, 0, %v2822
        %v2824 = vrot.slane %v2739, 4
        %v2825 = vsel %vm990, %v2824, %v2723
        %v2827 = vunpack.c.l.s4 1983009808
        %v2828 = vunpack.c.0.s8 %v2827
        %v2829 = vperm.slane %v2825, %v2828
        %v2830 = vrot.slane %v2747, 4
        %v2831 = vsel %vm990, %v2830, %v2731
        %v2833 = vunpack.c.l.s4 1983009808
        %v2834 = vunpack.c.0.s8 %v2833
        %v2835 = vperm.slane %v2831, %v2834
        %v2836 = vrot.slane %v2835, 4
        %v2837 = vsel %vm990, %v2836, %v2829
        %v2838 = vrot.slane %v2829, 4
        %v2839 = vsel %vm990, %v2835, %v2838
        %v2841 = vunpack.c.l.s4 1934713408
        %v2842 = vunpack.c.0.s8 %v2841
        %v2843 = vperm.slane %v2837, %v2842
        %v2845 = vunpack.c.l.s4 1934713408
        %v2846 = vunpack.c.0.s8 %v2845
        %v2847 = vperm.slane %v2839, %v2846
        %v2848 = vrot.slane %v2843, 4
        %v2849 = vsel %vm990, 0, %v2848
        %v2850 = vrot.slane %v2847, 4
        %v2851 = vsel %vm990, 0, %v2850
        %v2852 = vrot.slane %v2743, 4
        %v2853 = vsel %vm990, %v2852, %v2727
        %v2855 = vunpack.c.l.s4 1983009808
        %v2856 = vunpack.c.0.s8 %v2855
        %v2857 = vperm.slane %v2853, %v2856
        %v2858 = vrot.slane %v2751, 4
        %v2859 = vsel %vm990, %v2858, %v2735
        %v2861 = vunpack.c.l.s4 1983009808
        %v2862 = vunpack.c.0.s8 %v2861
        %v2863 = vperm.slane %v2859, %v2862
        %v2864 = vrot.slane %v2863, 4
        %v2865 = vsel %vm990, %v2864, %v2857
        %v2866 = vrot.slane %v2857, 4
        %v2867 = vsel %vm990, %v2863, %v2866
        %v2869 = vunpack.c.l.s4 1934713408
        %v2870 = vunpack.c.0.s8 %v2869
        %v2871 = vperm.slane %v2865, %v2870
        %v2873 = vunpack.c.l.s4 1934713408
        %v2874 = vunpack.c.0.s8 %v2873
        %v2875 = vperm.slane %v2867, %v2874
        %v2876 = vrot.slane %v2871, 4
        %v2877 = vsel %vm990, 0, %v2876
        %v2878 = vrot.slane %v2875, 4
        %v2879 = vsel %vm990, 0, %v2878
        %v2882 = vpack.i.b16 %v2815, %v2787
        %v2883 = vshrl.u32 %v2787, 16
        %v2884 = vshrl.u32 %v2815, 16
        %v2885 = vpack.i.b16 %v2884, %v2883
        %v2888 = vpack.i.b16 %v2821, %v2793
        %v2889 = vshrl.u32 %v2793, 16
        %v2890 = vshrl.u32 %v2821, 16
        %v2891 = vpack.i.b16 %v2890, %v2889
        %v2894 = vpack.i.b16 %v2819, %v2791
        %v2895 = vshrl.u32 %v2791, 16
        %v2896 = vshrl.u32 %v2819, 16
        %v2897 = vpack.i.b16 %v2896, %v2895
        %v2900 = vpack.i.b16 %v2823, %v2795
        %v2901 = vshrl.u32 %v2795, 16
        %v2902 = vshrl.u32 %v2823, 16
        %v2903 = vpack.i.b16 %v2902, %v2901
        %v2906 = vpack.i.b16 %v2871, %v2843
        %v2907 = vshrl.u32 %v2843, 16
        %v2908 = vshrl.u32 %v2871, 16
        %v2909 = vpack.i.b16 %v2908, %v2907
        %v2912 = vpack.i.b16 %v2877, %v2849
        %v2913 = vshrl.u32 %v2849, 16
        %v2914 = vshrl.u32 %v2877, 16
        %v2915 = vpack.i.b16 %v2914, %v2913
        %v2918 = vpack.i.b16 %v2875, %v2847
        %v2919 = vshrl.u32 %v2847, 16
        %v2920 = vshrl.u32 %v2875, 16
        %v2921 = vpack.i.b16 %v2920, %v2919
        %v2924 = vpack.i.b16 %v2879, %v2851
        %v2925 = vshrl.u32 %v2851, 16
        %v2926 = vshrl.u32 %v2879, 16
        %v2927 = vpack.i.b16 %v2926, %v2925
        %v2928 = vunpack.c.l.b16 %v2885
        %v2929 = vpack.c.b16 %v2928, %v2928
        %2930 = vrot.lane.b32.xlu0 %v2929, 16
        %v2931 = vpop.permute.xlu0 %2930
        %v2932 = vunpack.c.l.b16 %v2888
        %v2933 = vpack.c.b16 %v2932, %v2932
        %2934 = vrot.lane.b32.xlu0 %v2933, 32
        %v2935 = vpop.permute.xlu0 %2934
        %v2936 = vunpack.c.l.b16 %v2891
        %v2937 = vpack.c.b16 %v2936, %v2936
        %2938 = vrot.lane.b32.xlu0 %v2937, 48
        %v2939 = vpop.permute.xlu0 %2938
        %v2940 = vunpack.c.l.b16 %v2894
        %v2941 = vpack.c.b16 %v2940, %v2940
        %2942 = vrot.lane.b32.xlu0 %v2941, 64
        %v2943 = vpop.permute.xlu0 %2942
        %v2944 = vunpack.c.l.b16 %v2897
        %v2945 = vpack.c.b16 %v2944, %v2944
        %2946 = vrot.lane.b32.xlu0 %v2945, 80
        %v2947 = vpop.permute.xlu0 %2946
        %v2948 = vunpack.c.l.b16 %v2900
        %v2949 = vpack.c.b16 %v2948, %v2948
        %2950 = vrot.lane.b32.xlu0 %v2949, 96
        %v2951 = vpop.permute.xlu0 %2950
        %v2952 = vunpack.c.l.b16 %v2903
        %v2953 = vpack.c.b16 %v2952, %v2952
        %2954 = vrot.lane.b32.xlu0 %v2953, 112
        %v2955 = vpop.permute.xlu0 %2954
        %v2956 = vunpack.c.l.b16 %v2909
        %v2957 = vpack.c.b16 %v2956, %v2956
        %2958 = vrot.lane.b32.xlu0 %v2957, 16
        %v2959 = vpop.permute.xlu0 %2958
        %v2960 = vunpack.c.l.b16 %v2912
        %v2961 = vpack.c.b16 %v2960, %v2960
        %2962 = vrot.lane.b32.xlu0 %v2961, 32
        %v2963 = vpop.permute.xlu0 %2962
        %v2964 = vunpack.c.l.b16 %v2915
        %v2965 = vpack.c.b16 %v2964, %v2964
        %2966 = vrot.lane.b32.xlu0 %v2965, 48
        %v2967 = vpop.permute.xlu0 %2966
        %v2968 = vunpack.c.l.b16 %v2918
        %v2969 = vpack.c.b16 %v2968, %v2968
        %2970 = vrot.lane.b32.xlu0 %v2969, 64
        %v2971 = vpop.permute.xlu0 %2970
        %v2972 = vunpack.c.l.b16 %v2921
        %v2973 = vpack.c.b16 %v2972, %v2972
        %2974 = vrot.lane.b32.xlu0 %v2973, 80
        %v2975 = vpop.permute.xlu0 %2974
        %v2976 = vunpack.c.l.b16 %v2924
        %v2977 = vpack.c.b16 %v2976, %v2976
        %2978 = vrot.lane.b32.xlu0 %v2977, 96
        %v2979 = vpop.permute.xlu0 %2978
        %v2980 = vunpack.c.l.b16 %v2927
        %v2981 = vpack.c.b16 %v2980, %v2980
        %2982 = vrot.lane.b32.xlu0 %v2981, 112
        %v2983 = vpop.permute.xlu0 %2982
        %v2986 = vsel %vm1206, %v2882, %v2931
        %v2988 = vsel %vm1210, %v2986, %v2935
        %v2990 = vsel %vm1213, %v2988, %v2939
        %v2992 = vsel %vm1216, %v2990, %v2943
        %v2994 = vsel %vm1219, %v2992, %v2947
        %v2996 = vsel %vm1222, %v2994, %v2951
        %v2998 = vsel %vm1225, %v2996, %v2955
        %v3001 = vsel %vm1206, %v2906, %v2959
        %v3003 = vsel %vm1210, %v3001, %v2963
        %v3005 = vsel %vm1213, %v3003, %v2967
        %v3007 = vsel %vm1216, %v3005, %v2971
        %v3009 = vsel %vm1219, %v3007, %v2975
        %v3011 = vsel %vm1222, %v3009, %v2979
        %v3013 = vsel %vm1225, %v3011, %v2983
        %s3014 = scalar_lea.vmem %s4, 8
        %v3015 = vld [vmem:[%s3014] sm:$0x3]
        %v3017 = vsel %vm430, %v3015, 0
        %v3019 = vsel %vm1559, %v2998, 0
        %v3021 = vsel %vm1559, %v3013, 0
        %3023 = vmatpush.bf16.msra.mxu0 0
        %3024 = vmatpush.bf16.msra.mxu0 0
        %3025 = vmatpush.bf16.msra.mxu0 0
        %3026 = vmatpush.bf16.msra.mxu0 0
        %3027 = vmatpush.bf16.msra.mxu0 0
        %3028 = vmatpush.bf16.msra.mxu0 0
        %3029 = vmatpush.bf16.msra.mxu0 0
        %3030 = vmatpush.bf16.msra.mxu0 %v3019
        %3031 = vmatmul.bf16.gmra.mxu0 %v3017
        %v3032 = vpop.f32.mrf.mxu0
        %v3033 = vadd.f32 0.0, %v3032
        %v3034 = vpop.f32.mrf.mxu0
        %3035 = vdwg.mxu0
        %3036 = vmatpush.bf16.msra.mxu0 0
        %3037 = vmatpush.bf16.msra.mxu0 0
        %3038 = vmatpush.bf16.msra.mxu0 0
        %3039 = vmatpush.bf16.msra.mxu0 0
        %3040 = vmatpush.bf16.msra.mxu0 0
        %3041 = vmatpush.bf16.msra.mxu0 0
        %3042 = vmatpush.bf16.msra.mxu0 0
        %3043 = vmatpush.bf16.msra.mxu0 %v3021
        %3044 = vmatmul.bf16.gmra.mxu0 %v3017
        %v3045 = vpop.f32.mrf.mxu0
        %v3046 = vadd.f32 0.0, %v3045
        %v3047 = vpop.f32.mrf.mxu0
        %3048 = vdwg.mxu0
        %v3049 = vadd.f32 %v2502, %v3033
        %v3050 = vadd.f32 %v2503, %v3046
        %v3051 = vld [vmem:[#allocation2] sm:$0xf]
        %v3052 = vld [vmem:[#allocation2 + $0x4] sm:$0xf]
        %v3053 = vld [vmem:[#allocation2 + $0x8] sm:$0x1]
        %v3054 = vld [vmem:[#allocation2 + $0xc] sm:$0xf]
        %v3055 = vld [vmem:[#allocation2 + $0x10] sm:$0xf]
        %v3056 = vld [vmem:[#allocation2 + $0x14] sm:$0x1]
        %v3057 = vld [vmem:[#allocation2 + $0x18] sm:$0xf]
        %v3058 = vld [vmem:[#allocation2 + $0x1c] sm:$0xf]
        %v3059 = vld [vmem:[#allocation2 + $0x20] sm:$0x1]
        %v3060 = vld [vmem:[#allocation2 + $0x24] sm:$0xf]
        %v3061 = vld [vmem:[#allocation2 + $0x28] sm:$0xf]
        %v3062 = vld [vmem:[#allocation2 + $0x2c] sm:$0x1]
        %v3063 = vld [vmem:[#allocation2 + $0x30] sm:$0xf]
        %v3064 = vld [vmem:[#allocation2 + $0x34] sm:$0xf]
        %v3065 = vld [vmem:[#allocation2 + $0x38] sm:$0x1]
        %v3066 = vld [vmem:[#allocation2 + $0x3c] sm:$0xf]
        %v3067 = vld [vmem:[#allocation2 + $0x40] sm:$0xf]
        %v3068 = vld [vmem:[#allocation2 + $0x44] sm:$0x1]
        %v3069 = vld [vmem:[#allocation2 + $0x48] sm:$0xf]
        %v3070 = vld [vmem:[#allocation2 + $0x4c] sm:$0xf]
        %v3071 = vld [vmem:[#allocation2 + $0x50] sm:$0x1]
        %v3072 = vld [vmem:[#allocation2 + $0x54] sm:$0xf]
        %v3073 = vld [vmem:[#allocation2 + $0x58] sm:$0xf]
        %v3074 = vld [vmem:[#allocation2 + $0x5c] sm:$0x1]
        %v3076 = vshrl.u32 %v3051, 16
        %v3078 = vrot.slane %v3076, 4
        %v3079 = vshll.u32 %v3051, 16
        %v3081 = vrot.slane %v3079, 5
        %v3082 = vor.u32 %v3078, %v3081
        %v3083 = vrot.slane %v3082, 4
        %v3085 = vshll.u32 %v3052, 16
        %v3087 = vrot.slane %v3085, 5
        %v3088 = vsel %vm2012, %v3083, %v3087
        %v3089 = vshrl.u32 %v3052, 16
        %v3091 = vrot.slane %v3089, 4
        %v3092 = vor.u32 %v3091, %v3087
        %v3093 = vrot.slane %v3092, 4
        %v3095 = vshll.u32 %v3053, 16
        %v3097 = vrot.slane %v3095, 5
        %v3098 = vsel %vm2012, %v3093, %v3097
        %v3100 = vshrl.u32 %v3054, 16
        %v3102 = vrot.slane %v3100, 4
        %v3103 = vshll.u32 %v3054, 16
        %v3105 = vrot.slane %v3103, 5
        %v3106 = vor.u32 %v3102, %v3105
        %v3107 = vrot.slane %v3106, 4
        %v3109 = vshll.u32 %v3055, 16
        %v3111 = vrot.slane %v3109, 5
        %v3112 = vsel %vm2012, %v3107, %v3111
        %v3113 = vshrl.u32 %v3055, 16
        %v3115 = vrot.slane %v3113, 4
        %v3116 = vor.u32 %v3115, %v3111
        %v3117 = vrot.slane %v3116, 4
        %v3119 = vshll.u32 %v3056, 16
        %v3121 = vrot.slane %v3119, 5
        %v3122 = vsel %vm2012, %v3117, %v3121
        %v3124 = vshrl.u32 %v3057, 16
        %v3126 = vrot.slane %v3124, 4
        %v3127 = vshll.u32 %v3057, 16
        %v3129 = vrot.slane %v3127, 5
        %v3130 = vor.u32 %v3126, %v3129
        %v3131 = vrot.slane %v3130, 4
        %v3133 = vshll.u32 %v3058, 16
        %v3135 = vrot.slane %v3133, 5
        %v3136 = vsel %vm2012, %v3131, %v3135
        %v3137 = vshrl.u32 %v3058, 16
        %v3139 = vrot.slane %v3137, 4
        %v3140 = vor.u32 %v3139, %v3135
        %v3141 = vrot.slane %v3140, 4
        %v3143 = vshll.u32 %v3059, 16
        %v3145 = vrot.slane %v3143, 5
        %v3146 = vsel %vm2012, %v3141, %v3145
        %v3148 = vshrl.u32 %v3060, 16
        %v3150 = vrot.slane %v3148, 4
        %v3151 = vshll.u32 %v3060, 16
        %v3153 = vrot.slane %v3151, 5
        %v3154 = vor.u32 %v3150, %v3153
        %v3155 = vrot.slane %v3154, 4
        %v3157 = vshll.u32 %v3061, 16
        %v3159 = vrot.slane %v3157, 5
        %v3160 = vsel %vm2012, %v3155, %v3159
        %v3161 = vshrl.u32 %v3061, 16
        %v3163 = vrot.slane %v3161, 4
        %v3164 = vor.u32 %v3163, %v3159
        %v3165 = vrot.slane %v3164, 4
        %v3167 = vshll.u32 %v3062, 16
        %v3169 = vrot.slane %v3167, 5
        %v3170 = vsel %vm2012, %v3165, %v3169
        %v3172 = vshrl.u32 %v3063, 16
        %v3174 = vrot.slane %v3172, 4
        %v3175 = vshll.u32 %v3063, 16
        %v3177 = vrot.slane %v3175, 5
        %v3178 = vor.u32 %v3174, %v3177
        %v3179 = vrot.slane %v3178, 4
        %v3181 = vshll.u32 %v3064, 16
        %v3183 = vrot.slane %v3181, 5
        %v3184 = vsel %vm2012, %v3179, %v3183
        %v3185 = vshrl.u32 %v3064, 16
        %v3187 = vrot.slane %v3185, 4
        %v3188 = vor.u32 %v3187, %v3183
        %v3189 = vrot.slane %v3188, 4
        %v3191 = vshll.u32 %v3065, 16
        %v3193 = vrot.slane %v3191, 5
        %v3194 = vsel %vm2012, %v3189, %v3193
        %v3196 = vshrl.u32 %v3066, 16
        %v3198 = vrot.slane %v3196, 4
        %v3199 = vshll.u32 %v3066, 16
        %v3201 = vrot.slane %v3199, 5
        %v3202 = vor.u32 %v3198, %v3201
        %v3203 = vrot.slane %v3202, 4
        %v3205 = vshll.u32 %v3067, 16
        %v3207 = vrot.slane %v3205, 5
        %v3208 = vsel %vm2012, %v3203, %v3207
        %v3209 = vshrl.u32 %v3067, 16
        %v3211 = vrot.slane %v3209, 4
        %v3212 = vor.u32 %v3211, %v3207
        %v3213 = vrot.slane %v3212, 4
        %v3215 = vshll.u32 %v3068, 16
        %v3217 = vrot.slane %v3215, 5
        %v3218 = vsel %vm2012, %v3213, %v3217
        %v3220 = vshrl.u32 %v3069, 16
        %v3222 = vrot.slane %v3220, 4
        %v3223 = vshll.u32 %v3069, 16
        %v3225 = vrot.slane %v3223, 5
        %v3226 = vor.u32 %v3222, %v3225
        %v3227 = vrot.slane %v3226, 4
        %v3229 = vshll.u32 %v3070, 16
        %v3231 = vrot.slane %v3229, 5
        %v3232 = vsel %vm2012, %v3227, %v3231
        %v3233 = vshrl.u32 %v3070, 16
        %v3235 = vrot.slane %v3233, 4
        %v3236 = vor.u32 %v3235, %v3231
        %v3237 = vrot.slane %v3236, 4
        %v3239 = vshll.u32 %v3071, 16
        %v3241 = vrot.slane %v3239, 5
        %v3242 = vsel %vm2012, %v3237, %v3241
        %v3244 = vshrl.u32 %v3072, 16
        %v3246 = vrot.slane %v3244, 4
        %v3247 = vshll.u32 %v3072, 16
        %v3249 = vrot.slane %v3247, 5
        %v3250 = vor.u32 %v3246, %v3249
        %v3251 = vrot.slane %v3250, 4
        %v3253 = vshll.u32 %v3073, 16
        %v3255 = vrot.slane %v3253, 5
        %v3256 = vsel %vm2012, %v3251, %v3255
        %v3257 = vshrl.u32 %v3073, 16
        %v3259 = vrot.slane %v3257, 4
        %v3260 = vor.u32 %v3259, %v3255
        %v3261 = vrot.slane %v3260, 4
        %v3263 = vshll.u32 %v3074, 16
        %v3265 = vrot.slane %v3263, 5
        %v3266 = vsel %vm2012, %v3261, %v3265
        %3267 = vrot.lane.b32.xlu0 %v3088, 126
        %v3268 = vpop.permute.xlu0 %3267
        %3269 = vrot.lane.b32.xlu0 %v3098, 126
        %v3270 = vpop.permute.xlu0 %3269
        %3271 = vrot.lane.b32.xlu0 %v3112, 126
        %v3272 = vpop.permute.xlu0 %3271
        %3273 = vrot.lane.b32.xlu0 %v3122, 126
        %v3274 = vpop.permute.xlu0 %3273
        %3275 = vrot.lane.b32.xlu0 %v3136, 126
        %v3276 = vpop.permute.xlu0 %3275
        %3277 = vrot.lane.b32.xlu0 %v3146, 126
        %v3278 = vpop.permute.xlu0 %3277
        %3279 = vrot.lane.b32.xlu0 %v3160, 126
        %v3280 = vpop.permute.xlu0 %3279
        %3281 = vrot.lane.b32.xlu0 %v3170, 126
        %v3282 = vpop.permute.xlu0 %3281
        %3283 = vrot.lane.b32.xlu0 %v3184, 126
        %v3284 = vpop.permute.xlu0 %3283
        %3285 = vrot.lane.b32.xlu0 %v3194, 126
        %v3286 = vpop.permute.xlu0 %3285
        %3287 = vrot.lane.b32.xlu0 %v3208, 126
        %v3288 = vpop.permute.xlu0 %3287
        %3289 = vrot.lane.b32.xlu0 %v3218, 126
        %v3290 = vpop.permute.xlu0 %3289
        %3291 = vrot.lane.b32.xlu0 %v3232, 126
        %v3292 = vpop.permute.xlu0 %3291
        %3293 = vrot.lane.b32.xlu0 %v3242, 126
        %v3294 = vpop.permute.xlu0 %3293
        %3295 = vrot.lane.b32.xlu0 %v3256, 126
        %v3296 = vpop.permute.xlu0 %3295
        %3297 = vrot.lane.b32.xlu0 %v3266, 126
        %v3298 = vpop.permute.xlu0 %3297
        %v3315 = vrot.slane %v3284, 4
        %v3316 = vsel %vm990, %v3315, %v3268
        %v3318 = vunpack.c.l.s4 1983009808
        %v3319 = vunpack.c.0.s8 %v3318
        %v3320 = vperm.slane %v3316, %v3319
        %v3321 = vrot.slane %v3292, 4
        %v3322 = vsel %vm990, %v3321, %v3276
        %v3324 = vunpack.c.l.s4 1983009808
        %v3325 = vunpack.c.0.s8 %v3324
        %v3326 = vperm.slane %v3322, %v3325
        %v3327 = vrot.slane %v3326, 4
        %v3328 = vsel %vm990, %v3327, %v3320
        %v3329 = vrot.slane %v3320, 4
        %v3330 = vsel %vm990, %v3326, %v3329
        %v3332 = vunpack.c.l.s4 1934713408
        %v3333 = vunpack.c.0.s8 %v3332
        %v3334 = vperm.slane %v3328, %v3333
        %v3336 = vunpack.c.l.s4 1934713408
        %v3337 = vunpack.c.0.s8 %v3336
        %v3338 = vperm.slane %v3330, %v3337
        %v3339 = vrot.slane %v3334, 4
        %v3340 = vsel %vm990, 0, %v3339
        %v3341 = vrot.slane %v3338, 4
        %v3342 = vsel %vm990, 0, %v3341
        %v3343 = vrot.slane %v3288, 4
        %v3344 = vsel %vm990, %v3343, %v3272
        %v3346 = vunpack.c.l.s4 1983009808
        %v3347 = vunpack.c.0.s8 %v3346
        %v3348 = vperm.slane %v3344, %v3347
        %v3349 = vrot.slane %v3296, 4
        %v3350 = vsel %vm990, %v3349, %v3280
        %v3352 = vunpack.c.l.s4 1983009808
        %v3353 = vunpack.c.0.s8 %v3352
        %v3354 = vperm.slane %v3350, %v3353
        %v3355 = vrot.slane %v3354, 4
        %v3356 = vsel %vm990, %v3355, %v3348
        %v3357 = vrot.slane %v3348, 4
        %v3358 = vsel %vm990, %v3354, %v3357
        %v3360 = vunpack.c.l.s4 1934713408
        %v3361 = vunpack.c.0.s8 %v3360
        %v3362 = vperm.slane %v3356, %v3361
        %v3364 = vunpack.c.l.s4 1934713408
        %v3365 = vunpack.c.0.s8 %v3364
        %v3366 = vperm.slane %v3358, %v3365
        %v3367 = vrot.slane %v3362, 4
        %v3368 = vsel %vm990, 0, %v3367
        %v3369 = vrot.slane %v3366, 4
        %v3370 = vsel %vm990, 0, %v3369
        %v3371 = vrot.slane %v3286, 4
        %v3372 = vsel %vm990, %v3371, %v3270
        %v3374 = vunpack.c.l.s4 1983009808
        %v3375 = vunpack.c.0.s8 %v3374
        %v3376 = vperm.slane %v3372, %v3375
        %v3377 = vrot.slane %v3294, 4
        %v3378 = vsel %vm990, %v3377, %v3278
        %v3380 = vunpack.c.l.s4 1983009808
        %v3381 = vunpack.c.0.s8 %v3380
        %v3382 = vperm.slane %v3378, %v3381
        %v3383 = vrot.slane %v3382, 4
        %v3384 = vsel %vm990, %v3383, %v3376
        %v3385 = vrot.slane %v3376, 4
        %v3386 = vsel %vm990, %v3382, %v3385
        %v3388 = vunpack.c.l.s4 1934713408
        %v3389 = vunpack.c.0.s8 %v3388
        %v3390 = vperm.slane %v3384, %v3389
        %v3392 = vunpack.c.l.s4 1934713408
        %v3393 = vunpack.c.0.s8 %v3392
        %v3394 = vperm.slane %v3386, %v3393
        %v3395 = vrot.slane %v3390, 4
        %v3396 = vsel %vm990, 0, %v3395
        %v3397 = vrot.slane %v3394, 4
        %v3398 = vsel %vm990, 0, %v3397
        %v3399 = vrot.slane %v3290, 4
        %v3400 = vsel %vm990, %v3399, %v3274
        %v3402 = vunpack.c.l.s4 1983009808
        %v3403 = vunpack.c.0.s8 %v3402
        %v3404 = vperm.slane %v3400, %v3403
        %v3405 = vrot.slane %v3298, 4
        %v3406 = vsel %vm990, %v3405, %v3282
        %v3408 = vunpack.c.l.s4 1983009808
        %v3409 = vunpack.c.0.s8 %v3408
        %v3410 = vperm.slane %v3406, %v3409
        %v3411 = vrot.slane %v3410, 4
        %v3412 = vsel %vm990, %v3411, %v3404
        %v3413 = vrot.slane %v3404, 4
        %v3414 = vsel %vm990, %v3410, %v3413
        %v3416 = vunpack.c.l.s4 1934713408
        %v3417 = vunpack.c.0.s8 %v3416
        %v3418 = vperm.slane %v3412, %v3417
        %v3420 = vunpack.c.l.s4 1934713408
        %v3421 = vunpack.c.0.s8 %v3420
        %v3422 = vperm.slane %v3414, %v3421
        %v3423 = vrot.slane %v3418, 4
        %v3424 = vsel %vm990, 0, %v3423
        %v3425 = vrot.slane %v3422, 4
        %v3426 = vsel %vm990, 0, %v3425
        %v3429 = vpack.i.b16 %v3362, %v3334
        %v3430 = vshrl.u32 %v3334, 16
        %v3431 = vshrl.u32 %v3362, 16
        %v3432 = vpack.i.b16 %v3431, %v3430
        %v3435 = vpack.i.b16 %v3368, %v3340
        %v3436 = vshrl.u32 %v3340, 16
        %v3437 = vshrl.u32 %v3368, 16
        %v3438 = vpack.i.b16 %v3437, %v3436
        %v3441 = vpack.i.b16 %v3366, %v3338
        %v3442 = vshrl.u32 %v3338, 16
        %v3443 = vshrl.u32 %v3366, 16
        %v3444 = vpack.i.b16 %v3443, %v3442
        %v3447 = vpack.i.b16 %v3370, %v3342
        %v3448 = vshrl.u32 %v3342, 16
        %v3449 = vshrl.u32 %v3370, 16
        %v3450 = vpack.i.b16 %v3449, %v3448
        %v3453 = vpack.i.b16 %v3418, %v3390
        %v3454 = vshrl.u32 %v3390, 16
        %v3455 = vshrl.u32 %v3418, 16
        %v3456 = vpack.i.b16 %v3455, %v3454
        %v3459 = vpack.i.b16 %v3424, %v3396
        %v3460 = vshrl.u32 %v3396, 16
        %v3461 = vshrl.u32 %v3424, 16
        %v3462 = vpack.i.b16 %v3461, %v3460
        %v3465 = vpack.i.b16 %v3422, %v3394
        %v3466 = vshrl.u32 %v3394, 16
        %v3467 = vshrl.u32 %v3422, 16
        %v3468 = vpack.i.b16 %v3467, %v3466
        %v3471 = vpack.i.b16 %v3426, %v3398
        %v3472 = vshrl.u32 %v3398, 16
        %v3473 = vshrl.u32 %v3426, 16
        %v3474 = vpack.i.b16 %v3473, %v3472
        %v3475 = vunpack.c.l.b16 %v3432
        %v3476 = vpack.c.b16 %v3475, %v3475
        %3477 = vrot.lane.b32.xlu0 %v3476, 16
        %v3478 = vpop.permute.xlu0 %3477
        %v3479 = vunpack.c.l.b16 %v3435
        %v3480 = vpack.c.b16 %v3479, %v3479
        %3481 = vrot.lane.b32.xlu0 %v3480, 32
        %v3482 = vpop.permute.xlu0 %3481
        %v3483 = vunpack.c.l.b16 %v3438
        %v3484 = vpack.c.b16 %v3483, %v3483
        %3485 = vrot.lane.b32.xlu0 %v3484, 48
        %v3486 = vpop.permute.xlu0 %3485
        %v3487 = vunpack.c.l.b16 %v3441
        %v3488 = vpack.c.b16 %v3487, %v3487
        %3489 = vrot.lane.b32.xlu0 %v3488, 64
        %v3490 = vpop.permute.xlu0 %3489
        %v3491 = vunpack.c.l.b16 %v3444
        %v3492 = vpack.c.b16 %v3491, %v3491
        %3493 = vrot.lane.b32.xlu0 %v3492, 80
        %v3494 = vpop.permute.xlu0 %3493
        %v3495 = vunpack.c.l.b16 %v3447
        %v3496 = vpack.c.b16 %v3495, %v3495
        %3497 = vrot.lane.b32.xlu0 %v3496, 96
        %v3498 = vpop.permute.xlu0 %3497
        %v3499 = vunpack.c.l.b16 %v3450
        %v3500 = vpack.c.b16 %v3499, %v3499
        %3501 = vrot.lane.b32.xlu0 %v3500, 112
        %v3502 = vpop.permute.xlu0 %3501
        %v3503 = vunpack.c.l.b16 %v3456
        %v3504 = vpack.c.b16 %v3503, %v3503
        %3505 = vrot.lane.b32.xlu0 %v3504, 16
        %v3506 = vpop.permute.xlu0 %3505
        %v3507 = vunpack.c.l.b16 %v3459
        %v3508 = vpack.c.b16 %v3507, %v3507
        %3509 = vrot.lane.b32.xlu0 %v3508, 32
        %v3510 = vpop.permute.xlu0 %3509
        %v3511 = vunpack.c.l.b16 %v3462
        %v3512 = vpack.c.b16 %v3511, %v3511
        %3513 = vrot.lane.b32.xlu0 %v3512, 48
        %v3514 = vpop.permute.xlu0 %3513
        %v3515 = vunpack.c.l.b16 %v3465
        %v3516 = vpack.c.b16 %v3515, %v3515
        %3517 = vrot.lane.b32.xlu0 %v3516, 64
        %v3518 = vpop.permute.xlu0 %3517
        %v3519 = vunpack.c.l.b16 %v3468
        %v3520 = vpack.c.b16 %v3519, %v3519
        %3521 = vrot.lane.b32.xlu0 %v3520, 80
        %v3522 = vpop.permute.xlu0 %3521
        %v3523 = vunpack.c.l.b16 %v3471
        %v3524 = vpack.c.b16 %v3523, %v3523
        %3525 = vrot.lane.b32.xlu0 %v3524, 96
        %v3526 = vpop.permute.xlu0 %3525
        %v3527 = vunpack.c.l.b16 %v3474
        %v3528 = vpack.c.b16 %v3527, %v3527
        %3529 = vrot.lane.b32.xlu0 %v3528, 112
        %v3530 = vpop.permute.xlu0 %3529
        %v3533 = vsel %vm1206, %v3429, %v3478
        %v3535 = vsel %vm1210, %v3533, %v3482
        %v3537 = vsel %vm1213, %v3535, %v3486
        %v3539 = vsel %vm1216, %v3537, %v3490
        %v3541 = vsel %vm1219, %v3539, %v3494
        %v3543 = vsel %vm1222, %v3541, %v3498
        %v3545 = vsel %vm1225, %v3543, %v3502
        %v3548 = vsel %vm1206, %v3453, %v3506
        %v3550 = vsel %vm1210, %v3548, %v3510
        %v3552 = vsel %vm1213, %v3550, %v3514
        %v3554 = vsel %vm1216, %v3552, %v3518
        %v3556 = vsel %vm1219, %v3554, %v3522
        %v3558 = vsel %vm1222, %v3556, %v3526
        %v3560 = vsel %vm1225, %v3558, %v3530
        %s3561 = scalar_lea.vmem %s4, 10
        %v3562 = vld [vmem:[%s3561] sm:$0x3]
        %v3564 = vsel %vm430, %v3562, 0
        %v3566 = vsel %vm1559, %v3545, 0
        %v3568 = vsel %vm1559, %v3560, 0
        %3570 = vmatpush.bf16.msra.mxu0 0
        %3571 = vmatpush.bf16.msra.mxu0 0
        %3572 = vmatpush.bf16.msra.mxu0 0
        %3573 = vmatpush.bf16.msra.mxu0 0
        %3574 = vmatpush.bf16.msra.mxu0 0
        %3575 = vmatpush.bf16.msra.mxu0 0
        %3576 = vmatpush.bf16.msra.mxu0 0
        %3577 = vmatpush.bf16.msra.mxu0 %v3566
        %3578 = vmatmul.bf16.gmra.mxu0 %v3564
        %v3579 = vpop.f32.mrf.mxu0
        %v3580 = vadd.f32 0.0, %v3579
        %v3581 = vpop.f32.mrf.mxu0
        %3582 = vdwg.mxu0
        %3583 = vmatpush.bf16.msra.mxu0 0
        %3584 = vmatpush.bf16.msra.mxu0 0
        %3585 = vmatpush.bf16.msra.mxu0 0
        %3586 = vmatpush.bf16.msra.mxu0 0
        %3587 = vmatpush.bf16.msra.mxu0 0
        %3588 = vmatpush.bf16.msra.mxu0 0
        %3589 = vmatpush.bf16.msra.mxu0 0
        %3590 = vmatpush.bf16.msra.mxu0 %v3568
        %3591 = vmatmul.bf16.gmra.mxu0 %v3564
        %v3592 = vpop.f32.mrf.mxu0
        %v3593 = vadd.f32 0.0, %v3592
        %v3594 = vpop.f32.mrf.mxu0
        %3595 = vdwg.mxu0
        %v3596 = vadd.f32 %v3049, %v3580
        %v3597 = vadd.f32 %v3050, %v3593
        %v3598 = vld [vmem:[#allocation2] sm:$0xe]
        %v3599 = vld [vmem:[#allocation2 + $0x4] sm:$0xf]
        %v3600 = vld [vmem:[#allocation2 + $0x8] sm:$0x1]
        %v3601 = vld [vmem:[#allocation2 + $0xc] sm:$0xe]
        %v3602 = vld [vmem:[#allocation2 + $0x10] sm:$0xf]
        %v3603 = vld [vmem:[#allocation2 + $0x14] sm:$0x1]
        %v3604 = vld [vmem:[#allocation2 + $0x18] sm:$0xe]
        %v3605 = vld [vmem:[#allocation2 + $0x1c] sm:$0xf]
        %v3606 = vld [vmem:[#allocation2 + $0x20] sm:$0x1]
        %v3607 = vld [vmem:[#allocation2 + $0x24] sm:$0xe]
        %v3608 = vld [vmem:[#allocation2 + $0x28] sm:$0xf]
        %v3609 = vld [vmem:[#allocation2 + $0x2c] sm:$0x1]
        %v3610 = vld [vmem:[#allocation2 + $0x30] sm:$0xe]
        %v3611 = vld [vmem:[#allocation2 + $0x34] sm:$0xf]
        %v3612 = vld [vmem:[#allocation2 + $0x38] sm:$0x1]
        %v3613 = vld [vmem:[#allocation2 + $0x3c] sm:$0xe]
        %v3614 = vld [vmem:[#allocation2 + $0x40] sm:$0xf]
        %v3615 = vld [vmem:[#allocation2 + $0x44] sm:$0x1]
        %v3616 = vld [vmem:[#allocation2 + $0x48] sm:$0xe]
        %v3617 = vld [vmem:[#allocation2 + $0x4c] sm:$0xf]
        %v3618 = vld [vmem:[#allocation2 + $0x50] sm:$0x1]
        %v3619 = vld [vmem:[#allocation2 + $0x54] sm:$0xe]
        %v3620 = vld [vmem:[#allocation2 + $0x58] sm:$0xf]
        %v3621 = vld [vmem:[#allocation2 + $0x5c] sm:$0x1]
        %vm3646 = vcmask 1042432
        %vm3647 = vcmask 1046532
        %vm3648 = vmor %vm3646, %vm3647
        %v3649 = vrot.slane %v3598, 5
        %v3650 = vrot.slane %v3649, 4
        %v3651 = vrot.slane %v3599, 5
        %v3652 = vsel %vm3648, %v3650, %v3651
        %v3653 = vrot.slane %v3651, 4
        %v3654 = vrot.slane %v3600, 5
        %v3655 = vsel %vm3648, %v3653, %v3654
        %v3656 = vrot.slane %v3601, 5
        %v3657 = vrot.slane %v3656, 4
        %v3658 = vrot.slane %v3602, 5
        %v3659 = vsel %vm3648, %v3657, %v3658
        %v3660 = vrot.slane %v3658, 4
        %v3661 = vrot.slane %v3603, 5
        %v3662 = vsel %vm3648, %v3660, %v3661
        %v3663 = vrot.slane %v3604, 5
        %v3664 = vrot.slane %v3663, 4
        %v3665 = vrot.slane %v3605, 5
        %v3666 = vsel %vm3648, %v3664, %v3665
        %v3667 = vrot.slane %v3665, 4
        %v3668 = vrot.slane %v3606, 5
        %v3669 = vsel %vm3648, %v3667, %v3668
        %v3670 = vrot.slane %v3607, 5
        %v3671 = vrot.slane %v3670, 4
        %v3672 = vrot.slane %v3608, 5
        %v3673 = vsel %vm3648, %v3671, %v3672
        %v3674 = vrot.slane %v3672, 4
        %v3675 = vrot.slane %v3609, 5
        %v3676 = vsel %vm3648, %v3674, %v3675
        %v3677 = vrot.slane %v3610, 5
        %v3678 = vrot.slane %v3677, 4
        %v3679 = vrot.slane %v3611, 5
        %v3680 = vsel %vm3648, %v3678, %v3679
        %v3681 = vrot.slane %v3679, 4
        %v3682 = vrot.slane %v3612, 5
        %v3683 = vsel %vm3648, %v3681, %v3682
        %v3684 = vrot.slane %v3613, 5
        %v3685 = vrot.slane %v3684, 4
        %v3686 = vrot.slane %v3614, 5
        %v3687 = vsel %vm3648, %v3685, %v3686
        %v3688 = vrot.slane %v3686, 4
        %v3689 = vrot.slane %v3615, 5
        %v3690 = vsel %vm3648, %v3688, %v3689
        %v3691 = vrot.slane %v3616, 5
        %v3692 = vrot.slane %v3691, 4
        %v3693 = vrot.slane %v3617, 5
        %v3694 = vsel %vm3648, %v3692, %v3693
        %v3695 = vrot.slane %v3693, 4
        %v3696 = vrot.slane %v3618, 5
        %v3697 = vsel %vm3648, %v3695, %v3696
        %v3698 = vrot.slane %v3619, 5
        %v3699 = vrot.slane %v3698, 4
        %v3700 = vrot.slane %v3620, 5
        %v3701 = vsel %vm3648, %v3699, %v3700
        %v3702 = vrot.slane %v3700, 4
        %v3703 = vrot.slane %v3621, 5
        %v3704 = vsel %vm3648, %v3702, %v3703
        %v3721 = vrot.slane %v3680, 4
        %v3722 = vsel %vm990, %v3721, %v3652
        %v3724 = vunpack.c.l.s4 1983009808
        %v3725 = vunpack.c.0.s8 %v3724
        %v3726 = vperm.slane %v3722, %v3725
        %v3727 = vrot.slane %v3694, 4
        %v3728 = vsel %vm990, %v3727, %v3666
        %v3730 = vunpack.c.l.s4 1983009808
        %v3731 = vunpack.c.0.s8 %v3730
        %v3732 = vperm.slane %v3728, %v3731
        %v3733 = vrot.slane %v3732, 4
        %v3734 = vsel %vm990, %v3733, %v3726
        %v3735 = vrot.slane %v3726, 4
        %v3736 = vsel %vm990, %v3732, %v3735
        %v3738 = vunpack.c.l.s4 1934713408
        %v3739 = vunpack.c.0.s8 %v3738
        %v3740 = vperm.slane %v3734, %v3739
        %v3742 = vunpack.c.l.s4 1934713408
        %v3743 = vunpack.c.0.s8 %v3742
        %v3744 = vperm.slane %v3736, %v3743
        %v3745 = vrot.slane %v3740, 4
        %v3746 = vsel %vm990, 0, %v3745
        %v3747 = vrot.slane %v3744, 4
        %v3748 = vsel %vm990, 0, %v3747
        %v3749 = vrot.slane %v3687, 4
        %v3750 = vsel %vm990, %v3749, %v3659
        %v3752 = vunpack.c.l.s4 1983009808
        %v3753 = vunpack.c.0.s8 %v3752
        %v3754 = vperm.slane %v3750, %v3753
        %v3755 = vrot.slane %v3701, 4
        %v3756 = vsel %vm990, %v3755, %v3673
        %v3758 = vunpack.c.l.s4 1983009808
        %v3759 = vunpack.c.0.s8 %v3758
        %v3760 = vperm.slane %v3756, %v3759
        %v3761 = vrot.slane %v3760, 4
        %v3762 = vsel %vm990, %v3761, %v3754
        %v3763 = vrot.slane %v3754, 4
        %v3764 = vsel %vm990, %v3760, %v3763
        %v3766 = vunpack.c.l.s4 1934713408
        %v3767 = vunpack.c.0.s8 %v3766
        %v3768 = vperm.slane %v3762, %v3767
        %v3770 = vunpack.c.l.s4 1934713408
        %v3771 = vunpack.c.0.s8 %v3770
        %v3772 = vperm.slane %v3764, %v3771
        %v3773 = vrot.slane %v3768, 4
        %v3774 = vsel %vm990, 0, %v3773
        %v3775 = vrot.slane %v3772, 4
        %v3776 = vsel %vm990, 0, %v3775
        %v3777 = vrot.slane %v3683, 4
        %v3778 = vsel %vm990, %v3777, %v3655
        %v3780 = vunpack.c.l.s4 1983009808
        %v3781 = vunpack.c.0.s8 %v3780
        %v3782 = vperm.slane %v3778, %v3781
        %v3783 = vrot.slane %v3697, 4
        %v3784 = vsel %vm990, %v3783, %v3669
        %v3786 = vunpack.c.l.s4 1983009808
        %v3787 = vunpack.c.0.s8 %v3786
        %v3788 = vperm.slane %v3784, %v3787
        %v3789 = vrot.slane %v3788, 4
        %v3790 = vsel %vm990, %v3789, %v3782
        %v3791 = vrot.slane %v3782, 4
        %v3792 = vsel %vm990, %v3788, %v3791
        %v3794 = vunpack.c.l.s4 1934713408
        %v3795 = vunpack.c.0.s8 %v3794
        %v3796 = vperm.slane %v3790, %v3795
        %v3798 = vunpack.c.l.s4 1934713408
        %v3799 = vunpack.c.0.s8 %v3798
        %v3800 = vperm.slane %v3792, %v3799
        %v3801 = vrot.slane %v3796, 4
        %v3802 = vsel %vm990, 0, %v3801
        %v3803 = vrot.slane %v3800, 4
        %v3804 = vsel %vm990, 0, %v3803
        %v3805 = vrot.slane %v3690, 4
        %v3806 = vsel %vm990, %v3805, %v3662
        %v3808 = vunpack.c.l.s4 1983009808
        %v3809 = vunpack.c.0.s8 %v3808
        %v3810 = vperm.slane %v3806, %v3809
        %v3811 = vrot.slane %v3704, 4
        %v3812 = vsel %vm990, %v3811, %v3676
        %v3814 = vunpack.c.l.s4 1983009808
        %v3815 = vunpack.c.0.s8 %v3814
        %v3816 = vperm.slane %v3812, %v3815
        %v3817 = vrot.slane %v3816, 4
        %v3818 = vsel %vm990, %v3817, %v3810
        %v3819 = vrot.slane %v3810, 4
        %v3820 = vsel %vm990, %v3816, %v3819
        %v3822 = vunpack.c.l.s4 1934713408
        %v3823 = vunpack.c.0.s8 %v3822
        %v3824 = vperm.slane %v3818, %v3823
        %v3826 = vunpack.c.l.s4 1934713408
        %v3827 = vunpack.c.0.s8 %v3826
        %v3828 = vperm.slane %v3820, %v3827
        %v3829 = vrot.slane %v3824, 4
        %v3830 = vsel %vm990, 0, %v3829
        %v3831 = vrot.slane %v3828, 4
        %v3832 = vsel %vm990, 0, %v3831
        %v3835 = vpack.i.b16 %v3768, %v3740
        %v3836 = vshrl.u32 %v3740, 16
        %v3837 = vshrl.u32 %v3768, 16
        %v3838 = vpack.i.b16 %v3837, %v3836
        %v3841 = vpack.i.b16 %v3774, %v3746
        %v3842 = vshrl.u32 %v3746, 16
        %v3843 = vshrl.u32 %v3774, 16
        %v3844 = vpack.i.b16 %v3843, %v3842
        %v3847 = vpack.i.b16 %v3772, %v3744
        %v3848 = vshrl.u32 %v3744, 16
        %v3849 = vshrl.u32 %v3772, 16
        %v3850 = vpack.i.b16 %v3849, %v3848
        %v3853 = vpack.i.b16 %v3776, %v3748
        %v3854 = vshrl.u32 %v3748, 16
        %v3855 = vshrl.u32 %v3776, 16
        %v3856 = vpack.i.b16 %v3855, %v3854
        %v3859 = vpack.i.b16 %v3824, %v3796
        %v3860 = vshrl.u32 %v3796, 16
        %v3861 = vshrl.u32 %v3824, 16
        %v3862 = vpack.i.b16 %v3861, %v3860
        %v3865 = vpack.i.b16 %v3830, %v3802
        %v3866 = vshrl.u32 %v3802, 16
        %v3867 = vshrl.u32 %v3830, 16
        %v3868 = vpack.i.b16 %v3867, %v3866
        %v3871 = vpack.i.b16 %v3828, %v3800
        %v3872 = vshrl.u32 %v3800, 16
        %v3873 = vshrl.u32 %v3828, 16
        %v3874 = vpack.i.b16 %v3873, %v3872
        %v3877 = vpack.i.b16 %v3832, %v3804
        %v3878 = vshrl.u32 %v3804, 16
        %v3879 = vshrl.u32 %v3832, 16
        %v3880 = vpack.i.b16 %v3879, %v3878
        %v3881 = vunpack.c.l.b16 %v3838
        %v3882 = vpack.c.b16 %v3881, %v3881
        %3883 = vrot.lane.b32.xlu0 %v3882, 16
        %v3884 = vpop.permute.xlu0 %3883
        %v3885 = vunpack.c.l.b16 %v3841
        %v3886 = vpack.c.b16 %v3885, %v3885
        %3887 = vrot.lane.b32.xlu0 %v3886, 32
        %v3888 = vpop.permute.xlu0 %3887
        %v3889 = vunpack.c.l.b16 %v3844
        %v3890 = vpack.c.b16 %v3889, %v3889
        %3891 = vrot.lane.b32.xlu0 %v3890, 48
        %v3892 = vpop.permute.xlu0 %3891
        %v3893 = vunpack.c.l.b16 %v3847
        %v3894 = vpack.c.b16 %v3893, %v3893
        %3895 = vrot.lane.b32.xlu0 %v3894, 64
        %v3896 = vpop.permute.xlu0 %3895
        %v3897 = vunpack.c.l.b16 %v3850
        %v3898 = vpack.c.b16 %v3897, %v3897
        %3899 = vrot.lane.b32.xlu0 %v3898, 80
        %v3900 = vpop.permute.xlu0 %3899
        %v3901 = vunpack.c.l.b16 %v3853
        %v3902 = vpack.c.b16 %v3901, %v3901
        %3903 = vrot.lane.b32.xlu0 %v3902, 96
        %v3904 = vpop.permute.xlu0 %3903
        %v3905 = vunpack.c.l.b16 %v3856
        %v3906 = vpack.c.b16 %v3905, %v3905
        %3907 = vrot.lane.b32.xlu0 %v3906, 112
        %v3908 = vpop.permute.xlu0 %3907
        %v3909 = vunpack.c.l.b16 %v3862
        %v3910 = vpack.c.b16 %v3909, %v3909
        %3911 = vrot.lane.b32.xlu0 %v3910, 16
        %v3912 = vpop.permute.xlu0 %3911
        %v3913 = vunpack.c.l.b16 %v3865
        %v3914 = vpack.c.b16 %v3913, %v3913
        %3915 = vrot.lane.b32.xlu0 %v3914, 32
        %v3916 = vpop.permute.xlu0 %3915
        %v3917 = vunpack.c.l.b16 %v3868
        %v3918 = vpack.c.b16 %v3917, %v3917
        %3919 = vrot.lane.b32.xlu0 %v3918, 48
        %v3920 = vpop.permute.xlu0 %3919
        %v3921 = vunpack.c.l.b16 %v3871
        %v3922 = vpack.c.b16 %v3921, %v3921
        %3923 = vrot.lane.b32.xlu0 %v3922, 64
        %v3924 = vpop.permute.xlu0 %3923
        %v3925 = vunpack.c.l.b16 %v3874
        %v3926 = vpack.c.b16 %v3925, %v3925
        %3927 = vrot.lane.b32.xlu0 %v3926, 80
        %v3928 = vpop.permute.xlu0 %3927
        %v3929 = vunpack.c.l.b16 %v3877
        %v3930 = vpack.c.b16 %v3929, %v3929
        %3931 = vrot.lane.b32.xlu0 %v3930, 96
        %v3932 = vpop.permute.xlu0 %3931
        %v3933 = vunpack.c.l.b16 %v3880
        %v3934 = vpack.c.b16 %v3933, %v3933
        %3935 = vrot.lane.b32.xlu0 %v3934, 112
        %v3936 = vpop.permute.xlu0 %3935
        %v3939 = vsel %vm1206, %v3835, %v3884
        %v3941 = vsel %vm1210, %v3939, %v3888
        %v3943 = vsel %vm1213, %v3941, %v3892
        %v3945 = vsel %vm1216, %v3943, %v3896
        %v3947 = vsel %vm1219, %v3945, %v3900
        %v3949 = vsel %vm1222, %v3947, %v3904
        %v3951 = vsel %vm1225, %v3949, %v3908
        %v3954 = vsel %vm1206, %v3859, %v3912
        %v3956 = vsel %vm1210, %v3954, %v3916
        %v3958 = vsel %vm1213, %v3956, %v3920
        %v3960 = vsel %vm1216, %v3958, %v3924
        %v3962 = vsel %vm1219, %v3960, %v3928
        %v3964 = vsel %vm1222, %v3962, %v3932
        %v3966 = vsel %vm1225, %v3964, %v3936
        %s3967 = scalar_lea.vmem %s4, 12
        %v3968 = vld [vmem:[%s3967] sm:$0x3]
        %v3970 = vsel %vm430, %v3968, 0
        %v3972 = vsel %vm1559, %v3951, 0
        %v3974 = vsel %vm1559, %v3966, 0
        %3976 = vmatpush.bf16.msra.mxu0 0
        %3977 = vmatpush.bf16.msra.mxu0 0
        %3978 = vmatpush.bf16.msra.mxu0 0
        %3979 = vmatpush.bf16.msra.mxu0 0
        %3980 = vmatpush.bf16.msra.mxu0 0
        %3981 = vmatpush.bf16.msra.mxu0 0
        %3982 = vmatpush.bf16.msra.mxu0 0
        %3983 = vmatpush.bf16.msra.mxu0 %v3972
        %3984 = vmatmul.bf16.gmra.mxu0 %v3970
        %v3985 = vpop.f32.mrf.mxu0
        %v3986 = vadd.f32 0.0, %v3985
        %v3987 = vpop.f32.mrf.mxu0
        %3988 = vdwg.mxu0
        %3989 = vmatpush.bf16.msra.mxu0 0
        %3990 = vmatpush.bf16.msra.mxu0 0
        %3991 = vmatpush.bf16.msra.mxu0 0
        %3992 = vmatpush.bf16.msra.mxu0 0
        %3993 = vmatpush.bf16.msra.mxu0 0
        %3994 = vmatpush.bf16.msra.mxu0 0
        %3995 = vmatpush.bf16.msra.mxu0 0
        %3996 = vmatpush.bf16.msra.mxu0 %v3974
        %3997 = vmatmul.bf16.gmra.mxu0 %v3970
        %v3998 = vpop.f32.mrf.mxu0
        %v3999 = vadd.f32 0.0, %v3998
        %v4000 = vpop.f32.mrf.mxu0
        %4001 = vdwg.mxu0
        %v4002 = vadd.f32 %v3596, %v3986
        %v4003 = vadd.f32 %v3597, %v3999
        %v4004 = vld [vmem:[#allocation2] sm:$0xe]
        %v4005 = vld [vmem:[#allocation2 + $0x4] sm:$0xf]
        %v4006 = vld [vmem:[#allocation2 + $0x8] sm:$0x1]
        %v4007 = vld [vmem:[#allocation2 + $0xc] sm:$0xe]
        %v4008 = vld [vmem:[#allocation2 + $0x10] sm:$0xf]
        %v4009 = vld [vmem:[#allocation2 + $0x14] sm:$0x1]
        %v4010 = vld [vmem:[#allocation2 + $0x18] sm:$0xe]
        %v4011 = vld [vmem:[#allocation2 + $0x1c] sm:$0xf]
        %v4012 = vld [vmem:[#allocation2 + $0x20] sm:$0x1]
        %v4013 = vld [vmem:[#allocation2 + $0x24] sm:$0xe]
        %v4014 = vld [vmem:[#allocation2 + $0x28] sm:$0xf]
        %v4015 = vld [vmem:[#allocation2 + $0x2c] sm:$0x1]
        %v4016 = vld [vmem:[#allocation2 + $0x30] sm:$0xe]
        %v4017 = vld [vmem:[#allocation2 + $0x34] sm:$0xf]
        %v4018 = vld [vmem:[#allocation2 + $0x38] sm:$0x1]
        %v4019 = vld [vmem:[#allocation2 + $0x3c] sm:$0xe]
        %v4020 = vld [vmem:[#allocation2 + $0x40] sm:$0xf]
        %v4021 = vld [vmem:[#allocation2 + $0x44] sm:$0x1]
        %v4022 = vld [vmem:[#allocation2 + $0x48] sm:$0xe]
        %v4023 = vld [vmem:[#allocation2 + $0x4c] sm:$0xf]
        %v4024 = vld [vmem:[#allocation2 + $0x50] sm:$0x1]
        %v4025 = vld [vmem:[#allocation2 + $0x54] sm:$0xe]
        %v4026 = vld [vmem:[#allocation2 + $0x58] sm:$0xf]
        %v4027 = vld [vmem:[#allocation2 + $0x5c] sm:$0x1]
        %v4052 = vrot.slane %v4004, 5
        %v4053 = vrot.slane %v4052, 4
        %v4054 = vrot.slane %v4005, 5
        %v4055 = vsel %vm3648, %v4053, %v4054
        %v4056 = vrot.slane %v4054, 4
        %v4057 = vrot.slane %v4006, 5
        %v4058 = vsel %vm3648, %v4056, %v4057
        %v4059 = vrot.slane %v4007, 5
        %v4060 = vrot.slane %v4059, 4
        %v4061 = vrot.slane %v4008, 5
        %v4062 = vsel %vm3648, %v4060, %v4061
        %v4063 = vrot.slane %v4061, 4
        %v4064 = vrot.slane %v4009, 5
        %v4065 = vsel %vm3648, %v4063, %v4064
        %v4066 = vrot.slane %v4010, 5
        %v4067 = vrot.slane %v4066, 4
        %v4068 = vrot.slane %v4011, 5
        %v4069 = vsel %vm3648, %v4067, %v4068
        %v4070 = vrot.slane %v4068, 4
        %v4071 = vrot.slane %v4012, 5
        %v4072 = vsel %vm3648, %v4070, %v4071
        %v4073 = vrot.slane %v4013, 5
        %v4074 = vrot.slane %v4073, 4
        %v4075 = vrot.slane %v4014, 5
        %v4076 = vsel %vm3648, %v4074, %v4075
        %v4077 = vrot.slane %v4075, 4
        %v4078 = vrot.slane %v4015, 5
        %v4079 = vsel %vm3648, %v4077, %v4078
        %v4080 = vrot.slane %v4016, 5
        %v4081 = vrot.slane %v4080, 4
        %v4082 = vrot.slane %v4017, 5
        %v4083 = vsel %vm3648, %v4081, %v4082
        %v4084 = vrot.slane %v4082, 4
        %v4085 = vrot.slane %v4018, 5
        %v4086 = vsel %vm3648, %v4084, %v4085
        %v4087 = vrot.slane %v4019, 5
        %v4088 = vrot.slane %v4087, 4
        %v4089 = vrot.slane %v4020, 5
        %v4090 = vsel %vm3648, %v4088, %v4089
        %v4091 = vrot.slane %v4089, 4
        %v4092 = vrot.slane %v4021, 5
        %v4093 = vsel %vm3648, %v4091, %v4092
        %v4094 = vrot.slane %v4022, 5
        %v4095 = vrot.slane %v4094, 4
        %v4096 = vrot.slane %v4023, 5
        %v4097 = vsel %vm3648, %v4095, %v4096
        %v4098 = vrot.slane %v4096, 4
        %v4099 = vrot.slane %v4024, 5
        %v4100 = vsel %vm3648, %v4098, %v4099
        %v4101 = vrot.slane %v4025, 5
        %v4102 = vrot.slane %v4101, 4
        %v4103 = vrot.slane %v4026, 5
        %v4104 = vsel %vm3648, %v4102, %v4103
        %v4105 = vrot.slane %v4103, 4
        %v4106 = vrot.slane %v4027, 5
        %v4107 = vsel %vm3648, %v4105, %v4106
        %4108 = vrot.lane.b32.xlu0 %v4055, 127
        %v4109 = vpop.permute.xlu0 %4108
        %4110 = vrot.lane.b32.xlu0 %v4058, 127
        %v4111 = vpop.permute.xlu0 %4110
        %4112 = vrot.lane.b32.xlu0 %v4062, 127
        %v4113 = vpop.permute.xlu0 %4112
        %4114 = vrot.lane.b32.xlu0 %v4065, 127
        %v4115 = vpop.permute.xlu0 %4114
        %4116 = vrot.lane.b32.xlu0 %v4069, 127
        %v4117 = vpop.permute.xlu0 %4116
        %4118 = vrot.lane.b32.xlu0 %v4072, 127
        %v4119 = vpop.permute.xlu0 %4118
        %4120 = vrot.lane.b32.xlu0 %v4076, 127
        %v4121 = vpop.permute.xlu0 %4120
        %4122 = vrot.lane.b32.xlu0 %v4079, 127
        %v4123 = vpop.permute.xlu0 %4122
        %4124 = vrot.lane.b32.xlu0 %v4083, 127
        %v4125 = vpop.permute.xlu0 %4124
        %4126 = vrot.lane.b32.xlu0 %v4086, 127
        %v4127 = vpop.permute.xlu0 %4126
        %4128 = vrot.lane.b32.xlu0 %v4090, 127
        %v4129 = vpop.permute.xlu0 %4128
        %4130 = vrot.lane.b32.xlu0 %v4093, 127
        %v4131 = vpop.permute.xlu0 %4130
        %4132 = vrot.lane.b32.xlu0 %v4097, 127
        %v4133 = vpop.permute.xlu0 %4132
        %4134 = vrot.lane.b32.xlu0 %v4100, 127
        %v4135 = vpop.permute.xlu0 %4134
        %4136 = vrot.lane.b32.xlu0 %v4104, 127
        %v4137 = vpop.permute.xlu0 %4136
        %4138 = vrot.lane.b32.xlu0 %v4107, 127
        %v4139 = vpop.permute.xlu0 %4138
        %v4156 = vrot.slane %v4125, 4
        %v4157 = vsel %vm990, %v4156, %v4109
        %v4159 = vunpack.c.l.s4 1983009808
        %v4160 = vunpack.c.0.s8 %v4159
        %v4161 = vperm.slane %v4157, %v4160
        %v4162 = vrot.slane %v4133, 4
        %v4163 = vsel %vm990, %v4162, %v4117
        %v4165 = vunpack.c.l.s4 1983009808
        %v4166 = vunpack.c.0.s8 %v4165
        %v4167 = vperm.slane %v4163, %v4166
        %v4168 = vrot.slane %v4167, 4
        %v4169 = vsel %vm990, %v4168, %v4161
        %v4170 = vrot.slane %v4161, 4
        %v4171 = vsel %vm990, %v4167, %v4170
        %v4173 = vunpack.c.l.s4 1934713408
        %v4174 = vunpack.c.0.s8 %v4173
        %v4175 = vperm.slane %v4169, %v4174
        %v4177 = vunpack.c.l.s4 1934713408
        %v4178 = vunpack.c.0.s8 %v4177
        %v4179 = vperm.slane %v4171, %v4178
        %v4180 = vrot.slane %v4175, 4
        %v4181 = vsel %vm990, 0, %v4180
        %v4182 = vrot.slane %v4179, 4
        %v4183 = vsel %vm990, 0, %v4182
        %v4184 = vrot.slane %v4129, 4
        %v4185 = vsel %vm990, %v4184, %v4113
        %v4187 = vunpack.c.l.s4 1983009808
        %v4188 = vunpack.c.0.s8 %v4187
        %v4189 = vperm.slane %v4185, %v4188
        %v4190 = vrot.slane %v4137, 4
        %v4191 = vsel %vm990, %v4190, %v4121
        %v4193 = vunpack.c.l.s4 1983009808
        %v4194 = vunpack.c.0.s8 %v4193
        %v4195 = vperm.slane %v4191, %v4194
        %v4196 = vrot.slane %v4195, 4
        %v4197 = vsel %vm990, %v4196, %v4189
        %v4198 = vrot.slane %v4189, 4
        %v4199 = vsel %vm990, %v4195, %v4198
        %v4201 = vunpack.c.l.s4 1934713408
        %v4202 = vunpack.c.0.s8 %v4201
        %v4203 = vperm.slane %v4197, %v4202
        %v4205 = vunpack.c.l.s4 1934713408
        %v4206 = vunpack.c.0.s8 %v4205
        %v4207 = vperm.slane %v4199, %v4206
        %v4208 = vrot.slane %v4203, 4
        %v4209 = vsel %vm990, 0, %v4208
        %v4210 = vrot.slane %v4207, 4
        %v4211 = vsel %vm990, 0, %v4210
        %v4212 = vrot.slane %v4127, 4
        %v4213 = vsel %vm990, %v4212, %v4111
        %v4215 = vunpack.c.l.s4 1983009808
        %v4216 = vunpack.c.0.s8 %v4215
        %v4217 = vperm.slane %v4213, %v4216
        %v4218 = vrot.slane %v4135, 4
        %v4219 = vsel %vm990, %v4218, %v4119
        %v4221 = vunpack.c.l.s4 1983009808
        %v4222 = vunpack.c.0.s8 %v4221
        %v4223 = vperm.slane %v4219, %v4222
        %v4224 = vrot.slane %v4223, 4
        %v4225 = vsel %vm990, %v4224, %v4217
        %v4226 = vrot.slane %v4217, 4
        %v4227 = vsel %vm990, %v4223, %v4226
        %v4229 = vunpack.c.l.s4 1934713408
        %v4230 = vunpack.c.0.s8 %v4229
        %v4231 = vperm.slane %v4225, %v4230
        %v4233 = vunpack.c.l.s4 1934713408
        %v4234 = vunpack.c.0.s8 %v4233
        %v4235 = vperm.slane %v4227, %v4234
        %v4236 = vrot.slane %v4231, 4
        %v4237 = vsel %vm990, 0, %v4236
        %v4238 = vrot.slane %v4235, 4
        %v4239 = vsel %vm990, 0, %v4238
        %v4240 = vrot.slane %v4131, 4
        %v4241 = vsel %vm990, %v4240, %v4115
        %v4243 = vunpack.c.l.s4 1983009808
        %v4244 = vunpack.c.0.s8 %v4243
        %v4245 = vperm.slane %v4241, %v4244
        %v4246 = vrot.slane %v4139, 4
        %v4247 = vsel %vm990, %v4246, %v4123
        %v4249 = vunpack.c.l.s4 1983009808
        %v4250 = vunpack.c.0.s8 %v4249
        %v4251 = vperm.slane %v4247, %v4250
        %v4252 = vrot.slane %v4251, 4
        %v4253 = vsel %vm990, %v4252, %v4245
        %v4254 = vrot.slane %v4245, 4
        %v4255 = vsel %vm990, %v4251, %v4254
        %v4257 = vunpack.c.l.s4 1934713408
        %v4258 = vunpack.c.0.s8 %v4257
        %v4259 = vperm.slane %v4253, %v4258
        %v4261 = vunpack.c.l.s4 1934713408
        %v4262 = vunpack.c.0.s8 %v4261
        %v4263 = vperm.slane %v4255, %v4262
        %v4264 = vrot.slane %v4259, 4
        %v4265 = vsel %vm990, 0, %v4264
        %v4266 = vrot.slane %v4263, 4
        %v4267 = vsel %vm990, 0, %v4266
        %v4270 = vpack.i.b16 %v4203, %v4175
        %v4271 = vshrl.u32 %v4175, 16
        %v4272 = vshrl.u32 %v4203, 16
        %v4273 = vpack.i.b16 %v4272, %v4271
        %v4276 = vpack.i.b16 %v4209, %v4181
        %v4277 = vshrl.u32 %v4181, 16
        %v4278 = vshrl.u32 %v4209, 16
        %v4279 = vpack.i.b16 %v4278, %v4277
        %v4282 = vpack.i.b16 %v4207, %v4179
        %v4283 = vshrl.u32 %v4179, 16
        %v4284 = vshrl.u32 %v4207, 16
        %v4285 = vpack.i.b16 %v4284, %v4283
        %v4288 = vpack.i.b16 %v4211, %v4183
        %v4289 = vshrl.u32 %v4183, 16
        %v4290 = vshrl.u32 %v4211, 16
        %v4291 = vpack.i.b16 %v4290, %v4289
        %v4294 = vpack.i.b16 %v4259, %v4231
        %v4295 = vshrl.u32 %v4231, 16
        %v4296 = vshrl.u32 %v4259, 16
        %v4297 = vpack.i.b16 %v4296, %v4295
        %v4300 = vpack.i.b16 %v4265, %v4237
        %v4301 = vshrl.u32 %v4237, 16
        %v4302 = vshrl.u32 %v4265, 16
        %v4303 = vpack.i.b16 %v4302, %v4301
        %v4306 = vpack.i.b16 %v4263, %v4235
        %v4307 = vshrl.u32 %v4235, 16
        %v4308 = vshrl.u32 %v4263, 16
        %v4309 = vpack.i.b16 %v4308, %v4307
        %v4312 = vpack.i.b16 %v4267, %v4239
        %v4313 = vshrl.u32 %v4239, 16
        %v4314 = vshrl.u32 %v4267, 16
        %v4315 = vpack.i.b16 %v4314, %v4313
        %v4316 = vunpack.c.l.b16 %v4273
        %v4317 = vpack.c.b16 %v4316, %v4316
        %4318 = vrot.lane.b32.xlu0 %v4317, 16
        %v4319 = vpop.permute.xlu0 %4318
        %v4320 = vunpack.c.l.b16 %v4276
        %v4321 = vpack.c.b16 %v4320, %v4320
        %4322 = vrot.lane.b32.xlu0 %v4321, 32
        %v4323 = vpop.permute.xlu0 %4322
        %v4324 = vunpack.c.l.b16 %v4279
        %v4325 = vpack.c.b16 %v4324, %v4324
        %4326 = vrot.lane.b32.xlu0 %v4325, 48
        %v4327 = vpop.permute.xlu0 %4326
        %v4328 = vunpack.c.l.b16 %v4282
        %v4329 = vpack.c.b16 %v4328, %v4328
        %4330 = vrot.lane.b32.xlu0 %v4329, 64
        %v4331 = vpop.permute.xlu0 %4330
        %v4332 = vunpack.c.l.b16 %v4285
        %v4333 = vpack.c.b16 %v4332, %v4332
        %4334 = vrot.lane.b32.xlu0 %v4333, 80
        %v4335 = vpop.permute.xlu0 %4334
        %v4336 = vunpack.c.l.b16 %v4288
        %v4337 = vpack.c.b16 %v4336, %v4336
        %4338 = vrot.lane.b32.xlu0 %v4337, 96
        %v4339 = vpop.permute.xlu0 %4338
        %v4340 = vunpack.c.l.b16 %v4291
        %v4341 = vpack.c.b16 %v4340, %v4340
        %4342 = vrot.lane.b32.xlu0 %v4341, 112
        %v4343 = vpop.permute.xlu0 %4342
        %v4344 = vunpack.c.l.b16 %v4297
        %v4345 = vpack.c.b16 %v4344, %v4344
        %4346 = vrot.lane.b32.xlu0 %v4345, 16
        %v4347 = vpop.permute.xlu0 %4346
        %v4348 = vunpack.c.l.b16 %v4300
        %v4349 = vpack.c.b16 %v4348, %v4348
        %4350 = vrot.lane.b32.xlu0 %v4349, 32
        %v4351 = vpop.permute.xlu0 %4350
        %v4352 = vunpack.c.l.b16 %v4303
        %v4353 = vpack.c.b16 %v4352, %v4352
        %4354 = vrot.lane.b32.xlu0 %v4353, 48
        %v4355 = vpop.permute.xlu0 %4354
        %v4356 = vunpack.c.l.b16 %v4306
        %v4357 = vpack.c.b16 %v4356, %v4356
        %4358 = vrot.lane.b32.xlu0 %v4357, 64
        %v4359 = vpop.permute.xlu0 %4358
        %v4360 = vunpack.c.l.b16 %v4309
        %v4361 = vpack.c.b16 %v4360, %v4360
        %4362 = vrot.lane.b32.xlu0 %v4361, 80
        %v4363 = vpop.permute.xlu0 %4362
        %v4364 = vunpack.c.l.b16 %v4312
        %v4365 = vpack.c.b16 %v4364, %v4364
        %4366 = vrot.lane.b32.xlu0 %v4365, 96
        %v4367 = vpop.permute.xlu0 %4366
        %v4368 = vunpack.c.l.b16 %v4315
        %v4369 = vpack.c.b16 %v4368, %v4368
        %4370 = vrot.lane.b32.xlu0 %v4369, 112
        %v4371 = vpop.permute.xlu0 %4370
        %v4374 = vsel %vm1206, %v4270, %v4319
        %v4376 = vsel %vm1210, %v4374, %v4323
        %v4378 = vsel %vm1213, %v4376, %v4327
        %v4380 = vsel %vm1216, %v4378, %v4331
        %v4382 = vsel %vm1219, %v4380, %v4335
        %v4384 = vsel %vm1222, %v4382, %v4339
        %v4386 = vsel %vm1225, %v4384, %v4343
        %v4389 = vsel %vm1206, %v4294, %v4347
        %v4391 = vsel %vm1210, %v4389, %v4351
        %v4393 = vsel %vm1213, %v4391, %v4355
        %v4395 = vsel %vm1216, %v4393, %v4359
        %v4397 = vsel %vm1219, %v4395, %v4363
        %v4399 = vsel %vm1222, %v4397, %v4367
        %v4401 = vsel %vm1225, %v4399, %v4371
        %s4402 = scalar_lea.vmem %s4, 14
        %v4403 = vld [vmem:[%s4402] sm:$0x3]
        %v4405 = vsel %vm430, %v4403, 0
        %v4407 = vsel %vm1559, %v4386, 0
        %v4409 = vsel %vm1559, %v4401, 0
        %4411 = vmatpush.bf16.msra.mxu0 0
        %4412 = vmatpush.bf16.msra.mxu0 0
        %4413 = vmatpush.bf16.msra.mxu0 0
        %4414 = vmatpush.bf16.msra.mxu0 0
        %4415 = vmatpush.bf16.msra.mxu0 0
        %4416 = vmatpush.bf16.msra.mxu0 0
        %4417 = vmatpush.bf16.msra.mxu0 0
        %4418 = vmatpush.bf16.msra.mxu0 %v4407
        %4419 = vmatmul.bf16.gmra.mxu0 %v4405
        %v4420 = vpop.f32.mrf.mxu0
        %v4421 = vadd.f32 0.0, %v4420
        %v4422 = vpop.f32.mrf.mxu0
        %4423 = vdwg.mxu0
        %4424 = vmatpush.bf16.msra.mxu0 0
        %4425 = vmatpush.bf16.msra.mxu0 0
        %4426 = vmatpush.bf16.msra.mxu0 0
        %4427 = vmatpush.bf16.msra.mxu0 0
        %4428 = vmatpush.bf16.msra.mxu0 0
        %4429 = vmatpush.bf16.msra.mxu0 0
        %4430 = vmatpush.bf16.msra.mxu0 0
        %4431 = vmatpush.bf16.msra.mxu0 %v4409
        %4432 = vmatmul.bf16.gmra.mxu0 %v4405
        %v4433 = vpop.f32.mrf.mxu0
        %v4434 = vadd.f32 0.0, %v4433
        %v4435 = vpop.f32.mrf.mxu0
        %4436 = vdwg.mxu0
        %v4437 = vadd.f32 %v4002, %v4421
        %v4438 = vadd.f32 %v4003, %v4434
        %v4439 = vld [vmem:[#allocation2] sm:$0xe]
        %v4440 = vld [vmem:[#allocation2 + $0x4] sm:$0xf]
        %v4441 = vld [vmem:[#allocation2 + $0x8] sm:$0x1]
        %v4442 = vld [vmem:[#allocation2 + $0xc] sm:$0xe]
        %v4443 = vld [vmem:[#allocation2 + $0x10] sm:$0xf]
        %v4444 = vld [vmem:[#allocation2 + $0x14] sm:$0x1]
        %v4445 = vld [vmem:[#allocation2 + $0x18] sm:$0xe]
        %v4446 = vld [vmem:[#allocation2 + $0x1c] sm:$0xf]
        %v4447 = vld [vmem:[#allocation2 + $0x20] sm:$0x1]
        %v4448 = vld [vmem:[#allocation2 + $0x24] sm:$0xe]
        %v4449 = vld [vmem:[#allocation2 + $0x28] sm:$0xf]
        %v4450 = vld [vmem:[#allocation2 + $0x2c] sm:$0x1]
        %v4451 = vld [vmem:[#allocation2 + $0x30] sm:$0xe]
        %v4452 = vld [vmem:[#allocation2 + $0x34] sm:$0xf]
        %v4453 = vld [vmem:[#allocation2 + $0x38] sm:$0x1]
        %v4454 = vld [vmem:[#allocation2 + $0x3c] sm:$0xe]
        %v4455 = vld [vmem:[#allocation2 + $0x40] sm:$0xf]
        %v4456 = vld [vmem:[#allocation2 + $0x44] sm:$0x1]
        %v4457 = vld [vmem:[#allocation2 + $0x48] sm:$0xe]
        %v4458 = vld [vmem:[#allocation2 + $0x4c] sm:$0xf]
        %v4459 = vld [vmem:[#allocation2 + $0x50] sm:$0x1]
        %v4460 = vld [vmem:[#allocation2 + $0x54] sm:$0xe]
        %v4461 = vld [vmem:[#allocation2 + $0x58] sm:$0xf]
        %v4462 = vld [vmem:[#allocation2 + $0x5c] sm:$0x1]
        %v4487 = vrot.slane %v4439, 5
        %v4488 = vrot.slane %v4487, 4
        %v4489 = vrot.slane %v4440, 5
        %v4490 = vsel %vm3648, %v4488, %v4489
        %v4491 = vrot.slane %v4489, 4
        %v4492 = vrot.slane %v4441, 5
        %v4493 = vsel %vm3648, %v4491, %v4492
        %v4494 = vrot.slane %v4442, 5
        %v4495 = vrot.slane %v4494, 4
        %v4496 = vrot.slane %v4443, 5
        %v4497 = vsel %vm3648, %v4495, %v4496
        %v4498 = vrot.slane %v4496, 4
        %v4499 = vrot.slane %v4444, 5
        %v4500 = vsel %vm3648, %v4498, %v4499
        %v4501 = vrot.slane %v4445, 5
        %v4502 = vrot.slane %v4501, 4
        %v4503 = vrot.slane %v4446, 5
        %v4504 = vsel %vm3648, %v4502, %v4503
        %v4505 = vrot.slane %v4503, 4
        %v4506 = vrot.slane %v4447, 5
        %v4507 = vsel %vm3648, %v4505, %v4506
        %v4508 = vrot.slane %v4448, 5
        %v4509 = vrot.slane %v4508, 4
        %v4510 = vrot.slane %v4449, 5
        %v4511 = vsel %vm3648, %v4509, %v4510
        %v4512 = vrot.slane %v4510, 4
        %v4513 = vrot.slane %v4450, 5
        %v4514 = vsel %vm3648, %v4512, %v4513
        %v4515 = vrot.slane %v4451, 5
        %v4516 = vrot.slane %v4515, 4
        %v4517 = vrot.slane %v4452, 5
        %v4518 = vsel %vm3648, %v4516, %v4517
        %v4519 = vrot.slane %v4517, 4
        %v4520 = vrot.slane %v4453, 5
        %v4521 = vsel %vm3648, %v4519, %v4520
        %v4522 = vrot.slane %v4454, 5
        %v4523 = vrot.slane %v4522, 4
        %v4524 = vrot.slane %v4455, 5
        %v4525 = vsel %vm3648, %v4523, %v4524
        %v4526 = vrot.slane %v4524, 4
        %v4527 = vrot.slane %v4456, 5
        %v4528 = vsel %vm3648, %v4526, %v4527
        %v4529 = vrot.slane %v4457, 5
        %v4530 = vrot.slane %v4529, 4
        %v4531 = vrot.slane %v4458, 5
        %v4532 = vsel %vm3648, %v4530, %v4531
        %v4533 = vrot.slane %v4531, 4
        %v4534 = vrot.slane %v4459, 5
        %v4535 = vsel %vm3648, %v4533, %v4534
        %v4536 = vrot.slane %v4460, 5
        %v4537 = vrot.slane %v4536, 4
        %v4538 = vrot.slane %v4461, 5
        %v4539 = vsel %vm3648, %v4537, %v4538
        %v4540 = vrot.slane %v4538, 4
        %v4541 = vrot.slane %v4462, 5
        %v4542 = vsel %vm3648, %v4540, %v4541
        %4543 = vrot.lane.b32.xlu0 %v4490, 126
        %v4544 = vpop.permute.xlu0 %4543
        %4545 = vrot.lane.b32.xlu0 %v4493, 126
        %v4546 = vpop.permute.xlu0 %4545
        %4547 = vrot.lane.b32.xlu0 %v4497, 126
        %v4548 = vpop.permute.xlu0 %4547
        %4549 = vrot.lane.b32.xlu0 %v4500, 126
        %v4550 = vpop.permute.xlu0 %4549
        %4551 = vrot.lane.b32.xlu0 %v4504, 126
        %v4552 = vpop.permute.xlu0 %4551
        %4553 = vrot.lane.b32.xlu0 %v4507, 126
        %v4554 = vpop.permute.xlu0 %4553
        %4555 = vrot.lane.b32.xlu0 %v4511, 126
        %v4556 = vpop.permute.xlu0 %4555
        %4557 = vrot.lane.b32.xlu0 %v4514, 126
        %v4558 = vpop.permute.xlu0 %4557
        %4559 = vrot.lane.b32.xlu0 %v4518, 126
        %v4560 = vpop.permute.xlu0 %4559
        %4561 = vrot.lane.b32.xlu0 %v4521, 126
        %v4562 = vpop.permute.xlu0 %4561
        %4563 = vrot.lane.b32.xlu0 %v4525, 126
        %v4564 = vpop.permute.xlu0 %4563
        %4565 = vrot.lane.b32.xlu0 %v4528, 126
        %v4566 = vpop.permute.xlu0 %4565
        %4567 = vrot.lane.b32.xlu0 %v4532, 126
        %v4568 = vpop.permute.xlu0 %4567
        %4569 = vrot.lane.b32.xlu0 %v4535, 126
        %v4570 = vpop.permute.xlu0 %4569
        %4571 = vrot.lane.b32.xlu0 %v4539, 126
        %v4572 = vpop.permute.xlu0 %4571
        %4573 = vrot.lane.b32.xlu0 %v4542, 126
        %v4574 = vpop.permute.xlu0 %4573
        %v4591 = vrot.slane %v4560, 4
        %v4592 = vsel %vm990, %v4591, %v4544
        %v4594 = vunpack.c.l.s4 1983009808
        %v4595 = vunpack.c.0.s8 %v4594
        %v4596 = vperm.slane %v4592, %v4595
        %v4597 = vrot.slane %v4568, 4
        %v4598 = vsel %vm990, %v4597, %v4552
        %v4600 = vunpack.c.l.s4 1983009808
        %v4601 = vunpack.c.0.s8 %v4600
        %v4602 = vperm.slane %v4598, %v4601
        %v4603 = vrot.slane %v4602, 4
        %v4604 = vsel %vm990, %v4603, %v4596
        %v4605 = vrot.slane %v4596, 4
        %v4606 = vsel %vm990, %v4602, %v4605
        %v4608 = vunpack.c.l.s4 1934713408
        %v4609 = vunpack.c.0.s8 %v4608
        %v4610 = vperm.slane %v4604, %v4609
        %v4612 = vunpack.c.l.s4 1934713408
        %v4613 = vunpack.c.0.s8 %v4612
        %v4614 = vperm.slane %v4606, %v4613
        %v4615 = vrot.slane %v4610, 4
        %v4616 = vsel %vm990, 0, %v4615
        %v4617 = vrot.slane %v4614, 4
        %v4618 = vsel %vm990, 0, %v4617
        %v4619 = vrot.slane %v4564, 4
        %v4620 = vsel %vm990, %v4619, %v4548
        %v4622 = vunpack.c.l.s4 1983009808
        %v4623 = vunpack.c.0.s8 %v4622
        %v4624 = vperm.slane %v4620, %v4623
        %v4625 = vrot.slane %v4572, 4
        %v4626 = vsel %vm990, %v4625, %v4556
        %v4628 = vunpack.c.l.s4 1983009808
        %v4629 = vunpack.c.0.s8 %v4628
        %v4630 = vperm.slane %v4626, %v4629
        %v4631 = vrot.slane %v4630, 4
        %v4632 = vsel %vm990, %v4631, %v4624
        %v4633 = vrot.slane %v4624, 4
        %v4634 = vsel %vm990, %v4630, %v4633
        %v4636 = vunpack.c.l.s4 1934713408
        %v4637 = vunpack.c.0.s8 %v4636
        %v4638 = vperm.slane %v4632, %v4637
        %v4640 = vunpack.c.l.s4 1934713408
        %v4641 = vunpack.c.0.s8 %v4640
        %v4642 = vperm.slane %v4634, %v4641
        %v4643 = vrot.slane %v4638, 4
        %v4644 = vsel %vm990, 0, %v4643
        %v4645 = vrot.slane %v4642, 4
        %v4646 = vsel %vm990, 0, %v4645
        %v4647 = vrot.slane %v4562, 4
        %v4648 = vsel %vm990, %v4647, %v4546
        %v4650 = vunpack.c.l.s4 1983009808
        %v4651 = vunpack.c.0.s8 %v4650
        %v4652 = vperm.slane %v4648, %v4651
        %v4653 = vrot.slane %v4570, 4
        %v4654 = vsel %vm990, %v4653, %v4554
        %v4656 = vunpack.c.l.s4 1983009808
        %v4657 = vunpack.c.0.s8 %v4656
        %v4658 = vperm.slane %v4654, %v4657
        %v4659 = vrot.slane %v4658, 4
        %v4660 = vsel %vm990, %v4659, %v4652
        %v4661 = vrot.slane %v4652, 4
        %v4662 = vsel %vm990, %v4658, %v4661
        %v4664 = vunpack.c.l.s4 1934713408
        %v4665 = vunpack.c.0.s8 %v4664
        %v4666 = vperm.slane %v4660, %v4665
        %v4668 = vunpack.c.l.s4 1934713408
        %v4669 = vunpack.c.0.s8 %v4668
        %v4670 = vperm.slane %v4662, %v4669
        %v4671 = vrot.slane %v4666, 4
        %v4672 = vsel %vm990, 0, %v4671
        %v4673 = vrot.slane %v4670, 4
        %v4674 = vsel %vm990, 0, %v4673
        %v4675 = vrot.slane %v4566, 4
        %v4676 = vsel %vm990, %v4675, %v4550
        %v4678 = vunpack.c.l.s4 1983009808
        %v4679 = vunpack.c.0.s8 %v4678
        %v4680 = vperm.slane %v4676, %v4679
        %v4681 = vrot.slane %v4574, 4
        %v4682 = vsel %vm990, %v4681, %v4558
        %v4684 = vunpack.c.l.s4 1983009808
        %v4685 = vunpack.c.0.s8 %v4684
        %v4686 = vperm.slane %v4682, %v4685
        %v4687 = vrot.slane %v4686, 4
        %v4688 = vsel %vm990, %v4687, %v4680
        %v4689 = vrot.slane %v4680, 4
        %v4690 = vsel %vm990, %v4686, %v4689
        %v4692 = vunpack.c.l.s4 1934713408
        %v4693 = vunpack.c.0.s8 %v4692
        %v4694 = vperm.slane %v4688, %v4693
        %v4696 = vunpack.c.l.s4 1934713408
        %v4697 = vunpack.c.0.s8 %v4696
        %v4698 = vperm.slane %v4690, %v4697
        %v4699 = vrot.slane %v4694, 4
        %v4700 = vsel %vm990, 0, %v4699
        %v4701 = vrot.slane %v4698, 4
        %v4702 = vsel %vm990, 0, %v4701
        %v4705 = vpack.i.b16 %v4638, %v4610
        %v4706 = vshrl.u32 %v4610, 16
        %v4707 = vshrl.u32 %v4638, 16
        %v4708 = vpack.i.b16 %v4707, %v4706
        %v4711 = vpack.i.b16 %v4644, %v4616
        %v4712 = vshrl.u32 %v4616, 16
        %v4713 = vshrl.u32 %v4644, 16
        %v4714 = vpack.i.b16 %v4713, %v4712
        %v4717 = vpack.i.b16 %v4642, %v4614
        %v4718 = vshrl.u32 %v4614, 16
        %v4719 = vshrl.u32 %v4642, 16
        %v4720 = vpack.i.b16 %v4719, %v4718
        %v4723 = vpack.i.b16 %v4646, %v4618
        %v4724 = vshrl.u32 %v4618, 16
        %v4725 = vshrl.u32 %v4646, 16
        %v4726 = vpack.i.b16 %v4725, %v4724
        %v4729 = vpack.i.b16 %v4694, %v4666
        %v4730 = vshrl.u32 %v4666, 16
        %v4731 = vshrl.u32 %v4694, 16
        %v4732 = vpack.i.b16 %v4731, %v4730
        %v4735 = vpack.i.b16 %v4700, %v4672
        %v4736 = vshrl.u32 %v4672, 16
        %v4737 = vshrl.u32 %v4700, 16
        %v4738 = vpack.i.b16 %v4737, %v4736
        %v4741 = vpack.i.b16 %v4698, %v4670
        %v4742 = vshrl.u32 %v4670, 16
        %v4743 = vshrl.u32 %v4698, 16
        %v4744 = vpack.i.b16 %v4743, %v4742
        %v4747 = vpack.i.b16 %v4702, %v4674
        %v4748 = vshrl.u32 %v4674, 16
        %v4749 = vshrl.u32 %v4702, 16
        %v4750 = vpack.i.b16 %v4749, %v4748
        %v4751 = vunpack.c.l.b16 %v4708
        %v4752 = vpack.c.b16 %v4751, %v4751
        %4753 = vrot.lane.b32.xlu0 %v4752, 16
        %v4754 = vpop.permute.xlu0 %4753
        %v4755 = vunpack.c.l.b16 %v4711
        %v4756 = vpack.c.b16 %v4755, %v4755
        %4757 = vrot.lane.b32.xlu0 %v4756, 32
        %v4758 = vpop.permute.xlu0 %4757
        %v4759 = vunpack.c.l.b16 %v4714
        %v4760 = vpack.c.b16 %v4759, %v4759
        %4761 = vrot.lane.b32.xlu0 %v4760, 48
        %v4762 = vpop.permute.xlu0 %4761
        %v4763 = vunpack.c.l.b16 %v4717
        %v4764 = vpack.c.b16 %v4763, %v4763
        %4765 = vrot.lane.b32.xlu0 %v4764, 64
        %v4766 = vpop.permute.xlu0 %4765
        %v4767 = vunpack.c.l.b16 %v4720
        %v4768 = vpack.c.b16 %v4767, %v4767
        %4769 = vrot.lane.b32.xlu0 %v4768, 80
        %v4770 = vpop.permute.xlu0 %4769
        %v4771 = vunpack.c.l.b16 %v4723
        %v4772 = vpack.c.b16 %v4771, %v4771
        %4773 = vrot.lane.b32.xlu0 %v4772, 96
        %v4774 = vpop.permute.xlu0 %4773
        %v4775 = vunpack.c.l.b16 %v4726
        %v4776 = vpack.c.b16 %v4775, %v4775
        %4777 = vrot.lane.b32.xlu0 %v4776, 112
        %v4778 = vpop.permute.xlu0 %4777
        %v4779 = vunpack.c.l.b16 %v4732
        %v4780 = vpack.c.b16 %v4779, %v4779
        %4781 = vrot.lane.b32.xlu0 %v4780, 16
        %v4782 = vpop.permute.xlu0 %4781
        %v4783 = vunpack.c.l.b16 %v4735
        %v4784 = vpack.c.b16 %v4783, %v4783
        %4785 = vrot.lane.b32.xlu0 %v4784, 32
        %v4786 = vpop.permute.xlu0 %4785
        %v4787 = vunpack.c.l.b16 %v4738
        %v4788 = vpack.c.b16 %v4787, %v4787
        %4789 = vrot.lane.b32.xlu0 %v4788, 48
        %v4790 = vpop.permute.xlu0 %4789
        %v4791 = vunpack.c.l.b16 %v4741
        %v4792 = vpack.c.b16 %v4791, %v4791
        %4793 = vrot.lane.b32.xlu0 %v4792, 64
        %v4794 = vpop.permute.xlu0 %4793
        %v4795 = vunpack.c.l.b16 %v4744
        %v4796 = vpack.c.b16 %v4795, %v4795
        %4797 = vrot.lane.b32.xlu0 %v4796, 80
        %v4798 = vpop.permute.xlu0 %4797
        %v4799 = vunpack.c.l.b16 %v4747
        %v4800 = vpack.c.b16 %v4799, %v4799
        %4801 = vrot.lane.b32.xlu0 %v4800, 96
        %v4802 = vpop.permute.xlu0 %4801
        %v4803 = vunpack.c.l.b16 %v4750
        %v4804 = vpack.c.b16 %v4803, %v4803
        %4805 = vrot.lane.b32.xlu0 %v4804, 112
        %v4806 = vpop.permute.xlu0 %4805
        %v4809 = vsel %vm1206, %v4705, %v4754
        %v4811 = vsel %vm1210, %v4809, %v4758
        %v4813 = vsel %vm1213, %v4811, %v4762
        %v4815 = vsel %vm1216, %v4813, %v4766
        %v4817 = vsel %vm1219, %v4815, %v4770
        %v4819 = vsel %vm1222, %v4817, %v4774
        %v4821 = vsel %vm1225, %v4819, %v4778
        %v4824 = vsel %vm1206, %v4729, %v4782
        %v4826 = vsel %vm1210, %v4824, %v4786
        %v4828 = vsel %vm1213, %v4826, %v4790
        %v4830 = vsel %vm1216, %v4828, %v4794
        %v4832 = vsel %vm1219, %v4830, %v4798
        %v4834 = vsel %vm1222, %v4832, %v4802
        %v4836 = vsel %vm1225, %v4834, %v4806
        %s4837 = scalar_lea.vmem %s4, 16
        %v4838 = vld [vmem:[%s4837] sm:$0x3]
        %v4840 = vsel %vm430, %v4838, 0
        %v4842 = vsel %vm1559, %v4821, 0
        %v4844 = vsel %vm1559, %v4836, 0
        %4846 = vmatpush.bf16.msra.mxu0 0
        %4847 = vmatpush.bf16.msra.mxu0 0
        %4848 = vmatpush.bf16.msra.mxu0 0
        %4849 = vmatpush.bf16.msra.mxu0 0
        %4850 = vmatpush.bf16.msra.mxu0 0
        %4851 = vmatpush.bf16.msra.mxu0 0
        %4852 = vmatpush.bf16.msra.mxu0 0
        %4853 = vmatpush.bf16.msra.mxu0 %v4842
        %4854 = vmatmul.bf16.gmra.mxu0 %v4840
        %v4855 = vpop.f32.mrf.mxu0
        %v4856 = vadd.f32 0.0, %v4855
        %v4857 = vpop.f32.mrf.mxu0
        %4858 = vdwg.mxu0
        %4859 = vmatpush.bf16.msra.mxu0 0
        %4860 = vmatpush.bf16.msra.mxu0 0
        %4861 = vmatpush.bf16.msra.mxu0 0
        %4862 = vmatpush.bf16.msra.mxu0 0
        %4863 = vmatpush.bf16.msra.mxu0 0
        %4864 = vmatpush.bf16.msra.mxu0 0
        %4865 = vmatpush.bf16.msra.mxu0 0
        %4866 = vmatpush.bf16.msra.mxu0 %v4844
        %4867 = vmatmul.bf16.gmra.mxu0 %v4840
        %v4868 = vpop.f32.mrf.mxu0
        %v4869 = vadd.f32 0.0, %v4868
        %v4870 = vpop.f32.mrf.mxu0
        %4871 = vdwg.mxu0
        %v4872 = vadd.f32 %v4437, %v4856
        %v4873 = vadd.f32 %v4438, %v4869
        %v4874 = vld [vmem:[%s5] sm:$0xf]
        %4876 = vset.pattern.permute.xlu0 0
        %4877 = vperm.xlu0 %4876, %v4874
        %v4878 = vpop.permute.xlu0 %4877
        %v4880 = vmul.f32 %v4872, %v4878
        %v4881 = vmul.f32 %v4873, %v4878
        %v4882 = vld [vmem:[%s6] sm:$0xf]
        %4884 = vset.pattern.permute.xlu0 0
        %4885 = vperm.xlu0 %4884, %v4882
        %v4886 = vpop.permute.xlu0 %4885
        %v4888 = vadd.f32 %v4880, %v4886
        %v4889 = vadd.f32 %v4881, %v4886
        %v4890 = vmax.f32 %v4888, 0.0
        %v4891 = vmax.f32 %v4889, 0.0
        %v4892 = vld [vmem:[#allocation3] sm:$0x1]
        %v4893 = vsel %vm574, 0, %v4892
        %4894 = vst [vmem:[#allocation3] sm:$0x1] %v4893
        %v4895 = vld [vmem:[#allocation3 + $0xc] sm:$0x1]
        %v4896 = vsel %vm574, 0, %v4895
        %4897 = vst [vmem:[#allocation3 + $0xc] sm:$0x1] %v4896
        %v4898 = vld [vmem:[#allocation3 + $0x18] sm:$0x1]
        %v4899 = vsel %vm574, 0, %v4898
        %4900 = vst [vmem:[#allocation3 + $0x18] sm:$0x1] %v4899
        %v4901 = vld [vmem:[#allocation3 + $0x24] sm:$0x1]
        %v4902 = vsel %vm574, 0, %v4901
        %4903 = vst [vmem:[#allocation3 + $0x24] sm:$0x1] %v4902
        %v4904 = vld [vmem:[#allocation3 + $0x8] sm:$0x1]
        %v4905 = vsel %vm600, 0, %v4904
        %4906 = vst [vmem:[#allocation3 + $0x8] sm:$0x1] %v4905
        %v4907 = vld [vmem:[#allocation3 + $0x14] sm:$0x1]
        %v4908 = vsel %vm600, 0, %v4907
        %4909 = vst [vmem:[#allocation3 + $0x14] sm:$0x1] %v4908
        %v4910 = vld [vmem:[#allocation3 + $0x20] sm:$0x1]
        %v4911 = vsel %vm600, 0, %v4910
        %4912 = vst [vmem:[#allocation3 + $0x20] sm:$0x1] %v4911
        %v4913 = vld [vmem:[#allocation3 + $0x2c] sm:$0x1]
        %v4914 = vsel %vm600, 0, %v4913
        %4915 = vst [vmem:[#allocation3 + $0x2c] sm:$0x1] %v4914
        %4916 = vst.msk [vmem:[#allocation3] sm:$0xf] %vm625, 0
        %4917 = vst.msk [vmem:[#allocation3 + $0x4] sm:$0xf] %vm625, 0
        %4918 = vst.msk [vmem:[#allocation3 + $0x8] sm:$0x1] %vm628, 0
        %4919 = vst.msk [vmem:[#allocation3 + $0xc] sm:$0xf] %vm625, 0
        %4920 = vst.msk [vmem:[#allocation3 + $0x10] sm:$0xf] %vm625, 0
        %4921 = vst.msk [vmem:[#allocation3 + $0x14] sm:$0x1] %vm628, 0
        %4922 = vst.msk [vmem:[#allocation3 + $0x18] sm:$0xf] %vm625, 0
        %4923 = vst.msk [vmem:[#allocation3 + $0x1c] sm:$0xf] %vm625, 0
        %4924 = vst.msk [vmem:[#allocation3 + $0x20] sm:$0x1] %vm628, 0
        %4925 = vst.msk [vmem:[#allocation3 + $0x24] sm:$0xf] %vm625, 0
        %4926 = vst.msk [vmem:[#allocation3 + $0x28] sm:$0xf] %vm625, 0
        %4927 = vst.msk [vmem:[#allocation3 + $0x2c] sm:$0x1] %vm628, 0
        %4928 = vst.msk [vmem:[#allocation3] sm:$0xf] %vm651, 0
        %4929 = vst.msk [vmem:[#allocation3 + $0x4] sm:$0xf] %vm651, 0
        %4930 = vst.msk [vmem:[#allocation3 + $0x8] sm:$0x1] %vm654, 0
        %4931 = vst.msk [vmem:[#allocation3 + $0xc] sm:$0xf] %vm651, 0
        %4932 = vst.msk [vmem:[#allocation3 + $0x10] sm:$0xf] %vm651, 0
        %4933 = vst.msk [vmem:[#allocation3 + $0x14] sm:$0x1] %vm654, 0
        %4934 = vst.msk [vmem:[#allocation3 + $0x18] sm:$0xf] %vm651, 0
        %4935 = vst.msk [vmem:[#allocation3 + $0x1c] sm:$0xf] %vm651, 0
        %4936 = vst.msk [vmem:[#allocation3 + $0x20] sm:$0x1] %vm654, 0
        %4937 = vst.msk [vmem:[#allocation3 + $0x24] sm:$0xf] %vm651, 0
        %4938 = vst.msk [vmem:[#allocation3 + $0x28] sm:$0xf] %vm651, 0
        %4939 = vst.msk [vmem:[#allocation3 + $0x2c] sm:$0x1] %vm654, 0
        %4941 = vrot.lane.b32.xlu0 %v4890, 112
        %v4942 = vpop.permute.xlu0 %4941
        %4944 = vrot.lane.b32.xlu0 %v4890, 96
        %v4945 = vpop.permute.xlu0 %4944
        %4947 = vrot.lane.b32.xlu0 %v4890, 80
        %v4948 = vpop.permute.xlu0 %4947
        %4950 = vrot.lane.b32.xlu0 %v4890, 64
        %v4951 = vpop.permute.xlu0 %4950
        %4953 = vrot.lane.b32.xlu0 %v4890, 48
        %v4954 = vpop.permute.xlu0 %4953
        %4956 = vrot.lane.b32.xlu0 %v4890, 32
        %v4957 = vpop.permute.xlu0 %4956
        %4959 = vrot.lane.b32.xlu0 %v4890, 16
        %v4960 = vpop.permute.xlu0 %4959
        %4963 = vrot.lane.b32.xlu0 %v4891, 112
        %v4964 = vpop.permute.xlu0 %4963
        %4966 = vrot.lane.b32.xlu0 %v4891, 96
        %v4967 = vpop.permute.xlu0 %4966
        %4969 = vrot.lane.b32.xlu0 %v4891, 80
        %v4970 = vpop.permute.xlu0 %4969
        %4972 = vrot.lane.b32.xlu0 %v4891, 64
        %v4973 = vpop.permute.xlu0 %4972
        %4975 = vrot.lane.b32.xlu0 %v4891, 48
        %v4976 = vpop.permute.xlu0 %4975
        %4978 = vrot.lane.b32.xlu0 %v4891, 32
        %v4979 = vpop.permute.xlu0 %4978
        %4981 = vrot.lane.b32.xlu0 %v4891, 16
        %v4982 = vpop.permute.xlu0 %4981
        %v4984 = vrot.slane %v4945, 4
        %vm4985 = vcmask 1047556
        %v4986 = vsel %vm4985, %v4984, %v4890
        %v4988 = vunpack.c.l.s4 1983009808
        %v4989 = vunpack.c.0.s8 %v4988
        %v4990 = vperm.slane %v4986, %v4989
        %v4991 = vrot.slane %v4948, 4
        %v4992 = vsel %vm4985, %v4991, %v4942
        %v4994 = vunpack.c.l.s4 1983009808
        %v4995 = vunpack.c.0.s8 %v4994
        %v4996 = vperm.slane %v4992, %v4995
        %v4997 = vrot.slane %v4957, 4
        %v4998 = vsel %vm4985, %v4997, %v4951
        %v5000 = vunpack.c.l.s4 1983009808
        %v5001 = vunpack.c.0.s8 %v5000
        %v5002 = vperm.slane %v4998, %v5001
        %v5003 = vrot.slane %v4960, 4
        %v5004 = vsel %vm4985, %v5003, %v4954
        %v5006 = vunpack.c.l.s4 1983009808
        %v5007 = vunpack.c.0.s8 %v5006
        %v5008 = vperm.slane %v5004, %v5007
        %v5009 = vrot.slane %v4996, 4
        %v5010 = vsel %vm4985, %v5009, %v4990
        %v5011 = vrot.slane %v4990, 4
        %v5012 = vsel %vm4985, %v4996, %v5011
        %v5014 = vunpack.c.l.s4 1934713408
        %v5015 = vunpack.c.0.s8 %v5014
        %v5016 = vperm.slane %v5010, %v5015
        %v5018 = vunpack.c.l.s4 1934713408
        %v5019 = vunpack.c.0.s8 %v5018
        %v5020 = vperm.slane %v5012, %v5019
        %v5021 = vrot.slane %v5008, 4
        %v5022 = vsel %vm4985, %v5021, %v5002
        %v5023 = vrot.slane %v5002, 4
        %v5024 = vsel %vm4985, %v5008, %v5023
        %v5026 = vunpack.c.l.s4 1934713408
        %v5027 = vunpack.c.0.s8 %v5026
        %v5028 = vperm.slane %v5022, %v5027
        %v5030 = vunpack.c.l.s4 1934713408
        %v5031 = vunpack.c.0.s8 %v5030
        %v5032 = vperm.slane %v5024, %v5031
        %v5033 = vrot.slane %v5028, 4
        %v5034 = vsel %vm4985, %v5033, %v5016
        %v5035 = vrot.slane %v5016, 4
        %v5036 = vsel %vm4985, %v5028, %v5035
        %v5037 = vrot.slane %v5032, 4
        %v5038 = vsel %vm4985, %v5037, %v5020
        %v5039 = vrot.slane %v5020, 4
        %v5040 = vsel %vm4985, %v5032, %v5039
        %v5041 = vrot.slane %v4967, 4
        %v5042 = vsel %vm4985, %v5041, %v4891
        %v5044 = vunpack.c.l.s4 1983009808
        %v5045 = vunpack.c.0.s8 %v5044
        %v5046 = vperm.slane %v5042, %v5045
        %v5047 = vrot.slane %v4970, 4
        %v5048 = vsel %vm4985, %v5047, %v4964
        %v5050 = vunpack.c.l.s4 1983009808
        %v5051 = vunpack.c.0.s8 %v5050
        %v5052 = vperm.slane %v5048, %v5051
        %v5053 = vrot.slane %v4979, 4
        %v5054 = vsel %vm4985, %v5053, %v4973
        %v5056 = vunpack.c.l.s4 1983009808
        %v5057 = vunpack.c.0.s8 %v5056
        %v5058 = vperm.slane %v5054, %v5057
        %v5059 = vrot.slane %v4982, 4
        %v5060 = vsel %vm4985, %v5059, %v4976
        %v5062 = vunpack.c.l.s4 1983009808
        %v5063 = vunpack.c.0.s8 %v5062
        %v5064 = vperm.slane %v5060, %v5063
        %v5065 = vrot.slane %v5052, 4
        %v5066 = vsel %vm4985, %v5065, %v5046
        %v5067 = vrot.slane %v5046, 4
        %v5068 = vsel %vm4985, %v5052, %v5067
        %v5070 = vunpack.c.l.s4 1934713408
        %v5071 = vunpack.c.0.s8 %v5070
        %v5072 = vperm.slane %v5066, %v5071
        %v5074 = vunpack.c.l.s4 1934713408
        %v5075 = vunpack.c.0.s8 %v5074
        %v5076 = vperm.slane %v5068, %v5075
        %v5077 = vrot.slane %v5064, 4
        %v5078 = vsel %vm4985, %v5077, %v5058
        %v5079 = vrot.slane %v5058, 4
        %v5080 = vsel %vm4985, %v5064, %v5079
        %v5082 = vunpack.c.l.s4 1934713408
        %v5083 = vunpack.c.0.s8 %v5082
        %v5084 = vperm.slane %v5078, %v5083
        %v5086 = vunpack.c.l.s4 1934713408
        %v5087 = vunpack.c.0.s8 %v5086
        %v5088 = vperm.slane %v5080, %v5087
        %v5089 = vrot.slane %v5084, 4
        %v5090 = vsel %vm4985, %v5089, %v5072
        %v5091 = vrot.slane %v5072, 4
        %v5092 = vsel %vm4985, %v5084, %v5091
        %v5093 = vrot.slane %v5088, 4
        %v5094 = vsel %vm4985, %v5093, %v5076
        %v5095 = vrot.slane %v5076, 4
        %v5096 = vsel %vm4985, %v5088, %v5095
        %v5097 = vpack.c.bf16 %v5034, %v5034
        %v5098 = vpack.c.bf16 %v5090, %v5090
        %v5099 = vpack.c.bf16 %v5036, %v5036
        %v5100 = vpack.c.bf16 %v5092, %v5092
        %v5101 = vpack.c.bf16 %v5038, %v5038
        %v5102 = vpack.c.bf16 %v5094, %v5094
        %v5103 = vpack.c.bf16 %v5040, %v5040
        %v5104 = vpack.c.bf16 %v5096, %v5096
        %v5106 = vshrl.u32 %v5097, 16
        %v5108 = vrot.slane %v5106, 7
        %v5109 = vshll.u32 %v5097, 16
        %v5111 = vor.u32 %v5108, %v5109
        %v5112 = vrot.slane %v5108, 4
        %v5114 = vshrl.u32 %v5098, 16
        %v5116 = vrot.slane %v5114, 7
        %v5117 = vshll.u32 %v5098, 16
        %v5119 = vor.u32 %v5116, %v5117
        %v5120 = vsel %vm694, %v5112, %v5119
        %v5121 = vrot.slane %v5116, 4
        %v5123 = vshrl.u32 %v5099, 16
        %v5125 = vrot.slane %v5123, 7
        %v5126 = vshll.u32 %v5099, 16
        %v5128 = vor.u32 %v5125, %v5126
        %v5129 = vrot.slane %v5125, 4
        %v5131 = vshrl.u32 %v5100, 16
        %v5133 = vrot.slane %v5131, 7
        %v5134 = vshll.u32 %v5100, 16
        %v5136 = vor.u32 %v5133, %v5134
        %v5137 = vsel %vm694, %v5129, %v5136
        %v5138 = vrot.slane %v5133, 4
        %v5140 = vshrl.u32 %v5101, 16
        %v5142 = vrot.slane %v5140, 7
        %v5143 = vshll.u32 %v5101, 16
        %v5145 = vor.u32 %v5142, %v5143
        %v5146 = vrot.slane %v5142, 4
        %v5148 = vshrl.u32 %v5102, 16
        %v5150 = vrot.slane %v5148, 7
        %v5151 = vshll.u32 %v5102, 16
        %v5153 = vor.u32 %v5150, %v5151
        %v5154 = vsel %vm694, %v5146, %v5153
        %v5155 = vrot.slane %v5150, 4
        %v5157 = vshrl.u32 %v5103, 16
        %v5159 = vrot.slane %v5157, 7
        %v5160 = vshll.u32 %v5103, 16
        %v5162 = vor.u32 %v5159, %v5160
        %v5163 = vrot.slane %v5159, 4
        %v5165 = vshrl.u32 %v5104, 16
        %v5167 = vrot.slane %v5165, 7
        %v5168 = vshll.u32 %v5104, 16
        %v5170 = vor.u32 %v5167, %v5168
        %v5171 = vsel %vm694, %v5163, %v5170
        %v5172 = vrot.slane %v5167, 4
        %5173 = vrot.lane.b32.xlu0 %v5111, 1
        %v5174 = vpop.permute.xlu0 %5173
        %5175 = vrot.lane.b32.xlu0 %v5120, 1
        %v5176 = vpop.permute.xlu0 %5175
        %5177 = vrot.lane.b32.xlu0 %v5121, 1
        %v5178 = vpop.permute.xlu0 %5177
        %5179 = vrot.lane.b32.xlu0 %v5128, 1
        %v5180 = vpop.permute.xlu0 %5179
        %5181 = vrot.lane.b32.xlu0 %v5137, 1
        %v5182 = vpop.permute.xlu0 %5181
        %5183 = vrot.lane.b32.xlu0 %v5138, 1
        %v5184 = vpop.permute.xlu0 %5183
        %5185 = vrot.lane.b32.xlu0 %v5145, 1
        %v5186 = vpop.permute.xlu0 %5185
        %5187 = vrot.lane.b32.xlu0 %v5154, 1
        %v5188 = vpop.permute.xlu0 %5187
        %5189 = vrot.lane.b32.xlu0 %v5155, 1
        %v5190 = vpop.permute.xlu0 %5189
        %5191 = vrot.lane.b32.xlu0 %v5162, 1
        %v5192 = vpop.permute.xlu0 %5191
        %5193 = vrot.lane.b32.xlu0 %v5171, 1
        %v5194 = vpop.permute.xlu0 %5193
        %5195 = vrot.lane.b32.xlu0 %v5172, 1
        %v5196 = vpop.permute.xlu0 %5195
        %v5209 = vld [vmem:[#allocation3] sm:$0xf]
        %v5210 = vsel %vm800, %v5174, %v5209
        %5211 = vst [vmem:[#allocation3] sm:$0xf] %v5210
        %5212 = vst.msk [vmem:[#allocation3 + $0x4] sm:$0xf] %vm804, %v5176
        %v5213 = vld [vmem:[#allocation3 + $0x8] sm:$0x1]
        %v5214 = vsel %vm807, %v5178, %v5213
        %5215 = vst [vmem:[#allocation3 + $0x8] sm:$0x1] %v5214
        %v5216 = vld [vmem:[#allocation3 + $0xc] sm:$0xf]
        %v5217 = vsel %vm800, %v5180, %v5216
        %5218 = vst [vmem:[#allocation3 + $0xc] sm:$0xf] %v5217
        %5219 = vst.msk [vmem:[#allocation3 + $0x10] sm:$0xf] %vm804, %v5182
        %v5220 = vld [vmem:[#allocation3 + $0x14] sm:$0x1]
        %v5221 = vsel %vm807, %v5184, %v5220
        %5222 = vst [vmem:[#allocation3 + $0x14] sm:$0x1] %v5221
        %v5223 = vld [vmem:[#allocation3 + $0x18] sm:$0xf]
        %v5224 = vsel %vm800, %v5186, %v5223
        %5225 = vst [vmem:[#allocation3 + $0x18] sm:$0xf] %v5224
        %5226 = vst.msk [vmem:[#allocation3 + $0x1c] sm:$0xf] %vm804, %v5188
        %v5227 = vld [vmem:[#allocation3 + $0x20] sm:$0x1]
        %v5228 = vsel %vm807, %v5190, %v5227
        %5229 = vst [vmem:[#allocation3 + $0x20] sm:$0x1] %v5228
        %v5230 = vld [vmem:[#allocation3 + $0x24] sm:$0xf]
        %v5231 = vsel %vm800, %v5192, %v5230
        %5232 = vst [vmem:[#allocation3 + $0x24] sm:$0xf] %v5231
        %5233 = vst.msk [vmem:[#allocation3 + $0x28] sm:$0xf] %vm804, %v5194
        %v5234 = vld [vmem:[#allocation3 + $0x2c] sm:$0x1]
        %v5235 = vsel %vm807, %v5196, %v5234
        %5236 = vst [vmem:[#allocation3 + $0x2c] sm:$0x1] %v5235
        %v5237 = vld [vmem:[#allocation3] sm:$0xf]
        %v5238 = vld [vmem:[#allocation3 + $0x4] sm:$0xf]
        %v5239 = vld [vmem:[#allocation3 + $0xc] sm:$0xf]
        %v5240 = vld [vmem:[#allocation3 + $0x10] sm:$0xf]
        %v5241 = vld [vmem:[#allocation3 + $0x18] sm:$0xf]
        %v5242 = vld [vmem:[#allocation3 + $0x1c] sm:$0xf]
        %v5243 = vld [vmem:[#allocation3 + $0x24] sm:$0xf]
        %v5244 = vld [vmem:[#allocation3 + $0x28] sm:$0xf]
        %v5247 = vpack.i.b16 %v5239, %v5237
        %v5248 = vshrl.u32 %v5237, 16
        %v5249 = vshrl.u32 %v5239, 16
        %v5250 = vpack.i.b16 %v5249, %v5248
        %v5253 = vpack.i.b16 %v5243, %v5241
        %v5254 = vshrl.u32 %v5241, 16
        %v5255 = vshrl.u32 %v5243, 16
        %v5256 = vpack.i.b16 %v5255, %v5254
        %v5259 = vpack.i.b16 %v5240, %v5238
        %v5260 = vshrl.u32 %v5238, 16
        %v5261 = vshrl.u32 %v5240, 16
        %v5262 = vpack.i.b16 %v5261, %v5260
        %v5265 = vpack.i.b16 %v5244, %v5242
        %v5266 = vshrl.u32 %v5242, 16
        %v5267 = vshrl.u32 %v5244, 16
        %v5268 = vpack.i.b16 %v5267, %v5266
        %v5271 = vunpack.c.l.s4 1983009808
        %v5272 = vunpack.c.0.s8 %v5271
        %v5273 = vperm.slane %v5247, %v5272
        %v5276 = vunpack.c.l.s4 1983009808
        %v5277 = vunpack.c.0.s8 %v5276
        %v5278 = vperm.slane %v5253, %v5277
        %v5279 = vrot.slane %v5278, 4
        %v5280 = vsel %vm990, %v5279, %v5273
        %v5281 = vrot.slane %v5273, 4
        %v5282 = vsel %vm990, %v5278, %v5281
        %v5284 = vunpack.c.l.s4 1934713408
        %v5285 = vunpack.c.0.s8 %v5284
        %v5286 = vperm.slane %v5280, %v5285
        %v5288 = vunpack.c.l.s4 1934713408
        %v5289 = vunpack.c.0.s8 %v5288
        %v5290 = vperm.slane %v5282, %v5289
        %v5291 = vrot.slane %v5286, 4
        %v5292 = vsel %vm990, 0, %v5291
        %v5293 = vrot.slane %v5290, 4
        %v5294 = vsel %vm990, 0, %v5293
        %v5297 = vunpack.c.l.s4 1983009808
        %v5298 = vunpack.c.0.s8 %v5297
        %v5299 = vperm.slane %v5250, %v5298
        %v5302 = vunpack.c.l.s4 1983009808
        %v5303 = vunpack.c.0.s8 %v5302
        %v5304 = vperm.slane %v5256, %v5303
        %v5305 = vrot.slane %v5304, 4
        %v5306 = vsel %vm990, %v5305, %v5299
        %v5307 = vrot.slane %v5299, 4
        %v5308 = vsel %vm990, %v5304, %v5307
        %v5310 = vunpack.c.l.s4 1934713408
        %v5311 = vunpack.c.0.s8 %v5310
        %v5312 = vperm.slane %v5306, %v5311
        %v5314 = vunpack.c.l.s4 1934713408
        %v5315 = vunpack.c.0.s8 %v5314
        %v5316 = vperm.slane %v5308, %v5315
        %v5317 = vrot.slane %v5312, 4
        %v5318 = vsel %vm990, 0, %v5317
        %v5319 = vrot.slane %v5316, 4
        %v5320 = vsel %vm990, 0, %v5319
        %v5323 = vunpack.c.l.s4 1983009808
        %v5324 = vunpack.c.0.s8 %v5323
        %v5325 = vperm.slane %v5259, %v5324
        %v5328 = vunpack.c.l.s4 1983009808
        %v5329 = vunpack.c.0.s8 %v5328
        %v5330 = vperm.slane %v5265, %v5329
        %v5331 = vrot.slane %v5330, 4
        %v5332 = vsel %vm990, %v5331, %v5325
        %v5333 = vrot.slane %v5325, 4
        %v5334 = vsel %vm990, %v5330, %v5333
        %v5336 = vunpack.c.l.s4 1934713408
        %v5337 = vunpack.c.0.s8 %v5336
        %v5338 = vperm.slane %v5332, %v5337
        %v5340 = vunpack.c.l.s4 1934713408
        %v5341 = vunpack.c.0.s8 %v5340
        %v5342 = vperm.slane %v5334, %v5341
        %v5343 = vrot.slane %v5338, 4
        %v5344 = vsel %vm990, 0, %v5343
        %v5345 = vrot.slane %v5342, 4
        %v5346 = vsel %vm990, 0, %v5345
        %v5349 = vunpack.c.l.s4 1983009808
        %v5350 = vunpack.c.0.s8 %v5349
        %v5351 = vperm.slane %v5262, %v5350
        %v5354 = vunpack.c.l.s4 1983009808
        %v5355 = vunpack.c.0.s8 %v5354
        %v5356 = vperm.slane %v5268, %v5355
        %v5357 = vrot.slane %v5356, 4
        %v5358 = vsel %vm990, %v5357, %v5351
        %v5359 = vrot.slane %v5351, 4
        %v5360 = vsel %vm990, %v5356, %v5359
        %v5362 = vunpack.c.l.s4 1934713408
        %v5363 = vunpack.c.0.s8 %v5362
        %v5364 = vperm.slane %v5358, %v5363
        %v5366 = vunpack.c.l.s4 1934713408
        %v5367 = vunpack.c.0.s8 %v5366
        %v5368 = vperm.slane %v5360, %v5367
        %v5369 = vrot.slane %v5364, 4
        %v5370 = vsel %vm990, 0, %v5369
        %v5371 = vrot.slane %v5368, 4
        %v5372 = vsel %vm990, 0, %v5371
        %v5374 = vunpack.c.l.b16 %v5312
        %v5375 = vpack.c.b16 %v5374, %v5374
        %5376 = vrot.lane.b32.xlu0 %v5375, 16
        %v5377 = vpop.permute.xlu0 %5376
        %v5379 = vunpack.c.l.b16 %v5292
        %v5380 = vpack.c.b16 %v5379, %v5379
        %5381 = vrot.lane.b32.xlu0 %v5380, 32
        %v5382 = vpop.permute.xlu0 %5381
        %v5384 = vunpack.c.l.b16 %v5318
        %v5385 = vpack.c.b16 %v5384, %v5384
        %5386 = vrot.lane.b32.xlu0 %v5385, 48
        %v5387 = vpop.permute.xlu0 %5386
        %v5389 = vunpack.c.l.b16 %v5290
        %v5390 = vpack.c.b16 %v5389, %v5389
        %5391 = vrot.lane.b32.xlu0 %v5390, 64
        %v5392 = vpop.permute.xlu0 %5391
        %v5394 = vunpack.c.l.b16 %v5316
        %v5395 = vpack.c.b16 %v5394, %v5394
        %5396 = vrot.lane.b32.xlu0 %v5395, 80
        %v5397 = vpop.permute.xlu0 %5396
        %v5399 = vunpack.c.l.b16 %v5294
        %v5400 = vpack.c.b16 %v5399, %v5399
        %5401 = vrot.lane.b32.xlu0 %v5400, 96
        %v5402 = vpop.permute.xlu0 %5401
        %v5404 = vunpack.c.l.b16 %v5320
        %v5405 = vpack.c.b16 %v5404, %v5404
        %5406 = vrot.lane.b32.xlu0 %v5405, 112
        %v5407 = vpop.permute.xlu0 %5406
        %v5409 = vunpack.c.l.b16 %v5364
        %v5410 = vpack.c.b16 %v5409, %v5409
        %5411 = vrot.lane.b32.xlu0 %v5410, 16
        %v5412 = vpop.permute.xlu0 %5411
        %v5414 = vunpack.c.l.b16 %v5344
        %v5415 = vpack.c.b16 %v5414, %v5414
        %5416 = vrot.lane.b32.xlu0 %v5415, 32
        %v5417 = vpop.permute.xlu0 %5416
        %v5419 = vunpack.c.l.b16 %v5370
        %v5420 = vpack.c.b16 %v5419, %v5419
        %5421 = vrot.lane.b32.xlu0 %v5420, 48
        %v5422 = vpop.permute.xlu0 %5421
        %v5424 = vunpack.c.l.b16 %v5342
        %v5425 = vpack.c.b16 %v5424, %v5424
        %5426 = vrot.lane.b32.xlu0 %v5425, 64
        %v5427 = vpop.permute.xlu0 %5426
        %v5429 = vunpack.c.l.b16 %v5368
        %v5430 = vpack.c.b16 %v5429, %v5429
        %5431 = vrot.lane.b32.xlu0 %v5430, 80
        %v5432 = vpop.permute.xlu0 %5431
        %v5434 = vunpack.c.l.b16 %v5346
        %v5435 = vpack.c.b16 %v5434, %v5434
        %5436 = vrot.lane.b32.xlu0 %v5435, 96
        %v5437 = vpop.permute.xlu0 %5436
        %v5439 = vunpack.c.l.b16 %v5372
        %v5440 = vpack.c.b16 %v5439, %v5439
        %5441 = vrot.lane.b32.xlu0 %v5440, 112
        %v5442 = vpop.permute.xlu0 %5441
        %v5445 = vsel %vm1206, %v5286, %v5377
        %v5447 = vsel %vm1210, %v5445, %v5382
        %v5449 = vsel %vm1213, %v5447, %v5387
        %v5451 = vsel %vm1216, %v5449, %v5392
        %v5453 = vsel %vm1219, %v5451, %v5397
        %v5455 = vsel %vm1222, %v5453, %v5402
        %v5457 = vsel %vm1225, %v5455, %v5407
        %v5460 = vsel %vm1206, %v5338, %v5412
        %v5462 = vsel %vm1210, %v5460, %v5417
        %v5464 = vsel %vm1213, %v5462, %v5422
        %v5466 = vsel %vm1216, %v5464, %v5427
        %v5468 = vsel %vm1219, %v5466, %v5432
        %v5470 = vsel %vm1222, %v5468, %v5437
        %v5472 = vsel %vm1225, %v5470, %v5442
        %v5473 = vld [vmem:[%s7] sm:$0x3]
        %5482 = vrot.lane.b32.xlu0 %v5237, 127
        %v5483 = vpop.permute.xlu0 %5482
        %5484 = vrot.lane.b32.xlu0 %v5238, 127
        %v5485 = vpop.permute.xlu0 %5484
        %5486 = vrot.lane.b32.xlu0 %v5239, 127
        %v5487 = vpop.permute.xlu0 %5486
        %5488 = vrot.lane.b32.xlu0 %v5240, 127
        %v5489 = vpop.permute.xlu0 %5488
        %5490 = vrot.lane.b32.xlu0 %v5241, 127
        %v5491 = vpop.permute.xlu0 %5490
        %5492 = vrot.lane.b32.xlu0 %v5242, 127
        %v5493 = vpop.permute.xlu0 %5492
        %5494 = vrot.lane.b32.xlu0 %v5243, 127
        %v5495 = vpop.permute.xlu0 %5494
        %5496 = vrot.lane.b32.xlu0 %v5244, 127
        %v5497 = vpop.permute.xlu0 %5496
        %v5500 = vpack.i.b16 %v5487, %v5483
        %v5501 = vshrl.u32 %v5483, 16
        %v5502 = vshrl.u32 %v5487, 16
        %v5503 = vpack.i.b16 %v5502, %v5501
        %v5506 = vpack.i.b16 %v5495, %v5491
        %v5507 = vshrl.u32 %v5491, 16
        %v5508 = vshrl.u32 %v5495, 16
        %v5509 = vpack.i.b16 %v5508, %v5507
        %v5512 = vpack.i.b16 %v5489, %v5485
        %v5513 = vshrl.u32 %v5485, 16
        %v5514 = vshrl.u32 %v5489, 16
        %v5515 = vpack.i.b16 %v5514, %v5513
        %v5518 = vpack.i.b16 %v5497, %v5493
        %v5519 = vshrl.u32 %v5493, 16
        %v5520 = vshrl.u32 %v5497, 16
        %v5521 = vpack.i.b16 %v5520, %v5519
        %v5524 = vunpack.c.l.s4 1983009808
        %v5525 = vunpack.c.0.s8 %v5524
        %v5526 = vperm.slane %v5500, %v5525
        %v5529 = vunpack.c.l.s4 1983009808
        %v5530 = vunpack.c.0.s8 %v5529
        %v5531 = vperm.slane %v5506, %v5530
        %v5532 = vrot.slane %v5531, 4
        %v5533 = vsel %vm990, %v5532, %v5526
        %v5534 = vrot.slane %v5526, 4
        %v5535 = vsel %vm990, %v5531, %v5534
        %v5537 = vunpack.c.l.s4 1934713408
        %v5538 = vunpack.c.0.s8 %v5537
        %v5539 = vperm.slane %v5533, %v5538
        %v5541 = vunpack.c.l.s4 1934713408
        %v5542 = vunpack.c.0.s8 %v5541
        %v5543 = vperm.slane %v5535, %v5542
        %v5544 = vrot.slane %v5539, 4
        %v5545 = vsel %vm990, 0, %v5544
        %v5546 = vrot.slane %v5543, 4
        %v5547 = vsel %vm990, 0, %v5546
        %v5550 = vunpack.c.l.s4 1983009808
        %v5551 = vunpack.c.0.s8 %v5550
        %v5552 = vperm.slane %v5503, %v5551
        %v5555 = vunpack.c.l.s4 1983009808
        %v5556 = vunpack.c.0.s8 %v5555
        %v5557 = vperm.slane %v5509, %v5556
        %v5558 = vrot.slane %v5557, 4
        %v5559 = vsel %vm990, %v5558, %v5552
        %v5560 = vrot.slane %v5552, 4
        %v5561 = vsel %vm990, %v5557, %v5560
        %v5563 = vunpack.c.l.s4 1934713408
        %v5564 = vunpack.c.0.s8 %v5563
        %v5565 = vperm.slane %v5559, %v5564
        %v5567 = vunpack.c.l.s4 1934713408
        %v5568 = vunpack.c.0.s8 %v5567
        %v5569 = vperm.slane %v5561, %v5568
        %v5570 = vrot.slane %v5565, 4
        %v5571 = vsel %vm990, 0, %v5570
        %v5572 = vrot.slane %v5569, 4
        %v5573 = vsel %vm990, 0, %v5572
        %v5576 = vunpack.c.l.s4 1983009808
        %v5577 = vunpack.c.0.s8 %v5576
        %v5578 = vperm.slane %v5512, %v5577
        %v5581 = vunpack.c.l.s4 1983009808
        %v5582 = vunpack.c.0.s8 %v5581
        %v5583 = vperm.slane %v5518, %v5582
        %v5584 = vrot.slane %v5583, 4
        %v5585 = vsel %vm990, %v5584, %v5578
        %v5586 = vrot.slane %v5578, 4
        %v5587 = vsel %vm990, %v5583, %v5586
        %v5589 = vunpack.c.l.s4 1934713408
        %v5590 = vunpack.c.0.s8 %v5589
        %v5591 = vperm.slane %v5585, %v5590
        %v5593 = vunpack.c.l.s4 1934713408
        %v5594 = vunpack.c.0.s8 %v5593
        %v5595 = vperm.slane %v5587, %v5594
        %v5596 = vrot.slane %v5591, 4
        %v5597 = vsel %vm990, 0, %v5596
        %v5598 = vrot.slane %v5595, 4
        %v5599 = vsel %vm990, 0, %v5598
        %v5602 = vunpack.c.l.s4 1983009808
        %v5603 = vunpack.c.0.s8 %v5602
        %v5604 = vperm.slane %v5515, %v5603
        %v5607 = vunpack.c.l.s4 1983009808
        %v5608 = vunpack.c.0.s8 %v5607
        %v5609 = vperm.slane %v5521, %v5608
        %v5610 = vrot.slane %v5609, 4
        %v5611 = vsel %vm990, %v5610, %v5604
        %v5612 = vrot.slane %v5604, 4
        %v5613 = vsel %vm990, %v5609, %v5612
        %v5615 = vunpack.c.l.s4 1934713408
        %v5616 = vunpack.c.0.s8 %v5615
        %v5617 = vperm.slane %v5611, %v5616
        %v5619 = vunpack.c.l.s4 1934713408
        %v5620 = vunpack.c.0.s8 %v5619
        %v5621 = vperm.slane %v5613, %v5620
        %v5622 = vrot.slane %v5617, 4
        %v5623 = vsel %vm990, 0, %v5622
        %v5624 = vrot.slane %v5621, 4
        %v5625 = vsel %vm990, 0, %v5624
        %v5627 = vunpack.c.l.b16 %v5565
        %v5628 = vpack.c.b16 %v5627, %v5627
        %5629 = vrot.lane.b32.xlu0 %v5628, 16
        %v5630 = vpop.permute.xlu0 %5629
        %v5632 = vunpack.c.l.b16 %v5545
        %v5633 = vpack.c.b16 %v5632, %v5632
        %5634 = vrot.lane.b32.xlu0 %v5633, 32
        %v5635 = vpop.permute.xlu0 %5634
        %v5637 = vunpack.c.l.b16 %v5571
        %v5638 = vpack.c.b16 %v5637, %v5637
        %5639 = vrot.lane.b32.xlu0 %v5638, 48
        %v5640 = vpop.permute.xlu0 %5639
        %v5642 = vunpack.c.l.b16 %v5543
        %v5643 = vpack.c.b16 %v5642, %v5642
        %5644 = vrot.lane.b32.xlu0 %v5643, 64
        %v5645 = vpop.permute.xlu0 %5644
        %v5647 = vunpack.c.l.b16 %v5569
        %v5648 = vpack.c.b16 %v5647, %v5647
        %5649 = vrot.lane.b32.xlu0 %v5648, 80
        %v5650 = vpop.permute.xlu0 %5649
        %v5652 = vunpack.c.l.b16 %v5547
        %v5653 = vpack.c.b16 %v5652, %v5652
        %5654 = vrot.lane.b32.xlu0 %v5653, 96
        %v5655 = vpop.permute.xlu0 %5654
        %v5657 = vunpack.c.l.b16 %v5573
        %v5658 = vpack.c.b16 %v5657, %v5657
        %5659 = vrot.lane.b32.xlu0 %v5658, 112
        %v5660 = vpop.permute.xlu0 %5659
        %v5662 = vunpack.c.l.b16 %v5617
        %v5663 = vpack.c.b16 %v5662, %v5662
        %5664 = vrot.lane.b32.xlu0 %v5663, 16
        %v5665 = vpop.permute.xlu0 %5664
        %v5667 = vunpack.c.l.b16 %v5597
        %v5668 = vpack.c.b16 %v5667, %v5667
        %5669 = vrot.lane.b32.xlu0 %v5668, 32
        %v5670 = vpop.permute.xlu0 %5669
        %v5672 = vunpack.c.l.b16 %v5623
        %v5673 = vpack.c.b16 %v5672, %v5672
        %5674 = vrot.lane.b32.xlu0 %v5673, 48
        %v5675 = vpop.permute.xlu0 %5674
        %v5677 = vunpack.c.l.b16 %v5595
        %v5678 = vpack.c.b16 %v5677, %v5677
        %5679 = vrot.lane.b32.xlu0 %v5678, 64
        %v5680 = vpop.permute.xlu0 %5679
        %v5682 = vunpack.c.l.b16 %v5621
        %v5683 = vpack.c.b16 %v5682, %v5682
        %5684 = vrot.lane.b32.xlu0 %v5683, 80
        %v5685 = vpop.permute.xlu0 %5684
        %v5687 = vunpack.c.l.b16 %v5599
        %v5688 = vpack.c.b16 %v5687, %v5687
        %5689 = vrot.lane.b32.xlu0 %v5688, 96
        %v5690 = vpop.permute.xlu0 %5689
        %v5692 = vunpack.c.l.b16 %v5625
        %v5693 = vpack.c.b16 %v5692, %v5692
        %5694 = vrot.lane.b32.xlu0 %v5693, 112
        %v5695 = vpop.permute.xlu0 %5694
        %v5698 = vsel %vm1206, %v5539, %v5630
        %v5700 = vsel %vm1210, %v5698, %v5635
        %v5702 = vsel %vm1213, %v5700, %v5640
        %v5704 = vsel %vm1216, %v5702, %v5645
        %v5706 = vsel %vm1219, %v5704, %v5650
        %v5708 = vsel %vm1222, %v5706, %v5655
        %v5710 = vsel %vm1225, %v5708, %v5660
        %v5713 = vsel %vm1206, %v5591, %v5665
        %v5715 = vsel %vm1210, %v5713, %v5670
        %v5717 = vsel %vm1213, %v5715, %v5675
        %v5719 = vsel %vm1216, %v5717, %v5680
        %v5721 = vsel %vm1219, %v5719, %v5685
        %v5723 = vsel %vm1222, %v5721, %v5690
        %v5725 = vsel %vm1225, %v5723, %v5695
        %s5726 = scalar_lea.vmem %s7, 2
        %v5727 = vld [vmem:[%s5726] sm:$0x3]
        %vm5728 = vcmask 31744
        %v5730 = vsel %vm5728, %v5727, 0
        %vm5732 = vcmask 1041408
        %v5733 = vsel %vm5732, %v5710, 0
        %v5735 = vsel %vm5732, %v5725, 0
        %5737 = vmatpush.bf16.msra.mxu0 0
        %5738 = vmatpush.bf16.msra.mxu0 0
        %5739 = vmatpush.bf16.msra.mxu0 0
        %5740 = vmatpush.bf16.msra.mxu0 0
        %5741 = vmatpush.bf16.msra.mxu0 0
        %5742 = vmatpush.bf16.msra.mxu0 0
        %5743 = vmatpush.bf16.msra.mxu0 0
        %5744 = vmatpush.bf16.msra.mxu0 %v5733
        %5745 = vmatmul.bf16.gmra.mxu0 %v5730
        %v5746 = vpop.f32.mrf.mxu0
        %v5747 = vadd.f32 0.0, %v5746
        %v5748 = vpop.f32.mrf.mxu0
        %5749 = vdwg.mxu0
        %5750 = vmatpush.bf16.msra.mxu0 0
        %5751 = vmatpush.bf16.msra.mxu0 0
        %5752 = vmatpush.bf16.msra.mxu0 0
        %5753 = vmatpush.bf16.msra.mxu0 0
        %5754 = vmatpush.bf16.msra.mxu0 0
        %5755 = vmatpush.bf16.msra.mxu0 0
        %5756 = vmatpush.bf16.msra.mxu0 0
        %5757 = vmatpush.bf16.msra.mxu0 %v5735
        %5758 = vmatmul.bf16.gmra.mxu0 %v5730
        %v5759 = vpop.f32.mrf.mxu0
        %v5760 = vadd.f32 0.0, %v5759
        %v5761 = vpop.f32.mrf.mxu0
        %5762 = vdwg.mxu0
        %v5764 = vsel %vm5728, %v5473, 0
        %v5766 = vsel %vm5732, %v5457, 0
        %v5768 = vsel %vm5732, %v5472, 0
        %5770 = vmatpush.bf16.msra.mxu0 0
        %5771 = vmatpush.bf16.msra.mxu0 0
        %5772 = vmatpush.bf16.msra.mxu0 0
        %5773 = vmatpush.bf16.msra.mxu0 0
        %5774 = vmatpush.bf16.msra.mxu0 0
        %5775 = vmatpush.bf16.msra.mxu0 0
        %5776 = vmatpush.bf16.msra.mxu0 0
        %5777 = vmatpush.bf16.msra.mxu0 %v5766
        %5778 = vmatmul.bf16.gmra.mxu0 %v5764
        %v5779 = vpop.f32.mrf.mxu0
        %v5780 = vadd.f32 %v5747, %v5779
        %v5781 = vpop.f32.mrf.mxu0
        %5782 = vdwg.mxu0
        %5783 = vmatpush.bf16.msra.mxu0 0
        %5784 = vmatpush.bf16.msra.mxu0 0
        %5785 = vmatpush.bf16.msra.mxu0 0
        %5786 = vmatpush.bf16.msra.mxu0 0
        %5787 = vmatpush.bf16.msra.mxu0 0
        %5788 = vmatpush.bf16.msra.mxu0 0
        %5789 = vmatpush.bf16.msra.mxu0 0
        %5790 = vmatpush.bf16.msra.mxu0 %v5768
        %5791 = vmatmul.bf16.gmra.mxu0 %v5764
        %v5792 = vpop.f32.mrf.mxu0
        %v5793 = vadd.f32 %v5760, %v5792
        %v5794 = vpop.f32.mrf.mxu0
        %5795 = vdwg.mxu0
        %v5796 = vld [vmem:[#allocation3] sm:$0xf]
        %v5797 = vld [vmem:[#allocation3 + $0x4] sm:$0xf]
        %v5798 = vld [vmem:[#allocation3 + $0xc] sm:$0xf]
        %v5799 = vld [vmem:[#allocation3 + $0x10] sm:$0xf]
        %v5800 = vld [vmem:[#allocation3 + $0x18] sm:$0xf]
        %v5801 = vld [vmem:[#allocation3 + $0x1c] sm:$0xf]
        %v5802 = vld [vmem:[#allocation3 + $0x24] sm:$0xf]
        %v5803 = vld [vmem:[#allocation3 + $0x28] sm:$0xf]
        %5812 = vrot.lane.b32.xlu0 %v5796, 126
        %v5813 = vpop.permute.xlu0 %5812
        %5814 = vrot.lane.b32.xlu0 %v5797, 126
        %v5815 = vpop.permute.xlu0 %5814
        %5816 = vrot.lane.b32.xlu0 %v5798, 126
        %v5817 = vpop.permute.xlu0 %5816
        %5818 = vrot.lane.b32.xlu0 %v5799, 126
        %v5819 = vpop.permute.xlu0 %5818
        %5820 = vrot.lane.b32.xlu0 %v5800, 126
        %v5821 = vpop.permute.xlu0 %5820
        %5822 = vrot.lane.b32.xlu0 %v5801, 126
        %v5823 = vpop.permute.xlu0 %5822
        %5824 = vrot.lane.b32.xlu0 %v5802, 126
        %v5825 = vpop.permute.xlu0 %5824
        %5826 = vrot.lane.b32.xlu0 %v5803, 126
        %v5827 = vpop.permute.xlu0 %5826
        %v5830 = vpack.i.b16 %v5817, %v5813
        %v5831 = vshrl.u32 %v5813, 16
        %v5832 = vshrl.u32 %v5817, 16
        %v5833 = vpack.i.b16 %v5832, %v5831
        %v5836 = vpack.i.b16 %v5825, %v5821
        %v5837 = vshrl.u32 %v5821, 16
        %v5838 = vshrl.u32 %v5825, 16
        %v5839 = vpack.i.b16 %v5838, %v5837
        %v5842 = vpack.i.b16 %v5819, %v5815
        %v5843 = vshrl.u32 %v5815, 16
        %v5844 = vshrl.u32 %v5819, 16
        %v5845 = vpack.i.b16 %v5844, %v5843
        %v5848 = vpack.i.b16 %v5827, %v5823
        %v5849 = vshrl.u32 %v5823, 16
        %v5850 = vshrl.u32 %v5827, 16
        %v5851 = vpack.i.b16 %v5850, %v5849
        %v5854 = vunpack.c.l.s4 1983009808
        %v5855 = vunpack.c.0.s8 %v5854
        %v5856 = vperm.slane %v5830, %v5855
        %v5859 = vunpack.c.l.s4 1983009808
        %v5860 = vunpack.c.0.s8 %v5859
        %v5861 = vperm.slane %v5836, %v5860
        %v5862 = vrot.slane %v5861, 4
        %v5863 = vsel %vm990, %v5862, %v5856
        %v5864 = vrot.slane %v5856, 4
        %v5865 = vsel %vm990, %v5861, %v5864
        %v5867 = vunpack.c.l.s4 1934713408
        %v5868 = vunpack.c.0.s8 %v5867
        %v5869 = vperm.slane %v5863, %v5868
        %v5871 = vunpack.c.l.s4 1934713408
        %v5872 = vunpack.c.0.s8 %v5871
        %v5873 = vperm.slane %v5865, %v5872
        %v5874 = vrot.slane %v5869, 4
        %v5875 = vsel %vm990, 0, %v5874
        %v5876 = vrot.slane %v5873, 4
        %v5877 = vsel %vm990, 0, %v5876
        %v5880 = vunpack.c.l.s4 1983009808
        %v5881 = vunpack.c.0.s8 %v5880
        %v5882 = vperm.slane %v5833, %v5881
        %v5885 = vunpack.c.l.s4 1983009808
        %v5886 = vunpack.c.0.s8 %v5885
        %v5887 = vperm.slane %v5839, %v5886
        %v5888 = vrot.slane %v5887, 4
        %v5889 = vsel %vm990, %v5888, %v5882
        %v5890 = vrot.slane %v5882, 4
        %v5891 = vsel %vm990, %v5887, %v5890
        %v5893 = vunpack.c.l.s4 1934713408
        %v5894 = vunpack.c.0.s8 %v5893
        %v5895 = vperm.slane %v5889, %v5894
        %v5897 = vunpack.c.l.s4 1934713408
        %v5898 = vunpack.c.0.s8 %v5897
        %v5899 = vperm.slane %v5891, %v5898
        %v5900 = vrot.slane %v5895, 4
        %v5901 = vsel %vm990, 0, %v5900
        %v5902 = vrot.slane %v5899, 4
        %v5903 = vsel %vm990, 0, %v5902
        %v5906 = vunpack.c.l.s4 1983009808
        %v5907 = vunpack.c.0.s8 %v5906
        %v5908 = vperm.slane %v5842, %v5907
        %v5911 = vunpack.c.l.s4 1983009808
        %v5912 = vunpack.c.0.s8 %v5911
        %v5913 = vperm.slane %v5848, %v5912
        %v5914 = vrot.slane %v5913, 4
        %v5915 = vsel %vm990, %v5914, %v5908
        %v5916 = vrot.slane %v5908, 4
        %v5917 = vsel %vm990, %v5913, %v5916
        %v5919 = vunpack.c.l.s4 1934713408
        %v5920 = vunpack.c.0.s8 %v5919
        %v5921 = vperm.slane %v5915, %v5920
        %v5923 = vunpack.c.l.s4 1934713408
        %v5924 = vunpack.c.0.s8 %v5923
        %v5925 = vperm.slane %v5917, %v5924
        %v5926 = vrot.slane %v5921, 4
        %v5927 = vsel %vm990, 0, %v5926
        %v5928 = vrot.slane %v5925, 4
        %v5929 = vsel %vm990, 0, %v5928
        %v5932 = vunpack.c.l.s4 1983009808
        %v5933 = vunpack.c.0.s8 %v5932
        %v5934 = vperm.slane %v5845, %v5933
        %v5937 = vunpack.c.l.s4 1983009808
        %v5938 = vunpack.c.0.s8 %v5937
        %v5939 = vperm.slane %v5851, %v5938
        %v5940 = vrot.slane %v5939, 4
        %v5941 = vsel %vm990, %v5940, %v5934
        %v5942 = vrot.slane %v5934, 4
        %v5943 = vsel %vm990, %v5939, %v5942
        %v5945 = vunpack.c.l.s4 1934713408
        %v5946 = vunpack.c.0.s8 %v5945
        %v5947 = vperm.slane %v5941, %v5946
        %v5949 = vunpack.c.l.s4 1934713408
        %v5950 = vunpack.c.0.s8 %v5949
        %v5951 = vperm.slane %v5943, %v5950
        %v5952 = vrot.slane %v5947, 4
        %v5953 = vsel %vm990, 0, %v5952
        %v5954 = vrot.slane %v5951, 4
        %v5955 = vsel %vm990, 0, %v5954
        %v5957 = vunpack.c.l.b16 %v5895
        %v5958 = vpack.c.b16 %v5957, %v5957
        %5959 = vrot.lane.b32.xlu0 %v5958, 16
        %v5960 = vpop.permute.xlu0 %5959
        %v5962 = vunpack.c.l.b16 %v5875
        %v5963 = vpack.c.b16 %v5962, %v5962
        %5964 = vrot.lane.b32.xlu0 %v5963, 32
        %v5965 = vpop.permute.xlu0 %5964
        %v5967 = vunpack.c.l.b16 %v5901
        %v5968 = vpack.c.b16 %v5967, %v5967
        %5969 = vrot.lane.b32.xlu0 %v5968, 48
        %v5970 = vpop.permute.xlu0 %5969
        %v5972 = vunpack.c.l.b16 %v5873
        %v5973 = vpack.c.b16 %v5972, %v5972
        %5974 = vrot.lane.b32.xlu0 %v5973, 64
        %v5975 = vpop.permute.xlu0 %5974
        %v5977 = vunpack.c.l.b16 %v5899
        %v5978 = vpack.c.b16 %v5977, %v5977
        %5979 = vrot.lane.b32.xlu0 %v5978, 80
        %v5980 = vpop.permute.xlu0 %5979
        %v5982 = vunpack.c.l.b16 %v5877
        %v5983 = vpack.c.b16 %v5982, %v5982
        %5984 = vrot.lane.b32.xlu0 %v5983, 96
        %v5985 = vpop.permute.xlu0 %5984
        %v5987 = vunpack.c.l.b16 %v5903
        %v5988 = vpack.c.b16 %v5987, %v5987
        %5989 = vrot.lane.b32.xlu0 %v5988, 112
        %v5990 = vpop.permute.xlu0 %5989
        %v5992 = vunpack.c.l.b16 %v5947
        %v5993 = vpack.c.b16 %v5992, %v5992
        %5994 = vrot.lane.b32.xlu0 %v5993, 16
        %v5995 = vpop.permute.xlu0 %5994
        %v5997 = vunpack.c.l.b16 %v5927
        %v5998 = vpack.c.b16 %v5997, %v5997
        %5999 = vrot.lane.b32.xlu0 %v5998, 32
        %v6000 = vpop.permute.xlu0 %5999
        %v6002 = vunpack.c.l.b16 %v5953
        %v6003 = vpack.c.b16 %v6002, %v6002
        %6004 = vrot.lane.b32.xlu0 %v6003, 48
        %v6005 = vpop.permute.xlu0 %6004
        %v6007 = vunpack.c.l.b16 %v5925
        %v6008 = vpack.c.b16 %v6007, %v6007
        %6009 = vrot.lane.b32.xlu0 %v6008, 64
        %v6010 = vpop.permute.xlu0 %6009
        %v6012 = vunpack.c.l.b16 %v5951
        %v6013 = vpack.c.b16 %v6012, %v6012
        %6014 = vrot.lane.b32.xlu0 %v6013, 80
        %v6015 = vpop.permute.xlu0 %6014
        %v6017 = vunpack.c.l.b16 %v5929
        %v6018 = vpack.c.b16 %v6017, %v6017
        %6019 = vrot.lane.b32.xlu0 %v6018, 96
        %v6020 = vpop.permute.xlu0 %6019
        %v6022 = vunpack.c.l.b16 %v5955
        %v6023 = vpack.c.b16 %v6022, %v6022
        %6024 = vrot.lane.b32.xlu0 %v6023, 112
        %v6025 = vpop.permute.xlu0 %6024
        %v6028 = vsel %vm1206, %v5869, %v5960
        %v6030 = vsel %vm1210, %v6028, %v5965
        %v6032 = vsel %vm1213, %v6030, %v5970
        %v6034 = vsel %vm1216, %v6032, %v5975
        %v6036 = vsel %vm1219, %v6034, %v5980
        %v6038 = vsel %vm1222, %v6036, %v5985
        %v6040 = vsel %vm1225, %v6038, %v5990
        %v6043 = vsel %vm1206, %v5921, %v5995
        %v6045 = vsel %vm1210, %v6043, %v6000
        %v6047 = vsel %vm1213, %v6045, %v6005
        %v6049 = vsel %vm1216, %v6047, %v6010
        %v6051 = vsel %vm1219, %v6049, %v6015
        %v6053 = vsel %vm1222, %v6051, %v6020
        %v6055 = vsel %vm1225, %v6053, %v6025
        %s6056 = scalar_lea.vmem %s7, 4
        %v6057 = vld [vmem:[%s6056] sm:$0x3]
        %v6059 = vsel %vm5728, %v6057, 0
        %v6061 = vsel %vm5732, %v6040, 0
        %v6063 = vsel %vm5732, %v6055, 0
        %6065 = vmatpush.bf16.msra.mxu0 0
        %6066 = vmatpush.bf16.msra.mxu0 0
        %6067 = vmatpush.bf16.msra.mxu0 0
        %6068 = vmatpush.bf16.msra.mxu0 0
        %6069 = vmatpush.bf16.msra.mxu0 0
        %6070 = vmatpush.bf16.msra.mxu0 0
        %6071 = vmatpush.bf16.msra.mxu0 0
        %6072 = vmatpush.bf16.msra.mxu0 %v6061
        %6073 = vmatmul.bf16.gmra.mxu0 %v6059
        %v6074 = vpop.f32.mrf.mxu0
        %v6075 = vadd.f32 0.0, %v6074
        %v6076 = vpop.f32.mrf.mxu0
        %6077 = vdwg.mxu0
        %6078 = vmatpush.bf16.msra.mxu0 0
        %6079 = vmatpush.bf16.msra.mxu0 0
        %6080 = vmatpush.bf16.msra.mxu0 0
        %6081 = vmatpush.bf16.msra.mxu0 0
        %6082 = vmatpush.bf16.msra.mxu0 0
        %6083 = vmatpush.bf16.msra.mxu0 0
        %6084 = vmatpush.bf16.msra.mxu0 0
        %6085 = vmatpush.bf16.msra.mxu0 %v6063
        %6086 = vmatmul.bf16.gmra.mxu0 %v6059
        %v6087 = vpop.f32.mrf.mxu0
        %v6088 = vadd.f32 0.0, %v6087
        %v6089 = vpop.f32.mrf.mxu0
        %6090 = vdwg.mxu0
        %v6091 = vadd.f32 %v5780, %v6075
        %v6092 = vadd.f32 %v5793, %v6088
        %v6093 = vld [vmem:[#allocation3] sm:$0xf]
        %v6094 = vld [vmem:[#allocation3 + $0x4] sm:$0xf]
        %v6095 = vld [vmem:[#allocation3 + $0x8] sm:$0x1]
        %v6096 = vld [vmem:[#allocation3 + $0xc] sm:$0xf]
        %v6097 = vld [vmem:[#allocation3 + $0x10] sm:$0xf]
        %v6098 = vld [vmem:[#allocation3 + $0x14] sm:$0x1]
        %v6099 = vld [vmem:[#allocation3 + $0x18] sm:$0xf]
        %v6100 = vld [vmem:[#allocation3 + $0x1c] sm:$0xf]
        %v6101 = vld [vmem:[#allocation3 + $0x20] sm:$0x1]
        %v6102 = vld [vmem:[#allocation3 + $0x24] sm:$0xf]
        %v6103 = vld [vmem:[#allocation3 + $0x28] sm:$0xf]
        %v6104 = vld [vmem:[#allocation3 + $0x2c] sm:$0x1]
        %v6106 = vshrl.u32 %v6093, 16
        %v6108 = vrot.slane %v6106, 4
        %v6109 = vshll.u32 %v6093, 16
        %v6111 = vrot.slane %v6109, 5
        %v6112 = vor.u32 %v6108, %v6111
        %v6113 = vrot.slane %v6112, 4
        %v6115 = vshll.u32 %v6094, 16
        %v6117 = vrot.slane %v6115, 5
        %v6118 = vsel %vm2012, %v6113, %v6117
        %v6119 = vshrl.u32 %v6094, 16
        %v6121 = vrot.slane %v6119, 4
        %v6122 = vor.u32 %v6121, %v6117
        %v6123 = vrot.slane %v6122, 4
        %v6125 = vshll.u32 %v6095, 16
        %v6127 = vrot.slane %v6125, 5
        %v6128 = vsel %vm2012, %v6123, %v6127
        %v6130 = vshrl.u32 %v6096, 16
        %v6132 = vrot.slane %v6130, 4
        %v6133 = vshll.u32 %v6096, 16
        %v6135 = vrot.slane %v6133, 5
        %v6136 = vor.u32 %v6132, %v6135
        %v6137 = vrot.slane %v6136, 4
        %v6139 = vshll.u32 %v6097, 16
        %v6141 = vrot.slane %v6139, 5
        %v6142 = vsel %vm2012, %v6137, %v6141
        %v6143 = vshrl.u32 %v6097, 16
        %v6145 = vrot.slane %v6143, 4
        %v6146 = vor.u32 %v6145, %v6141
        %v6147 = vrot.slane %v6146, 4
        %v6149 = vshll.u32 %v6098, 16
        %v6151 = vrot.slane %v6149, 5
        %v6152 = vsel %vm2012, %v6147, %v6151
        %v6154 = vshrl.u32 %v6099, 16
        %v6156 = vrot.slane %v6154, 4
        %v6157 = vshll.u32 %v6099, 16
        %v6159 = vrot.slane %v6157, 5
        %v6160 = vor.u32 %v6156, %v6159
        %v6161 = vrot.slane %v6160, 4
        %v6163 = vshll.u32 %v6100, 16
        %v6165 = vrot.slane %v6163, 5
        %v6166 = vsel %vm2012, %v6161, %v6165
        %v6167 = vshrl.u32 %v6100, 16
        %v6169 = vrot.slane %v6167, 4
        %v6170 = vor.u32 %v6169, %v6165
        %v6171 = vrot.slane %v6170, 4
        %v6173 = vshll.u32 %v6101, 16
        %v6175 = vrot.slane %v6173, 5
        %v6176 = vsel %vm2012, %v6171, %v6175
        %v6178 = vshrl.u32 %v6102, 16
        %v6180 = vrot.slane %v6178, 4
        %v6181 = vshll.u32 %v6102, 16
        %v6183 = vrot.slane %v6181, 5
        %v6184 = vor.u32 %v6180, %v6183
        %v6185 = vrot.slane %v6184, 4
        %v6187 = vshll.u32 %v6103, 16
        %v6189 = vrot.slane %v6187, 5
        %v6190 = vsel %vm2012, %v6185, %v6189
        %v6191 = vshrl.u32 %v6103, 16
        %v6193 = vrot.slane %v6191, 4
        %v6194 = vor.u32 %v6193, %v6189
        %v6195 = vrot.slane %v6194, 4
        %v6197 = vshll.u32 %v6104, 16
        %v6199 = vrot.slane %v6197, 5
        %v6200 = vsel %vm2012, %v6195, %v6199
        %v6203 = vpack.i.b16 %v6142, %v6118
        %v6204 = vshrl.u32 %v6118, 16
        %v6205 = vshrl.u32 %v6142, 16
        %v6206 = vpack.i.b16 %v6205, %v6204
        %v6209 = vpack.i.b16 %v6190, %v6166
        %v6210 = vshrl.u32 %v6166, 16
        %v6211 = vshrl.u32 %v6190, 16
        %v6212 = vpack.i.b16 %v6211, %v6210
        %v6215 = vpack.i.b16 %v6152, %v6128
        %v6216 = vshrl.u32 %v6128, 16
        %v6217 = vshrl.u32 %v6152, 16
        %v6218 = vpack.i.b16 %v6217, %v6216
        %v6221 = vpack.i.b16 %v6200, %v6176
        %v6222 = vshrl.u32 %v6176, 16
        %v6223 = vshrl.u32 %v6200, 16
        %v6224 = vpack.i.b16 %v6223, %v6222
        %v6227 = vunpack.c.l.s4 1983009808
        %v6228 = vunpack.c.0.s8 %v6227
        %v6229 = vperm.slane %v6203, %v6228
        %v6232 = vunpack.c.l.s4 1983009808
        %v6233 = vunpack.c.0.s8 %v6232
        %v6234 = vperm.slane %v6209, %v6233
        %v6235 = vrot.slane %v6234, 4
        %v6236 = vsel %vm990, %v6235, %v6229
        %v6237 = vrot.slane %v6229, 4
        %v6238 = vsel %vm990, %v6234, %v6237
        %v6240 = vunpack.c.l.s4 1934713408
        %v6241 = vunpack.c.0.s8 %v6240
        %v6242 = vperm.slane %v6236, %v6241
        %v6244 = vunpack.c.l.s4 1934713408
        %v6245 = vunpack.c.0.s8 %v6244
        %v6246 = vperm.slane %v6238, %v6245
        %v6247 = vrot.slane %v6242, 4
        %v6248 = vsel %vm990, 0, %v6247
        %v6249 = vrot.slane %v6246, 4
        %v6250 = vsel %vm990, 0, %v6249
        %v6253 = vunpack.c.l.s4 1983009808
        %v6254 = vunpack.c.0.s8 %v6253
        %v6255 = vperm.slane %v6206, %v6254
        %v6258 = vunpack.c.l.s4 1983009808
        %v6259 = vunpack.c.0.s8 %v6258
        %v6260 = vperm.slane %v6212, %v6259
        %v6261 = vrot.slane %v6260, 4
        %v6262 = vsel %vm990, %v6261, %v6255
        %v6263 = vrot.slane %v6255, 4
        %v6264 = vsel %vm990, %v6260, %v6263
        %v6266 = vunpack.c.l.s4 1934713408
        %v6267 = vunpack.c.0.s8 %v6266
        %v6268 = vperm.slane %v6262, %v6267
        %v6270 = vunpack.c.l.s4 1934713408
        %v6271 = vunpack.c.0.s8 %v6270
        %v6272 = vperm.slane %v6264, %v6271
        %v6273 = vrot.slane %v6268, 4
        %v6274 = vsel %vm990, 0, %v6273
        %v6275 = vrot.slane %v6272, 4
        %v6276 = vsel %vm990, 0, %v6275
        %v6279 = vunpack.c.l.s4 1983009808
        %v6280 = vunpack.c.0.s8 %v6279
        %v6281 = vperm.slane %v6215, %v6280
        %v6284 = vunpack.c.l.s4 1983009808
        %v6285 = vunpack.c.0.s8 %v6284
        %v6286 = vperm.slane %v6221, %v6285
        %v6287 = vrot.slane %v6286, 4
        %v6288 = vsel %vm990, %v6287, %v6281
        %v6289 = vrot.slane %v6281, 4
        %v6290 = vsel %vm990, %v6286, %v6289
        %v6292 = vunpack.c.l.s4 1934713408
        %v6293 = vunpack.c.0.s8 %v6292
        %v6294 = vperm.slane %v6288, %v6293
        %v6296 = vunpack.c.l.s4 1934713408
        %v6297 = vunpack.c.0.s8 %v6296
        %v6298 = vperm.slane %v6290, %v6297
        %v6299 = vrot.slane %v6294, 4
        %v6300 = vsel %vm990, 0, %v6299
        %v6301 = vrot.slane %v6298, 4
        %v6302 = vsel %vm990, 0, %v6301
        %v6305 = vunpack.c.l.s4 1983009808
        %v6306 = vunpack.c.0.s8 %v6305
        %v6307 = vperm.slane %v6218, %v6306
        %v6310 = vunpack.c.l.s4 1983009808
        %v6311 = vunpack.c.0.s8 %v6310
        %v6312 = vperm.slane %v6224, %v6311
        %v6313 = vrot.slane %v6312, 4
        %v6314 = vsel %vm990, %v6313, %v6307
        %v6315 = vrot.slane %v6307, 4
        %v6316 = vsel %vm990, %v6312, %v6315
        %v6318 = vunpack.c.l.s4 1934713408
        %v6319 = vunpack.c.0.s8 %v6318
        %v6320 = vperm.slane %v6314, %v6319
        %v6322 = vunpack.c.l.s4 1934713408
        %v6323 = vunpack.c.0.s8 %v6322
        %v6324 = vperm.slane %v6316, %v6323
        %v6325 = vrot.slane %v6320, 4
        %v6326 = vsel %vm990, 0, %v6325
        %v6327 = vrot.slane %v6324, 4
        %v6328 = vsel %vm990, 0, %v6327
        %v6330 = vunpack.c.l.b16 %v6268
        %v6331 = vpack.c.b16 %v6330, %v6330
        %6332 = vrot.lane.b32.xlu0 %v6331, 16
        %v6333 = vpop.permute.xlu0 %6332
        %v6335 = vunpack.c.l.b16 %v6248
        %v6336 = vpack.c.b16 %v6335, %v6335
        %6337 = vrot.lane.b32.xlu0 %v6336, 32
        %v6338 = vpop.permute.xlu0 %6337
        %v6340 = vunpack.c.l.b16 %v6274
        %v6341 = vpack.c.b16 %v6340, %v6340
        %6342 = vrot.lane.b32.xlu0 %v6341, 48
        %v6343 = vpop.permute.xlu0 %6342
        %v6345 = vunpack.c.l.b16 %v6246
        %v6346 = vpack.c.b16 %v6345, %v6345
        %6347 = vrot.lane.b32.xlu0 %v6346, 64
        %v6348 = vpop.permute.xlu0 %6347
        %v6350 = vunpack.c.l.b16 %v6272
        %v6351 = vpack.c.b16 %v6350, %v6350
        %6352 = vrot.lane.b32.xlu0 %v6351, 80
        %v6353 = vpop.permute.xlu0 %6352
        %v6355 = vunpack.c.l.b16 %v6250
        %v6356 = vpack.c.b16 %v6355, %v6355
        %6357 = vrot.lane.b32.xlu0 %v6356, 96
        %v6358 = vpop.permute.xlu0 %6357
        %v6360 = vunpack.c.l.b16 %v6276
        %v6361 = vpack.c.b16 %v6360, %v6360
        %6362 = vrot.lane.b32.xlu0 %v6361, 112
        %v6363 = vpop.permute.xlu0 %6362
        %v6365 = vunpack.c.l.b16 %v6320
        %v6366 = vpack.c.b16 %v6365, %v6365
        %6367 = vrot.lane.b32.xlu0 %v6366, 16
        %v6368 = vpop.permute.xlu0 %6367
        %v6370 = vunpack.c.l.b16 %v6300
        %v6371 = vpack.c.b16 %v6370, %v6370
        %6372 = vrot.lane.b32.xlu0 %v6371, 32
        %v6373 = vpop.permute.xlu0 %6372
        %v6375 = vunpack.c.l.b16 %v6326
        %v6376 = vpack.c.b16 %v6375, %v6375
        %6377 = vrot.lane.b32.xlu0 %v6376, 48
        %v6378 = vpop.permute.xlu0 %6377
        %v6380 = vunpack.c.l.b16 %v6298
        %v6381 = vpack.c.b16 %v6380, %v6380
        %6382 = vrot.lane.b32.xlu0 %v6381, 64
        %v6383 = vpop.permute.xlu0 %6382
        %v6385 = vunpack.c.l.b16 %v6324
        %v6386 = vpack.c.b16 %v6385, %v6385
        %6387 = vrot.lane.b32.xlu0 %v6386, 80
        %v6388 = vpop.permute.xlu0 %6387
        %v6390 = vunpack.c.l.b16 %v6302
        %v6391 = vpack.c.b16 %v6390, %v6390
        %6392 = vrot.lane.b32.xlu0 %v6391, 96
        %v6393 = vpop.permute.xlu0 %6392
        %v6395 = vunpack.c.l.b16 %v6328
        %v6396 = vpack.c.b16 %v6395, %v6395
        %6397 = vrot.lane.b32.xlu0 %v6396, 112
        %v6398 = vpop.permute.xlu0 %6397
        %v6401 = vsel %vm1206, %v6242, %v6333
        %v6403 = vsel %vm1210, %v6401, %v6338
        %v6405 = vsel %vm1213, %v6403, %v6343
        %v6407 = vsel %vm1216, %v6405, %v6348
        %v6409 = vsel %vm1219, %v6407, %v6353
        %v6411 = vsel %vm1222, %v6409, %v6358
        %v6413 = vsel %vm1225, %v6411, %v6363
        %v6416 = vsel %vm1206, %v6294, %v6368
        %v6418 = vsel %vm1210, %v6416, %v6373
        %v6420 = vsel %vm1213, %v6418, %v6378
        %v6422 = vsel %vm1216, %v6420, %v6383
        %v6424 = vsel %vm1219, %v6422, %v6388
        %v6426 = vsel %vm1222, %v6424, %v6393
        %v6428 = vsel %vm1225, %v6426, %v6398
        %s6429 = scalar_lea.vmem %s7, 6
        %v6430 = vld [vmem:[%s6429] sm:$0x3]
        %v6432 = vsel %vm5728, %v6430, 0
        %v6434 = vsel %vm5732, %v6413, 0
        %v6436 = vsel %vm5732, %v6428, 0
        %6438 = vmatpush.bf16.msra.mxu0 0
        %6439 = vmatpush.bf16.msra.mxu0 0
        %6440 = vmatpush.bf16.msra.mxu0 0
        %6441 = vmatpush.bf16.msra.mxu0 0
        %6442 = vmatpush.bf16.msra.mxu0 0
        %6443 = vmatpush.bf16.msra.mxu0 0
        %6444 = vmatpush.bf16.msra.mxu0 0
        %6445 = vmatpush.bf16.msra.mxu0 %v6434
        %6446 = vmatmul.bf16.gmra.mxu0 %v6432
        %v6447 = vpop.f32.mrf.mxu0
        %v6448 = vadd.f32 0.0, %v6447
        %v6449 = vpop.f32.mrf.mxu0
        %6450 = vdwg.mxu0
        %6451 = vmatpush.bf16.msra.mxu0 0
        %6452 = vmatpush.bf16.msra.mxu0 0
        %6453 = vmatpush.bf16.msra.mxu0 0
        %6454 = vmatpush.bf16.msra.mxu0 0
        %6455 = vmatpush.bf16.msra.mxu0 0
        %6456 = vmatpush.bf16.msra.mxu0 0
        %6457 = vmatpush.bf16.msra.mxu0 0
        %6458 = vmatpush.bf16.msra.mxu0 %v6436
        %6459 = vmatmul.bf16.gmra.mxu0 %v6432
        %v6460 = vpop.f32.mrf.mxu0
        %v6461 = vadd.f32 0.0, %v6460
        %v6462 = vpop.f32.mrf.mxu0
        %6463 = vdwg.mxu0
        %v6464 = vadd.f32 %v6091, %v6448
        %v6465 = vadd.f32 %v6092, %v6461
        %v6466 = vld [vmem:[#allocation3] sm:$0xf]
        %v6467 = vld [vmem:[#allocation3 + $0x4] sm:$0xf]
        %v6468 = vld [vmem:[#allocation3 + $0x8] sm:$0x1]
        %v6469 = vld [vmem:[#allocation3 + $0xc] sm:$0xf]
        %v6470 = vld [vmem:[#allocation3 + $0x10] sm:$0xf]
        %v6471 = vld [vmem:[#allocation3 + $0x14] sm:$0x1]
        %v6472 = vld [vmem:[#allocation3 + $0x18] sm:$0xf]
        %v6473 = vld [vmem:[#allocation3 + $0x1c] sm:$0xf]
        %v6474 = vld [vmem:[#allocation3 + $0x20] sm:$0x1]
        %v6475 = vld [vmem:[#allocation3 + $0x24] sm:$0xf]
        %v6476 = vld [vmem:[#allocation3 + $0x28] sm:$0xf]
        %v6477 = vld [vmem:[#allocation3 + $0x2c] sm:$0x1]
        %v6479 = vshrl.u32 %v6466, 16
        %v6481 = vrot.slane %v6479, 4
        %v6482 = vshll.u32 %v6466, 16
        %v6484 = vrot.slane %v6482, 5
        %v6485 = vor.u32 %v6481, %v6484
        %v6486 = vrot.slane %v6485, 4
        %v6488 = vshll.u32 %v6467, 16
        %v6490 = vrot.slane %v6488, 5
        %v6491 = vsel %vm2012, %v6486, %v6490
        %v6492 = vshrl.u32 %v6467, 16
        %v6494 = vrot.slane %v6492, 4
        %v6495 = vor.u32 %v6494, %v6490
        %v6496 = vrot.slane %v6495, 4
        %v6498 = vshll.u32 %v6468, 16
        %v6500 = vrot.slane %v6498, 5
        %v6501 = vsel %vm2012, %v6496, %v6500
        %v6503 = vshrl.u32 %v6469, 16
        %v6505 = vrot.slane %v6503, 4
        %v6506 = vshll.u32 %v6469, 16
        %v6508 = vrot.slane %v6506, 5
        %v6509 = vor.u32 %v6505, %v6508
        %v6510 = vrot.slane %v6509, 4
        %v6512 = vshll.u32 %v6470, 16
        %v6514 = vrot.slane %v6512, 5
        %v6515 = vsel %vm2012, %v6510, %v6514
        %v6516 = vshrl.u32 %v6470, 16
        %v6518 = vrot.slane %v6516, 4
        %v6519 = vor.u32 %v6518, %v6514
        %v6520 = vrot.slane %v6519, 4
        %v6522 = vshll.u32 %v6471, 16
        %v6524 = vrot.slane %v6522, 5
        %v6525 = vsel %vm2012, %v6520, %v6524
        %v6527 = vshrl.u32 %v6472, 16
        %v6529 = vrot.slane %v6527, 4
        %v6530 = vshll.u32 %v6472, 16
        %v6532 = vrot.slane %v6530, 5
        %v6533 = vor.u32 %v6529, %v6532
        %v6534 = vrot.slane %v6533, 4
        %v6536 = vshll.u32 %v6473, 16
        %v6538 = vrot.slane %v6536, 5
        %v6539 = vsel %vm2012, %v6534, %v6538
        %v6540 = vshrl.u32 %v6473, 16
        %v6542 = vrot.slane %v6540, 4
        %v6543 = vor.u32 %v6542, %v6538
        %v6544 = vrot.slane %v6543, 4
        %v6546 = vshll.u32 %v6474, 16
        %v6548 = vrot.slane %v6546, 5
        %v6549 = vsel %vm2012, %v6544, %v6548
        %v6551 = vshrl.u32 %v6475, 16
        %v6553 = vrot.slane %v6551, 4
        %v6554 = vshll.u32 %v6475, 16
        %v6556 = vrot.slane %v6554, 5
        %v6557 = vor.u32 %v6553, %v6556
        %v6558 = vrot.slane %v6557, 4
        %v6560 = vshll.u32 %v6476, 16
        %v6562 = vrot.slane %v6560, 5
        %v6563 = vsel %vm2012, %v6558, %v6562
        %v6564 = vshrl.u32 %v6476, 16
        %v6566 = vrot.slane %v6564, 4
        %v6567 = vor.u32 %v6566, %v6562
        %v6568 = vrot.slane %v6567, 4
        %v6570 = vshll.u32 %v6477, 16
        %v6572 = vrot.slane %v6570, 5
        %v6573 = vsel %vm2012, %v6568, %v6572
        %6574 = vrot.lane.b32.xlu0 %v6491, 127
        %v6575 = vpop.permute.xlu0 %6574
        %6576 = vrot.lane.b32.xlu0 %v6501, 127
        %v6577 = vpop.permute.xlu0 %6576
        %6578 = vrot.lane.b32.xlu0 %v6515, 127
        %v6579 = vpop.permute.xlu0 %6578
        %6580 = vrot.lane.b32.xlu0 %v6525, 127
        %v6581 = vpop.permute.xlu0 %6580
        %6582 = vrot.lane.b32.xlu0 %v6539, 127
        %v6583 = vpop.permute.xlu0 %6582
        %6584 = vrot.lane.b32.xlu0 %v6549, 127
        %v6585 = vpop.permute.xlu0 %6584
        %6586 = vrot.lane.b32.xlu0 %v6563, 127
        %v6587 = vpop.permute.xlu0 %6586
        %6588 = vrot.lane.b32.xlu0 %v6573, 127
        %v6589 = vpop.permute.xlu0 %6588
        %v6592 = vpack.i.b16 %v6579, %v6575
        %v6593 = vshrl.u32 %v6575, 16
        %v6594 = vshrl.u32 %v6579, 16
        %v6595 = vpack.i.b16 %v6594, %v6593
        %v6598 = vpack.i.b16 %v6587, %v6583
        %v6599 = vshrl.u32 %v6583, 16
        %v6600 = vshrl.u32 %v6587, 16
        %v6601 = vpack.i.b16 %v6600, %v6599
        %v6604 = vpack.i.b16 %v6581, %v6577
        %v6605 = vshrl.u32 %v6577, 16
        %v6606 = vshrl.u32 %v6581, 16
        %v6607 = vpack.i.b16 %v6606, %v6605
        %v6610 = vpack.i.b16 %v6589, %v6585
        %v6611 = vshrl.u32 %v6585, 16
        %v6612 = vshrl.u32 %v6589, 16
        %v6613 = vpack.i.b16 %v6612, %v6611
        %v6616 = vunpack.c.l.s4 1983009808
        %v6617 = vunpack.c.0.s8 %v6616
        %v6618 = vperm.slane %v6592, %v6617
        %v6621 = vunpack.c.l.s4 1983009808
        %v6622 = vunpack.c.0.s8 %v6621
        %v6623 = vperm.slane %v6598, %v6622
        %v6624 = vrot.slane %v6623, 4
        %v6625 = vsel %vm990, %v6624, %v6618
        %v6626 = vrot.slane %v6618, 4
        %v6627 = vsel %vm990, %v6623, %v6626
        %v6629 = vunpack.c.l.s4 1934713408
        %v6630 = vunpack.c.0.s8 %v6629
        %v6631 = vperm.slane %v6625, %v6630
        %v6633 = vunpack.c.l.s4 1934713408
        %v6634 = vunpack.c.0.s8 %v6633
        %v6635 = vperm.slane %v6627, %v6634
        %v6636 = vrot.slane %v6631, 4
        %v6637 = vsel %vm990, 0, %v6636
        %v6638 = vrot.slane %v6635, 4
        %v6639 = vsel %vm990, 0, %v6638
        %v6642 = vunpack.c.l.s4 1983009808
        %v6643 = vunpack.c.0.s8 %v6642
        %v6644 = vperm.slane %v6595, %v6643
        %v6647 = vunpack.c.l.s4 1983009808
        %v6648 = vunpack.c.0.s8 %v6647
        %v6649 = vperm.slane %v6601, %v6648
        %v6650 = vrot.slane %v6649, 4
        %v6651 = vsel %vm990, %v6650, %v6644
        %v6652 = vrot.slane %v6644, 4
        %v6653 = vsel %vm990, %v6649, %v6652
        %v6655 = vunpack.c.l.s4 1934713408
        %v6656 = vunpack.c.0.s8 %v6655
        %v6657 = vperm.slane %v6651, %v6656
        %v6659 = vunpack.c.l.s4 1934713408
        %v6660 = vunpack.c.0.s8 %v6659
        %v6661 = vperm.slane %v6653, %v6660
        %v6662 = vrot.slane %v6657, 4
        %v6663 = vsel %vm990, 0, %v6662
        %v6664 = vrot.slane %v6661, 4
        %v6665 = vsel %vm990, 0, %v6664
        %v6668 = vunpack.c.l.s4 1983009808
        %v6669 = vunpack.c.0.s8 %v6668
        %v6670 = vperm.slane %v6604, %v6669
        %v6673 = vunpack.c.l.s4 1983009808
        %v6674 = vunpack.c.0.s8 %v6673
        %v6675 = vperm.slane %v6610, %v6674
        %v6676 = vrot.slane %v6675, 4
        %v6677 = vsel %vm990, %v6676, %v6670
        %v6678 = vrot.slane %v6670, 4
        %v6679 = vsel %vm990, %v6675, %v6678
        %v6681 = vunpack.c.l.s4 1934713408
        %v6682 = vunpack.c.0.s8 %v6681
        %v6683 = vperm.slane %v6677, %v6682
        %v6685 = vunpack.c.l.s4 1934713408
        %v6686 = vunpack.c.0.s8 %v6685
        %v6687 = vperm.slane %v6679, %v6686
        %v6688 = vrot.slane %v6683, 4
        %v6689 = vsel %vm990, 0, %v6688
        %v6690 = vrot.slane %v6687, 4
        %v6691 = vsel %vm990, 0, %v6690
        %v6694 = vunpack.c.l.s4 1983009808
        %v6695 = vunpack.c.0.s8 %v6694
        %v6696 = vperm.slane %v6607, %v6695
        %v6699 = vunpack.c.l.s4 1983009808
        %v6700 = vunpack.c.0.s8 %v6699
        %v6701 = vperm.slane %v6613, %v6700
        %v6702 = vrot.slane %v6701, 4
        %v6703 = vsel %vm990, %v6702, %v6696
        %v6704 = vrot.slane %v6696, 4
        %v6705 = vsel %vm990, %v6701, %v6704
        %v6707 = vunpack.c.l.s4 1934713408
        %v6708 = vunpack.c.0.s8 %v6707
        %v6709 = vperm.slane %v6703, %v6708
        %v6711 = vunpack.c.l.s4 1934713408
        %v6712 = vunpack.c.0.s8 %v6711
        %v6713 = vperm.slane %v6705, %v6712
        %v6714 = vrot.slane %v6709, 4
        %v6715 = vsel %vm990, 0, %v6714
        %v6716 = vrot.slane %v6713, 4
        %v6717 = vsel %vm990, 0, %v6716
        %v6719 = vunpack.c.l.b16 %v6657
        %v6720 = vpack.c.b16 %v6719, %v6719
        %6721 = vrot.lane.b32.xlu0 %v6720, 16
        %v6722 = vpop.permute.xlu0 %6721
        %v6724 = vunpack.c.l.b16 %v6637
        %v6725 = vpack.c.b16 %v6724, %v6724
        %6726 = vrot.lane.b32.xlu0 %v6725, 32
        %v6727 = vpop.permute.xlu0 %6726
        %v6729 = vunpack.c.l.b16 %v6663
        %v6730 = vpack.c.b16 %v6729, %v6729
        %6731 = vrot.lane.b32.xlu0 %v6730, 48
        %v6732 = vpop.permute.xlu0 %6731
        %v6734 = vunpack.c.l.b16 %v6635
        %v6735 = vpack.c.b16 %v6734, %v6734
        %6736 = vrot.lane.b32.xlu0 %v6735, 64
        %v6737 = vpop.permute.xlu0 %6736
        %v6739 = vunpack.c.l.b16 %v6661
        %v6740 = vpack.c.b16 %v6739, %v6739
        %6741 = vrot.lane.b32.xlu0 %v6740, 80
        %v6742 = vpop.permute.xlu0 %6741
        %v6744 = vunpack.c.l.b16 %v6639
        %v6745 = vpack.c.b16 %v6744, %v6744
        %6746 = vrot.lane.b32.xlu0 %v6745, 96
        %v6747 = vpop.permute.xlu0 %6746
        %v6749 = vunpack.c.l.b16 %v6665
        %v6750 = vpack.c.b16 %v6749, %v6749
        %6751 = vrot.lane.b32.xlu0 %v6750, 112
        %v6752 = vpop.permute.xlu0 %6751
        %v6754 = vunpack.c.l.b16 %v6709
        %v6755 = vpack.c.b16 %v6754, %v6754
        %6756 = vrot.lane.b32.xlu0 %v6755, 16
        %v6757 = vpop.permute.xlu0 %6756
        %v6759 = vunpack.c.l.b16 %v6689
        %v6760 = vpack.c.b16 %v6759, %v6759
        %6761 = vrot.lane.b32.xlu0 %v6760, 32
        %v6762 = vpop.permute.xlu0 %6761
        %v6764 = vunpack.c.l.b16 %v6715
        %v6765 = vpack.c.b16 %v6764, %v6764
        %6766 = vrot.lane.b32.xlu0 %v6765, 48
        %v6767 = vpop.permute.xlu0 %6766
        %v6769 = vunpack.c.l.b16 %v6687
        %v6770 = vpack.c.b16 %v6769, %v6769
        %6771 = vrot.lane.b32.xlu0 %v6770, 64
        %v6772 = vpop.permute.xlu0 %6771
        %v6774 = vunpack.c.l.b16 %v6713
        %v6775 = vpack.c.b16 %v6774, %v6774
        %6776 = vrot.lane.b32.xlu0 %v6775, 80
        %v6777 = vpop.permute.xlu0 %6776
        %v6779 = vunpack.c.l.b16 %v6691
        %v6780 = vpack.c.b16 %v6779, %v6779
        %6781 = vrot.lane.b32.xlu0 %v6780, 96
        %v6782 = vpop.permute.xlu0 %6781
        %v6784 = vunpack.c.l.b16 %v6717
        %v6785 = vpack.c.b16 %v6784, %v6784
        %6786 = vrot.lane.b32.xlu0 %v6785, 112
        %v6787 = vpop.permute.xlu0 %6786
        %v6790 = vsel %vm1206, %v6631, %v6722
        %v6792 = vsel %vm1210, %v6790, %v6727
        %v6794 = vsel %vm1213, %v6792, %v6732
        %v6796 = vsel %vm1216, %v6794, %v6737
        %v6798 = vsel %vm1219, %v6796, %v6742
        %v6800 = vsel %vm1222, %v6798, %v6747
        %v6802 = vsel %vm1225, %v6800, %v6752
        %v6805 = vsel %vm1206, %v6683, %v6757
        %v6807 = vsel %vm1210, %v6805, %v6762
        %v6809 = vsel %vm1213, %v6807, %v6767
        %v6811 = vsel %vm1216, %v6809, %v6772
        %v6813 = vsel %vm1219, %v6811, %v6777
        %v6815 = vsel %vm1222, %v6813, %v6782
        %v6817 = vsel %vm1225, %v6815, %v6787
        %s6818 = scalar_lea.vmem %s7, 8
        %v6819 = vld [vmem:[%s6818] sm:$0x3]
        %v6821 = vsel %vm5728, %v6819, 0
        %v6823 = vsel %vm5732, %v6802, 0
        %v6825 = vsel %vm5732, %v6817, 0
        %6827 = vmatpush.bf16.msra.mxu0 0
        %6828 = vmatpush.bf16.msra.mxu0 0
        %6829 = vmatpush.bf16.msra.mxu0 0
        %6830 = vmatpush.bf16.msra.mxu0 0
        %6831 = vmatpush.bf16.msra.mxu0 0
        %6832 = vmatpush.bf16.msra.mxu0 0
        %6833 = vmatpush.bf16.msra.mxu0 0
        %6834 = vmatpush.bf16.msra.mxu0 %v6823
        %6835 = vmatmul.bf16.gmra.mxu0 %v6821
        %v6836 = vpop.f32.mrf.mxu0
        %v6837 = vadd.f32 0.0, %v6836
        %v6838 = vpop.f32.mrf.mxu0
        %6839 = vdwg.mxu0
        %6840 = vmatpush.bf16.msra.mxu0 0
        %6841 = vmatpush.bf16.msra.mxu0 0
        %6842 = vmatpush.bf16.msra.mxu0 0
        %6843 = vmatpush.bf16.msra.mxu0 0
        %6844 = vmatpush.bf16.msra.mxu0 0
        %6845 = vmatpush.bf16.msra.mxu0 0
        %6846 = vmatpush.bf16.msra.mxu0 0
        %6847 = vmatpush.bf16.msra.mxu0 %v6825
        %6848 = vmatmul.bf16.gmra.mxu0 %v6821
        %v6849 = vpop.f32.mrf.mxu0
        %v6850 = vadd.f32 0.0, %v6849
        %v6851 = vpop.f32.mrf.mxu0
        %6852 = vdwg.mxu0
        %v6853 = vadd.f32 %v6464, %v6837
        %v6854 = vadd.f32 %v6465, %v6850
        %v6855 = vld [vmem:[#allocation3] sm:$0xf]
        %v6856 = vld [vmem:[#allocation3 + $0x4] sm:$0xf]
        %v6857 = vld [vmem:[#allocation3 + $0x8] sm:$0x1]
        %v6858 = vld [vmem:[#allocation3 + $0xc] sm:$0xf]
        %v6859 = vld [vmem:[#allocation3 + $0x10] sm:$0xf]
        %v6860 = vld [vmem:[#allocation3 + $0x14] sm:$0x1]
        %v6861 = vld [vmem:[#allocation3 + $0x18] sm:$0xf]
        %v6862 = vld [vmem:[#allocation3 + $0x1c] sm:$0xf]
        %v6863 = vld [vmem:[#allocation3 + $0x20] sm:$0x1]
        %v6864 = vld [vmem:[#allocation3 + $0x24] sm:$0xf]
        %v6865 = vld [vmem:[#allocation3 + $0x28] sm:$0xf]
        %v6866 = vld [vmem:[#allocation3 + $0x2c] sm:$0x1]
        %v6868 = vshrl.u32 %v6855, 16
        %v6870 = vrot.slane %v6868, 4
        %v6871 = vshll.u32 %v6855, 16
        %v6873 = vrot.slane %v6871, 5
        %v6874 = vor.u32 %v6870, %v6873
        %v6875 = vrot.slane %v6874, 4
        %v6877 = vshll.u32 %v6856, 16
        %v6879 = vrot.slane %v6877, 5
        %v6880 = vsel %vm2012, %v6875, %v6879
        %v6881 = vshrl.u32 %v6856, 16
        %v6883 = vrot.slane %v6881, 4
        %v6884 = vor.u32 %v6883, %v6879
        %v6885 = vrot.slane %v6884, 4
        %v6887 = vshll.u32 %v6857, 16
        %v6889 = vrot.slane %v6887, 5
        %v6890 = vsel %vm2012, %v6885, %v6889
        %v6892 = vshrl.u32 %v6858, 16
        %v6894 = vrot.slane %v6892, 4
        %v6895 = vshll.u32 %v6858, 16
        %v6897 = vrot.slane %v6895, 5
        %v6898 = vor.u32 %v6894, %v6897
        %v6899 = vrot.slane %v6898, 4
        %v6901 = vshll.u32 %v6859, 16
        %v6903 = vrot.slane %v6901, 5
        %v6904 = vsel %vm2012, %v6899, %v6903
        %v6905 = vshrl.u32 %v6859, 16
        %v6907 = vrot.slane %v6905, 4
        %v6908 = vor.u32 %v6907, %v6903
        %v6909 = vrot.slane %v6908, 4
        %v6911 = vshll.u32 %v6860, 16
        %v6913 = vrot.slane %v6911, 5
        %v6914 = vsel %vm2012, %v6909, %v6913
        %v6916 = vshrl.u32 %v6861, 16
        %v6918 = vrot.slane %v6916, 4
        %v6919 = vshll.u32 %v6861, 16
        %v6921 = vrot.slane %v6919, 5
        %v6922 = vor.u32 %v6918, %v6921
        %v6923 = vrot.slane %v6922, 4
        %v6925 = vshll.u32 %v6862, 16
        %v6927 = vrot.slane %v6925, 5
        %v6928 = vsel %vm2012, %v6923, %v6927
        %v6929 = vshrl.u32 %v6862, 16
        %v6931 = vrot.slane %v6929, 4
        %v6932 = vor.u32 %v6931, %v6927
        %v6933 = vrot.slane %v6932, 4
        %v6935 = vshll.u32 %v6863, 16
        %v6937 = vrot.slane %v6935, 5
        %v6938 = vsel %vm2012, %v6933, %v6937
        %v6940 = vshrl.u32 %v6864, 16
        %v6942 = vrot.slane %v6940, 4
        %v6943 = vshll.u32 %v6864, 16
        %v6945 = vrot.slane %v6943, 5
        %v6946 = vor.u32 %v6942, %v6945
        %v6947 = vrot.slane %v6946, 4
        %v6949 = vshll.u32 %v6865, 16
        %v6951 = vrot.slane %v6949, 5
        %v6952 = vsel %vm2012, %v6947, %v6951
        %v6953 = vshrl.u32 %v6865, 16
        %v6955 = vrot.slane %v6953, 4
        %v6956 = vor.u32 %v6955, %v6951
        %v6957 = vrot.slane %v6956, 4
        %v6959 = vshll.u32 %v6866, 16
        %v6961 = vrot.slane %v6959, 5
        %v6962 = vsel %vm2012, %v6957, %v6961
        %6963 = vrot.lane.b32.xlu0 %v6880, 126
        %v6964 = vpop.permute.xlu0 %6963
        %6965 = vrot.lane.b32.xlu0 %v6890, 126
        %v6966 = vpop.permute.xlu0 %6965
        %6967 = vrot.lane.b32.xlu0 %v6904, 126
        %v6968 = vpop.permute.xlu0 %6967
        %6969 = vrot.lane.b32.xlu0 %v6914, 126
        %v6970 = vpop.permute.xlu0 %6969
        %6971 = vrot.lane.b32.xlu0 %v6928, 126
        %v6972 = vpop.permute.xlu0 %6971
        %6973 = vrot.lane.b32.xlu0 %v6938, 126
        %v6974 = vpop.permute.xlu0 %6973
        %6975 = vrot.lane.b32.xlu0 %v6952, 126
        %v6976 = vpop.permute.xlu0 %6975
        %6977 = vrot.lane.b32.xlu0 %v6962, 126
        %v6978 = vpop.permute.xlu0 %6977
        %v6981 = vpack.i.b16 %v6968, %v6964
        %v6982 = vshrl.u32 %v6964, 16
        %v6983 = vshrl.u32 %v6968, 16
        %v6984 = vpack.i.b16 %v6983, %v6982
        %v6987 = vpack.i.b16 %v6976, %v6972
        %v6988 = vshrl.u32 %v6972, 16
        %v6989 = vshrl.u32 %v6976, 16
        %v6990 = vpack.i.b16 %v6989, %v6988
        %v6993 = vpack.i.b16 %v6970, %v6966
        %v6994 = vshrl.u32 %v6966, 16
        %v6995 = vshrl.u32 %v6970, 16
        %v6996 = vpack.i.b16 %v6995, %v6994
        %v6999 = vpack.i.b16 %v6978, %v6974
        %v7000 = vshrl.u32 %v6974, 16
        %v7001 = vshrl.u32 %v6978, 16
        %v7002 = vpack.i.b16 %v7001, %v7000
        %v7005 = vunpack.c.l.s4 1983009808
        %v7006 = vunpack.c.0.s8 %v7005
        %v7007 = vperm.slane %v6981, %v7006
        %v7010 = vunpack.c.l.s4 1983009808
        %v7011 = vunpack.c.0.s8 %v7010
        %v7012 = vperm.slane %v6987, %v7011
        %v7013 = vrot.slane %v7012, 4
        %v7014 = vsel %vm990, %v7013, %v7007
        %v7015 = vrot.slane %v7007, 4
        %v7016 = vsel %vm990, %v7012, %v7015
        %v7018 = vunpack.c.l.s4 1934713408
        %v7019 = vunpack.c.0.s8 %v7018
        %v7020 = vperm.slane %v7014, %v7019
        %v7022 = vunpack.c.l.s4 1934713408
        %v7023 = vunpack.c.0.s8 %v7022
        %v7024 = vperm.slane %v7016, %v7023
        %v7025 = vrot.slane %v7020, 4
        %v7026 = vsel %vm990, 0, %v7025
        %v7027 = vrot.slane %v7024, 4
        %v7028 = vsel %vm990, 0, %v7027
        %v7031 = vunpack.c.l.s4 1983009808
        %v7032 = vunpack.c.0.s8 %v7031
        %v7033 = vperm.slane %v6984, %v7032
        %v7036 = vunpack.c.l.s4 1983009808
        %v7037 = vunpack.c.0.s8 %v7036
        %v7038 = vperm.slane %v6990, %v7037
        %v7039 = vrot.slane %v7038, 4
        %v7040 = vsel %vm990, %v7039, %v7033
        %v7041 = vrot.slane %v7033, 4
        %v7042 = vsel %vm990, %v7038, %v7041
        %v7044 = vunpack.c.l.s4 1934713408
        %v7045 = vunpack.c.0.s8 %v7044
        %v7046 = vperm.slane %v7040, %v7045
        %v7048 = vunpack.c.l.s4 1934713408
        %v7049 = vunpack.c.0.s8 %v7048
        %v7050 = vperm.slane %v7042, %v7049
        %v7051 = vrot.slane %v7046, 4
        %v7052 = vsel %vm990, 0, %v7051
        %v7053 = vrot.slane %v7050, 4
        %v7054 = vsel %vm990, 0, %v7053
        %v7057 = vunpack.c.l.s4 1983009808
        %v7058 = vunpack.c.0.s8 %v7057
        %v7059 = vperm.slane %v6993, %v7058
        %v7062 = vunpack.c.l.s4 1983009808
        %v7063 = vunpack.c.0.s8 %v7062
        %v7064 = vperm.slane %v6999, %v7063
        %v7065 = vrot.slane %v7064, 4
        %v7066 = vsel %vm990, %v7065, %v7059
        %v7067 = vrot.slane %v7059, 4
        %v7068 = vsel %vm990, %v7064, %v7067
        %v7070 = vunpack.c.l.s4 1934713408
        %v7071 = vunpack.c.0.s8 %v7070
        %v7072 = vperm.slane %v7066, %v7071
        %v7074 = vunpack.c.l.s4 1934713408
        %v7075 = vunpack.c.0.s8 %v7074
        %v7076 = vperm.slane %v7068, %v7075
        %v7077 = vrot.slane %v7072, 4
        %v7078 = vsel %vm990, 0, %v7077
        %v7079 = vrot.slane %v7076, 4
        %v7080 = vsel %vm990, 0, %v7079
        %v7083 = vunpack.c.l.s4 1983009808
        %v7084 = vunpack.c.0.s8 %v7083
        %v7085 = vperm.slane %v6996, %v7084
        %v7088 = vunpack.c.l.s4 1983009808
        %v7089 = vunpack.c.0.s8 %v7088
        %v7090 = vperm.slane %v7002, %v7089
        %v7091 = vrot.slane %v7090, 4
        %v7092 = vsel %vm990, %v7091, %v7085
        %v7093 = vrot.slane %v7085, 4
        %v7094 = vsel %vm990, %v7090, %v7093
        %v7096 = vunpack.c.l.s4 1934713408
        %v7097 = vunpack.c.0.s8 %v7096
        %v7098 = vperm.slane %v7092, %v7097
        %v7100 = vunpack.c.l.s4 1934713408
        %v7101 = vunpack.c.0.s8 %v7100
        %v7102 = vperm.slane %v7094, %v7101
        %v7103 = vrot.slane %v7098, 4
        %v7104 = vsel %vm990, 0, %v7103
        %v7105 = vrot.slane %v7102, 4
        %v7106 = vsel %vm990, 0, %v7105
        %v7108 = vunpack.c.l.b16 %v7046
        %v7109 = vpack.c.b16 %v7108, %v7108
        %7110 = vrot.lane.b32.xlu0 %v7109, 16
        %v7111 = vpop.permute.xlu0 %7110
        %v7113 = vunpack.c.l.b16 %v7026
        %v7114 = vpack.c.b16 %v7113, %v7113
        %7115 = vrot.lane.b32.xlu0 %v7114, 32
        %v7116 = vpop.permute.xlu0 %7115
        %v7118 = vunpack.c.l.b16 %v7052
        %v7119 = vpack.c.b16 %v7118, %v7118
        %7120 = vrot.lane.b32.xlu0 %v7119, 48
        %v7121 = vpop.permute.xlu0 %7120
        %v7123 = vunpack.c.l.b16 %v7024
        %v7124 = vpack.c.b16 %v7123, %v7123
        %7125 = vrot.lane.b32.xlu0 %v7124, 64
        %v7126 = vpop.permute.xlu0 %7125
        %v7128 = vunpack.c.l.b16 %v7050
        %v7129 = vpack.c.b16 %v7128, %v7128
        %7130 = vrot.lane.b32.xlu0 %v7129, 80
        %v7131 = vpop.permute.xlu0 %7130
        %v7133 = vunpack.c.l.b16 %v7028
        %v7134 = vpack.c.b16 %v7133, %v7133
        %7135 = vrot.lane.b32.xlu0 %v7134, 96
        %v7136 = vpop.permute.xlu0 %7135
        %v7138 = vunpack.c.l.b16 %v7054
        %v7139 = vpack.c.b16 %v7138, %v7138
        %7140 = vrot.lane.b32.xlu0 %v7139, 112
        %v7141 = vpop.permute.xlu0 %7140
        %v7143 = vunpack.c.l.b16 %v7098
        %v7144 = vpack.c.b16 %v7143, %v7143
        %7145 = vrot.lane.b32.xlu0 %v7144, 16
        %v7146 = vpop.permute.xlu0 %7145
        %v7148 = vunpack.c.l.b16 %v7078
        %v7149 = vpack.c.b16 %v7148, %v7148
        %7150 = vrot.lane.b32.xlu0 %v7149, 32
        %v7151 = vpop.permute.xlu0 %7150
        %v7153 = vunpack.c.l.b16 %v7104
        %v7154 = vpack.c.b16 %v7153, %v7153
        %7155 = vrot.lane.b32.xlu0 %v7154, 48
        %v7156 = vpop.permute.xlu0 %7155
        %v7158 = vunpack.c.l.b16 %v7076
        %v7159 = vpack.c.b16 %v7158, %v7158
        %7160 = vrot.lane.b32.xlu0 %v7159, 64
        %v7161 = vpop.permute.xlu0 %7160
        %v7163 = vunpack.c.l.b16 %v7102
        %v7164 = vpack.c.b16 %v7163, %v7163
        %7165 = vrot.lane.b32.xlu0 %v7164, 80
        %v7166 = vpop.permute.xlu0 %7165
        %v7168 = vunpack.c.l.b16 %v7080
        %v7169 = vpack.c.b16 %v7168, %v7168
        %7170 = vrot.lane.b32.xlu0 %v7169, 96
        %v7171 = vpop.permute.xlu0 %7170
        %v7173 = vunpack.c.l.b16 %v7106
        %v7174 = vpack.c.b16 %v7173, %v7173
        %7175 = vrot.lane.b32.xlu0 %v7174, 112
        %v7176 = vpop.permute.xlu0 %7175
        %v7179 = vsel %vm1206, %v7020, %v7111
        %v7181 = vsel %vm1210, %v7179, %v7116
        %v7183 = vsel %vm1213, %v7181, %v7121
        %v7185 = vsel %vm1216, %v7183, %v7126
        %v7187 = vsel %vm1219, %v7185, %v7131
        %v7189 = vsel %vm1222, %v7187, %v7136
        %v7191 = vsel %vm1225, %v7189, %v7141
        %v7194 = vsel %vm1206, %v7072, %v7146
        %v7196 = vsel %vm1210, %v7194, %v7151
        %v7198 = vsel %vm1213, %v7196, %v7156
        %v7200 = vsel %vm1216, %v7198, %v7161
        %v7202 = vsel %vm1219, %v7200, %v7166
        %v7204 = vsel %vm1222, %v7202, %v7171
        %v7206 = vsel %vm1225, %v7204, %v7176
        %s7207 = scalar_lea.vmem %s7, 10
        %v7208 = vld [vmem:[%s7207] sm:$0x3]
        %v7210 = vsel %vm5728, %v7208, 0
        %v7212 = vsel %vm5732, %v7191, 0
        %v7214 = vsel %vm5732, %v7206, 0
        %7216 = vmatpush.bf16.msra.mxu0 0
        %7217 = vmatpush.bf16.msra.mxu0 0
        %7218 = vmatpush.bf16.msra.mxu0 0
        %7219 = vmatpush.bf16.msra.mxu0 0
        %7220 = vmatpush.bf16.msra.mxu0 0
        %7221 = vmatpush.bf16.msra.mxu0 0
        %7222 = vmatpush.bf16.msra.mxu0 0
        %7223 = vmatpush.bf16.msra.mxu0 %v7212
        %7224 = vmatmul.bf16.gmra.mxu0 %v7210
        %v7225 = vpop.f32.mrf.mxu0
        %v7226 = vadd.f32 0.0, %v7225
        %v7227 = vpop.f32.mrf.mxu0
        %7228 = vdwg.mxu0
        %7229 = vmatpush.bf16.msra.mxu0 0
        %7230 = vmatpush.bf16.msra.mxu0 0
        %7231 = vmatpush.bf16.msra.mxu0 0
        %7232 = vmatpush.bf16.msra.mxu0 0
        %7233 = vmatpush.bf16.msra.mxu0 0
        %7234 = vmatpush.bf16.msra.mxu0 0
        %7235 = vmatpush.bf16.msra.mxu0 0
        %7236 = vmatpush.bf16.msra.mxu0 %v7214
        %7237 = vmatmul.bf16.gmra.mxu0 %v7210
        %v7238 = vpop.f32.mrf.mxu0
        %v7239 = vadd.f32 0.0, %v7238
        %v7240 = vpop.f32.mrf.mxu0
        %7241 = vdwg.mxu0
        %v7242 = vadd.f32 %v6853, %v7226
        %v7243 = vadd.f32 %v6854, %v7239
        %v7244 = vld [vmem:[#allocation3] sm:$0xe]
        %v7245 = vld [vmem:[#allocation3 + $0x4] sm:$0xf]
        %v7246 = vld [vmem:[#allocation3 + $0x8] sm:$0x1]
        %v7247 = vld [vmem:[#allocation3 + $0xc] sm:$0xe]
        %v7248 = vld [vmem:[#allocation3 + $0x10] sm:$0xf]
        %v7249 = vld [vmem:[#allocation3 + $0x14] sm:$0x1]
        %v7250 = vld [vmem:[#allocation3 + $0x18] sm:$0xe]
        %v7251 = vld [vmem:[#allocation3 + $0x1c] sm:$0xf]
        %v7252 = vld [vmem:[#allocation3 + $0x20] sm:$0x1]
        %v7253 = vld [vmem:[#allocation3 + $0x24] sm:$0xe]
        %v7254 = vld [vmem:[#allocation3 + $0x28] sm:$0xf]
        %v7255 = vld [vmem:[#allocation3 + $0x2c] sm:$0x1]
        %v7268 = vrot.slane %v7244, 5
        %v7269 = vrot.slane %v7268, 4
        %v7270 = vrot.slane %v7245, 5
        %v7271 = vsel %vm3648, %v7269, %v7270
        %v7272 = vrot.slane %v7270, 4
        %v7273 = vrot.slane %v7246, 5
        %v7274 = vsel %vm3648, %v7272, %v7273
        %v7275 = vrot.slane %v7247, 5
        %v7276 = vrot.slane %v7275, 4
        %v7277 = vrot.slane %v7248, 5
        %v7278 = vsel %vm3648, %v7276, %v7277
        %v7279 = vrot.slane %v7277, 4
        %v7280 = vrot.slane %v7249, 5
        %v7281 = vsel %vm3648, %v7279, %v7280
        %v7282 = vrot.slane %v7250, 5
        %v7283 = vrot.slane %v7282, 4
        %v7284 = vrot.slane %v7251, 5
        %v7285 = vsel %vm3648, %v7283, %v7284
        %v7286 = vrot.slane %v7284, 4
        %v7287 = vrot.slane %v7252, 5
        %v7288 = vsel %vm3648, %v7286, %v7287
        %v7289 = vrot.slane %v7253, 5
        %v7290 = vrot.slane %v7289, 4
        %v7291 = vrot.slane %v7254, 5
        %v7292 = vsel %vm3648, %v7290, %v7291
        %v7293 = vrot.slane %v7291, 4
        %v7294 = vrot.slane %v7255, 5
        %v7295 = vsel %vm3648, %v7293, %v7294
        %v7298 = vpack.i.b16 %v7278, %v7271
        %v7299 = vshrl.u32 %v7271, 16
        %v7300 = vshrl.u32 %v7278, 16
        %v7301 = vpack.i.b16 %v7300, %v7299
        %v7304 = vpack.i.b16 %v7292, %v7285
        %v7305 = vshrl.u32 %v7285, 16
        %v7306 = vshrl.u32 %v7292, 16
        %v7307 = vpack.i.b16 %v7306, %v7305
        %v7310 = vpack.i.b16 %v7281, %v7274
        %v7311 = vshrl.u32 %v7274, 16
        %v7312 = vshrl.u32 %v7281, 16
        %v7313 = vpack.i.b16 %v7312, %v7311
        %v7316 = vpack.i.b16 %v7295, %v7288
        %v7317 = vshrl.u32 %v7288, 16
        %v7318 = vshrl.u32 %v7295, 16
        %v7319 = vpack.i.b16 %v7318, %v7317
        %v7322 = vunpack.c.l.s4 1983009808
        %v7323 = vunpack.c.0.s8 %v7322
        %v7324 = vperm.slane %v7298, %v7323
        %v7327 = vunpack.c.l.s4 1983009808
        %v7328 = vunpack.c.0.s8 %v7327
        %v7329 = vperm.slane %v7304, %v7328
        %v7330 = vrot.slane %v7329, 4
        %v7331 = vsel %vm990, %v7330, %v7324
        %v7332 = vrot.slane %v7324, 4
        %v7333 = vsel %vm990, %v7329, %v7332
        %v7335 = vunpack.c.l.s4 1934713408
        %v7336 = vunpack.c.0.s8 %v7335
        %v7337 = vperm.slane %v7331, %v7336
        %v7339 = vunpack.c.l.s4 1934713408
        %v7340 = vunpack.c.0.s8 %v7339
        %v7341 = vperm.slane %v7333, %v7340
        %v7342 = vrot.slane %v7337, 4
        %v7343 = vsel %vm990, 0, %v7342
        %v7344 = vrot.slane %v7341, 4
        %v7345 = vsel %vm990, 0, %v7344
        %v7348 = vunpack.c.l.s4 1983009808
        %v7349 = vunpack.c.0.s8 %v7348
        %v7350 = vperm.slane %v7301, %v7349
        %v7353 = vunpack.c.l.s4 1983009808
        %v7354 = vunpack.c.0.s8 %v7353
        %v7355 = vperm.slane %v7307, %v7354
        %v7356 = vrot.slane %v7355, 4
        %v7357 = vsel %vm990, %v7356, %v7350
        %v7358 = vrot.slane %v7350, 4
        %v7359 = vsel %vm990, %v7355, %v7358
        %v7361 = vunpack.c.l.s4 1934713408
        %v7362 = vunpack.c.0.s8 %v7361
        %v7363 = vperm.slane %v7357, %v7362
        %v7365 = vunpack.c.l.s4 1934713408
        %v7366 = vunpack.c.0.s8 %v7365
        %v7367 = vperm.slane %v7359, %v7366
        %v7368 = vrot.slane %v7363, 4
        %v7369 = vsel %vm990, 0, %v7368
        %v7370 = vrot.slane %v7367, 4
        %v7371 = vsel %vm990, 0, %v7370
        %v7374 = vunpack.c.l.s4 1983009808
        %v7375 = vunpack.c.0.s8 %v7374
        %v7376 = vperm.slane %v7310, %v7375
        %v7379 = vunpack.c.l.s4 1983009808
        %v7380 = vunpack.c.0.s8 %v7379
        %v7381 = vperm.slane %v7316, %v7380
        %v7382 = vrot.slane %v7381, 4
        %v7383 = vsel %vm990, %v7382, %v7376
        %v7384 = vrot.slane %v7376, 4
        %v7385 = vsel %vm990, %v7381, %v7384
        %v7387 = vunpack.c.l.s4 1934713408
        %v7388 = vunpack.c.0.s8 %v7387
        %v7389 = vperm.slane %v7383, %v7388
        %v7391 = vunpack.c.l.s4 1934713408
        %v7392 = vunpack.c.0.s8 %v7391
        %v7393 = vperm.slane %v7385, %v7392
        %v7394 = vrot.slane %v7389, 4
        %v7395 = vsel %vm990, 0, %v7394
        %v7396 = vrot.slane %v7393, 4
        %v7397 = vsel %vm990, 0, %v7396
        %v7400 = vunpack.c.l.s4 1983009808
        %v7401 = vunpack.c.0.s8 %v7400
        %v7402 = vperm.slane %v7313, %v7401
        %v7405 = vunpack.c.l.s4 1983009808
        %v7406 = vunpack.c.0.s8 %v7405
        %v7407 = vperm.slane %v7319, %v7406
        %v7408 = vrot.slane %v7407, 4
        %v7409 = vsel %vm990, %v7408, %v7402
        %v7410 = vrot.slane %v7402, 4
        %v7411 = vsel %vm990, %v7407, %v7410
        %v7413 = vunpack.c.l.s4 1934713408
        %v7414 = vunpack.c.0.s8 %v7413
        %v7415 = vperm.slane %v7409, %v7414
        %v7417 = vunpack.c.l.s4 1934713408
        %v7418 = vunpack.c.0.s8 %v7417
        %v7419 = vperm.slane %v7411, %v7418
        %v7420 = vrot.slane %v7415, 4
        %v7421 = vsel %vm990, 0, %v7420
        %v7422 = vrot.slane %v7419, 4
        %v7423 = vsel %vm990, 0, %v7422
        %v7425 = vunpack.c.l.b16 %v7363
        %v7426 = vpack.c.b16 %v7425, %v7425
        %7427 = vrot.lane.b32.xlu0 %v7426, 16
        %v7428 = vpop.permute.xlu0 %7427
        %v7430 = vunpack.c.l.b16 %v7343
        %v7431 = vpack.c.b16 %v7430, %v7430
        %7432 = vrot.lane.b32.xlu0 %v7431, 32
        %v7433 = vpop.permute.xlu0 %7432
        %v7435 = vunpack.c.l.b16 %v7369
        %v7436 = vpack.c.b16 %v7435, %v7435
        %7437 = vrot.lane.b32.xlu0 %v7436, 48
        %v7438 = vpop.permute.xlu0 %7437
        %v7440 = vunpack.c.l.b16 %v7341
        %v7441 = vpack.c.b16 %v7440, %v7440
        %7442 = vrot.lane.b32.xlu0 %v7441, 64
        %v7443 = vpop.permute.xlu0 %7442
        %v7445 = vunpack.c.l.b16 %v7367
        %v7446 = vpack.c.b16 %v7445, %v7445
        %7447 = vrot.lane.b32.xlu0 %v7446, 80
        %v7448 = vpop.permute.xlu0 %7447
        %v7450 = vunpack.c.l.b16 %v7345
        %v7451 = vpack.c.b16 %v7450, %v7450
        %7452 = vrot.lane.b32.xlu0 %v7451, 96
        %v7453 = vpop.permute.xlu0 %7452
        %v7455 = vunpack.c.l.b16 %v7371
        %v7456 = vpack.c.b16 %v7455, %v7455
        %7457 = vrot.lane.b32.xlu0 %v7456, 112
        %v7458 = vpop.permute.xlu0 %7457
        %v7460 = vunpack.c.l.b16 %v7415
        %v7461 = vpack.c.b16 %v7460, %v7460
        %7462 = vrot.lane.b32.xlu0 %v7461, 16
        %v7463 = vpop.permute.xlu0 %7462
        %v7465 = vunpack.c.l.b16 %v7395
        %v7466 = vpack.c.b16 %v7465, %v7465
        %7467 = vrot.lane.b32.xlu0 %v7466, 32
        %v7468 = vpop.permute.xlu0 %7467
        %v7470 = vunpack.c.l.b16 %v7421
        %v7471 = vpack.c.b16 %v7470, %v7470
        %7472 = vrot.lane.b32.xlu0 %v7471, 48
        %v7473 = vpop.permute.xlu0 %7472
        %v7475 = vunpack.c.l.b16 %v7393
        %v7476 = vpack.c.b16 %v7475, %v7475
        %7477 = vrot.lane.b32.xlu0 %v7476, 64
        %v7478 = vpop.permute.xlu0 %7477
        %v7480 = vunpack.c.l.b16 %v7419
        %v7481 = vpack.c.b16 %v7480, %v7480
        %7482 = vrot.lane.b32.xlu0 %v7481, 80
        %v7483 = vpop.permute.xlu0 %7482
        %v7485 = vunpack.c.l.b16 %v7397
        %v7486 = vpack.c.b16 %v7485, %v7485
        %7487 = vrot.lane.b32.xlu0 %v7486, 96
        %v7488 = vpop.permute.xlu0 %7487
        %v7490 = vunpack.c.l.b16 %v7423
        %v7491 = vpack.c.b16 %v7490, %v7490
        %7492 = vrot.lane.b32.xlu0 %v7491, 112
        %v7493 = vpop.permute.xlu0 %7492
        %v7496 = vsel %vm1206, %v7337, %v7428
        %v7498 = vsel %vm1210, %v7496, %v7433
        %v7500 = vsel %vm1213, %v7498, %v7438
        %v7502 = vsel %vm1216, %v7500, %v7443
        %v7504 = vsel %vm1219, %v7502, %v7448
        %v7506 = vsel %vm1222, %v7504, %v7453
        %v7508 = vsel %vm1225, %v7506, %v7458
        %v7511 = vsel %vm1206, %v7389, %v7463
        %v7513 = vsel %vm1210, %v7511, %v7468
        %v7515 = vsel %vm1213, %v7513, %v7473
        %v7517 = vsel %vm1216, %v7515, %v7478
        %v7519 = vsel %vm1219, %v7517, %v7483
        %v7521 = vsel %vm1222, %v7519, %v7488
        %v7523 = vsel %vm1225, %v7521, %v7493
        %s7524 = scalar_lea.vmem %s7, 12
        %v7525 = vld [vmem:[%s7524] sm:$0x3]
        %v7527 = vsel %vm5728, %v7525, 0
        %v7529 = vsel %vm5732, %v7508, 0
        %v7531 = vsel %vm5732, %v7523, 0
        %7533 = vmatpush.bf16.msra.mxu0 0
        %7534 = vmatpush.bf16.msra.mxu0 0
        %7535 = vmatpush.bf16.msra.mxu0 0
        %7536 = vmatpush.bf16.msra.mxu0 0
        %7537 = vmatpush.bf16.msra.mxu0 0
        %7538 = vmatpush.bf16.msra.mxu0 0
        %7539 = vmatpush.bf16.msra.mxu0 0
        %7540 = vmatpush.bf16.msra.mxu0 %v7529
        %7541 = vmatmul.bf16.gmra.mxu0 %v7527
        %v7542 = vpop.f32.mrf.mxu0
        %v7543 = vadd.f32 0.0, %v7542
        %v7544 = vpop.f32.mrf.mxu0
        %7545 = vdwg.mxu0
        %7546 = vmatpush.bf16.msra.mxu0 0
        %7547 = vmatpush.bf16.msra.mxu0 0
        %7548 = vmatpush.bf16.msra.mxu0 0
        %7549 = vmatpush.bf16.msra.mxu0 0
        %7550 = vmatpush.bf16.msra.mxu0 0
        %7551 = vmatpush.bf16.msra.mxu0 0
        %7552 = vmatpush.bf16.msra.mxu0 0
        %7553 = vmatpush.bf16.msra.mxu0 %v7531
        %7554 = vmatmul.bf16.gmra.mxu0 %v7527
        %v7555 = vpop.f32.mrf.mxu0
        %v7556 = vadd.f32 0.0, %v7555
        %v7557 = vpop.f32.mrf.mxu0
        %7558 = vdwg.mxu0
        %v7559 = vadd.f32 %v7242, %v7543
        %v7560 = vadd.f32 %v7243, %v7556
        %v7561 = vld [vmem:[#allocation3] sm:$0xe]
        %v7562 = vld [vmem:[#allocation3 + $0x4] sm:$0xf]
        %v7563 = vld [vmem:[#allocation3 + $0x8] sm:$0x1]
        %v7564 = vld [vmem:[#allocation3 + $0xc] sm:$0xe]
        %v7565 = vld [vmem:[#allocation3 + $0x10] sm:$0xf]
        %v7566 = vld [vmem:[#allocation3 + $0x14] sm:$0x1]
        %v7567 = vld [vmem:[#allocation3 + $0x18] sm:$0xe]
        %v7568 = vld [vmem:[#allocation3 + $0x1c] sm:$0xf]
        %v7569 = vld [vmem:[#allocation3 + $0x20] sm:$0x1]
        %v7570 = vld [vmem:[#allocation3 + $0x24] sm:$0xe]
        %v7571 = vld [vmem:[#allocation3 + $0x28] sm:$0xf]
        %v7572 = vld [vmem:[#allocation3 + $0x2c] sm:$0x1]
        %v7585 = vrot.slane %v7561, 5
        %v7586 = vrot.slane %v7585, 4
        %v7587 = vrot.slane %v7562, 5
        %v7588 = vsel %vm3648, %v7586, %v7587
        %v7589 = vrot.slane %v7587, 4
        %v7590 = vrot.slane %v7563, 5
        %v7591 = vsel %vm3648, %v7589, %v7590
        %v7592 = vrot.slane %v7564, 5
        %v7593 = vrot.slane %v7592, 4
        %v7594 = vrot.slane %v7565, 5
        %v7595 = vsel %vm3648, %v7593, %v7594
        %v7596 = vrot.slane %v7594, 4
        %v7597 = vrot.slane %v7566, 5
        %v7598 = vsel %vm3648, %v7596, %v7597
        %v7599 = vrot.slane %v7567, 5
        %v7600 = vrot.slane %v7599, 4
        %v7601 = vrot.slane %v7568, 5
        %v7602 = vsel %vm3648, %v7600, %v7601
        %v7603 = vrot.slane %v7601, 4
        %v7604 = vrot.slane %v7569, 5
        %v7605 = vsel %vm3648, %v7603, %v7604
        %v7606 = vrot.slane %v7570, 5
        %v7607 = vrot.slane %v7606, 4
        %v7608 = vrot.slane %v7571, 5
        %v7609 = vsel %vm3648, %v7607, %v7608
        %v7610 = vrot.slane %v7608, 4
        %v7611 = vrot.slane %v7572, 5
        %v7612 = vsel %vm3648, %v7610, %v7611
        %7613 = vrot.lane.b32.xlu0 %v7588, 127
        %v7614 = vpop.permute.xlu0 %7613
        %7615 = vrot.lane.b32.xlu0 %v7591, 127
        %v7616 = vpop.permute.xlu0 %7615
        %7617 = vrot.lane.b32.xlu0 %v7595, 127
        %v7618 = vpop.permute.xlu0 %7617
        %7619 = vrot.lane.b32.xlu0 %v7598, 127
        %v7620 = vpop.permute.xlu0 %7619
        %7621 = vrot.lane.b32.xlu0 %v7602, 127
        %v7622 = vpop.permute.xlu0 %7621
        %7623 = vrot.lane.b32.xlu0 %v7605, 127
        %v7624 = vpop.permute.xlu0 %7623
        %7625 = vrot.lane.b32.xlu0 %v7609, 127
        %v7626 = vpop.permute.xlu0 %7625
        %7627 = vrot.lane.b32.xlu0 %v7612, 127
        %v7628 = vpop.permute.xlu0 %7627
        %v7631 = vpack.i.b16 %v7618, %v7614
        %v7632 = vshrl.u32 %v7614, 16
        %v7633 = vshrl.u32 %v7618, 16
        %v7634 = vpack.i.b16 %v7633, %v7632
        %v7637 = vpack.i.b16 %v7626, %v7622
        %v7638 = vshrl.u32 %v7622, 16
        %v7639 = vshrl.u32 %v7626, 16
        %v7640 = vpack.i.b16 %v7639, %v7638
        %v7643 = vpack.i.b16 %v7620, %v7616
        %v7644 = vshrl.u32 %v7616, 16
        %v7645 = vshrl.u32 %v7620, 16
        %v7646 = vpack.i.b16 %v7645, %v7644
        %v7649 = vpack.i.b16 %v7628, %v7624
        %v7650 = vshrl.u32 %v7624, 16
        %v7651 = vshrl.u32 %v7628, 16
        %v7652 = vpack.i.b16 %v7651, %v7650
        %v7655 = vunpack.c.l.s4 1983009808
        %v7656 = vunpack.c.0.s8 %v7655
        %v7657 = vperm.slane %v7631, %v7656
        %v7660 = vunpack.c.l.s4 1983009808
        %v7661 = vunpack.c.0.s8 %v7660
        %v7662 = vperm.slane %v7637, %v7661
        %v7663 = vrot.slane %v7662, 4
        %v7664 = vsel %vm990, %v7663, %v7657
        %v7665 = vrot.slane %v7657, 4
        %v7666 = vsel %vm990, %v7662, %v7665
        %v7668 = vunpack.c.l.s4 1934713408
        %v7669 = vunpack.c.0.s8 %v7668
        %v7670 = vperm.slane %v7664, %v7669
        %v7672 = vunpack.c.l.s4 1934713408
        %v7673 = vunpack.c.0.s8 %v7672
        %v7674 = vperm.slane %v7666, %v7673
        %v7675 = vrot.slane %v7670, 4
        %v7676 = vsel %vm990, 0, %v7675
        %v7677 = vrot.slane %v7674, 4
        %v7678 = vsel %vm990, 0, %v7677
        %v7681 = vunpack.c.l.s4 1983009808
        %v7682 = vunpack.c.0.s8 %v7681
        %v7683 = vperm.slane %v7634, %v7682
        %v7686 = vunpack.c.l.s4 1983009808
        %v7687 = vunpack.c.0.s8 %v7686
        %v7688 = vperm.slane %v7640, %v7687
        %v7689 = vrot.slane %v7688, 4
        %v7690 = vsel %vm990, %v7689, %v7683
        %v7691 = vrot.slane %v7683, 4
        %v7692 = vsel %vm990, %v7688, %v7691
        %v7694 = vunpack.c.l.s4 1934713408
        %v7695 = vunpack.c.0.s8 %v7694
        %v7696 = vperm.slane %v7690, %v7695
        %v7698 = vunpack.c.l.s4 1934713408
        %v7699 = vunpack.c.0.s8 %v7698
        %v7700 = vperm.slane %v7692, %v7699
        %v7701 = vrot.slane %v7696, 4
        %v7702 = vsel %vm990, 0, %v7701
        %v7703 = vrot.slane %v7700, 4
        %v7704 = vsel %vm990, 0, %v7703
        %v7707 = vunpack.c.l.s4 1983009808
        %v7708 = vunpack.c.0.s8 %v7707
        %v7709 = vperm.slane %v7643, %v7708
        %v7712 = vunpack.c.l.s4 1983009808
        %v7713 = vunpack.c.0.s8 %v7712
        %v7714 = vperm.slane %v7649, %v7713
        %v7715 = vrot.slane %v7714, 4
        %v7716 = vsel %vm990, %v7715, %v7709
        %v7717 = vrot.slane %v7709, 4
        %v7718 = vsel %vm990, %v7714, %v7717
        %v7720 = vunpack.c.l.s4 1934713408
        %v7721 = vunpack.c.0.s8 %v7720
        %v7722 = vperm.slane %v7716, %v7721
        %v7724 = vunpack.c.l.s4 1934713408
        %v7725 = vunpack.c.0.s8 %v7724
        %v7726 = vperm.slane %v7718, %v7725
        %v7727 = vrot.slane %v7722, 4
        %v7728 = vsel %vm990, 0, %v7727
        %v7729 = vrot.slane %v7726, 4
        %v7730 = vsel %vm990, 0, %v7729
        %v7733 = vunpack.c.l.s4 1983009808
        %v7734 = vunpack.c.0.s8 %v7733
        %v7735 = vperm.slane %v7646, %v7734
        %v7738 = vunpack.c.l.s4 1983009808
        %v7739 = vunpack.c.0.s8 %v7738
        %v7740 = vperm.slane %v7652, %v7739
        %v7741 = vrot.slane %v7740, 4
        %v7742 = vsel %vm990, %v7741, %v7735
        %v7743 = vrot.slane %v7735, 4
        %v7744 = vsel %vm990, %v7740, %v7743
        %v7746 = vunpack.c.l.s4 1934713408
        %v7747 = vunpack.c.0.s8 %v7746
        %v7748 = vperm.slane %v7742, %v7747
        %v7750 = vunpack.c.l.s4 1934713408
        %v7751 = vunpack.c.0.s8 %v7750
        %v7752 = vperm.slane %v7744, %v7751
        %v7753 = vrot.slane %v7748, 4
        %v7754 = vsel %vm990, 0, %v7753
        %v7755 = vrot.slane %v7752, 4
        %v7756 = vsel %vm990, 0, %v7755
        %v7758 = vunpack.c.l.b16 %v7696
        %v7759 = vpack.c.b16 %v7758, %v7758
        %7760 = vrot.lane.b32.xlu0 %v7759, 16
        %v7761 = vpop.permute.xlu0 %7760
        %v7763 = vunpack.c.l.b16 %v7676
        %v7764 = vpack.c.b16 %v7763, %v7763
        %7765 = vrot.lane.b32.xlu0 %v7764, 32
        %v7766 = vpop.permute.xlu0 %7765
        %v7768 = vunpack.c.l.b16 %v7702
        %v7769 = vpack.c.b16 %v7768, %v7768
        %7770 = vrot.lane.b32.xlu0 %v7769, 48
        %v7771 = vpop.permute.xlu0 %7770
        %v7773 = vunpack.c.l.b16 %v7674
        %v7774 = vpack.c.b16 %v7773, %v7773
        %7775 = vrot.lane.b32.xlu0 %v7774, 64
        %v7776 = vpop.permute.xlu0 %7775
        %v7778 = vunpack.c.l.b16 %v7700
        %v7779 = vpack.c.b16 %v7778, %v7778
        %7780 = vrot.lane.b32.xlu0 %v7779, 80
        %v7781 = vpop.permute.xlu0 %7780
        %v7783 = vunpack.c.l.b16 %v7678
        %v7784 = vpack.c.b16 %v7783, %v7783
        %7785 = vrot.lane.b32.xlu0 %v7784, 96
        %v7786 = vpop.permute.xlu0 %7785
        %v7788 = vunpack.c.l.b16 %v7704
        %v7789 = vpack.c.b16 %v7788, %v7788
        %7790 = vrot.lane.b32.xlu0 %v7789, 112
        %v7791 = vpop.permute.xlu0 %7790
        %v7793 = vunpack.c.l.b16 %v7748
        %v7794 = vpack.c.b16 %v7793, %v7793
        %7795 = vrot.lane.b32.xlu0 %v7794, 16
        %v7796 = vpop.permute.xlu0 %7795
        %v7798 = vunpack.c.l.b16 %v7728
        %v7799 = vpack.c.b16 %v7798, %v7798
        %7800 = vrot.lane.b32.xlu0 %v7799, 32
        %v7801 = vpop.permute.xlu0 %7800
        %v7803 = vunpack.c.l.b16 %v7754
        %v7804 = vpack.c.b16 %v7803, %v7803
        %7805 = vrot.lane.b32.xlu0 %v7804, 48
        %v7806 = vpop.permute.xlu0 %7805
        %v7808 = vunpack.c.l.b16 %v7726
        %v7809 = vpack.c.b16 %v7808, %v7808
        %7810 = vrot.lane.b32.xlu0 %v7809, 64
        %v7811 = vpop.permute.xlu0 %7810
        %v7813 = vunpack.c.l.b16 %v7752
        %v7814 = vpack.c.b16 %v7813, %v7813
        %7815 = vrot.lane.b32.xlu0 %v7814, 80
        %v7816 = vpop.permute.xlu0 %7815
        %v7818 = vunpack.c.l.b16 %v7730
        %v7819 = vpack.c.b16 %v7818, %v7818
        %7820 = vrot.lane.b32.xlu0 %v7819, 96
        %v7821 = vpop.permute.xlu0 %7820
        %v7823 = vunpack.c.l.b16 %v7756
        %v7824 = vpack.c.b16 %v7823, %v7823
        %7825 = vrot.lane.b32.xlu0 %v7824, 112
        %v7826 = vpop.permute.xlu0 %7825
        %v7829 = vsel %vm1206, %v7670, %v7761
        %v7831 = vsel %vm1210, %v7829, %v7766
        %v7833 = vsel %vm1213, %v7831, %v7771
        %v7835 = vsel %vm1216, %v7833, %v7776
        %v7837 = vsel %vm1219, %v7835, %v7781
        %v7839 = vsel %vm1222, %v7837, %v7786
        %v7841 = vsel %vm1225, %v7839, %v7791
        %v7844 = vsel %vm1206, %v7722, %v7796
        %v7846 = vsel %vm1210, %v7844, %v7801
        %v7848 = vsel %vm1213, %v7846, %v7806
        %v7850 = vsel %vm1216, %v7848, %v7811
        %v7852 = vsel %vm1219, %v7850, %v7816
        %v7854 = vsel %vm1222, %v7852, %v7821
        %v7856 = vsel %vm1225, %v7854, %v7826
        %s7857 = scalar_lea.vmem %s7, 14
        %v7858 = vld [vmem:[%s7857] sm:$0x3]
        %v7860 = vsel %vm5728, %v7858, 0
        %v7862 = vsel %vm5732, %v7841, 0
        %v7864 = vsel %vm5732, %v7856, 0
        %7866 = vmatpush.bf16.msra.mxu0 0
        %7867 = vmatpush.bf16.msra.mxu0 0
        %7868 = vmatpush.bf16.msra.mxu0 0
        %7869 = vmatpush.bf16.msra.mxu0 0
        %7870 = vmatpush.bf16.msra.mxu0 0
        %7871 = vmatpush.bf16.msra.mxu0 0
        %7872 = vmatpush.bf16.msra.mxu0 0
        %7873 = vmatpush.bf16.msra.mxu0 %v7862
        %7874 = vmatmul.bf16.gmra.mxu0 %v7860
        %v7875 = vpop.f32.mrf.mxu0
        %v7876 = vadd.f32 0.0, %v7875
        %v7877 = vpop.f32.mrf.mxu0
        %7878 = vdwg.mxu0
        %7879 = vmatpush.bf16.msra.mxu0 0
        %7880 = vmatpush.bf16.msra.mxu0 0
        %7881 = vmatpush.bf16.msra.mxu0 0
        %7882 = vmatpush.bf16.msra.mxu0 0
        %7883 = vmatpush.bf16.msra.mxu0 0
        %7884 = vmatpush.bf16.msra.mxu0 0
        %7885 = vmatpush.bf16.msra.mxu0 0
        %7886 = vmatpush.bf16.msra.mxu0 %v7864
        %7887 = vmatmul.bf16.gmra.mxu0 %v7860
        %v7888 = vpop.f32.mrf.mxu0
        %v7889 = vadd.f32 0.0, %v7888
        %v7890 = vpop.f32.mrf.mxu0
        %7891 = vdwg.mxu0
        %v7892 = vadd.f32 %v7559, %v7876
        %v7893 = vadd.f32 %v7560, %v7889
        %v7894 = vld [vmem:[#allocation3] sm:$0xe]
        %v7895 = vld [vmem:[#allocation3 + $0x4] sm:$0xf]
        %v7896 = vld [vmem:[#allocation3 + $0x8] sm:$0x1]
        %v7897 = vld [vmem:[#allocation3 + $0xc] sm:$0xe]
        %v7898 = vld [vmem:[#allocation3 + $0x10] sm:$0xf]
        %v7899 = vld [vmem:[#allocation3 + $0x14] sm:$0x1]
        %v7900 = vld [vmem:[#allocation3 + $0x18] sm:$0xe]
        %v7901 = vld [vmem:[#allocation3 + $0x1c] sm:$0xf]
        %v7902 = vld [vmem:[#allocation3 + $0x20] sm:$0x1]
        %v7903 = vld [vmem:[#allocation3 + $0x24] sm:$0xe]
        %v7904 = vld [vmem:[#allocation3 + $0x28] sm:$0xf]
        %v7905 = vld [vmem:[#allocation3 + $0x2c] sm:$0x1]
        %v7918 = vrot.slane %v7894, 5
        %v7919 = vrot.slane %v7918, 4
        %v7920 = vrot.slane %v7895, 5
        %v7921 = vsel %vm3648, %v7919, %v7920
        %v7922 = vrot.slane %v7920, 4
        %v7923 = vrot.slane %v7896, 5
        %v7924 = vsel %vm3648, %v7922, %v7923
        %v7925 = vrot.slane %v7897, 5
        %v7926 = vrot.slane %v7925, 4
        %v7927 = vrot.slane %v7898, 5
        %v7928 = vsel %vm3648, %v7926, %v7927
        %v7929 = vrot.slane %v7927, 4
        %v7930 = vrot.slane %v7899, 5
        %v7931 = vsel %vm3648, %v7929, %v7930
        %v7932 = vrot.slane %v7900, 5
        %v7933 = vrot.slane %v7932, 4
        %v7934 = vrot.slane %v7901, 5
        %v7935 = vsel %vm3648, %v7933, %v7934
        %v7936 = vrot.slane %v7934, 4
        %v7937 = vrot.slane %v7902, 5
        %v7938 = vsel %vm3648, %v7936, %v7937
        %v7939 = vrot.slane %v7903, 5
        %v7940 = vrot.slane %v7939, 4
        %v7941 = vrot.slane %v7904, 5
        %v7942 = vsel %vm3648, %v7940, %v7941
        %v7943 = vrot.slane %v7941, 4
        %v7944 = vrot.slane %v7905, 5
        %v7945 = vsel %vm3648, %v7943, %v7944
        %7946 = vrot.lane.b32.xlu0 %v7921, 126
        %v7947 = vpop.permute.xlu0 %7946
        %7948 = vrot.lane.b32.xlu0 %v7924, 126
        %v7949 = vpop.permute.xlu0 %7948
        %7950 = vrot.lane.b32.xlu0 %v7928, 126
        %v7951 = vpop.permute.xlu0 %7950
        %7952 = vrot.lane.b32.xlu0 %v7931, 126
        %v7953 = vpop.permute.xlu0 %7952
        %7954 = vrot.lane.b32.xlu0 %v7935, 126
        %v7955 = vpop.permute.xlu0 %7954
        %7956 = vrot.lane.b32.xlu0 %v7938, 126
        %v7957 = vpop.permute.xlu0 %7956
        %7958 = vrot.lane.b32.xlu0 %v7942, 126
        %v7959 = vpop.permute.xlu0 %7958
        %7960 = vrot.lane.b32.xlu0 %v7945, 126
        %v7961 = vpop.permute.xlu0 %7960
        %v7964 = vpack.i.b16 %v7951, %v7947
        %v7965 = vshrl.u32 %v7947, 16
        %v7966 = vshrl.u32 %v7951, 16
        %v7967 = vpack.i.b16 %v7966, %v7965
        %v7970 = vpack.i.b16 %v7959, %v7955
        %v7971 = vshrl.u32 %v7955, 16
        %v7972 = vshrl.u32 %v7959, 16
        %v7973 = vpack.i.b16 %v7972, %v7971
        %v7976 = vpack.i.b16 %v7953, %v7949
        %v7977 = vshrl.u32 %v7949, 16
        %v7978 = vshrl.u32 %v7953, 16
        %v7979 = vpack.i.b16 %v7978, %v7977
        %v7982 = vpack.i.b16 %v7961, %v7957
        %v7983 = vshrl.u32 %v7957, 16
        %v7984 = vshrl.u32 %v7961, 16
        %v7985 = vpack.i.b16 %v7984, %v7983
        %v7988 = vunpack.c.l.s4 1983009808
        %v7989 = vunpack.c.0.s8 %v7988
        %v7990 = vperm.slane %v7964, %v7989
        %v7993 = vunpack.c.l.s4 1983009808
        %v7994 = vunpack.c.0.s8 %v7993
        %v7995 = vperm.slane %v7970, %v7994
        %v7996 = vrot.slane %v7995, 4
        %v7997 = vsel %vm990, %v7996, %v7990
        %v7998 = vrot.slane %v7990, 4
        %v7999 = vsel %vm990, %v7995, %v7998
        %v8001 = vunpack.c.l.s4 1934713408
        %v8002 = vunpack.c.0.s8 %v8001
        %v8003 = vperm.slane %v7997, %v8002
        %v8005 = vunpack.c.l.s4 1934713408
        %v8006 = vunpack.c.0.s8 %v8005
        %v8007 = vperm.slane %v7999, %v8006
        %v8008 = vrot.slane %v8003, 4
        %v8009 = vsel %vm990, 0, %v8008
        %v8010 = vrot.slane %v8007, 4
        %v8011 = vsel %vm990, 0, %v8010
        %v8014 = vunpack.c.l.s4 1983009808
        %v8015 = vunpack.c.0.s8 %v8014
        %v8016 = vperm.slane %v7967, %v8015
        %v8019 = vunpack.c.l.s4 1983009808
        %v8020 = vunpack.c.0.s8 %v8019
        %v8021 = vperm.slane %v7973, %v8020
        %v8022 = vrot.slane %v8021, 4
        %v8023 = vsel %vm990, %v8022, %v8016
        %v8024 = vrot.slane %v8016, 4
        %v8025 = vsel %vm990, %v8021, %v8024
        %v8027 = vunpack.c.l.s4 1934713408
        %v8028 = vunpack.c.0.s8 %v8027
        %v8029 = vperm.slane %v8023, %v8028
        %v8031 = vunpack.c.l.s4 1934713408
        %v8032 = vunpack.c.0.s8 %v8031
        %v8033 = vperm.slane %v8025, %v8032
        %v8034 = vrot.slane %v8029, 4
        %v8035 = vsel %vm990, 0, %v8034
        %v8036 = vrot.slane %v8033, 4
        %v8037 = vsel %vm990, 0, %v8036
        %v8040 = vunpack.c.l.s4 1983009808
        %v8041 = vunpack.c.0.s8 %v8040
        %v8042 = vperm.slane %v7976, %v8041
        %v8045 = vunpack.c.l.s4 1983009808
        %v8046 = vunpack.c.0.s8 %v8045
        %v8047 = vperm.slane %v7982, %v8046
        %v8048 = vrot.slane %v8047, 4
        %v8049 = vsel %vm990, %v8048, %v8042
        %v8050 = vrot.slane %v8042, 4
        %v8051 = vsel %vm990, %v8047, %v8050
        %v8053 = vunpack.c.l.s4 1934713408
        %v8054 = vunpack.c.0.s8 %v8053
        %v8055 = vperm.slane %v8049, %v8054
        %v8057 = vunpack.c.l.s4 1934713408
        %v8058 = vunpack.c.0.s8 %v8057
        %v8059 = vperm.slane %v8051, %v8058
        %v8060 = vrot.slane %v8055, 4
        %v8061 = vsel %vm990, 0, %v8060
        %v8062 = vrot.slane %v8059, 4
        %v8063 = vsel %vm990, 0, %v8062
        %v8066 = vunpack.c.l.s4 1983009808
        %v8067 = vunpack.c.0.s8 %v8066
        %v8068 = vperm.slane %v7979, %v8067
        %v8071 = vunpack.c.l.s4 1983009808
        %v8072 = vunpack.c.0.s8 %v8071
        %v8073 = vperm.slane %v7985, %v8072
        %v8074 = vrot.slane %v8073, 4
        %v8075 = vsel %vm990, %v8074, %v8068
        %v8076 = vrot.slane %v8068, 4
        %v8077 = vsel %vm990, %v8073, %v8076
        %v8079 = vunpack.c.l.s4 1934713408
        %v8080 = vunpack.c.0.s8 %v8079
        %v8081 = vperm.slane %v8075, %v8080
        %v8083 = vunpack.c.l.s4 1934713408
        %v8084 = vunpack.c.0.s8 %v8083
        %v8085 = vperm.slane %v8077, %v8084
        %v8086 = vrot.slane %v8081, 4
        %v8087 = vsel %vm990, 0, %v8086
        %v8088 = vrot.slane %v8085, 4
        %v8089 = vsel %vm990, 0, %v8088
        %v8091 = vunpack.c.l.b16 %v8029
        %v8092 = vpack.c.b16 %v8091, %v8091
        %8093 = vrot.lane.b32.xlu0 %v8092, 16
        %v8094 = vpop.permute.xlu0 %8093
        %v8096 = vunpack.c.l.b16 %v8009
        %v8097 = vpack.c.b16 %v8096, %v8096
        %8098 = vrot.lane.b32.xlu0 %v8097, 32
        %v8099 = vpop.permute.xlu0 %8098
        %v8101 = vunpack.c.l.b16 %v8035
        %v8102 = vpack.c.b16 %v8101, %v8101
        %8103 = vrot.lane.b32.xlu0 %v8102, 48
        %v8104 = vpop.permute.xlu0 %8103
        %v8106 = vunpack.c.l.b16 %v8007
        %v8107 = vpack.c.b16 %v8106, %v8106
        %8108 = vrot.lane.b32.xlu0 %v8107, 64
        %v8109 = vpop.permute.xlu0 %8108
        %v8111 = vunpack.c.l.b16 %v8033
        %v8112 = vpack.c.b16 %v8111, %v8111
        %8113 = vrot.lane.b32.xlu0 %v8112, 80
        %v8114 = vpop.permute.xlu0 %8113
        %v8116 = vunpack.c.l.b16 %v8011
        %v8117 = vpack.c.b16 %v8116, %v8116
        %8118 = vrot.lane.b32.xlu0 %v8117, 96
        %v8119 = vpop.permute.xlu0 %8118
        %v8121 = vunpack.c.l.b16 %v8037
        %v8122 = vpack.c.b16 %v8121, %v8121
        %8123 = vrot.lane.b32.xlu0 %v8122, 112
        %v8124 = vpop.permute.xlu0 %8123
        %v8126 = vunpack.c.l.b16 %v8081
        %v8127 = vpack.c.b16 %v8126, %v8126
        %8128 = vrot.lane.b32.xlu0 %v8127, 16
        %v8129 = vpop.permute.xlu0 %8128
        %v8131 = vunpack.c.l.b16 %v8061
        %v8132 = vpack.c.b16 %v8131, %v8131
        %8133 = vrot.lane.b32.xlu0 %v8132, 32
        %v8134 = vpop.permute.xlu0 %8133
        %v8136 = vunpack.c.l.b16 %v8087
        %v8137 = vpack.c.b16 %v8136, %v8136
        %8138 = vrot.lane.b32.xlu0 %v8137, 48
        %v8139 = vpop.permute.xlu0 %8138
        %v8141 = vunpack.c.l.b16 %v8059
        %v8142 = vpack.c.b16 %v8141, %v8141
        %8143 = vrot.lane.b32.xlu0 %v8142, 64
        %v8144 = vpop.permute.xlu0 %8143
        %v8146 = vunpack.c.l.b16 %v8085
        %v8147 = vpack.c.b16 %v8146, %v8146
        %8148 = vrot.lane.b32.xlu0 %v8147, 80
        %v8149 = vpop.permute.xlu0 %8148
        %v8151 = vunpack.c.l.b16 %v8063
        %v8152 = vpack.c.b16 %v8151, %v8151
        %8153 = vrot.lane.b32.xlu0 %v8152, 96
        %v8154 = vpop.permute.xlu0 %8153
        %v8156 = vunpack.c.l.b16 %v8089
        %v8157 = vpack.c.b16 %v8156, %v8156
        %8158 = vrot.lane.b32.xlu0 %v8157, 112
        %v8159 = vpop.permute.xlu0 %8158
        %v8162 = vsel %vm1206, %v8003, %v8094
        %v8164 = vsel %vm1210, %v8162, %v8099
        %v8166 = vsel %vm1213, %v8164, %v8104
        %v8168 = vsel %vm1216, %v8166, %v8109
        %v8170 = vsel %vm1219, %v8168, %v8114
        %v8172 = vsel %vm1222, %v8170, %v8119
        %v8174 = vsel %vm1225, %v8172, %v8124
        %v8177 = vsel %vm1206, %v8055, %v8129
        %v8179 = vsel %vm1210, %v8177, %v8134
        %v8181 = vsel %vm1213, %v8179, %v8139
        %v8183 = vsel %vm1216, %v8181, %v8144
        %v8185 = vsel %vm1219, %v8183, %v8149
        %v8187 = vsel %vm1222, %v8185, %v8154
        %v8189 = vsel %vm1225, %v8187, %v8159
        %s8190 = scalar_lea.vmem %s7, 16
        %v8191 = vld [vmem:[%s8190] sm:$0x3]
        %v8193 = vsel %vm5728, %v8191, 0
        %v8195 = vsel %vm5732, %v8174, 0
        %v8197 = vsel %vm5732, %v8189, 0
        %8199 = vmatpush.bf16.msra.mxu0 0
        %8200 = vmatpush.bf16.msra.mxu0 0
        %8201 = vmatpush.bf16.msra.mxu0 0
        %8202 = vmatpush.bf16.msra.mxu0 0
        %8203 = vmatpush.bf16.msra.mxu0 0
        %8204 = vmatpush.bf16.msra.mxu0 0
        %8205 = vmatpush.bf16.msra.mxu0 0
        %8206 = vmatpush.bf16.msra.mxu0 %v8195
        %8207 = vmatmul.bf16.gmra.mxu0 %v8193
        %v8208 = vpop.f32.mrf.mxu0
        %v8209 = vadd.f32 0.0, %v8208
        %v8210 = vpop.f32.mrf.mxu0
        %8211 = vdwg.mxu0
        %8212 = vmatpush.bf16.msra.mxu0 0
        %8213 = vmatpush.bf16.msra.mxu0 0
        %8214 = vmatpush.bf16.msra.mxu0 0
        %8215 = vmatpush.bf16.msra.mxu0 0
        %8216 = vmatpush.bf16.msra.mxu0 0
        %8217 = vmatpush.bf16.msra.mxu0 0
        %8218 = vmatpush.bf16.msra.mxu0 0
        %8219 = vmatpush.bf16.msra.mxu0 %v8197
        %8220 = vmatmul.bf16.gmra.mxu0 %v8193
        %v8221 = vpop.f32.mrf.mxu0
        %v8222 = vadd.f32 0.0, %v8221
        %v8223 = vpop.f32.mrf.mxu0
        %8224 = vdwg.mxu0
        %v8225 = vadd.f32 %v7892, %v8209
        %v8226 = vadd.f32 %v7893, %v8222
        %v8227 = vld [vmem:[%s8] sm:$0xf]
        %8229 = vset.pattern.permute.xlu0 0
        %8230 = vperm.xlu0 %8229, %v8227
        %v8231 = vpop.permute.xlu0 %8230
        %v8233 = vmul.f32 %v8225, %v8231
        %v8234 = vmul.f32 %v8226, %v8231
        %v8235 = vld [vmem:[%s9] sm:$0xf]
        %8237 = vset.pattern.permute.xlu0 0
        %8238 = vperm.xlu0 %8237, %v8235
        %v8239 = vpop.permute.xlu0 %8238
        %v8241 = vadd.f32 %v8233, %v8239
        %v8242 = vadd.f32 %v8234, %v8239
        %v8243 = vmax.f32 %v8241, 0.0
        %v8244 = vmax.f32 %v8242, 0.0
        %v8247 = vrot.slane %v8244, 4
        %v8248 = vsel %vm1559, %v8243, %v8247
        %8250 = vst [vmem:[%s423] sm:$0xff] %v8248
        %p8251 = scmp.lt.s32.totalorder %s27, 1
        %s8252 = scalar_select %p8251, %s27, 1
        %s8253 = smul.addr %s8252, 2
        %s8254 = smul.addr %s8253, 4
        %s8255 = scalar_lea.vmem %s10, %s8254
        // Predicated region
        $region69: #{up_forward.1} parent=59 // pred_check
          %p8256 = pneg %p265
        $region70: #{up_forward.1} parent=59 // pred_check_branch
          %8258 = sbr.rel (%p8256) target = $region72
        $region71: #{up_forward.1} parent=59 // pred_region
          _
        $region72: #{up_forward.1} parent=59 // pred_fallthru
          _
      $region60: #{up_forward.1} parent=5 // pred_fallthru
        _
      %p8259 = scmp.le.s32.totalorder 2, %s22
      // Predicated region
      $region73: #{up_forward.1} parent=5 // pred_check
        %p8260 = pneg %p8259
      $region74: #{up_forward.1} parent=5 // pred_check_branch
        %8262 = sbr.rel (%p8260) target = $region76
      $region75: #{up_forward.1} parent=5 // pred_region
        %s8263 = ssub.s32 %s22, 2
        // Predicated region
        $region77: #{up_forward.1} parent=75 // pred_check
          %p8264 = pneg %p271
        $region78: #{up_forward.1} parent=75 // pred_check_branch
          %8266 = sbr.rel (%p8264) target = $region80
        $region79: #{up_forward.1} parent=75 // pred_region
          %p8267 = scmp.lt.s32.totalorder %s28, 1
          %s8268 = scalar_select %p8267, %s28, 1
          %s8269 = smul.addr %s8268, 2
          %s8270 = smul.addr %s8269, 4
          %s8271 = scalar_lea.vmem %s10, %s8270
        $region80: #{up_forward.1} parent=75 // pred_fallthru
          _
      $region76: #{up_forward.1} parent=5 // pred_fallthru
        _
    $region6: #{up_forward.1} parent=1 // loop_footer
      %s26 = sadd.s32 1, %s22
    $region7: #{up_forward.1} parent=1 // loop_footer_branch
      %21 = sbr.rel target = $region3
    $region8: #{up_forward.1} parent=1 // loop_exit
      _
    %8272 = vsyncpa [#allocation5], 1
    %s8273 = scalar_lea.sflag [#allocation5], 1
    %8274 = vsyncpa %s8273, 1
    %8275 = vsyncpa [#allocation7], 1
    %s8276 = scalar_lea.sflag [#allocation7], 1
    %8277 = vsyncpa %s8276, 1

</llo_original>
